<compile_context>
chip_gen: v7x
topology: tpu7x:2x2x1
jax: 0.10.0
libtpu: 0.0.40
codegen_flags: <defaults>
</compile_context>

<pallas_src>
import functools

import jax
import jax.numpy as jnp
from jax.experimental import pallas as pl
from jax.experimental.pallas import tpu as pltpu

EPS = 1e-5
VMEM_LIMIT_BYTES = 32 * 1024 * 1024


def _round_up(x, m):
    return ((x + m - 1) // m) * m


# ---------------------------------------------------------------------------
# Pallas kernels (channel-on-sublane layout: rows = channels, lanes = spatial)
# ---------------------------------------------------------------------------
def bn_stats_kernel(x_ref, w1t_ref, sum_ref, sumsq_ref):
    """Pass 1: per-batch partial per-channel sum / sum-of-squares of W1^T @ x.

    x_ref     : (1, C_in, TS)  f32 tile of the NCDHW input (spatial on lanes)
    w1t_ref   : (N1P, C_in)    bf16 transposed conv1 weight (resident)
    sum_ref   : (1, N1P, 1)    f32 grid-resident accumulator (this batch)
    sumsq_ref : (1, N1P, 1)    f32 grid-resident accumulator (this batch)

    No masking: the wrapper zero-pads the spatial axis and conv1 bias is
    dropped, so padded columns contribute exactly 0 to both accumulators.
    """
    i = pl.program_id(1)

    @pl.when(i == 0)
    def _init():
        sum_ref[...] = jnp.zeros_like(sum_ref)
        sumsq_ref[...] = jnp.zeros_like(sumsq_ref)

    xb = x_ref[0].astype(jnp.bfloat16)                                 # (C_in, TS)
    h = jnp.dot(w1t_ref[...], xb, preferred_element_type=jnp.float32)  # (N1P, TS)
    sum_ref[...] += jnp.sum(h, axis=1, keepdims=True)[None]
    sumsq_ref[...] += jnp.sum(h * h, axis=1, keepdims=True)[None]


def fused_apply_kernel(x_ref, w1t_ref, sum_ref, sumsq_ref, gamma_ref, beta_ref,
                       w2t_ref, b2_ref, o_ref, *, inv_m):
    """Pass 2: outT = W2^T @ relu((W1^T @ x) * scale + shift) + b2, fused.

    BN finalize (mean/var/scale/shift from the per-batch partial sums) is done
    at the top of the kernel on (N1P, 1) vectors -- effectively free -- so no
    XLA glue runs between the two pallas_calls.  The 150-wide intermediate
    never leaves VMEM/vregs.
    """
    s1 = jnp.sum(sum_ref[...], axis=0)          # (N1P, 1) combine batch partials
    s2 = jnp.sum(sumsq_ref[...], axis=0)
    mean = s1 * inv_m
    var = jnp.maximum(s2 * inv_m - mean * mean, 0.0)
    scale = gamma_ref[...] * jax.lax.rsqrt(var + EPS)
    shift = beta_ref[...] - mean * scale

    xb = x_ref[0].astype(jnp.bfloat16)                                 # (C_in, TS)
    h = jnp.dot(w1t_ref[...], xb, preferred_element_type=jnp.float32)  # (N1P, TS)
    h = jnp.maximum(h * scale + shift, 0.0)                            # BN + ReLU
    out = jnp.dot(w2t_ref[...], h.astype(jnp.bfloat16),
                  preferred_element_type=jnp.float32) + b2_ref[...]    # (N2P, TS)
    o_ref[...] = out[None].astype(o_ref.dtype)


# ---------------------------------------------------------------------------
# Forward pass wrapper
# ---------------------------------------------------------------------------
def conv_block_final_double_forward(x, params, *, ts=2048):
    """x: (N, ch_in, D, H, W) float32 NCDHW -> (N, output_ch, D, H, W)."""
    w1 = params["w1"]          # (ch_in, ch_out)       1x1x1 conv as channel matmul
    gamma = params["gamma"]    # (ch_out,)
    beta = params["beta"]      # (ch_out,)
    w2 = params["w2"]          # (ch_out, output_ch)
    b2 = params["b2"]          # (output_ch,)
    # NOTE: params["b1"] (conv1 bias) is intentionally unused: training-mode
    # BatchNorm subtracts the per-channel batch mean, which cancels a
    # per-channel bias exactly (same output, fewer ops, and it makes the
    # zero-padding of the spatial axis statistics-neutral).

    n, c_in, d, hh, ww = x.shape
    c_mid = w1.shape[1]
    c_out = w2.shape[1]
    s = d * hh * ww
    m = n * s

    # Channel-on-sublane: only sublane (8) alignment needed for channel dims.
    n1p = _round_up(c_mid, 8)
    n2p = _round_up(c_out, 8)

    ts = max(128, min(_round_up(ts, 128), _round_up(s, 128)))
    s_pad = _round_up(s, ts)
    num_s_tiles = s_pad // ts

    # NCDHW consumed directly as (N, C_in, S): free reshape, no transpose/cast.
    x3 = x.reshape(n, c_in, s)
    if s_pad != s:
        x3 = jnp.pad(x3, ((0, 0), (0, 0), (0, s_pad - s)))

    f32 = jnp.float32
    w1t = jnp.pad(w1.T, ((0, n1p - c_mid), (0, 0))).astype(jnp.bfloat16)           # (N1P, C_in)
    w2t = jnp.pad(w2.T, ((0, n2p - c_out), (0, n1p - c_mid))).astype(jnp.bfloat16)  # (N2P, N1P)
    gamma_c = jnp.pad(gamma, (0, n1p - c_mid)).reshape(n1p, 1).astype(f32)
    beta_c = jnp.pad(beta, (0, n1p - c_mid)).reshape(n1p, 1).astype(f32)
    b2_c = jnp.pad(b2, (0, n2p - c_out)).reshape(n2p, 1).astype(f32)

    # ---- Pass 1: training-mode BN batch statistics (per-batch partials) -----
    sums, sumsqs = pl.pallas_call(
        bn_stats_kernel,
        out_shape=(jax.ShapeDtypeStruct((n, n1p, 1), f32),
                   jax.ShapeDtypeStruct((n, n1p, 1), f32)),
        grid=(n, num_s_tiles),
        in_specs=[
            pl.BlockSpec((1, c_in, ts), lambda b, i: (b, 0, i)),
            pl.BlockSpec((n1p, c_in), lambda b, i: (0, 0)),
        ],
        out_specs=(pl.BlockSpec((1, n1p, 1), lambda b, i: (b, 0, 0)),
                   pl.BlockSpec((1, n1p, 1), lambda b, i: (b, 0, 0))),
        compiler_params=pltpu.CompilerParams(
            dimension_semantics=("parallel", "arbitrary"),
            vmem_limit_bytes=VMEM_LIMIT_BYTES),
    )(x3, w1t)

    # ---- Pass 2: fused conv1 + BN(finalized in-kernel) + ReLU + conv2 -------
    out_t = pl.pallas_call(
        functools.partial(fused_apply_kernel, inv_m=1.0 / float(m)),
        out_shape=jax.ShapeDtypeStruct((n, n2p, s_pad), f32),
        grid=(n, num_s_tiles),
        in_specs=[
            pl.BlockSpec((1, c_in, ts), lambda b, i: (b, 0, i)),
            pl.BlockSpec((n1p, c_in), lambda b, i: (0, 0)),
            pl.BlockSpec((n, n1p, 1), lambda b, i: (0, 0, 0)),
            pl.BlockSpec((n, n1p, 1), lambda b, i: (0, 0, 0)),
            pl.BlockSpec((n1p, 1), lambda b, i: (0, 0)),
            pl.BlockSpec((n1p, 1), lambda b, i: (0, 0)),
            pl.BlockSpec((n2p, n1p), lambda b, i: (0, 0)),
            pl.BlockSpec((n2p, 1), lambda b, i: (0, 0)),
        ],
        out_specs=pl.BlockSpec((1, n2p, ts), lambda b, i: (b, 0, i)),
        compiler_params=pltpu.CompilerParams(
            dimension_semantics=("parallel", "parallel"),
            vmem_limit_bytes=VMEM_LIMIT_BYTES),
    )(x3, w1t, sums, sumsqs, gamma_c, beta_c, w2t, b2_c)

    # Output is already channel-major (NCDHW); just drop channel/spatial pad.
    return out_t[:, :c_out, :s].reshape(n, c_out, d, hh, ww)


# ---------------------------------------------------------------------------
# Parameters (deterministic synthetic init) and pure-JAX f32 reference
# ---------------------------------------------------------------------------
def init_params(key, ch_in, ch_out, output_ch):
    k = jax.random.split(key, 6)
    w1 = jax.random.normal(k[0], (ch_in, ch_out), jnp.float32) / jnp.sqrt(float(ch_in))
    b1 = 0.01 * jax.random.normal(k[1], (ch_out,), jnp.float32)
    gamma = 1.0 + 0.1 * jax.random.normal(k[2], (ch_out,), jnp.float32)
    beta = 0.01 * jax.random.normal(k[3], (ch_out,), jnp.float32)
    w2 = jax.random.normal(k[4], (ch_out, output_ch), jnp.float32) / jnp.sqrt(float(ch_out))
    b2 = 0.01 * jax.random.normal(k[5], (output_ch,), jnp.float32)
    return {"w1": w1, "b1": b1, "gamma": gamma, "beta": beta, "w2": w2, "b2": b2}


def reference_forward(x, params):
    """Pure-JAX f32 reference of the PyTorch module (training-mode BN)."""
    n, c_in, d, h_, w_ = x.shape
    xl = jnp.transpose(x, (0, 2, 3, 4, 1)).reshape(-1, c_in).astype(jnp.float32)
    h = xl @ params["w1"] + params["b1"][None, :]
    mean = jnp.mean(h, axis=0, keepdims=True)
    var = jnp.mean((h - mean) ** 2, axis=0, keepdims=True)
    h = (h - mean) * (params["gamma"][None, :] * jax.lax.rsqrt(var + EPS)) \
        + params["beta"][None, :]
    h = jnp.maximum(h, 0.0)
    o = h @ params["w2"] + params["b2"][None, :]
    c_out = params["w2"].shape[1]
    o = o.reshape(n, d, h_, w_, c_out)
    return jnp.transpose(o, (0, 4, 1, 2, 3))


# ---------------------------------------------------------------------------
if __name__ == "__main__":
    key = jax.random.PRNGKey(0)
    kx, kp = jax.random.split(key)

    N, CH_IN, CH_OUT, OUT_CH = 2, 128, 150, 2
    D = H = W = 16                                   # S = 4096, M = 8192 rows
    x = jax.random.normal(kx, (N, CH_IN, D, H, W), jnp.float32)
    params = init_params(kp, CH_IN, CH_OUT, OUT_CH)

    fwd = jax.jit(conv_block_final_double_forward, static_argnames=("ts",))
    out = fwd(x, params)
    jax.block_until_ready(out)
    assert out.shape == (N, OUT_CH, D, H, W), out.shape

    ref = reference_forward(x, params)
    err = float(jnp.max(jnp.abs(out - ref)))
    # Loose tolerance: kernel uses bf16 matmul operands (f32 accumulation/BN).
    assert err < 1e-1, f"max abs error vs f32 reference: {err}"
    print("KERNEL_OK")
</pallas_src>

<mosaic_0001>
module attributes {stable_mosaic.version = 11 : i64} {
  func.func @fused_apply_kernel(%arg0: i32, %arg1: i32, %arg2: memref<1x128x2048xf32, #tpu.memory_space<vmem>>, %arg3: memref<152x128xbf16, #tpu.memory_space<vmem>>, %arg4: memref<2x152x1xf32, #tpu.memory_space<vmem>>, %arg5: memref<2x152x1xf32, #tpu.memory_space<vmem>>, %arg6: memref<152x1xf32, #tpu.memory_space<vmem>>, %arg7: memref<152x1xf32, #tpu.memory_space<vmem>>, %arg8: memref<8x152xbf16, #tpu.memory_space<vmem>>, %arg9: memref<8x1xf32, #tpu.memory_space<vmem>>, %arg10: memref<1x8x2048xf32, #tpu.memory_space<vmem>>) attributes {dimension_semantics = [#tpu.dimension_semantics<parallel>, #tpu.dimension_semantics<parallel>], iteration_bounds = array<i64: 2, 2>, scalar_prefetch = 0 : i64, scratch_operands = 0 : i64, tpu.core_type = #tpu.core_type<tc>, window_params = [{transform_indices = @transform_0, window_bounds = array<i64: 1, 128, 2048>}, {pipeline_mode = #tpu.pipeline_mode<synchronous>, transform_indices = @transform_1, window_bounds = array<i64: 152, 128>}, {pipeline_mode = #tpu.pipeline_mode<synchronous>, transform_indices = @transform_2, window_bounds = array<i64: 2, 152, 1>}, {pipeline_mode = #tpu.pipeline_mode<synchronous>, transform_indices = @transform_3, window_bounds = array<i64: 2, 152, 1>}, {pipeline_mode = #tpu.pipeline_mode<synchronous>, transform_indices = @transform_4, window_bounds = array<i64: 152, 1>}, {pipeline_mode = #tpu.pipeline_mode<synchronous>, transform_indices = @transform_5, window_bounds = array<i64: 152, 1>}, {pipeline_mode = #tpu.pipeline_mode<synchronous>, transform_indices = @transform_6, window_bounds = array<i64: 8, 152>}, {pipeline_mode = #tpu.pipeline_mode<synchronous>, transform_indices = @transform_7, window_bounds = array<i64: 8, 1>}, {transform_indices = @transform_8, window_bounds = array<i64: 1, 8, 2048>}]} {
    %c0 = arith.constant 0 : index
    %c0_0 = arith.constant 0 : index
    %c0_1 = arith.constant 0 : index
    %0 = vector.load %arg4[%c0, %c0_0, %c0_1] : memref<2x152x1xf32, #tpu.memory_space<vmem>>, vector<2x152x1xf32>
    %cst = arith.constant dense<0.000000e+00> : vector<152x1xf32>
    %1 = vector.multi_reduction <add>, %0, %cst [0] : vector<2x152x1xf32> to vector<152x1xf32>
    %c0_2 = arith.constant 0 : index
    %c0_3 = arith.constant 0 : index
    %c0_4 = arith.constant 0 : index
    %2 = vector.load %arg5[%c0_2, %c0_3, %c0_4] : memref<2x152x1xf32, #tpu.memory_space<vmem>>, vector<2x152x1xf32>
    %cst_5 = arith.constant dense<0.000000e+00> : vector<152x1xf32>
    %3 = vector.multi_reduction <add>, %2, %cst_5 [0] : vector<2x152x1xf32> to vector<152x1xf32>
    %cst_6 = arith.constant 1.22070313E-4 : f32
    %4 = vector.broadcast %cst_6 : f32 to vector<152x1xf32>
    %5 = arith.mulf %1, %4 : vector<152x1xf32>
    %cst_7 = arith.constant 1.22070313E-4 : f32
    %6 = vector.broadcast %cst_7 : f32 to vector<152x1xf32>
    %7 = arith.mulf %3, %6 : vector<152x1xf32>
    %8 = arith.mulf %5, %5 : vector<152x1xf32>
    %9 = arith.subf %7, %8 : vector<152x1xf32>
    %cst_8 = arith.constant 0.000000e+00 : f32
    %10 = vector.broadcast %cst_8 : f32 to vector<152x1xf32>
    %11 = arith.maximumf %9, %10 : vector<152x1xf32>
    %c0_9 = arith.constant 0 : index
    %c0_10 = arith.constant 0 : index
    %12 = vector.load %arg6[%c0_9, %c0_10] : memref<152x1xf32, #tpu.memory_space<vmem>>, vector<152x1xf32>
    %cst_11 = arith.constant 9.99999974E-6 : f32
    %13 = vector.broadcast %cst_11 : f32 to vector<152x1xf32>
    %14 = arith.addf %11, %13 : vector<152x1xf32>
    %15 = math.rsqrt %14 : vector<152x1xf32>
    %16 = arith.mulf %12, %15 : vector<152x1xf32>
    %c0_12 = arith.constant 0 : index
    %c0_13 = arith.constant 0 : index
    %17 = vector.load %arg7[%c0_12, %c0_13] : memref<152x1xf32, #tpu.memory_space<vmem>>, vector<152x1xf32>
    %18 = arith.mulf %5, %16 : vector<152x1xf32>
    %19 = arith.subf %17, %18 : vector<152x1xf32>
    %c0_14 = arith.constant 0 : index
    %c0_15 = arith.constant 0 : index
    %c0_16 = arith.constant 0 : index
    %20 = vector.load %arg2[%c0_14, %c0_15, %c0_16] : memref<1x128x2048xf32, #tpu.memory_space<vmem>>, vector<1x128x2048xf32>
    %21 = vector.shape_cast %20 : vector<1x128x2048xf32> to vector<128x2048xf32>
    %22 = arith.truncf %21 : vector<128x2048xf32> to vector<128x2048xbf16>
    %c0_17 = arith.constant 0 : index
    %c0_18 = arith.constant 0 : index
    %23 = vector.load %arg3[%c0_17, %c0_18] : memref<152x128xbf16, #tpu.memory_space<vmem>>, vector<152x128xbf16>
    %cst_19 = arith.constant dense<0.000000e+00> : vector<152x2048xf32>
    %24 = tpu.matmul %23, %22, %cst_19 {dimension_numbers = #tpu.dot_dimension_numbers<[1], [0], [0], [1], [0, 0, 1, 1], [], []>} : vector<152x128xbf16>, vector<128x2048xbf16>, vector<152x2048xf32> -> vector<152x2048xf32>
    %25 = vector.broadcast %16 : vector<152x1xf32> to vector<152x2048xf32>
    %26 = arith.mulf %24, %25 : vector<152x2048xf32>
    %27 = vector.broadcast %19 : vector<152x1xf32> to vector<152x2048xf32>
    %28 = arith.addf %26, %27 : vector<152x2048xf32>
    %cst_20 = arith.constant 0.000000e+00 : f32
    %29 = vector.broadcast %cst_20 : f32 to vector<152x2048xf32>
    %30 = arith.maximumf %28, %29 : vector<152x2048xf32>
    %c0_21 = arith.constant 0 : index
    %c0_22 = arith.constant 0 : index
    %31 = vector.load %arg8[%c0_21, %c0_22] : memref<8x152xbf16, #tpu.memory_space<vmem>>, vector<8x152xbf16>
    %32 = arith.truncf %30 : vector<152x2048xf32> to vector<152x2048xbf16>
    %cst_23 = arith.constant dense<0.000000e+00> : vector<8x2048xf32>
    %33 = tpu.matmul %31, %32, %cst_23 {dimension_numbers = #tpu.dot_dimension_numbers<[1], [0], [0], [1], [0, 0, 1, 1], [], []>} : vector<8x152xbf16>, vector<152x2048xbf16>, vector<8x2048xf32> -> vector<8x2048xf32>
    %c0_24 = arith.constant 0 : index
    %c0_25 = arith.constant 0 : index
    %34 = vector.load %arg9[%c0_24, %c0_25] : memref<8x1xf32, #tpu.memory_space<vmem>>, vector<8x1xf32>
    %35 = vector.broadcast %34 : vector<8x1xf32> to vector<8x2048xf32>
    %36 = arith.addf %33, %35 : vector<8x2048xf32>
    %37 = vector.shape_cast %36 : vector<8x2048xf32> to vector<1x8x2048xf32>
    %c0_26 = arith.constant 0 : index
    %c0_27 = arith.constant 0 : index
    %c0_28 = arith.constant 0 : index
    %38 = vector.load %arg10[%c0_26, %c0_27, %c0_28] : memref<1x8x2048xf32, #tpu.memory_space<vmem>>, vector<1x8x2048xf32>
    tpu.vector_store %arg10[%c0_26, %c0_27, %c0_28], %37 {strides = array<i32>} : memref<1x8x2048xf32, #tpu.memory_space<vmem>>, vector<1x8x2048xf32>,
    return
  }
  func.func @transform_0(%arg0: i32, %arg1: i32) -> (i32, i32, i32) {
    %c0_i32 = arith.constant 0 : i32
    %c0_i32_0 = arith.constant 0 : i32
    return %arg0, %c0_i32, %arg1 : i32, i32, i32
  }
  func.func @transform_1(%arg0: i32, %arg1: i32) -> (i32, i32) {
    %c0_i32 = arith.constant 0 : i32
    %c0_i32_0 = arith.constant 0 : i32
    %c0_i32_1 = arith.constant 0 : i32
    return %c0_i32, %c0_i32_0 : i32, i32
  }
  func.func @transform_2(%arg0: i32, %arg1: i32) -> (i32, i32, i32) {
    %c0_i32 = arith.constant 0 : i32
    %c0_i32_0 = arith.constant 0 : i32
    %c0_i32_1 = arith.constant 0 : i32
    %c0_i32_2 = arith.constant 0 : i32
    return %c0_i32, %c0_i32_0, %c0_i32_1 : i32, i32, i32
  }
  func.func @transform_3(%arg0: i32, %arg1: i32) -> (i32, i32, i32) {
    %c0_i32 = arith.constant 0 : i32
    %c0_i32_0 = arith.constant 0 : i32
    %c0_i32_1 = arith.constant 0 : i32
    %c0_i32_2 = arith.constant 0 : i32
    return %c0_i32, %c0_i32_0, %c0_i32_1 : i32, i32, i32
  }
  func.func @transform_4(%arg0: i32, %arg1: i32) -> (i32, i32) {
    %c0_i32 = arith.constant 0 : i32
    %c0_i32_0 = arith.constant 0 : i32
    %c0_i32_1 = arith.constant 0 : i32
    return %c0_i32, %c0_i32_0 : i32, i32
  }
  func.func @transform_5(%arg0: i32, %arg1: i32) -> (i32, i32) {
    %c0_i32 = arith.constant 0 : i32
    %c0_i32_0 = arith.constant 0 : i32
    %c0_i32_1 = arith.constant 0 : i32
    return %c0_i32, %c0_i32_0 : i32, i32
  }
  func.func @transform_6(%arg0: i32, %arg1: i32) -> (i32, i32) {
    %c0_i32 = arith.constant 0 : i32
    %c0_i32_0 = arith.constant 0 : i32
    %c0_i32_1 = arith.constant 0 : i32
    return %c0_i32, %c0_i32_0 : i32, i32
  }
  func.func @transform_7(%arg0: i32, %arg1: i32) -> (i32, i32) {
    %c0_i32 = arith.constant 0 : i32
    %c0_i32_0 = arith.constant 0 : i32
    %c0_i32_1 = arith.constant 0 : i32
    return %c0_i32, %c0_i32_0 : i32, i32
  }
  func.func @transform_8(%arg0: i32, %arg1: i32) -> (i32, i32, i32) {
    %c0_i32 = arith.constant 0 : i32
    %c0_i32_0 = arith.constant 0 : i32
    return %arg0, %c0_i32, %arg1 : i32, i32, i32
  }
}

module attributes {stable_mosaic.version = 11 : i64} {
  func.func @bn_stats_kernel(%arg0: i32, %arg1: i32, %arg2: memref<1x128x2048xf32, #tpu.memory_space<vmem>>, %arg3: memref<152x128xbf16, #tpu.memory_space<vmem>>, %arg4: memref<1x152x1xf32, #tpu.memory_space<vmem>>, %arg5: memref<1x152x1xf32, #tpu.memory_space<vmem>>) attributes {dimension_semantics = [#tpu.dimension_semantics<parallel>, #tpu.dimension_semantics<arbitrary>], iteration_bounds = array<i64: 2, 2>, scalar_prefetch = 0 : i64, scratch_operands = 0 : i64, tpu.core_type = #tpu.core_type<tc>, window_params = [{transform_indices = @transform_0, window_bounds = array<i64: 1, 128, 2048>}, {pipeline_mode = #tpu.pipeline_mode<synchronous>, transform_indices = @transform_1, window_bounds = array<i64: 152, 128>}, {transform_indices = @transform_2, window_bounds = array<i64: 1, 152, 1>}, {transform_indices = @transform_3, window_bounds = array<i64: 1, 152, 1>}]} {
    %c0_i32 = arith.constant 0 : i32
    %0 = arith.cmpi eq, %arg1, %c0_i32 : i32
    %1 = arith.extui %0 : i1 to i32
    %c0_i32_0 = arith.constant 0 : i32
    %2 = arith.cmpi ne, %1, %c0_i32_0 : i32
    scf.if %2 {
      %cst_19 = arith.constant 0.000000e+00 : f32
      %21 = vector.broadcast %cst_19 : f32 to vector<1x152x1xf32>
      %c0_20 = arith.constant 0 : index
      %c0_21 = arith.constant 0 : index
      %c0_22 = arith.constant 0 : index
      %22 = vector.load %arg4[%c0_20, %c0_21, %c0_22] : memref<1x152x1xf32, #tpu.memory_space<vmem>>, vector<1x152x1xf32>
      tpu.vector_store %arg4[%c0_20, %c0_21, %c0_22], %21 {strides = array<i32>} : memref<1x152x1xf32, #tpu.memory_space<vmem>>, vector<1x152x1xf32>,
      %cst_23 = arith.constant 0.000000e+00 : f32
      %23 = vector.broadcast %cst_23 : f32 to vector<1x152x1xf32>
      %c0_24 = arith.constant 0 : index
      %c0_25 = arith.constant 0 : index
      %c0_26 = arith.constant 0 : index
      %24 = vector.load %arg5[%c0_24, %c0_25, %c0_26] : memref<1x152x1xf32, #tpu.memory_space<vmem>>, vector<1x152x1xf32>
      tpu.vector_store %arg5[%c0_24, %c0_25, %c0_26], %23 {strides = array<i32>} : memref<1x152x1xf32, #tpu.memory_space<vmem>>, vector<1x152x1xf32>,
    } else {
    }
    %c0 = arith.constant 0 : index
    %c0_1 = arith.constant 0 : index
    %c0_2 = arith.constant 0 : index
    %3 = vector.load %arg2[%c0, %c0_1, %c0_2] : memref<1x128x2048xf32, #tpu.memory_space<vmem>>, vector<1x128x2048xf32>
    %4 = vector.shape_cast %3 : vector<1x128x2048xf32> to vector<128x2048xf32>
    %5 = arith.truncf %4 : vector<128x2048xf32> to vector<128x2048xbf16>
    %c0_3 = arith.constant 0 : index
    %c0_4 = arith.constant 0 : index
    %6 = vector.load %arg3[%c0_3, %c0_4] : memref<152x128xbf16, #tpu.memory_space<vmem>>, vector<152x128xbf16>
    %cst = arith.constant dense<0.000000e+00> : vector<152x2048xf32>
    %7 = tpu.matmul %6, %5, %cst {dimension_numbers = #tpu.dot_dimension_numbers<[1], [0], [0], [1], [0, 0, 1, 1], [], []>} : vector<152x128xbf16>, vector<128x2048xbf16>, vector<152x2048xf32> -> vector<152x2048xf32>
    %c0_5 = arith.constant 0 : index
    %c0_6 = arith.constant 0 : index
    %c0_7 = arith.constant 0 : index
    %8 = vector.load %arg4[%c0_5, %c0_6, %c0_7] : memref<1x152x1xf32, #tpu.memory_space<vmem>>, vector<1x152x1xf32>
    %cst_8 = arith.constant dense<0.000000e+00> : vector<152xf32>
    %9 = vector.multi_reduction <add>, %7, %cst_8 [1] : vector<152x2048xf32> to vector<152xf32>
    %10 = vector.shape_cast %9 : vector<152xf32> to vector<152x1xf32>
    %11 = vector.shape_cast %10 : vector<152x1xf32> to vector<1x152x1xf32>
    %12 = arith.addf %8, %11 : vector<1x152x1xf32>
    %c0_9 = arith.constant 0 : index
    %c0_10 = arith.constant 0 : index
    %c0_11 = arith.constant 0 : index
    %13 = vector.load %arg4[%c0_9, %c0_10, %c0_11] : memref<1x152x1xf32, #tpu.memory_space<vmem>>, vector<1x152x1xf32>
    tpu.vector_store %arg4[%c0_9, %c0_10, %c0_11], %12 {strides = array<i32>} : memref<1x152x1xf32, #tpu.memory_space<vmem>>, vector<1x152x1xf32>,
    %c0_12 = arith.constant 0 : index
    %c0_13 = arith.constant 0 : index
    %c0_14 = arith.constant 0 : index
    %14 = vector.load %arg5[%c0_12, %c0_13, %c0_14] : memref<1x152x1xf32, #tpu.memory_space<vmem>>, vector<1x152x1xf32>
    %15 = arith.mulf %7, %7 : vector<152x2048xf32>
    %cst_15 = arith.constant dense<0.000000e+00> : vector<152xf32>
    %16 = vector.multi_reduction <add>, %15, %cst_15 [1] : vector<152x2048xf32> to vector<152xf32>
    %17 = vector.shape_cast %16 : vector<152xf32> to vector<152x1xf32>
    %18 = vector.shape_cast %17 : vector<152x1xf32> to vector<1x152x1xf32>
    %19 = arith.addf %14, %18 : vector<1x152x1xf32>
    %c0_16 = arith.constant 0 : index
    %c0_17 = arith.constant 0 : index
    %c0_18 = arith.constant 0 : index
    %20 = vector.load %arg5[%c0_16, %c0_17, %c0_18] : memref<1x152x1xf32, #tpu.memory_space<vmem>>, vector<1x152x1xf32>
    tpu.vector_store %arg5[%c0_16, %c0_17, %c0_18], %19 {strides = array<i32>} : memref<1x152x1xf32, #tpu.memory_space<vmem>>, vector<1x152x1xf32>,
    return
  }
  func.func @transform_0(%arg0: i32, %arg1: i32) -> (i32, i32, i32) {
    %c0_i32 = arith.constant 0 : i32
    %c0_i32_0 = arith.constant 0 : i32
    return %arg0, %c0_i32, %arg1 : i32, i32, i32
  }
  func.func @transform_1(%arg0: i32, %arg1: i32) -> (i32, i32) {
    %c0_i32 = arith.constant 0 : i32
    %c0_i32_0 = arith.constant 0 : i32
    %c0_i32_1 = arith.constant 0 : i32
    return %c0_i32, %c0_i32_0 : i32, i32
  }
  func.func @transform_2(%arg0: i32, %arg1: i32) -> (i32, i32, i32) {
    %c0_i32 = arith.constant 0 : i32
    %c0_i32_0 = arith.constant 0 : i32
    %c0_i32_1 = arith.constant 0 : i32
    return %arg0, %c0_i32, %c0_i32_0 : i32, i32, i32
  }
  func.func @transform_3(%arg0: i32, %arg1: i32) -> (i32, i32, i32) {
    %c0_i32 = arith.constant 0 : i32
    %c0_i32_0 = arith.constant 0 : i32
    %c0_i32_1 = arith.constant 0 : i32
    return %arg0, %c0_i32, %c0_i32_0 : i32, i32, i32
  }
}

</mosaic_0001>

<llo_original>
// kernel: conv_block_final_double_forward.3
$region0: #{conv_block_final_double_forward.3}
  #allocation0 [shape = 'u32[]', space=smem, size = 0x4, offset = 0x4, fixed_abs, tag = 'smem constant byte address 0x4 - core index']
  #allocation1 [shape = 'u32[144,128]{1,0:T(1,128)}', space=vmem, size = 0x12000, scoped, tag = 'internal scratch']
  %s0 = inlined_call_operand.vmem [shape: f32[2,128,4096], index: 0, kind: input, shape index: {}]
  %s1 = inlined_call_operand.vmem [shape: bf16[152,128], index: 1, kind: input, shape index: {}]
  %s2 = inlined_call_operand.vmem [shape: f32[2,152,1], index: 2, kind: input, shape index: {}]
  %s3 = inlined_call_operand.vmem [shape: f32[2,152,1], index: 3, kind: input, shape index: {}]
  %s4 = inlined_call_operand.vmem [shape: f32[152,1], index: 4, kind: input, shape index: {}]
  %s5 = inlined_call_operand.vmem [shape: f32[152,1], index: 5, kind: input, shape index: {}]
  %s6 = inlined_call_operand.vmem [shape: bf16[8,152], index: 6, kind: input, shape index: {}]
  %s7 = inlined_call_operand.vmem [shape: f32[8,1], index: 7, kind: input, shape index: {}]
  %s8 = inlined_call_operand.vmem [shape: f32[2,8,4096], index: 8, kind: output, shape index: {}]
  %s9 = sld [smem:[#allocation0]]
  $region88: #{conv_block_final_double_forward.3} parent=0
    _
  %s11 = ssub.s32 1, %s9
  %s12 = scalar_select 0, %s11, %s9
  $region1: #{conv_block_final_double_forward.3} parent=0
    #allocation2 [shape = 'u8[2097152]{0}', space=vmem, size = 0x200000, scoped, tag = 'input window, operand 0']
    loop: start=0, step=1, limit=6
    $region2: #{conv_block_final_double_forward.3} parent=1 // loop_pre_header
      _
    $region3: #{conv_block_final_double_forward.3} parent=1 // loop_header
      %s14 = sphi 0, %s18
      %p15 = scmp.ge.s32.totalorder %s14, 6
      %s21 = sphi 0, %s33
      %s22 = sphi 0, %s29
      %s23 = sphi 0, %s21
      %s24 = sphi 0, %s22
      %s25 = sphi 0, %s23
      %s26 = sphi 0, %s24
      %s38 = sphi 0, %s40
      %s41 = sphi 0, %s38
      %s42 = sphi 0, %s41
      %s58 = sphi 0, %s42
      %s62 = sphi 0, %s62
      %s64 = sphi 0, %s62
      %s65 = sphi 0, %s64
      %s79 = sphi 0, %s65
      %s83 = sphi 0, %s83
      %s85 = sphi 0, %s83
      %s86 = sphi 0, %s85
      %s100 = sphi 0, %s86
      %s104 = sphi 0, %s104
      %s106 = sphi 0, %s104
      %s107 = sphi 0, %s106
      %s121 = sphi 0, %s107
      %s125 = sphi 0, %s125
      %s127 = sphi 0, %s125
      %s128 = sphi 0, %s127
      %s142 = sphi 0, %s128
      %s146 = sphi 0, %s146
      %s148 = sphi 0, %s146
      %s149 = sphi 0, %s148
      %s163 = sphi 0, %s149
      %s167 = sphi 0, %s167
      %s169 = sphi 0, %s167
      %s170 = sphi 0, %s169
      %s184 = sphi 0, %s170
      %s188 = sphi 0, %s188
      %s190 = sphi 0, %s188
      %s191 = sphi 0, %s190
      %s205 = sphi 0, %s191
      %s213 = sphi 0, %s215
      %s216 = sphi 0, %s213
      %s217 = sphi 0, %s216
      %s233 = sphi 0, %s217
    $region4: #{conv_block_final_double_forward.3} parent=1 // loop_header_branch
      %17 = sbr.rel (%p15) target = $region8
    $region5: #{conv_block_final_double_forward.3} parent=1 // loop_body
      %s19 = ssub.s32 %s14, 1
      %s20 = ssub.s32 %s14, 2
      %s27 = sadd.s32 1, %s22
      %p28 = scmp.ge.s32.totalorder %s27, 2
      %s29 = scalar_select %p28, 0, %s27
      %s30 = sadd.s32 1, %s21
      %s31 = scalar_select %p28, %s30, %s21
      %p32 = scmp.ge.s32.totalorder %s31, 2
      %s33 = scalar_select %p32, 0, %s31
      %s34 = ssub.s32 %s21, %s33
      %s35 = ssub.s32 %s22, %s29
      %s36 = sor.u32 %s34, %s35
      %p37 = scmp.eq.s32.totalorder %s36, 0
      %s39 = sadd.s32 %s38, 1
      %s40 = scalar_select %p37, %s38, %s39
      %p43 = pneg %p37
      %p44 = scmp.eq.s32.totalorder %s14, 3
      %p45 = por %p43, %p44
      %p46 = scmp.ne.s32.totalorder %s38, %s41
      %p47 = scmp.eq.s32.totalorder %s14, 0
      %p48 = por %p46, %p47
      %p49 = scmp.ne.s32.totalorder %s38, %s41
      %p50 = scmp.eq.s32.totalorder %s19, 3
      %p51 = por %p49, %p50
      %p52 = scmp.ne.s32.totalorder %s41, %s42
      %p53 = scmp.eq.s32.totalorder %s19, 0
      %p54 = por %p52, %p53
      %p55 = scmp.ne.s32.totalorder %s41, %s42
      %p56 = scmp.eq.s32.totalorder %s20, 3
      %p57 = por %p55, %p56
      %p59 = scmp.ne.s32.totalorder %s42, %s58
      %p60 = scmp.eq.s32.totalorder %s20, 0
      %p61 = por %p59, %p60
      %s63 = sadd.s32 %s62, 1
      %p66 = scmp.eq.s32.totalorder %s14, 3
      %p67 = scmp.ne.s32.totalorder %s62, %s64
      %p68 = scmp.eq.s32.totalorder %s14, 0
      %p69 = por %p67, %p68
      %p70 = scmp.ne.s32.totalorder %s62, %s64
      %p71 = scmp.eq.s32.totalorder %s19, 3
      %p72 = por %p70, %p71
      %p73 = scmp.ne.s32.totalorder %s64, %s65
      %p74 = scmp.eq.s32.totalorder %s19, 0
      %p75 = por %p73, %p74
      %p76 = scmp.ne.s32.totalorder %s64, %s65
      %p77 = scmp.eq.s32.totalorder %s20, 3
      %p78 = por %p76, %p77
      %p80 = scmp.ne.s32.totalorder %s65, %s79
      %p81 = scmp.eq.s32.totalorder %s20, 0
      %p82 = por %p80, %p81
      %s84 = sadd.s32 %s83, 1
      %p87 = scmp.eq.s32.totalorder %s14, 3
      %p88 = scmp.ne.s32.totalorder %s83, %s85
      %p89 = scmp.eq.s32.totalorder %s14, 0
      %p90 = por %p88, %p89
      %p91 = scmp.ne.s32.totalorder %s83, %s85
      %p92 = scmp.eq.s32.totalorder %s19, 3
      %p93 = por %p91, %p92
      %p94 = scmp.ne.s32.totalorder %s85, %s86
      %p95 = scmp.eq.s32.totalorder %s19, 0
      %p96 = por %p94, %p95
      %p97 = scmp.ne.s32.totalorder %s85, %s86
      %p98 = scmp.eq.s32.totalorder %s20, 3
      %p99 = por %p97, %p98
      %p101 = scmp.ne.s32.totalorder %s86, %s100
      %p102 = scmp.eq.s32.totalorder %s20, 0
      %p103 = por %p101, %p102
      %s105 = sadd.s32 %s104, 1
      %p108 = scmp.eq.s32.totalorder %s14, 3
      %p109 = scmp.ne.s32.totalorder %s104, %s106
      %p110 = scmp.eq.s32.totalorder %s14, 0
      %p111 = por %p109, %p110
      %p112 = scmp.ne.s32.totalorder %s104, %s106
      %p113 = scmp.eq.s32.totalorder %s19, 3
      %p114 = por %p112, %p113
      %p115 = scmp.ne.s32.totalorder %s106, %s107
      %p116 = scmp.eq.s32.totalorder %s19, 0
      %p117 = por %p115, %p116
      %p118 = scmp.ne.s32.totalorder %s106, %s107
      %p119 = scmp.eq.s32.totalorder %s20, 3
      %p120 = por %p118, %p119
      %p122 = scmp.ne.s32.totalorder %s107, %s121
      %p123 = scmp.eq.s32.totalorder %s20, 0
      %p124 = por %p122, %p123
      %s126 = sadd.s32 %s125, 1
      %p129 = scmp.eq.s32.totalorder %s14, 3
      %p130 = scmp.ne.s32.totalorder %s125, %s127
      %p131 = scmp.eq.s32.totalorder %s14, 0
      %p132 = por %p130, %p131
      %p133 = scmp.ne.s32.totalorder %s125, %s127
      %p134 = scmp.eq.s32.totalorder %s19, 3
      %p135 = por %p133, %p134
      %p136 = scmp.ne.s32.totalorder %s127, %s128
      %p137 = scmp.eq.s32.totalorder %s19, 0
      %p138 = por %p136, %p137
      %p139 = scmp.ne.s32.totalorder %s127, %s128
      %p140 = scmp.eq.s32.totalorder %s20, 3
      %p141 = por %p139, %p140
      %p143 = scmp.ne.s32.totalorder %s128, %s142
      %p144 = scmp.eq.s32.totalorder %s20, 0
      %p145 = por %p143, %p144
      %s147 = sadd.s32 %s146, 1
      %p150 = scmp.eq.s32.totalorder %s14, 3
      %p151 = scmp.ne.s32.totalorder %s146, %s148
      %p152 = scmp.eq.s32.totalorder %s14, 0
      %p153 = por %p151, %p152
      %p154 = scmp.ne.s32.totalorder %s146, %s148
      %p155 = scmp.eq.s32.totalorder %s19, 3
      %p156 = por %p154, %p155
      %p157 = scmp.ne.s32.totalorder %s148, %s149
      %p158 = scmp.eq.s32.totalorder %s19, 0
      %p159 = por %p157, %p158
      %p160 = scmp.ne.s32.totalorder %s148, %s149
      %p161 = scmp.eq.s32.totalorder %s20, 3
      %p162 = por %p160, %p161
      %p164 = scmp.ne.s32.totalorder %s149, %s163
      %p165 = scmp.eq.s32.totalorder %s20, 0
      %p166 = por %p164, %p165
      %s168 = sadd.s32 %s167, 1
      %p171 = scmp.eq.s32.totalorder %s14, 3
      %p172 = scmp.ne.s32.totalorder %s167, %s169
      %p173 = scmp.eq.s32.totalorder %s14, 0
      %p174 = por %p172, %p173
      %p175 = scmp.ne.s32.totalorder %s167, %s169
      %p176 = scmp.eq.s32.totalorder %s19, 3
      %p177 = por %p175, %p176
      %p178 = scmp.ne.s32.totalorder %s169, %s170
      %p179 = scmp.eq.s32.totalorder %s19, 0
      %p180 = por %p178, %p179
      %p181 = scmp.ne.s32.totalorder %s169, %s170
      %p182 = scmp.eq.s32.totalorder %s20, 3
      %p183 = por %p181, %p182
      %p185 = scmp.ne.s32.totalorder %s170, %s184
      %p186 = scmp.eq.s32.totalorder %s20, 0
      %p187 = por %p185, %p186
      %s189 = sadd.s32 %s188, 1
      %p192 = scmp.eq.s32.totalorder %s14, 3
      %p193 = scmp.ne.s32.totalorder %s188, %s190
      %p194 = scmp.eq.s32.totalorder %s14, 0
      %p195 = por %p193, %p194
      %p196 = scmp.ne.s32.totalorder %s188, %s190
      %p197 = scmp.eq.s32.totalorder %s19, 3
      %p198 = por %p196, %p197
      %p199 = scmp.ne.s32.totalorder %s190, %s191
      %p200 = scmp.eq.s32.totalorder %s19, 0
      %p201 = por %p199, %p200
      %p202 = scmp.ne.s32.totalorder %s190, %s191
      %p203 = scmp.eq.s32.totalorder %s20, 3
      %p204 = por %p202, %p203
      %p206 = scmp.ne.s32.totalorder %s191, %s205
      %p207 = scmp.eq.s32.totalorder %s20, 0
      %p208 = por %p206, %p207
      %s209 = ssub.s32 %s21, %s33
      %s210 = ssub.s32 %s22, %s29
      %s211 = sor.u32 %s209, %s210
      %p212 = scmp.eq.s32.totalorder %s211, 0
      %s214 = sadd.s32 %s213, 1
      %s215 = scalar_select %p212, %s213, %s214
      %p218 = pneg %p212
      %p219 = scmp.eq.s32.totalorder %s14, 3
      %p220 = por %p218, %p219
      %p221 = scmp.ne.s32.totalorder %s213, %s216
      %p222 = scmp.eq.s32.totalorder %s14, 0
      %p223 = por %p221, %p222
      %p224 = scmp.ne.s32.totalorder %s213, %s216
      %p225 = scmp.eq.s32.totalorder %s19, 3
      %p226 = por %p224, %p225
      %p227 = scmp.ne.s32.totalorder %s216, %s217
      %p228 = scmp.eq.s32.totalorder %s19, 0
      %p229 = por %p227, %p228
      %p230 = scmp.ne.s32.totalorder %s216, %s217
      %p231 = scmp.eq.s32.totalorder %s20, 3
      %p232 = por %p230, %p231
      %p234 = scmp.ne.s32.totalorder %s217, %s233
      %p235 = scmp.eq.s32.totalorder %s20, 0
      %p236 = por %p234, %p235
      %p237 = scmp.le.s32.totalorder 1, %s14
      %p238 = scmp.lt.s32.totalorder %s14, 5
      %p239 = pnand %p237, %p238
      %p240 = pneg %p239
      // Predicated region
      $region9: #{conv_block_final_double_forward.3} parent=5 // pred_check
        _
      $region10: #{conv_block_final_double_forward.3} parent=5 // pred_check_branch
        %242 = sbr.rel (%p239) target = $region12
      $region11: #{conv_block_final_double_forward.3} parent=5 // pred_region
        %s243 = ssub.s32 %s14, 1
        // Predicated region
        $region13: #{conv_block_final_double_forward.3} parent=11 // pred_check
          %p244 = pneg %p75
        $region14: #{conv_block_final_double_forward.3} parent=11 // pred_check_branch
          %246 = sbr.rel (%p244) target = $region16
        $region15: #{conv_block_final_double_forward.3} parent=11 // pred_region
          _
        $region16: #{conv_block_final_double_forward.3} parent=11 // pred_fallthru
          _
        // Predicated region
        $region17: #{conv_block_final_double_forward.3} parent=11 // pred_check
          %p247 = pneg %p96
        $region18: #{conv_block_final_double_forward.3} parent=11 // pred_check_branch
          %249 = sbr.rel (%p247) target = $region20
        $region19: #{conv_block_final_double_forward.3} parent=11 // pred_region
          _
        $region20: #{conv_block_final_double_forward.3} parent=11 // pred_fallthru
          _
        // Predicated region
        $region21: #{conv_block_final_double_forward.3} parent=11 // pred_check
          %p250 = pneg %p117
        $region22: #{conv_block_final_double_forward.3} parent=11 // pred_check_branch
          %252 = sbr.rel (%p250) target = $region24
        $region23: #{conv_block_final_double_forward.3} parent=11 // pred_region
          _
        $region24: #{conv_block_final_double_forward.3} parent=11 // pred_fallthru
          _
        // Predicated region
        $region25: #{conv_block_final_double_forward.3} parent=11 // pred_check
          %p253 = pneg %p138
        $region26: #{conv_block_final_double_forward.3} parent=11 // pred_check_branch
          %255 = sbr.rel (%p253) target = $region28
        $region27: #{conv_block_final_double_forward.3} parent=11 // pred_region
          _
        $region28: #{conv_block_final_double_forward.3} parent=11 // pred_fallthru
          _
        // Predicated region
        $region29: #{conv_block_final_double_forward.3} parent=11 // pred_check
          %p256 = pneg %p159
        $region30: #{conv_block_final_double_forward.3} parent=11 // pred_check_branch
          %258 = sbr.rel (%p256) target = $region32
        $region31: #{conv_block_final_double_forward.3} parent=11 // pred_region
          _
        $region32: #{conv_block_final_double_forward.3} parent=11 // pred_fallthru
          _
        // Predicated region
        $region33: #{conv_block_final_double_forward.3} parent=11 // pred_check
          %p259 = pneg %p180
        $region34: #{conv_block_final_double_forward.3} parent=11 // pred_check_branch
          %261 = sbr.rel (%p259) target = $region36
        $region35: #{conv_block_final_double_forward.3} parent=11 // pred_region
          _
        $region36: #{conv_block_final_double_forward.3} parent=11 // pred_fallthru
          _
        // Predicated region
        $region37: #{conv_block_final_double_forward.3} parent=11 // pred_check
          %p262 = pneg %p201
        $region38: #{conv_block_final_double_forward.3} parent=11 // pred_check_branch
          %264 = sbr.rel (%p262) target = $region40
        $region39: #{conv_block_final_double_forward.3} parent=11 // pred_region
          _
        $region40: #{conv_block_final_double_forward.3} parent=11 // pred_fallthru
          _
      $region12: #{conv_block_final_double_forward.3} parent=5 // pred_fallthru
        _
      %p265 = scmp.lt.s32.totalorder %s14, 4
      // Predicated region
      $region41: #{conv_block_final_double_forward.3} parent=5 // pred_check
        %p266 = pneg %p265
      $region42: #{conv_block_final_double_forward.3} parent=5 // pred_check_branch
        %268 = sbr.rel (%p266) target = $region44
      $region43: #{conv_block_final_double_forward.3} parent=5 // pred_region
        // Predicated region
        $region45: #{conv_block_final_double_forward.3} parent=43 // pred_check
          %p269 = pneg %p48
        $region46: #{conv_block_final_double_forward.3} parent=43 // pred_check_branch
          %271 = sbr.rel (%p269) target = $region48
        $region47: #{conv_block_final_double_forward.3} parent=43 // pred_region
          %s272 = sand.u32 %s38, 1
          %s273 = sand.u32 %s38, 1
          %s274 = smul.addr %s273, 2048
          %s275 = scalar_lea.vmem [#allocation2], %s274
          %s276 = smul.u32 16, %s22
          %s277 = smul.addr %s21, 512
          %s278 = sadd.s32 %s276, %s277
          %s279 = smul.addr %s278, 8
          %s280 = scalar_lea.vmem %s0, %s279
          // Predicated region
          $region49: #{conv_block_final_double_forward.3} parent=47 // pred_check
            _
          $region50: #{conv_block_final_double_forward.3} parent=47 // pred_check_branch
            %282 = sbr.rel (0) target = $region52
          $region51: #{conv_block_final_double_forward.3} parent=47 // pred_region
            // Predicated region
            $region53: #{conv_block_final_double_forward.3} parent=51 // pred_check
              _
            $region54: #{conv_block_final_double_forward.3} parent=51 // pred_check_branch
              %284 = sbr.rel (0) target = $region56
            $region55: #{conv_block_final_double_forward.3} parent=51 // pred_region
              loop: start=0, step=1, limit=1
              $region57: #{conv_block_final_double_forward.3} parent=55 // loop_pre_header
                _
              $region58: #{conv_block_final_double_forward.3} parent=55 // loop_header
                %s286 = sphi 0, %s290
                %p287 = scmp.ge.s32.totalorder %s286, 1
                %s291 = sphi %s280, %s280
                %s292 = sphi %s275, %s275
              $region59: #{conv_block_final_double_forward.3} parent=55 // loop_header_branch
                %289 = sbr.rel (%p287) target = $region63
              $region60: #{conv_block_final_double_forward.3} parent=55 // loop_body
                %v293 = vld [vmem:[%s291] sm:$0xff]
                %294 = vst [vmem:[%s292] sm:$0xff] %v293
                %v295 = vld [vmem:[%s291 + $0x8] sm:$0xff]
                %296 = vst [vmem:[%s292 + $0x8] sm:$0xff] %v295
                %v297 = vld [vmem:[%s291 + $0x10] sm:$0xff]
                %298 = vst [vmem:[%s292 + $0x10] sm:$0xff] %v297
                %v299 = vld [vmem:[%s291 + $0x18] sm:$0xff]
                %300 = vst [vmem:[%s292 + $0x18] sm:$0xff] %v299
                %v301 = vld [vmem:[%s291 + $0x20] sm:$0xff]
                %302 = vst [vmem:[%s292 + $0x20] sm:$0xff] %v301
                %v303 = vld [vmem:[%s291 + $0x28] sm:$0xff]
                %304 = vst [vmem:[%s292 + $0x28] sm:$0xff] %v303
                %v305 = vld [vmem:[%s291 + $0x30] sm:$0xff]
                %306 = vst [vmem:[%s292 + $0x30] sm:$0xff] %v305
                %v307 = vld [vmem:[%s291 + $0x38] sm:$0xff]
                %308 = vst [vmem:[%s292 + $0x38] sm:$0xff] %v307
                %v309 = vld [vmem:[%s291 + $0x40] sm:$0xff]
                %310 = vst [vmem:[%s292 + $0x40] sm:$0xff] %v309
                %v311 = vld [vmem:[%s291 + $0x48] sm:$0xff]
                %312 = vst [vmem:[%s292 + $0x48] sm:$0xff] %v311
                %v313 = vld [vmem:[%s291 + $0x50] sm:$0xff]
                %314 = vst [vmem:[%s292 + $0x50] sm:$0xff] %v313
                %v315 = vld [vmem:[%s291 + $0x58] sm:$0xff]
                %316 = vst [vmem:[%s292 + $0x58] sm:$0xff] %v315
                %v317 = vld [vmem:[%s291 + $0x60] sm:$0xff]
                %318 = vst [vmem:[%s292 + $0x60] sm:$0xff] %v317
                %v319 = vld [vmem:[%s291 + $0x68] sm:$0xff]
                %320 = vst [vmem:[%s292 + $0x68] sm:$0xff] %v319
                %v321 = vld [vmem:[%s291 + $0x70] sm:$0xff]
                %322 = vst [vmem:[%s292 + $0x70] sm:$0xff] %v321
                %v323 = vld [vmem:[%s291 + $0x78] sm:$0xff]
                %324 = vst [vmem:[%s292 + $0x78] sm:$0xff] %v323
                %v325 = vld [vmem:[%s291 + $0x100] sm:$0xff]
                %326 = vst [vmem:[%s292 + $0x80] sm:$0xff] %v325
                %v327 = vld [vmem:[%s291 + $0x108] sm:$0xff]
                %328 = vst [vmem:[%s292 + $0x88] sm:$0xff] %v327
                %v329 = vld [vmem:[%s291 + $0x110] sm:$0xff]
                %330 = vst [vmem:[%s292 + $0x90] sm:$0xff] %v329
                %v331 = vld [vmem:[%s291 + $0x118] sm:$0xff]
                %332 = vst [vmem:[%s292 + $0x98] sm:$0xff] %v331
                %v333 = vld [vmem:[%s291 + $0x120] sm:$0xff]
                %334 = vst [vmem:[%s292 + $0xa0] sm:$0xff] %v333
                %v335 = vld [vmem:[%s291 + $0x128] sm:$0xff]
                %336 = vst [vmem:[%s292 + $0xa8] sm:$0xff] %v335
                %v337 = vld [vmem:[%s291 + $0x130] sm:$0xff]
                %338 = vst [vmem:[%s292 + $0xb0] sm:$0xff] %v337
                %v339 = vld [vmem:[%s291 + $0x138] sm:$0xff]
                %340 = vst [vmem:[%s292 + $0xb8] sm:$0xff] %v339
                %v341 = vld [vmem:[%s291 + $0x140] sm:$0xff]
                %342 = vst [vmem:[%s292 + $0xc0] sm:$0xff] %v341
                %v343 = vld [vmem:[%s291 + $0x148] sm:$0xff]
                %344 = vst [vmem:[%s292 + $0xc8] sm:$0xff] %v343
                %v345 = vld [vmem:[%s291 + $0x150] sm:$0xff]
                %346 = vst [vmem:[%s292 + $0xd0] sm:$0xff] %v345
                %v347 = vld [vmem:[%s291 + $0x158] sm:$0xff]
                %348 = vst [vmem:[%s292 + $0xd8] sm:$0xff] %v347
                %v349 = vld [vmem:[%s291 + $0x160] sm:$0xff]
                %350 = vst [vmem:[%s292 + $0xe0] sm:$0xff] %v349
                %v351 = vld [vmem:[%s291 + $0x168] sm:$0xff]
                %352 = vst [vmem:[%s292 + $0xe8] sm:$0xff] %v351
                %v353 = vld [vmem:[%s291 + $0x170] sm:$0xff]
                %354 = vst [vmem:[%s292 + $0xf0] sm:$0xff] %v353
                %v355 = vld [vmem:[%s291 + $0x178] sm:$0xff]
                %356 = vst [vmem:[%s292 + $0xf8] sm:$0xff] %v355
                %v357 = vld [vmem:[%s291 + $0x200] sm:$0xff]
                %358 = vst [vmem:[%s292 + $0x100] sm:$0xff] %v357
                %v359 = vld [vmem:[%s291 + $0x208] sm:$0xff]
                %360 = vst [vmem:[%s292 + $0x108] sm:$0xff] %v359
                %v361 = vld [vmem:[%s291 + $0x210] sm:$0xff]
                %362 = vst [vmem:[%s292 + $0x110] sm:$0xff] %v361
                %v363 = vld [vmem:[%s291 + $0x218] sm:$0xff]
                %364 = vst [vmem:[%s292 + $0x118] sm:$0xff] %v363
                %v365 = vld [vmem:[%s291 + $0x220] sm:$0xff]
                %366 = vst [vmem:[%s292 + $0x120] sm:$0xff] %v365
                %v367 = vld [vmem:[%s291 + $0x228] sm:$0xff]
                %368 = vst [vmem:[%s292 + $0x128] sm:$0xff] %v367
                %v369 = vld [vmem:[%s291 + $0x230] sm:$0xff]
                %370 = vst [vmem:[%s292 + $0x130] sm:$0xff] %v369
                %v371 = vld [vmem:[%s291 + $0x238] sm:$0xff]
                %372 = vst [vmem:[%s292 + $0x138] sm:$0xff] %v371
                %v373 = vld [vmem:[%s291 + $0x240] sm:$0xff]
                %374 = vst [vmem:[%s292 + $0x140] sm:$0xff] %v373
                %v375 = vld [vmem:[%s291 + $0x248] sm:$0xff]
                %376 = vst [vmem:[%s292 + $0x148] sm:$0xff] %v375
                %v377 = vld [vmem:[%s291 + $0x250] sm:$0xff]
                %378 = vst [vmem:[%s292 + $0x150] sm:$0xff] %v377
                %v379 = vld [vmem:[%s291 + $0x258] sm:$0xff]
                %380 = vst [vmem:[%s292 + $0x158] sm:$0xff] %v379
                %v381 = vld [vmem:[%s291 + $0x260] sm:$0xff]
                %382 = vst [vmem:[%s292 + $0x160] sm:$0xff] %v381
                %v383 = vld [vmem:[%s291 + $0x268] sm:$0xff]
                %384 = vst [vmem:[%s292 + $0x168] sm:$0xff] %v383
                %v385 = vld [vmem:[%s291 + $0x270] sm:$0xff]
                %386 = vst [vmem:[%s292 + $0x170] sm:$0xff] %v385
                %v387 = vld [vmem:[%s291 + $0x278] sm:$0xff]
                %388 = vst [vmem:[%s292 + $0x178] sm:$0xff] %v387
                %v389 = vld [vmem:[%s291 + $0x300] sm:$0xff]
                %390 = vst [vmem:[%s292 + $0x180] sm:$0xff] %v389
                %v391 = vld [vmem:[%s291 + $0x308] sm:$0xff]
                %392 = vst [vmem:[%s292 + $0x188] sm:$0xff] %v391
                %v393 = vld [vmem:[%s291 + $0x310] sm:$0xff]
                %394 = vst [vmem:[%s292 + $0x190] sm:$0xff] %v393
                %v395 = vld [vmem:[%s291 + $0x318] sm:$0xff]
                %396 = vst [vmem:[%s292 + $0x198] sm:$0xff] %v395
                %v397 = vld [vmem:[%s291 + $0x320] sm:$0xff]
                %398 = vst [vmem:[%s292 + $0x1a0] sm:$0xff] %v397
                %v399 = vld [vmem:[%s291 + $0x328] sm:$0xff]
                %400 = vst [vmem:[%s292 + $0x1a8] sm:$0xff] %v399
                %v401 = vld [vmem:[%s291 + $0x330] sm:$0xff]
                %402 = vst [vmem:[%s292 + $0x1b0] sm:$0xff] %v401
                %v403 = vld [vmem:[%s291 + $0x338] sm:$0xff]
                %404 = vst [vmem:[%s292 + $0x1b8] sm:$0xff] %v403
                %v405 = vld [vmem:[%s291 + $0x340] sm:$0xff]
                %406 = vst [vmem:[%s292 + $0x1c0] sm:$0xff] %v405
                %v407 = vld [vmem:[%s291 + $0x348] sm:$0xff]
                %408 = vst [vmem:[%s292 + $0x1c8] sm:$0xff] %v407
                %v409 = vld [vmem:[%s291 + $0x350] sm:$0xff]
                %410 = vst [vmem:[%s292 + $0x1d0] sm:$0xff] %v409
                %v411 = vld [vmem:[%s291 + $0x358] sm:$0xff]
                %412 = vst [vmem:[%s292 + $0x1d8] sm:$0xff] %v411
                %v413 = vld [vmem:[%s291 + $0x360] sm:$0xff]
                %414 = vst [vmem:[%s292 + $0x1e0] sm:$0xff] %v413
                %v415 = vld [vmem:[%s291 + $0x368] sm:$0xff]
                %416 = vst [vmem:[%s292 + $0x1e8] sm:$0xff] %v415
                %v417 = vld [vmem:[%s291 + $0x370] sm:$0xff]
                %418 = vst [vmem:[%s292 + $0x1f0] sm:$0xff] %v417
                %v419 = vld [vmem:[%s291 + $0x378] sm:$0xff]
                %420 = vst [vmem:[%s292 + $0x1f8] sm:$0xff] %v419
                %v421 = vld [vmem:[%s291 + $0x400] sm:$0xff]
                %422 = vst [vmem:[%s292 + $0x200] sm:$0xff] %v421
                %v423 = vld [vmem:[%s291 + $0x408] sm:$0xff]
                %424 = vst [vmem:[%s292 + $0x208] sm:$0xff] %v423
                %v425 = vld [vmem:[%s291 + $0x410] sm:$0xff]
                %426 = vst [vmem:[%s292 + $0x210] sm:$0xff] %v425
                %v427 = vld [vmem:[%s291 + $0x418] sm:$0xff]
                %428 = vst [vmem:[%s292 + $0x218] sm:$0xff] %v427
                %v429 = vld [vmem:[%s291 + $0x420] sm:$0xff]
                %430 = vst [vmem:[%s292 + $0x220] sm:$0xff] %v429
                %v431 = vld [vmem:[%s291 + $0x428] sm:$0xff]
                %432 = vst [vmem:[%s292 + $0x228] sm:$0xff] %v431
                %v433 = vld [vmem:[%s291 + $0x430] sm:$0xff]
                %434 = vst [vmem:[%s292 + $0x230] sm:$0xff] %v433
                %v435 = vld [vmem:[%s291 + $0x438] sm:$0xff]
                %436 = vst [vmem:[%s292 + $0x238] sm:$0xff] %v435
                %v437 = vld [vmem:[%s291 + $0x440] sm:$0xff]
                %438 = vst [vmem:[%s292 + $0x240] sm:$0xff] %v437
                %v439 = vld [vmem:[%s291 + $0x448] sm:$0xff]
                %440 = vst [vmem:[%s292 + $0x248] sm:$0xff] %v439
                %v441 = vld [vmem:[%s291 + $0x450] sm:$0xff]
                %442 = vst [vmem:[%s292 + $0x250] sm:$0xff] %v441
                %v443 = vld [vmem:[%s291 + $0x458] sm:$0xff]
                %444 = vst [vmem:[%s292 + $0x258] sm:$0xff] %v443
                %v445 = vld [vmem:[%s291 + $0x460] sm:$0xff]
                %446 = vst [vmem:[%s292 + $0x260] sm:$0xff] %v445
                %v447 = vld [vmem:[%s291 + $0x468] sm:$0xff]
                %448 = vst [vmem:[%s292 + $0x268] sm:$0xff] %v447
                %v449 = vld [vmem:[%s291 + $0x470] sm:$0xff]
                %450 = vst [vmem:[%s292 + $0x270] sm:$0xff] %v449
                %v451 = vld [vmem:[%s291 + $0x478] sm:$0xff]
                %452 = vst [vmem:[%s292 + $0x278] sm:$0xff] %v451
                %v453 = vld [vmem:[%s291 + $0x500] sm:$0xff]
                %454 = vst [vmem:[%s292 + $0x280] sm:$0xff] %v453
                %v455 = vld [vmem:[%s291 + $0x508] sm:$0xff]
                %456 = vst [vmem:[%s292 + $0x288] sm:$0xff] %v455
                %v457 = vld [vmem:[%s291 + $0x510] sm:$0xff]
                %458 = vst [vmem:[%s292 + $0x290] sm:$0xff] %v457
                %v459 = vld [vmem:[%s291 + $0x518] sm:$0xff]
                %460 = vst [vmem:[%s292 + $0x298] sm:$0xff] %v459
                %v461 = vld [vmem:[%s291 + $0x520] sm:$0xff]
                %462 = vst [vmem:[%s292 + $0x2a0] sm:$0xff] %v461
                %v463 = vld [vmem:[%s291 + $0x528] sm:$0xff]
                %464 = vst [vmem:[%s292 + $0x2a8] sm:$0xff] %v463
                %v465 = vld [vmem:[%s291 + $0x530] sm:$0xff]
                %466 = vst [vmem:[%s292 + $0x2b0] sm:$0xff] %v465
                %v467 = vld [vmem:[%s291 + $0x538] sm:$0xff]
                %468 = vst [vmem:[%s292 + $0x2b8] sm:$0xff] %v467
                %v469 = vld [vmem:[%s291 + $0x540] sm:$0xff]
                %470 = vst [vmem:[%s292 + $0x2c0] sm:$0xff] %v469
                %v471 = vld [vmem:[%s291 + $0x548] sm:$0xff]
                %472 = vst [vmem:[%s292 + $0x2c8] sm:$0xff] %v471
                %v473 = vld [vmem:[%s291 + $0x550] sm:$0xff]
                %474 = vst [vmem:[%s292 + $0x2d0] sm:$0xff] %v473
                %v475 = vld [vmem:[%s291 + $0x558] sm:$0xff]
                %476 = vst [vmem:[%s292 + $0x2d8] sm:$0xff] %v475
                %v477 = vld [vmem:[%s291 + $0x560] sm:$0xff]
                %478 = vst [vmem:[%s292 + $0x2e0] sm:$0xff] %v477
                %v479 = vld [vmem:[%s291 + $0x568] sm:$0xff]
                %480 = vst [vmem:[%s292 + $0x2e8] sm:$0xff] %v479
                %v481 = vld [vmem:[%s291 + $0x570] sm:$0xff]
                %482 = vst [vmem:[%s292 + $0x2f0] sm:$0xff] %v481
                %v483 = vld [vmem:[%s291 + $0x578] sm:$0xff]
                %484 = vst [vmem:[%s292 + $0x2f8] sm:$0xff] %v483
                %v485 = vld [vmem:[%s291 + $0x600] sm:$0xff]
                %486 = vst [vmem:[%s292 + $0x300] sm:$0xff] %v485
                %v487 = vld [vmem:[%s291 + $0x608] sm:$0xff]
                %488 = vst [vmem:[%s292 + $0x308] sm:$0xff] %v487
                %v489 = vld [vmem:[%s291 + $0x610] sm:$0xff]
                %490 = vst [vmem:[%s292 + $0x310] sm:$0xff] %v489
                %v491 = vld [vmem:[%s291 + $0x618] sm:$0xff]
                %492 = vst [vmem:[%s292 + $0x318] sm:$0xff] %v491
                %v493 = vld [vmem:[%s291 + $0x620] sm:$0xff]
                %494 = vst [vmem:[%s292 + $0x320] sm:$0xff] %v493
                %v495 = vld [vmem:[%s291 + $0x628] sm:$0xff]
                %496 = vst [vmem:[%s292 + $0x328] sm:$0xff] %v495
                %v497 = vld [vmem:[%s291 + $0x630] sm:$0xff]
                %498 = vst [vmem:[%s292 + $0x330] sm:$0xff] %v497
                %v499 = vld [vmem:[%s291 + $0x638] sm:$0xff]
                %500 = vst [vmem:[%s292 + $0x338] sm:$0xff] %v499
                %v501 = vld [vmem:[%s291 + $0x640] sm:$0xff]
                %502 = vst [vmem:[%s292 + $0x340] sm:$0xff] %v501
                %v503 = vld [vmem:[%s291 + $0x648] sm:$0xff]
                %504 = vst [vmem:[%s292 + $0x348] sm:$0xff] %v503
                %v505 = vld [vmem:[%s291 + $0x650] sm:$0xff]
                %506 = vst [vmem:[%s292 + $0x350] sm:$0xff] %v505
                %v507 = vld [vmem:[%s291 + $0x658] sm:$0xff]
                %508 = vst [vmem:[%s292 + $0x358] sm:$0xff] %v507
                %v509 = vld [vmem:[%s291 + $0x660] sm:$0xff]
                %510 = vst [vmem:[%s292 + $0x360] sm:$0xff] %v509
                %v511 = vld [vmem:[%s291 + $0x668] sm:$0xff]
                %512 = vst [vmem:[%s292 + $0x368] sm:$0xff] %v511
                %v513 = vld [vmem:[%s291 + $0x670] sm:$0xff]
                %514 = vst [vmem:[%s292 + $0x370] sm:$0xff] %v513
                %v515 = vld [vmem:[%s291 + $0x678] sm:$0xff]
                %516 = vst [vmem:[%s292 + $0x378] sm:$0xff] %v515
                %v517 = vld [vmem:[%s291 + $0x700] sm:$0xff]
                %518 = vst [vmem:[%s292 + $0x380] sm:$0xff] %v517
                %v519 = vld [vmem:[%s291 + $0x708] sm:$0xff]
                %520 = vst [vmem:[%s292 + $0x388] sm:$0xff] %v519
                %v521 = vld [vmem:[%s291 + $0x710] sm:$0xff]
                %522 = vst [vmem:[%s292 + $0x390] sm:$0xff] %v521
                %v523 = vld [vmem:[%s291 + $0x718] sm:$0xff]
                %524 = vst [vmem:[%s292 + $0x398] sm:$0xff] %v523
                %v525 = vld [vmem:[%s291 + $0x720] sm:$0xff]
                %526 = vst [vmem:[%s292 + $0x3a0] sm:$0xff] %v525
                %v527 = vld [vmem:[%s291 + $0x728] sm:$0xff]
                %528 = vst [vmem:[%s292 + $0x3a8] sm:$0xff] %v527
                %v529 = vld [vmem:[%s291 + $0x730] sm:$0xff]
                %530 = vst [vmem:[%s292 + $0x3b0] sm:$0xff] %v529
                %v531 = vld [vmem:[%s291 + $0x738] sm:$0xff]
                %532 = vst [vmem:[%s292 + $0x3b8] sm:$0xff] %v531
                %v533 = vld [vmem:[%s291 + $0x740] sm:$0xff]
                %534 = vst [vmem:[%s292 + $0x3c0] sm:$0xff] %v533
                %v535 = vld [vmem:[%s291 + $0x748] sm:$0xff]
                %536 = vst [vmem:[%s292 + $0x3c8] sm:$0xff] %v535
                %v537 = vld [vmem:[%s291 + $0x750] sm:$0xff]
                %538 = vst [vmem:[%s292 + $0x3d0] sm:$0xff] %v537
                %v539 = vld [vmem:[%s291 + $0x758] sm:$0xff]
                %540 = vst [vmem:[%s292 + $0x3d8] sm:$0xff] %v539
                %v541 = vld [vmem:[%s291 + $0x760] sm:$0xff]
                %542 = vst [vmem:[%s292 + $0x3e0] sm:$0xff] %v541
                %v543 = vld [vmem:[%s291 + $0x768] sm:$0xff]
                %544 = vst [vmem:[%s292 + $0x3e8] sm:$0xff] %v543
                %v545 = vld [vmem:[%s291 + $0x770] sm:$0xff]
                %546 = vst [vmem:[%s292 + $0x3f0] sm:$0xff] %v545
                %v547 = vld [vmem:[%s291 + $0x778] sm:$0xff]
                %548 = vst [vmem:[%s292 + $0x3f8] sm:$0xff] %v547
                %v549 = vld [vmem:[%s291 + $0x800] sm:$0xff]
                %550 = vst [vmem:[%s292 + $0x400] sm:$0xff] %v549
                %v551 = vld [vmem:[%s291 + $0x808] sm:$0xff]
                %552 = vst [vmem:[%s292 + $0x408] sm:$0xff] %v551
                %v553 = vld [vmem:[%s291 + $0x810] sm:$0xff]
                %554 = vst [vmem:[%s292 + $0x410] sm:$0xff] %v553
                %v555 = vld [vmem:[%s291 + $0x818] sm:$0xff]
                %556 = vst [vmem:[%s292 + $0x418] sm:$0xff] %v555
                %v557 = vld [vmem:[%s291 + $0x820] sm:$0xff]
                %558 = vst [vmem:[%s292 + $0x420] sm:$0xff] %v557
                %v559 = vld [vmem:[%s291 + $0x828] sm:$0xff]
                %560 = vst [vmem:[%s292 + $0x428] sm:$0xff] %v559
                %v561 = vld [vmem:[%s291 + $0x830] sm:$0xff]
                %562 = vst [vmem:[%s292 + $0x430] sm:$0xff] %v561
                %v563 = vld [vmem:[%s291 + $0x838] sm:$0xff]
                %564 = vst [vmem:[%s292 + $0x438] sm:$0xff] %v563
                %v565 = vld [vmem:[%s291 + $0x840] sm:$0xff]
                %566 = vst [vmem:[%s292 + $0x440] sm:$0xff] %v565
                %v567 = vld [vmem:[%s291 + $0x848] sm:$0xff]
                %568 = vst [vmem:[%s292 + $0x448] sm:$0xff] %v567
                %v569 = vld [vmem:[%s291 + $0x850] sm:$0xff]
                %570 = vst [vmem:[%s292 + $0x450] sm:$0xff] %v569
                %v571 = vld [vmem:[%s291 + $0x858] sm:$0xff]
                %572 = vst [vmem:[%s292 + $0x458] sm:$0xff] %v571
                %v573 = vld [vmem:[%s291 + $0x860] sm:$0xff]
                %574 = vst [vmem:[%s292 + $0x460] sm:$0xff] %v573
                %v575 = vld [vmem:[%s291 + $0x868] sm:$0xff]
                %576 = vst [vmem:[%s292 + $0x468] sm:$0xff] %v575
                %v577 = vld [vmem:[%s291 + $0x870] sm:$0xff]
                %578 = vst [vmem:[%s292 + $0x470] sm:$0xff] %v577
                %v579 = vld [vmem:[%s291 + $0x878] sm:$0xff]
                %580 = vst [vmem:[%s292 + $0x478] sm:$0xff] %v579
                %v581 = vld [vmem:[%s291 + $0x900] sm:$0xff]
                %582 = vst [vmem:[%s292 + $0x480] sm:$0xff] %v581
                %v583 = vld [vmem:[%s291 + $0x908] sm:$0xff]
                %584 = vst [vmem:[%s292 + $0x488] sm:$0xff] %v583
                %v585 = vld [vmem:[%s291 + $0x910] sm:$0xff]
                %586 = vst [vmem:[%s292 + $0x490] sm:$0xff] %v585
                %v587 = vld [vmem:[%s291 + $0x918] sm:$0xff]
                %588 = vst [vmem:[%s292 + $0x498] sm:$0xff] %v587
                %v589 = vld [vmem:[%s291 + $0x920] sm:$0xff]
                %590 = vst [vmem:[%s292 + $0x4a0] sm:$0xff] %v589
                %v591 = vld [vmem:[%s291 + $0x928] sm:$0xff]
                %592 = vst [vmem:[%s292 + $0x4a8] sm:$0xff] %v591
                %v593 = vld [vmem:[%s291 + $0x930] sm:$0xff]
                %594 = vst [vmem:[%s292 + $0x4b0] sm:$0xff] %v593
                %v595 = vld [vmem:[%s291 + $0x938] sm:$0xff]
                %596 = vst [vmem:[%s292 + $0x4b8] sm:$0xff] %v595
                %v597 = vld [vmem:[%s291 + $0x940] sm:$0xff]
                %598 = vst [vmem:[%s292 + $0x4c0] sm:$0xff] %v597
                %v599 = vld [vmem:[%s291 + $0x948] sm:$0xff]
                %600 = vst [vmem:[%s292 + $0x4c8] sm:$0xff] %v599
                %v601 = vld [vmem:[%s291 + $0x950] sm:$0xff]
                %602 = vst [vmem:[%s292 + $0x4d0] sm:$0xff] %v601
                %v603 = vld [vmem:[%s291 + $0x958] sm:$0xff]
                %604 = vst [vmem:[%s292 + $0x4d8] sm:$0xff] %v603
                %v605 = vld [vmem:[%s291 + $0x960] sm:$0xff]
                %606 = vst [vmem:[%s292 + $0x4e0] sm:$0xff] %v605
                %v607 = vld [vmem:[%s291 + $0x968] sm:$0xff]
                %608 = vst [vmem:[%s292 + $0x4e8] sm:$0xff] %v607
                %v609 = vld [vmem:[%s291 + $0x970] sm:$0xff]
                %610 = vst [vmem:[%s292 + $0x4f0] sm:$0xff] %v609
                %v611 = vld [vmem:[%s291 + $0x978] sm:$0xff]
                %612 = vst [vmem:[%s292 + $0x4f8] sm:$0xff] %v611
                %v613 = vld [vmem:[%s291 + $0xa00] sm:$0xff]
                %614 = vst [vmem:[%s292 + $0x500] sm:$0xff] %v613
                %v615 = vld [vmem:[%s291 + $0xa08] sm:$0xff]
                %616 = vst [vmem:[%s292 + $0x508] sm:$0xff] %v615
                %v617 = vld [vmem:[%s291 + $0xa10] sm:$0xff]
                %618 = vst [vmem:[%s292 + $0x510] sm:$0xff] %v617
                %v619 = vld [vmem:[%s291 + $0xa18] sm:$0xff]
                %620 = vst [vmem:[%s292 + $0x518] sm:$0xff] %v619
                %v621 = vld [vmem:[%s291 + $0xa20] sm:$0xff]
                %622 = vst [vmem:[%s292 + $0x520] sm:$0xff] %v621
                %v623 = vld [vmem:[%s291 + $0xa28] sm:$0xff]
                %624 = vst [vmem:[%s292 + $0x528] sm:$0xff] %v623
                %v625 = vld [vmem:[%s291 + $0xa30] sm:$0xff]
                %626 = vst [vmem:[%s292 + $0x530] sm:$0xff] %v625
                %v627 = vld [vmem:[%s291 + $0xa38] sm:$0xff]
                %628 = vst [vmem:[%s292 + $0x538] sm:$0xff] %v627
                %v629 = vld [vmem:[%s291 + $0xa40] sm:$0xff]
                %630 = vst [vmem:[%s292 + $0x540] sm:$0xff] %v629
                %v631 = vld [vmem:[%s291 + $0xa48] sm:$0xff]
                %632 = vst [vmem:[%s292 + $0x548] sm:$0xff] %v631
                %v633 = vld [vmem:[%s291 + $0xa50] sm:$0xff]
                %634 = vst [vmem:[%s292 + $0x550] sm:$0xff] %v633
                %v635 = vld [vmem:[%s291 + $0xa58] sm:$0xff]
                %636 = vst [vmem:[%s292 + $0x558] sm:$0xff] %v635
                %v637 = vld [vmem:[%s291 + $0xa60] sm:$0xff]
                %638 = vst [vmem:[%s292 + $0x560] sm:$0xff] %v637
                %v639 = vld [vmem:[%s291 + $0xa68] sm:$0xff]
                %640 = vst [vmem:[%s292 + $0x568] sm:$0xff] %v639
                %v641 = vld [vmem:[%s291 + $0xa70] sm:$0xff]
                %642 = vst [vmem:[%s292 + $0x570] sm:$0xff] %v641
                %v643 = vld [vmem:[%s291 + $0xa78] sm:$0xff]
                %644 = vst [vmem:[%s292 + $0x578] sm:$0xff] %v643
                %v645 = vld [vmem:[%s291 + $0xb00] sm:$0xff]
                %646 = vst [vmem:[%s292 + $0x580] sm:$0xff] %v645
                %v647 = vld [vmem:[%s291 + $0xb08] sm:$0xff]
                %648 = vst [vmem:[%s292 + $0x588] sm:$0xff] %v647
                %v649 = vld [vmem:[%s291 + $0xb10] sm:$0xff]
                %650 = vst [vmem:[%s292 + $0x590] sm:$0xff] %v649
                %v651 = vld [vmem:[%s291 + $0xb18] sm:$0xff]
                %652 = vst [vmem:[%s292 + $0x598] sm:$0xff] %v651
                %v653 = vld [vmem:[%s291 + $0xb20] sm:$0xff]
                %654 = vst [vmem:[%s292 + $0x5a0] sm:$0xff] %v653
                %v655 = vld [vmem:[%s291 + $0xb28] sm:$0xff]
                %656 = vst [vmem:[%s292 + $0x5a8] sm:$0xff] %v655
                %v657 = vld [vmem:[%s291 + $0xb30] sm:$0xff]
                %658 = vst [vmem:[%s292 + $0x5b0] sm:$0xff] %v657
                %v659 = vld [vmem:[%s291 + $0xb38] sm:$0xff]
                %660 = vst [vmem:[%s292 + $0x5b8] sm:$0xff] %v659
                %v661 = vld [vmem:[%s291 + $0xb40] sm:$0xff]
                %662 = vst [vmem:[%s292 + $0x5c0] sm:$0xff] %v661
                %v663 = vld [vmem:[%s291 + $0xb48] sm:$0xff]
                %664 = vst [vmem:[%s292 + $0x5c8] sm:$0xff] %v663
                %v665 = vld [vmem:[%s291 + $0xb50] sm:$0xff]
                %666 = vst [vmem:[%s292 + $0x5d0] sm:$0xff] %v665
                %v667 = vld [vmem:[%s291 + $0xb58] sm:$0xff]
                %668 = vst [vmem:[%s292 + $0x5d8] sm:$0xff] %v667
                %v669 = vld [vmem:[%s291 + $0xb60] sm:$0xff]
                %670 = vst [vmem:[%s292 + $0x5e0] sm:$0xff] %v669
                %v671 = vld [vmem:[%s291 + $0xb68] sm:$0xff]
                %672 = vst [vmem:[%s292 + $0x5e8] sm:$0xff] %v671
                %v673 = vld [vmem:[%s291 + $0xb70] sm:$0xff]
                %674 = vst [vmem:[%s292 + $0x5f0] sm:$0xff] %v673
                %v675 = vld [vmem:[%s291 + $0xb78] sm:$0xff]
                %676 = vst [vmem:[%s292 + $0x5f8] sm:$0xff] %v675
                %v677 = vld [vmem:[%s291 + $0xc00] sm:$0xff]
                %678 = vst [vmem:[%s292 + $0x600] sm:$0xff] %v677
                %v679 = vld [vmem:[%s291 + $0xc08] sm:$0xff]
                %680 = vst [vmem:[%s292 + $0x608] sm:$0xff] %v679
                %v681 = vld [vmem:[%s291 + $0xc10] sm:$0xff]
                %682 = vst [vmem:[%s292 + $0x610] sm:$0xff] %v681
                %v683 = vld [vmem:[%s291 + $0xc18] sm:$0xff]
                %684 = vst [vmem:[%s292 + $0x618] sm:$0xff] %v683
                %v685 = vld [vmem:[%s291 + $0xc20] sm:$0xff]
                %686 = vst [vmem:[%s292 + $0x620] sm:$0xff] %v685
                %v687 = vld [vmem:[%s291 + $0xc28] sm:$0xff]
                %688 = vst [vmem:[%s292 + $0x628] sm:$0xff] %v687
                %v689 = vld [vmem:[%s291 + $0xc30] sm:$0xff]
                %690 = vst [vmem:[%s292 + $0x630] sm:$0xff] %v689
                %v691 = vld [vmem:[%s291 + $0xc38] sm:$0xff]
                %692 = vst [vmem:[%s292 + $0x638] sm:$0xff] %v691
                %v693 = vld [vmem:[%s291 + $0xc40] sm:$0xff]
                %694 = vst [vmem:[%s292 + $0x640] sm:$0xff] %v693
                %v695 = vld [vmem:[%s291 + $0xc48] sm:$0xff]
                %696 = vst [vmem:[%s292 + $0x648] sm:$0xff] %v695
                %v697 = vld [vmem:[%s291 + $0xc50] sm:$0xff]
                %698 = vst [vmem:[%s292 + $0x650] sm:$0xff] %v697
                %v699 = vld [vmem:[%s291 + $0xc58] sm:$0xff]
                %700 = vst [vmem:[%s292 + $0x658] sm:$0xff] %v699
                %v701 = vld [vmem:[%s291 + $0xc60] sm:$0xff]
                %702 = vst [vmem:[%s292 + $0x660] sm:$0xff] %v701
                %v703 = vld [vmem:[%s291 + $0xc68] sm:$0xff]
                %704 = vst [vmem:[%s292 + $0x668] sm:$0xff] %v703
                %v705 = vld [vmem:[%s291 + $0xc70] sm:$0xff]
                %706 = vst [vmem:[%s292 + $0x670] sm:$0xff] %v705
                %v707 = vld [vmem:[%s291 + $0xc78] sm:$0xff]
                %708 = vst [vmem:[%s292 + $0x678] sm:$0xff] %v707
                %v709 = vld [vmem:[%s291 + $0xd00] sm:$0xff]
                %710 = vst [vmem:[%s292 + $0x680] sm:$0xff] %v709
                %v711 = vld [vmem:[%s291 + $0xd08] sm:$0xff]
                %712 = vst [vmem:[%s292 + $0x688] sm:$0xff] %v711
                %v713 = vld [vmem:[%s291 + $0xd10] sm:$0xff]
                %714 = vst [vmem:[%s292 + $0x690] sm:$0xff] %v713
                %v715 = vld [vmem:[%s291 + $0xd18] sm:$0xff]
                %716 = vst [vmem:[%s292 + $0x698] sm:$0xff] %v715
                %v717 = vld [vmem:[%s291 + $0xd20] sm:$0xff]
                %718 = vst [vmem:[%s292 + $0x6a0] sm:$0xff] %v717
                %v719 = vld [vmem:[%s291 + $0xd28] sm:$0xff]
                %720 = vst [vmem:[%s292 + $0x6a8] sm:$0xff] %v719
                %v721 = vld [vmem:[%s291 + $0xd30] sm:$0xff]
                %722 = vst [vmem:[%s292 + $0x6b0] sm:$0xff] %v721
                %v723 = vld [vmem:[%s291 + $0xd38] sm:$0xff]
                %724 = vst [vmem:[%s292 + $0x6b8] sm:$0xff] %v723
                %v725 = vld [vmem:[%s291 + $0xd40] sm:$0xff]
                %726 = vst [vmem:[%s292 + $0x6c0] sm:$0xff] %v725
                %v727 = vld [vmem:[%s291 + $0xd48] sm:$0xff]
                %728 = vst [vmem:[%s292 + $0x6c8] sm:$0xff] %v727
                %v729 = vld [vmem:[%s291 + $0xd50] sm:$0xff]
                %730 = vst [vmem:[%s292 + $0x6d0] sm:$0xff] %v729
                %v731 = vld [vmem:[%s291 + $0xd58] sm:$0xff]
                %732 = vst [vmem:[%s292 + $0x6d8] sm:$0xff] %v731
                %v733 = vld [vmem:[%s291 + $0xd60] sm:$0xff]
                %734 = vst [vmem:[%s292 + $0x6e0] sm:$0xff] %v733
                %v735 = vld [vmem:[%s291 + $0xd68] sm:$0xff]
                %736 = vst [vmem:[%s292 + $0x6e8] sm:$0xff] %v735
                %v737 = vld [vmem:[%s291 + $0xd70] sm:$0xff]
                %738 = vst [vmem:[%s292 + $0x6f0] sm:$0xff] %v737
                %v739 = vld [vmem:[%s291 + $0xd78] sm:$0xff]
                %740 = vst [vmem:[%s292 + $0x6f8] sm:$0xff] %v739
                %v741 = vld [vmem:[%s291 + $0xe00] sm:$0xff]
                %742 = vst [vmem:[%s292 + $0x700] sm:$0xff] %v741
                %v743 = vld [vmem:[%s291 + $0xe08] sm:$0xff]
                %744 = vst [vmem:[%s292 + $0x708] sm:$0xff] %v743
                %v745 = vld [vmem:[%s291 + $0xe10] sm:$0xff]
                %746 = vst [vmem:[%s292 + $0x710] sm:$0xff] %v745
                %v747 = vld [vmem:[%s291 + $0xe18] sm:$0xff]
                %748 = vst [vmem:[%s292 + $0x718] sm:$0xff] %v747
                %v749 = vld [vmem:[%s291 + $0xe20] sm:$0xff]
                %750 = vst [vmem:[%s292 + $0x720] sm:$0xff] %v749
                %v751 = vld [vmem:[%s291 + $0xe28] sm:$0xff]
                %752 = vst [vmem:[%s292 + $0x728] sm:$0xff] %v751
                %v753 = vld [vmem:[%s291 + $0xe30] sm:$0xff]
                %754 = vst [vmem:[%s292 + $0x730] sm:$0xff] %v753
                %v755 = vld [vmem:[%s291 + $0xe38] sm:$0xff]
                %756 = vst [vmem:[%s292 + $0x738] sm:$0xff] %v755
                %v757 = vld [vmem:[%s291 + $0xe40] sm:$0xff]
                %758 = vst [vmem:[%s292 + $0x740] sm:$0xff] %v757
                %v759 = vld [vmem:[%s291 + $0xe48] sm:$0xff]
                %760 = vst [vmem:[%s292 + $0x748] sm:$0xff] %v759
                %v761 = vld [vmem:[%s291 + $0xe50] sm:$0xff]
                %762 = vst [vmem:[%s292 + $0x750] sm:$0xff] %v761
                %v763 = vld [vmem:[%s291 + $0xe58] sm:$0xff]
                %764 = vst [vmem:[%s292 + $0x758] sm:$0xff] %v763
                %v765 = vld [vmem:[%s291 + $0xe60] sm:$0xff]
                %766 = vst [vmem:[%s292 + $0x760] sm:$0xff] %v765
                %v767 = vld [vmem:[%s291 + $0xe68] sm:$0xff]
                %768 = vst [vmem:[%s292 + $0x768] sm:$0xff] %v767
                %v769 = vld [vmem:[%s291 + $0xe70] sm:$0xff]
                %770 = vst [vmem:[%s292 + $0x770] sm:$0xff] %v769
                %v771 = vld [vmem:[%s291 + $0xe78] sm:$0xff]
                %772 = vst [vmem:[%s292 + $0x778] sm:$0xff] %v771
                %v773 = vld [vmem:[%s291 + $0xf00] sm:$0xff]
                %774 = vst [vmem:[%s292 + $0x780] sm:$0xff] %v773
                %v775 = vld [vmem:[%s291 + $0xf08] sm:$0xff]
                %776 = vst [vmem:[%s292 + $0x788] sm:$0xff] %v775
                %v777 = vld [vmem:[%s291 + $0xf10] sm:$0xff]
                %778 = vst [vmem:[%s292 + $0x790] sm:$0xff] %v777
                %v779 = vld [vmem:[%s291 + $0xf18] sm:$0xff]
                %780 = vst [vmem:[%s292 + $0x798] sm:$0xff] %v779
                %v781 = vld [vmem:[%s291 + $0xf20] sm:$0xff]
                %782 = vst [vmem:[%s292 + $0x7a0] sm:$0xff] %v781
                %v783 = vld [vmem:[%s291 + $0xf28] sm:$0xff]
                %784 = vst [vmem:[%s292 + $0x7a8] sm:$0xff] %v783
                %v785 = vld [vmem:[%s291 + $0xf30] sm:$0xff]
                %786 = vst [vmem:[%s292 + $0x7b0] sm:$0xff] %v785
                %v787 = vld [vmem:[%s291 + $0xf38] sm:$0xff]
                %788 = vst [vmem:[%s292 + $0x7b8] sm:$0xff] %v787
                %v789 = vld [vmem:[%s291 + $0xf40] sm:$0xff]
                %790 = vst [vmem:[%s292 + $0x7c0] sm:$0xff] %v789
                %v791 = vld [vmem:[%s291 + $0xf48] sm:$0xff]
                %792 = vst [vmem:[%s292 + $0x7c8] sm:$0xff] %v791
                %v793 = vld [vmem:[%s291 + $0xf50] sm:$0xff]
                %794 = vst [vmem:[%s292 + $0x7d0] sm:$0xff] %v793
                %v795 = vld [vmem:[%s291 + $0xf58] sm:$0xff]
                %796 = vst [vmem:[%s292 + $0x7d8] sm:$0xff] %v795
                %v797 = vld [vmem:[%s291 + $0xf60] sm:$0xff]
                %798 = vst [vmem:[%s292 + $0x7e0] sm:$0xff] %v797
                %v799 = vld [vmem:[%s291 + $0xf68] sm:$0xff]
                %800 = vst [vmem:[%s292 + $0x7e8] sm:$0xff] %v799
                %v801 = vld [vmem:[%s291 + $0xf70] sm:$0xff]
                %802 = vst [vmem:[%s292 + $0x7f0] sm:$0xff] %v801
                %v803 = vld [vmem:[%s291 + $0xf78] sm:$0xff]
                %804 = vst [vmem:[%s292 + $0x7f8] sm:$0xff] %v803
              $region61: #{conv_block_final_double_forward.3} parent=55 // loop_footer
                %s290 = sadd.s32 1, %s286
              $region62: #{conv_block_final_double_forward.3} parent=55 // loop_footer_branch
                %285 = sbr.rel target = $region58
              $region63: #{conv_block_final_double_forward.3} parent=55 // loop_exit
                _
            $region56: #{conv_block_final_double_forward.3} parent=51 // pred_fallthru
              _
            // Predicated region
            $region64: #{conv_block_final_double_forward.3} parent=51 // pred_check
              _
            $region65: #{conv_block_final_double_forward.3} parent=51 // pred_check_branch
              %806 = sbr.rel target = $region67
            $region66: #{conv_block_final_double_forward.3} parent=51 // pred_region
              _
            $region67: #{conv_block_final_double_forward.3} parent=51 // pred_fallthru
              _
          $region52: #{conv_block_final_double_forward.3} parent=47 // pred_fallthru
            _
          %807 = vnop
        $region48: #{conv_block_final_double_forward.3} parent=43 // pred_fallthru
          _
      $region44: #{conv_block_final_double_forward.3} parent=5 // pred_fallthru
        _
      %p808 = scmp.le.s32.totalorder 1, %s14
      %p809 = scmp.lt.s32.totalorder %s14, 5
      %p810 = pnand %p808, %p809
      %p811 = pneg %p810
      // Predicated region
      $region68: #{conv_block_final_double_forward.3} parent=5 // pred_check
        _
      $region69: #{conv_block_final_double_forward.3} parent=5 // pred_check_branch
        %813 = sbr.rel (%p810) target = $region71
      $region70: #{conv_block_final_double_forward.3} parent=5 // pred_region
        %s814 = ssub.s32 %s14, 1
        %s815 = sand.u32 %s41, 1
        %s816 = sand.u32 %s41, 1
        %s817 = smul.addr %s816, 2048
        %s818 = scalar_lea.vmem [#allocation2], %s817
        // Predicated region
        $region72: #{conv_block_final_double_forward.3} parent=70 // pred_check
          %p819 = pneg %p54
        $region73: #{conv_block_final_double_forward.3} parent=70 // pred_check_branch
          %821 = sbr.rel (%p819) target = $region75
        $region74: #{conv_block_final_double_forward.3} parent=70 // pred_region
          _
        $region75: #{conv_block_final_double_forward.3} parent=70 // pred_fallthru
          _
        %s822 = sand.u32 %s41, 1
        %s823 = sand.u32 %s41, 1
        %s824 = smul.addr %s823, 2048
        %s825 = scalar_lea.vmem [#allocation2], %s824
        %p826 = pneg %p54
        %p827 = pneg %p51
        %p828 = pneg %p75
        %p829 = pneg %p72
        %p830 = pneg %p96
        %p831 = pneg %p93
        %p832 = pneg %p117
        %p833 = pneg %p114
        %p834 = pneg %p138
        %p835 = pneg %p135
        %p836 = pneg %p159
        %p837 = pneg %p156
        %p838 = pneg %p180
        %p839 = pneg %p177
        %p840 = pneg %p201
        %p841 = pneg %p198
        %p842 = pneg %p229
        %p843 = pneg %p226
        %s844 = smul.u32 16, %s24
        %p845 = scmp.lt.s32.totalorder %s23, 1
        %s846 = scalar_select %p845, %s23, 1
        %p847 = scmp.lt.s32.totalorder %s844, 31
        %s848 = scalar_select %p847, %s844, 31
        %s849 = smul.addr %s846, 32
        %s850 = sadd.s32 %s848, %s849
        %s851 = smul.addr %s850, 8
        %s852 = scalar_lea.vmem %s8, %s851
        %s853 = smul.u32 16, %s24
        %s854 = smul.u32 16, %s24
        %p855 = scmp.lt.s32.totalorder %s23, 1
        %s856 = scalar_select %p855, %s23, 1
        %p857 = scmp.lt.s32.totalorder %s854, 31
        %s858 = scalar_select %p857, %s854, 31
        %s859 = smul.addr %s856, 32
        %s860 = sadd.s32 %s858, %s859
        %s861 = smul.addr %s860, 8
        %s862 = scalar_lea.vmem %s8, %s861
        %s863 = smul.u32 16, %s24
        %v865 = vld [vmem:[%s2] sm:$0xff]
        %v866 = vld [vmem:[%s2 + $0x8] sm:$0xff]
        %v867 = vld [vmem:[%s2 + $0x10] sm:$0xff]
        %v868 = vld [vmem:[%s2 + $0x18] sm:$0xff]
        %v869 = vld [vmem:[%s2 + $0x20] sm:$0xff]
        %v870 = vld [vmem:[%s2 + $0x28] sm:$0xff]
        %v871 = vld [vmem:[%s2 + $0x30] sm:$0xff]
        %v872 = vld [vmem:[%s2 + $0x38] sm:$0xff]
        %v873 = vld [vmem:[%s2 + $0x40] sm:$0xff]
        %v874 = vld [vmem:[%s2 + $0x48] sm:$0xff]
        %v875 = vld [vmem:[%s2 + $0x50] sm:$0xff]
        %v876 = vld [vmem:[%s2 + $0x58] sm:$0xff]
        %v877 = vld [vmem:[%s2 + $0x60] sm:$0xff]
        %v878 = vld [vmem:[%s2 + $0x68] sm:$0xff]
        %v879 = vld [vmem:[%s2 + $0x70] sm:$0xff]
        %v880 = vld [vmem:[%s2 + $0x78] sm:$0xff]
        %v881 = vld [vmem:[%s2 + $0x80] sm:$0xff]
        %v882 = vld [vmem:[%s2 + $0x88] sm:$0xff]
        %v883 = vld [vmem:[%s2 + $0x90] sm:$0xff]
        %v884 = vld [vmem:[%s2 + $0x98] sm:$0xff]
        %v885 = vld [vmem:[%s2 + $0xa0] sm:$0xff]
        %v886 = vld [vmem:[%s2 + $0xa8] sm:$0xff]
        %v887 = vld [vmem:[%s2 + $0xb0] sm:$0xff]
        %v888 = vld [vmem:[%s2 + $0xb8] sm:$0xff]
        %v889 = vld [vmem:[%s2 + $0xc0] sm:$0xff]
        %v890 = vld [vmem:[%s2 + $0xc8] sm:$0xff]
        %v891 = vld [vmem:[%s2 + $0xd0] sm:$0xff]
        %v892 = vld [vmem:[%s2 + $0xd8] sm:$0xff]
        %v893 = vld [vmem:[%s2 + $0xe0] sm:$0xff]
        %v894 = vld [vmem:[%s2 + $0xe8] sm:$0xff]
        %v895 = vld [vmem:[%s2 + $0xf0] sm:$0xff]
        %v896 = vld [vmem:[%s2 + $0xf8] sm:$0xff]
        %v897 = vld [vmem:[%s2 + $0x100] sm:$0xff]
        %v898 = vld [vmem:[%s2 + $0x108] sm:$0xff]
        %v899 = vld [vmem:[%s2 + $0x110] sm:$0xff]
        %v900 = vld [vmem:[%s2 + $0x118] sm:$0xff]
        %v901 = vld [vmem:[%s2 + $0x120] sm:$0xff]
        %v902 = vld [vmem:[%s2 + $0x128] sm:$0xff]
        %vm903 = vcmask 7168
        %v904 = vsel %vm903, %v865, 0.0
        %v905 = vsel %vm903, %v884, 0.0
        %v906 = vadd.f32 %v904, %v905
        %v907 = vsel %vm903, %v866, 0.0
        %v908 = vsel %vm903, %v885, 0.0
        %v909 = vadd.f32 %v907, %v908
        %v910 = vsel %vm903, %v867, 0.0
        %v911 = vsel %vm903, %v886, 0.0
        %v912 = vadd.f32 %v910, %v911
        %v913 = vsel %vm903, %v868, 0.0
        %v914 = vsel %vm903, %v887, 0.0
        %v915 = vadd.f32 %v913, %v914
        %v916 = vsel %vm903, %v869, 0.0
        %v917 = vsel %vm903, %v888, 0.0
        %v918 = vadd.f32 %v916, %v917
        %v919 = vsel %vm903, %v870, 0.0
        %v920 = vsel %vm903, %v889, 0.0
        %v921 = vadd.f32 %v919, %v920
        %v922 = vsel %vm903, %v871, 0.0
        %v923 = vsel %vm903, %v890, 0.0
        %v924 = vadd.f32 %v922, %v923
        %v925 = vsel %vm903, %v872, 0.0
        %v926 = vsel %vm903, %v891, 0.0
        %v927 = vadd.f32 %v925, %v926
        %v928 = vsel %vm903, %v873, 0.0
        %v929 = vsel %vm903, %v892, 0.0
        %v930 = vadd.f32 %v928, %v929
        %v931 = vsel %vm903, %v874, 0.0
        %v932 = vsel %vm903, %v893, 0.0
        %v933 = vadd.f32 %v931, %v932
        %v934 = vsel %vm903, %v875, 0.0
        %v935 = vsel %vm903, %v894, 0.0
        %v936 = vadd.f32 %v934, %v935
        %v937 = vsel %vm903, %v876, 0.0
        %v938 = vsel %vm903, %v895, 0.0
        %v939 = vadd.f32 %v937, %v938
        %v940 = vsel %vm903, %v877, 0.0
        %v941 = vsel %vm903, %v896, 0.0
        %v942 = vadd.f32 %v940, %v941
        %v943 = vsel %vm903, %v878, 0.0
        %v944 = vsel %vm903, %v897, 0.0
        %v945 = vadd.f32 %v943, %v944
        %v946 = vsel %vm903, %v879, 0.0
        %v947 = vsel %vm903, %v898, 0.0
        %v948 = vadd.f32 %v946, %v947
        %v949 = vsel %vm903, %v880, 0.0
        %v950 = vsel %vm903, %v899, 0.0
        %v951 = vadd.f32 %v949, %v950
        %v952 = vsel %vm903, %v881, 0.0
        %v953 = vsel %vm903, %v900, 0.0
        %v954 = vadd.f32 %v952, %v953
        %v955 = vsel %vm903, %v882, 0.0
        %v956 = vsel %vm903, %v901, 0.0
        %v957 = vadd.f32 %v955, %v956
        %v958 = vsel %vm903, %v883, 0.0
        %v959 = vsel %vm903, %v902, 0.0
        %v960 = vadd.f32 %v958, %v959
        %v961 = vld [vmem:[%s3] sm:$0xff]
        %v962 = vld [vmem:[%s3 + $0x8] sm:$0xff]
        %v963 = vld [vmem:[%s3 + $0x10] sm:$0xff]
        %v964 = vld [vmem:[%s3 + $0x18] sm:$0xff]
        %v965 = vld [vmem:[%s3 + $0x20] sm:$0xff]
        %v966 = vld [vmem:[%s3 + $0x28] sm:$0xff]
        %v967 = vld [vmem:[%s3 + $0x30] sm:$0xff]
        %v968 = vld [vmem:[%s3 + $0x38] sm:$0xff]
        %v969 = vld [vmem:[%s3 + $0x40] sm:$0xff]
        %v970 = vld [vmem:[%s3 + $0x48] sm:$0xff]
        %v971 = vld [vmem:[%s3 + $0x50] sm:$0xff]
        %v972 = vld [vmem:[%s3 + $0x58] sm:$0xff]
        %v973 = vld [vmem:[%s3 + $0x60] sm:$0xff]
        %v974 = vld [vmem:[%s3 + $0x68] sm:$0xff]
        %v975 = vld [vmem:[%s3 + $0x70] sm:$0xff]
        %v976 = vld [vmem:[%s3 + $0x78] sm:$0xff]
        %v977 = vld [vmem:[%s3 + $0x80] sm:$0xff]
        %v978 = vld [vmem:[%s3 + $0x88] sm:$0xff]
        %v979 = vld [vmem:[%s3 + $0x90] sm:$0xff]
        %v980 = vld [vmem:[%s3 + $0x98] sm:$0xff]
        %v981 = vld [vmem:[%s3 + $0xa0] sm:$0xff]
        %v982 = vld [vmem:[%s3 + $0xa8] sm:$0xff]
        %v983 = vld [vmem:[%s3 + $0xb0] sm:$0xff]
        %v984 = vld [vmem:[%s3 + $0xb8] sm:$0xff]
        %v985 = vld [vmem:[%s3 + $0xc0] sm:$0xff]
        %v986 = vld [vmem:[%s3 + $0xc8] sm:$0xff]
        %v987 = vld [vmem:[%s3 + $0xd0] sm:$0xff]
        %v988 = vld [vmem:[%s3 + $0xd8] sm:$0xff]
        %v989 = vld [vmem:[%s3 + $0xe0] sm:$0xff]
        %v990 = vld [vmem:[%s3 + $0xe8] sm:$0xff]
        %v991 = vld [vmem:[%s3 + $0xf0] sm:$0xff]
        %v992 = vld [vmem:[%s3 + $0xf8] sm:$0xff]
        %v993 = vld [vmem:[%s3 + $0x100] sm:$0xff]
        %v994 = vld [vmem:[%s3 + $0x108] sm:$0xff]
        %v995 = vld [vmem:[%s3 + $0x110] sm:$0xff]
        %v996 = vld [vmem:[%s3 + $0x118] sm:$0xff]
        %v997 = vld [vmem:[%s3 + $0x120] sm:$0xff]
        %v998 = vld [vmem:[%s3 + $0x128] sm:$0xff]
        %v999 = vsel %vm903, %v961, 0.0
        %v1000 = vsel %vm903, %v980, 0.0
        %v1001 = vadd.f32 %v999, %v1000
        %v1002 = vsel %vm903, %v962, 0.0
        %v1003 = vsel %vm903, %v981, 0.0
        %v1004 = vadd.f32 %v1002, %v1003
        %v1005 = vsel %vm903, %v963, 0.0
        %v1006 = vsel %vm903, %v982, 0.0
        %v1007 = vadd.f32 %v1005, %v1006
        %v1008 = vsel %vm903, %v964, 0.0
        %v1009 = vsel %vm903, %v983, 0.0
        %v1010 = vadd.f32 %v1008, %v1009
        %v1011 = vsel %vm903, %v965, 0.0
        %v1012 = vsel %vm903, %v984, 0.0
        %v1013 = vadd.f32 %v1011, %v1012
        %v1014 = vsel %vm903, %v966, 0.0
        %v1015 = vsel %vm903, %v985, 0.0
        %v1016 = vadd.f32 %v1014, %v1015
        %v1017 = vsel %vm903, %v967, 0.0
        %v1018 = vsel %vm903, %v986, 0.0
        %v1019 = vadd.f32 %v1017, %v1018
        %v1020 = vsel %vm903, %v968, 0.0
        %v1021 = vsel %vm903, %v987, 0.0
        %v1022 = vadd.f32 %v1020, %v1021
        %v1023 = vsel %vm903, %v969, 0.0
        %v1024 = vsel %vm903, %v988, 0.0
        %v1025 = vadd.f32 %v1023, %v1024
        %v1026 = vsel %vm903, %v970, 0.0
        %v1027 = vsel %vm903, %v989, 0.0
        %v1028 = vadd.f32 %v1026, %v1027
        %v1029 = vsel %vm903, %v971, 0.0
        %v1030 = vsel %vm903, %v990, 0.0
        %v1031 = vadd.f32 %v1029, %v1030
        %v1032 = vsel %vm903, %v972, 0.0
        %v1033 = vsel %vm903, %v991, 0.0
        %v1034 = vadd.f32 %v1032, %v1033
        %v1035 = vsel %vm903, %v973, 0.0
        %v1036 = vsel %vm903, %v992, 0.0
        %v1037 = vadd.f32 %v1035, %v1036
        %v1038 = vsel %vm903, %v974, 0.0
        %v1039 = vsel %vm903, %v993, 0.0
        %v1040 = vadd.f32 %v1038, %v1039
        %v1041 = vsel %vm903, %v975, 0.0
        %v1042 = vsel %vm903, %v994, 0.0
        %v1043 = vadd.f32 %v1041, %v1042
        %v1044 = vsel %vm903, %v976, 0.0
        %v1045 = vsel %vm903, %v995, 0.0
        %v1046 = vadd.f32 %v1044, %v1045
        %v1047 = vsel %vm903, %v977, 0.0
        %v1048 = vsel %vm903, %v996, 0.0
        %v1049 = vadd.f32 %v1047, %v1048
        %v1050 = vsel %vm903, %v978, 0.0
        %v1051 = vsel %vm903, %v997, 0.0
        %v1052 = vadd.f32 %v1050, %v1051
        %v1053 = vsel %vm903, %v979, 0.0
        %v1054 = vsel %vm903, %v998, 0.0
        %v1055 = vadd.f32 %v1053, %v1054
        %v1056 = vmul.f32 %v906, 0.00012207031
        %v1057 = vmul.f32 %v909, 0.00012207031
        %v1058 = vmul.f32 %v912, 0.00012207031
        %v1059 = vmul.f32 %v915, 0.00012207031
        %v1060 = vmul.f32 %v918, 0.00012207031
        %v1061 = vmul.f32 %v921, 0.00012207031
        %v1062 = vmul.f32 %v924, 0.00012207031
        %v1063 = vmul.f32 %v927, 0.00012207031
        %v1064 = vmul.f32 %v930, 0.00012207031
        %v1065 = vmul.f32 %v933, 0.00012207031
        %v1066 = vmul.f32 %v936, 0.00012207031
        %v1067 = vmul.f32 %v939, 0.00012207031
        %v1068 = vmul.f32 %v942, 0.00012207031
        %v1069 = vmul.f32 %v945, 0.00012207031
        %v1070 = vmul.f32 %v948, 0.00012207031
        %v1071 = vmul.f32 %v951, 0.00012207031
        %v1072 = vmul.f32 %v954, 0.00012207031
        %v1073 = vmul.f32 %v957, 0.00012207031
        %v1074 = vmul.f32 %v960, 0.00012207031
        %v1075 = vmul.f32 %v1001, 0.00012207031
        %v1076 = vmul.f32 %v1004, 0.00012207031
        %v1077 = vmul.f32 %v1007, 0.00012207031
        %v1078 = vmul.f32 %v1010, 0.00012207031
        %v1079 = vmul.f32 %v1013, 0.00012207031
        %v1080 = vmul.f32 %v1016, 0.00012207031
        %v1081 = vmul.f32 %v1019, 0.00012207031
        %v1082 = vmul.f32 %v1022, 0.00012207031
        %v1083 = vmul.f32 %v1025, 0.00012207031
        %v1084 = vmul.f32 %v1028, 0.00012207031
        %v1085 = vmul.f32 %v1031, 0.00012207031
        %v1086 = vmul.f32 %v1034, 0.00012207031
        %v1087 = vmul.f32 %v1037, 0.00012207031
        %v1088 = vmul.f32 %v1040, 0.00012207031
        %v1089 = vmul.f32 %v1043, 0.00012207031
        %v1090 = vmul.f32 %v1046, 0.00012207031
        %v1091 = vmul.f32 %v1049, 0.00012207031
        %v1092 = vmul.f32 %v1052, 0.00012207031
        %v1093 = vmul.f32 %v1055, 0.00012207031
        %v1094 = vmul.f32 %v1056, %v1056
        %v1095 = vmul.f32 %v1057, %v1057
        %v1096 = vmul.f32 %v1058, %v1058
        %v1097 = vmul.f32 %v1059, %v1059
        %v1098 = vmul.f32 %v1060, %v1060
        %v1099 = vmul.f32 %v1061, %v1061
        %v1100 = vmul.f32 %v1062, %v1062
        %v1101 = vmul.f32 %v1063, %v1063
        %v1102 = vmul.f32 %v1064, %v1064
        %v1103 = vmul.f32 %v1065, %v1065
        %v1104 = vmul.f32 %v1066, %v1066
        %v1105 = vmul.f32 %v1067, %v1067
        %v1106 = vmul.f32 %v1068, %v1068
        %v1107 = vmul.f32 %v1069, %v1069
        %v1108 = vmul.f32 %v1070, %v1070
        %v1109 = vmul.f32 %v1071, %v1071
        %v1110 = vmul.f32 %v1072, %v1072
        %v1111 = vmul.f32 %v1073, %v1073
        %v1112 = vmul.f32 %v1074, %v1074
        %v1113 = vsub.f32 %v1075, %v1094
        %v1114 = vsub.f32 %v1076, %v1095
        %v1115 = vsub.f32 %v1077, %v1096
        %v1116 = vsub.f32 %v1078, %v1097
        %v1117 = vsub.f32 %v1079, %v1098
        %v1118 = vsub.f32 %v1080, %v1099
        %v1119 = vsub.f32 %v1081, %v1100
        %v1120 = vsub.f32 %v1082, %v1101
        %v1121 = vsub.f32 %v1083, %v1102
        %v1122 = vsub.f32 %v1084, %v1103
        %v1123 = vsub.f32 %v1085, %v1104
        %v1124 = vsub.f32 %v1086, %v1105
        %v1125 = vsub.f32 %v1087, %v1106
        %v1126 = vsub.f32 %v1088, %v1107
        %v1127 = vsub.f32 %v1089, %v1108
        %v1128 = vsub.f32 %v1090, %v1109
        %v1129 = vsub.f32 %v1091, %v1110
        %v1130 = vsub.f32 %v1092, %v1111
        %v1131 = vsub.f32 %v1093, %v1112
        %v1132 = vmax.f32 %v1113, 0.0
        %v1133 = vmax.f32 %v1114, 0.0
        %v1134 = vmax.f32 %v1115, 0.0
        %v1135 = vmax.f32 %v1116, 0.0
        %v1136 = vmax.f32 %v1117, 0.0
        %v1137 = vmax.f32 %v1118, 0.0
        %v1138 = vmax.f32 %v1119, 0.0
        %v1139 = vmax.f32 %v1120, 0.0
        %v1140 = vmax.f32 %v1121, 0.0
        %v1141 = vmax.f32 %v1122, 0.0
        %v1142 = vmax.f32 %v1123, 0.0
        %v1143 = vmax.f32 %v1124, 0.0
        %v1144 = vmax.f32 %v1125, 0.0
        %v1145 = vmax.f32 %v1126, 0.0
        %v1146 = vmax.f32 %v1127, 0.0
        %v1147 = vmax.f32 %v1128, 0.0
        %v1148 = vmax.f32 %v1129, 0.0
        %v1149 = vmax.f32 %v1130, 0.0
        %v1150 = vmax.f32 %v1131, 0.0
        %v1151 = vld [vmem:[%s4] sm:$0xff]
        %v1152 = vld [vmem:[%s4 + $0x8] sm:$0xff]
        %v1153 = vld [vmem:[%s4 + $0x10] sm:$0xff]
        %v1154 = vld [vmem:[%s4 + $0x18] sm:$0xff]
        %v1155 = vld [vmem:[%s4 + $0x20] sm:$0xff]
        %v1156 = vld [vmem:[%s4 + $0x28] sm:$0xff]
        %v1157 = vld [vmem:[%s4 + $0x30] sm:$0xff]
        %v1158 = vld [vmem:[%s4 + $0x38] sm:$0xff]
        %v1159 = vld [vmem:[%s4 + $0x40] sm:$0xff]
        %v1160 = vld [vmem:[%s4 + $0x48] sm:$0xff]
        %v1161 = vld [vmem:[%s4 + $0x50] sm:$0xff]
        %v1162 = vld [vmem:[%s4 + $0x58] sm:$0xff]
        %v1163 = vld [vmem:[%s4 + $0x60] sm:$0xff]
        %v1164 = vld [vmem:[%s4 + $0x68] sm:$0xff]
        %v1165 = vld [vmem:[%s4 + $0x70] sm:$0xff]
        %v1166 = vld [vmem:[%s4 + $0x78] sm:$0xff]
        %v1167 = vld [vmem:[%s4 + $0x80] sm:$0xff]
        %v1168 = vld [vmem:[%s4 + $0x88] sm:$0xff]
        %v1169 = vld [vmem:[%s4 + $0x90] sm:$0xff]
        %v1170 = vadd.f32 %v1132, 1e-05
        %v1171 = vadd.f32 %v1133, 1e-05
        %v1172 = vadd.f32 %v1134, 1e-05
        %v1173 = vadd.f32 %v1135, 1e-05
        %v1174 = vadd.f32 %v1136, 1e-05
        %v1175 = vadd.f32 %v1137, 1e-05
        %v1176 = vadd.f32 %v1138, 1e-05
        %v1177 = vadd.f32 %v1139, 1e-05
        %v1178 = vadd.f32 %v1140, 1e-05
        %v1179 = vadd.f32 %v1141, 1e-05
        %v1180 = vadd.f32 %v1142, 1e-05
        %v1181 = vadd.f32 %v1143, 1e-05
        %v1182 = vadd.f32 %v1144, 1e-05
        %v1183 = vadd.f32 %v1145, 1e-05
        %v1184 = vadd.f32 %v1146, 1e-05
        %v1185 = vadd.f32 %v1147, 1e-05
        %v1186 = vadd.f32 %v1148, 1e-05
        %v1187 = vadd.f32 %v1149, 1e-05
        %v1188 = vadd.f32 %v1150, 1e-05
        %v1189 = vrsqrt.pop %v1170
        %v1190 = vrsqrt.pop %v1171
        %v1191 = vrsqrt.pop %v1172
        %v1192 = vrsqrt.pop %v1173
        %v1193 = vrsqrt.pop %v1174
        %v1194 = vrsqrt.pop %v1175
        %v1195 = vrsqrt.pop %v1176
        %v1196 = vrsqrt.pop %v1177
        %v1197 = vrsqrt.pop %v1178
        %v1198 = vrsqrt.pop %v1179
        %v1199 = vrsqrt.pop %v1180
        %v1200 = vrsqrt.pop %v1181
        %v1201 = vrsqrt.pop %v1182
        %v1202 = vrsqrt.pop %v1183
        %v1203 = vrsqrt.pop %v1184
        %v1204 = vrsqrt.pop %v1185
        %v1205 = vrsqrt.pop %v1186
        %v1206 = vrsqrt.pop %v1187
        %v1207 = vrsqrt.pop %v1188
        %v1208 = vmul.f32 %v1151, %v1189
        %v1209 = vmul.f32 %v1152, %v1190
        %v1210 = vmul.f32 %v1153, %v1191
        %v1211 = vmul.f32 %v1154, %v1192
        %v1212 = vmul.f32 %v1155, %v1193
        %v1213 = vmul.f32 %v1156, %v1194
        %v1214 = vmul.f32 %v1157, %v1195
        %v1215 = vmul.f32 %v1158, %v1196
        %v1216 = vmul.f32 %v1159, %v1197
        %v1217 = vmul.f32 %v1160, %v1198
        %v1218 = vmul.f32 %v1161, %v1199
        %v1219 = vmul.f32 %v1162, %v1200
        %v1220 = vmul.f32 %v1163, %v1201
        %v1221 = vmul.f32 %v1164, %v1202
        %v1222 = vmul.f32 %v1165, %v1203
        %v1223 = vmul.f32 %v1166, %v1204
        %v1224 = vmul.f32 %v1167, %v1205
        %v1225 = vmul.f32 %v1168, %v1206
        %v1226 = vmul.f32 %v1169, %v1207
        %v1227 = vld [vmem:[%s5] sm:$0xff]
        %v1228 = vld [vmem:[%s5 + $0x8] sm:$0xff]
        %v1229 = vld [vmem:[%s5 + $0x10] sm:$0xff]
        %v1230 = vld [vmem:[%s5 + $0x18] sm:$0xff]
        %v1231 = vld [vmem:[%s5 + $0x20] sm:$0xff]
        %v1232 = vld [vmem:[%s5 + $0x28] sm:$0xff]
        %v1233 = vld [vmem:[%s5 + $0x30] sm:$0xff]
        %v1234 = vld [vmem:[%s5 + $0x38] sm:$0xff]
        %v1235 = vld [vmem:[%s5 + $0x40] sm:$0xff]
        %v1236 = vld [vmem:[%s5 + $0x48] sm:$0xff]
        %v1237 = vld [vmem:[%s5 + $0x50] sm:$0xff]
        %v1238 = vld [vmem:[%s5 + $0x58] sm:$0xff]
        %v1239 = vld [vmem:[%s5 + $0x60] sm:$0xff]
        %v1240 = vld [vmem:[%s5 + $0x68] sm:$0xff]
        %v1241 = vld [vmem:[%s5 + $0x70] sm:$0xff]
        %v1242 = vld [vmem:[%s5 + $0x78] sm:$0xff]
        %v1243 = vld [vmem:[%s5 + $0x80] sm:$0xff]
        %v1244 = vld [vmem:[%s5 + $0x88] sm:$0xff]
        %v1245 = vld [vmem:[%s5 + $0x90] sm:$0xff]
        %v1246 = vmul.f32 %v1056, %v1208
        %v1247 = vmul.f32 %v1057, %v1209
        %v1248 = vmul.f32 %v1058, %v1210
        %v1249 = vmul.f32 %v1059, %v1211
        %v1250 = vmul.f32 %v1060, %v1212
        %v1251 = vmul.f32 %v1061, %v1213
        %v1252 = vmul.f32 %v1062, %v1214
        %v1253 = vmul.f32 %v1063, %v1215
        %v1254 = vmul.f32 %v1064, %v1216
        %v1255 = vmul.f32 %v1065, %v1217
        %v1256 = vmul.f32 %v1066, %v1218
        %v1257 = vmul.f32 %v1067, %v1219
        %v1258 = vmul.f32 %v1068, %v1220
        %v1259 = vmul.f32 %v1069, %v1221
        %v1260 = vmul.f32 %v1070, %v1222
        %v1261 = vmul.f32 %v1071, %v1223
        %v1262 = vmul.f32 %v1072, %v1224
        %v1263 = vmul.f32 %v1073, %v1225
        %v1264 = vmul.f32 %v1074, %v1226
        %v1265 = vsub.f32 %v1227, %v1246
        %v1266 = vsub.f32 %v1228, %v1247
        %v1267 = vsub.f32 %v1229, %v1248
        %v1268 = vsub.f32 %v1230, %v1249
        %v1269 = vsub.f32 %v1231, %v1250
        %v1270 = vsub.f32 %v1232, %v1251
        %v1271 = vsub.f32 %v1233, %v1252
        %v1272 = vsub.f32 %v1234, %v1253
        %v1273 = vsub.f32 %v1235, %v1254
        %v1274 = vsub.f32 %v1236, %v1255
        %v1275 = vsub.f32 %v1237, %v1256
        %v1276 = vsub.f32 %v1238, %v1257
        %v1277 = vsub.f32 %v1239, %v1258
        %v1278 = vsub.f32 %v1240, %v1259
        %v1279 = vsub.f32 %v1241, %v1260
        %v1280 = vsub.f32 %v1242, %v1261
        %v1281 = vsub.f32 %v1243, %v1262
        %v1282 = vsub.f32 %v1244, %v1263
        %v1283 = vsub.f32 %v1245, %v1264
        %v1284 = vld [vmem:[%s818] sm:$0xff]
        %v1285 = vld [vmem:[%s818 + $0x8] sm:$0xff]
        %v1286 = vld [vmem:[%s818 + $0x10] sm:$0xff]
        %v1287 = vld [vmem:[%s818 + $0x18] sm:$0xff]
        %v1288 = vld [vmem:[%s818 + $0x20] sm:$0xff]
        %v1289 = vld [vmem:[%s818 + $0x28] sm:$0xff]
        %v1290 = vld [vmem:[%s818 + $0x30] sm:$0xff]
        %v1291 = vld [vmem:[%s818 + $0x38] sm:$0xff]
        %v1292 = vld [vmem:[%s818 + $0x40] sm:$0xff]
        %v1293 = vld [vmem:[%s818 + $0x48] sm:$0xff]
        %v1294 = vld [vmem:[%s818 + $0x50] sm:$0xff]
        %v1295 = vld [vmem:[%s818 + $0x58] sm:$0xff]
        %v1296 = vld [vmem:[%s818 + $0x60] sm:$0xff]
        %v1297 = vld [vmem:[%s818 + $0x68] sm:$0xff]
        %v1298 = vld [vmem:[%s818 + $0x70] sm:$0xff]
        %v1299 = vld [vmem:[%s818 + $0x78] sm:$0xff]
        %v1300 = vld [vmem:[%s818 + $0x80] sm:$0xff]
        %v1301 = vld [vmem:[%s818 + $0x88] sm:$0xff]
        %v1302 = vld [vmem:[%s818 + $0x90] sm:$0xff]
        %v1303 = vld [vmem:[%s818 + $0x98] sm:$0xff]
        %v1304 = vld [vmem:[%s818 + $0xa0] sm:$0xff]
        %v1305 = vld [vmem:[%s818 + $0xa8] sm:$0xff]
        %v1306 = vld [vmem:[%s818 + $0xb0] sm:$0xff]
        %v1307 = vld [vmem:[%s818 + $0xb8] sm:$0xff]
        %v1308 = vld [vmem:[%s818 + $0xc0] sm:$0xff]
        %v1309 = vld [vmem:[%s818 + $0xc8] sm:$0xff]
        %v1310 = vld [vmem:[%s818 + $0xd0] sm:$0xff]
        %v1311 = vld [vmem:[%s818 + $0xd8] sm:$0xff]
        %v1312 = vld [vmem:[%s818 + $0xe0] sm:$0xff]
        %v1313 = vld [vmem:[%s818 + $0xe8] sm:$0xff]
        %v1314 = vld [vmem:[%s818 + $0xf0] sm:$0xff]
        %v1315 = vld [vmem:[%s818 + $0xf8] sm:$0xff]
        %v1316 = vld [vmem:[%s818 + $0x100] sm:$0xff]
        %v1317 = vld [vmem:[%s818 + $0x108] sm:$0xff]
        %v1318 = vld [vmem:[%s818 + $0x110] sm:$0xff]
        %v1319 = vld [vmem:[%s818 + $0x118] sm:$0xff]
        %v1320 = vld [vmem:[%s818 + $0x120] sm:$0xff]
        %v1321 = vld [vmem:[%s818 + $0x128] sm:$0xff]
        %v1322 = vld [vmem:[%s818 + $0x130] sm:$0xff]
        %v1323 = vld [vmem:[%s818 + $0x138] sm:$0xff]
        %v1324 = vld [vmem:[%s818 + $0x140] sm:$0xff]
        %v1325 = vld [vmem:[%s818 + $0x148] sm:$0xff]
        %v1326 = vld [vmem:[%s818 + $0x150] sm:$0xff]
        %v1327 = vld [vmem:[%s818 + $0x158] sm:$0xff]
        %v1328 = vld [vmem:[%s818 + $0x160] sm:$0xff]
        %v1329 = vld [vmem:[%s818 + $0x168] sm:$0xff]
        %v1330 = vld [vmem:[%s818 + $0x170] sm:$0xff]
        %v1331 = vld [vmem:[%s818 + $0x178] sm:$0xff]
        %v1332 = vld [vmem:[%s818 + $0x180] sm:$0xff]
        %v1333 = vld [vmem:[%s818 + $0x188] sm:$0xff]
        %v1334 = vld [vmem:[%s818 + $0x190] sm:$0xff]
        %v1335 = vld [vmem:[%s818 + $0x198] sm:$0xff]
        %v1336 = vld [vmem:[%s818 + $0x1a0] sm:$0xff]
        %v1337 = vld [vmem:[%s818 + $0x1a8] sm:$0xff]
        %v1338 = vld [vmem:[%s818 + $0x1b0] sm:$0xff]
        %v1339 = vld [vmem:[%s818 + $0x1b8] sm:$0xff]
        %v1340 = vld [vmem:[%s818 + $0x1c0] sm:$0xff]
        %v1341 = vld [vmem:[%s818 + $0x1c8] sm:$0xff]
        %v1342 = vld [vmem:[%s818 + $0x1d0] sm:$0xff]
        %v1343 = vld [vmem:[%s818 + $0x1d8] sm:$0xff]
        %v1344 = vld [vmem:[%s818 + $0x1e0] sm:$0xff]
        %v1345 = vld [vmem:[%s818 + $0x1e8] sm:$0xff]
        %v1346 = vld [vmem:[%s818 + $0x1f0] sm:$0xff]
        %v1347 = vld [vmem:[%s818 + $0x1f8] sm:$0xff]
        %v1348 = vld [vmem:[%s818 + $0x200] sm:$0xff]
        %v1349 = vld [vmem:[%s818 + $0x208] sm:$0xff]
        %v1350 = vld [vmem:[%s818 + $0x210] sm:$0xff]
        %v1351 = vld [vmem:[%s818 + $0x218] sm:$0xff]
        %v1352 = vld [vmem:[%s818 + $0x220] sm:$0xff]
        %v1353 = vld [vmem:[%s818 + $0x228] sm:$0xff]
        %v1354 = vld [vmem:[%s818 + $0x230] sm:$0xff]
        %v1355 = vld [vmem:[%s818 + $0x238] sm:$0xff]
        %v1356 = vld [vmem:[%s818 + $0x240] sm:$0xff]
        %v1357 = vld [vmem:[%s818 + $0x248] sm:$0xff]
        %v1358 = vld [vmem:[%s818 + $0x250] sm:$0xff]
        %v1359 = vld [vmem:[%s818 + $0x258] sm:$0xff]
        %v1360 = vld [vmem:[%s818 + $0x260] sm:$0xff]
        %v1361 = vld [vmem:[%s818 + $0x268] sm:$0xff]
        %v1362 = vld [vmem:[%s818 + $0x270] sm:$0xff]
        %v1363 = vld [vmem:[%s818 + $0x278] sm:$0xff]
        %v1364 = vld [vmem:[%s818 + $0x280] sm:$0xff]
        %v1365 = vld [vmem:[%s818 + $0x288] sm:$0xff]
        %v1366 = vld [vmem:[%s818 + $0x290] sm:$0xff]
        %v1367 = vld [vmem:[%s818 + $0x298] sm:$0xff]
        %v1368 = vld [vmem:[%s818 + $0x2a0] sm:$0xff]
        %v1369 = vld [vmem:[%s818 + $0x2a8] sm:$0xff]
        %v1370 = vld [vmem:[%s818 + $0x2b0] sm:$0xff]
        %v1371 = vld [vmem:[%s818 + $0x2b8] sm:$0xff]
        %v1372 = vld [vmem:[%s818 + $0x2c0] sm:$0xff]
        %v1373 = vld [vmem:[%s818 + $0x2c8] sm:$0xff]
        %v1374 = vld [vmem:[%s818 + $0x2d0] sm:$0xff]
        %v1375 = vld [vmem:[%s818 + $0x2d8] sm:$0xff]
        %v1376 = vld [vmem:[%s818 + $0x2e0] sm:$0xff]
        %v1377 = vld [vmem:[%s818 + $0x2e8] sm:$0xff]
        %v1378 = vld [vmem:[%s818 + $0x2f0] sm:$0xff]
        %v1379 = vld [vmem:[%s818 + $0x2f8] sm:$0xff]
        %v1380 = vld [vmem:[%s818 + $0x300] sm:$0xff]
        %v1381 = vld [vmem:[%s818 + $0x308] sm:$0xff]
        %v1382 = vld [vmem:[%s818 + $0x310] sm:$0xff]
        %v1383 = vld [vmem:[%s818 + $0x318] sm:$0xff]
        %v1384 = vld [vmem:[%s818 + $0x320] sm:$0xff]
        %v1385 = vld [vmem:[%s818 + $0x328] sm:$0xff]
        %v1386 = vld [vmem:[%s818 + $0x330] sm:$0xff]
        %v1387 = vld [vmem:[%s818 + $0x338] sm:$0xff]
        %v1388 = vld [vmem:[%s818 + $0x340] sm:$0xff]
        %v1389 = vld [vmem:[%s818 + $0x348] sm:$0xff]
        %v1390 = vld [vmem:[%s818 + $0x350] sm:$0xff]
        %v1391 = vld [vmem:[%s818 + $0x358] sm:$0xff]
        %v1392 = vld [vmem:[%s818 + $0x360] sm:$0xff]
        %v1393 = vld [vmem:[%s818 + $0x368] sm:$0xff]
        %v1394 = vld [vmem:[%s818 + $0x370] sm:$0xff]
        %v1395 = vld [vmem:[%s818 + $0x378] sm:$0xff]
        %v1396 = vld [vmem:[%s818 + $0x380] sm:$0xff]
        %v1397 = vld [vmem:[%s818 + $0x388] sm:$0xff]
        %v1398 = vld [vmem:[%s818 + $0x390] sm:$0xff]
        %v1399 = vld [vmem:[%s818 + $0x398] sm:$0xff]
        %v1400 = vld [vmem:[%s818 + $0x3a0] sm:$0xff]
        %v1401 = vld [vmem:[%s818 + $0x3a8] sm:$0xff]
        %v1402 = vld [vmem:[%s818 + $0x3b0] sm:$0xff]
        %v1403 = vld [vmem:[%s818 + $0x3b8] sm:$0xff]
        %v1404 = vld [vmem:[%s818 + $0x3c0] sm:$0xff]
        %v1405 = vld [vmem:[%s818 + $0x3c8] sm:$0xff]
        %v1406 = vld [vmem:[%s818 + $0x3d0] sm:$0xff]
        %v1407 = vld [vmem:[%s818 + $0x3d8] sm:$0xff]
        %v1408 = vld [vmem:[%s818 + $0x3e0] sm:$0xff]
        %v1409 = vld [vmem:[%s818 + $0x3e8] sm:$0xff]
        %v1410 = vld [vmem:[%s818 + $0x3f0] sm:$0xff]
        %v1411 = vld [vmem:[%s818 + $0x3f8] sm:$0xff]
        %v1412 = vld [vmem:[%s818 + $0x400] sm:$0xff]
        %v1413 = vld [vmem:[%s818 + $0x408] sm:$0xff]
        %v1414 = vld [vmem:[%s818 + $0x410] sm:$0xff]
        %v1415 = vld [vmem:[%s818 + $0x418] sm:$0xff]
        %v1416 = vld [vmem:[%s818 + $0x420] sm:$0xff]
        %v1417 = vld [vmem:[%s818 + $0x428] sm:$0xff]
        %v1418 = vld [vmem:[%s818 + $0x430] sm:$0xff]
        %v1419 = vld [vmem:[%s818 + $0x438] sm:$0xff]
        %v1420 = vld [vmem:[%s818 + $0x440] sm:$0xff]
        %v1421 = vld [vmem:[%s818 + $0x448] sm:$0xff]
        %v1422 = vld [vmem:[%s818 + $0x450] sm:$0xff]
        %v1423 = vld [vmem:[%s818 + $0x458] sm:$0xff]
        %v1424 = vld [vmem:[%s818 + $0x460] sm:$0xff]
        %v1425 = vld [vmem:[%s818 + $0x468] sm:$0xff]
        %v1426 = vld [vmem:[%s818 + $0x470] sm:$0xff]
        %v1427 = vld [vmem:[%s818 + $0x478] sm:$0xff]
        %v1428 = vld [vmem:[%s818 + $0x480] sm:$0xff]
        %v1429 = vld [vmem:[%s818 + $0x488] sm:$0xff]
        %v1430 = vld [vmem:[%s818 + $0x490] sm:$0xff]
        %v1431 = vld [vmem:[%s818 + $0x498] sm:$0xff]
        %v1432 = vld [vmem:[%s818 + $0x4a0] sm:$0xff]
        %v1433 = vld [vmem:[%s818 + $0x4a8] sm:$0xff]
        %v1434 = vld [vmem:[%s818 + $0x4b0] sm:$0xff]
        %v1435 = vld [vmem:[%s818 + $0x4b8] sm:$0xff]
        %v1436 = vld [vmem:[%s818 + $0x4c0] sm:$0xff]
        %v1437 = vld [vmem:[%s818 + $0x4c8] sm:$0xff]
        %v1438 = vld [vmem:[%s818 + $0x4d0] sm:$0xff]
        %v1439 = vld [vmem:[%s818 + $0x4d8] sm:$0xff]
        %v1440 = vld [vmem:[%s818 + $0x4e0] sm:$0xff]
        %v1441 = vld [vmem:[%s818 + $0x4e8] sm:$0xff]
        %v1442 = vld [vmem:[%s818 + $0x4f0] sm:$0xff]
        %v1443 = vld [vmem:[%s818 + $0x4f8] sm:$0xff]
        %v1444 = vld [vmem:[%s818 + $0x500] sm:$0xff]
        %v1445 = vld [vmem:[%s818 + $0x508] sm:$0xff]
        %v1446 = vld [vmem:[%s818 + $0x510] sm:$0xff]
        %v1447 = vld [vmem:[%s818 + $0x518] sm:$0xff]
        %v1448 = vld [vmem:[%s818 + $0x520] sm:$0xff]
        %v1449 = vld [vmem:[%s818 + $0x528] sm:$0xff]
        %v1450 = vld [vmem:[%s818 + $0x530] sm:$0xff]
        %v1451 = vld [vmem:[%s818 + $0x538] sm:$0xff]
        %v1452 = vld [vmem:[%s818 + $0x540] sm:$0xff]
        %v1453 = vld [vmem:[%s818 + $0x548] sm:$0xff]
        %v1454 = vld [vmem:[%s818 + $0x550] sm:$0xff]
        %v1455 = vld [vmem:[%s818 + $0x558] sm:$0xff]
        %v1456 = vld [vmem:[%s818 + $0x560] sm:$0xff]
        %v1457 = vld [vmem:[%s818 + $0x568] sm:$0xff]
        %v1458 = vld [vmem:[%s818 + $0x570] sm:$0xff]
        %v1459 = vld [vmem:[%s818 + $0x578] sm:$0xff]
        %v1460 = vld [vmem:[%s818 + $0x580] sm:$0xff]
        %v1461 = vld [vmem:[%s818 + $0x588] sm:$0xff]
        %v1462 = vld [vmem:[%s818 + $0x590] sm:$0xff]
        %v1463 = vld [vmem:[%s818 + $0x598] sm:$0xff]
        %v1464 = vld [vmem:[%s818 + $0x5a0] sm:$0xff]
        %v1465 = vld [vmem:[%s818 + $0x5a8] sm:$0xff]
        %v1466 = vld [vmem:[%s818 + $0x5b0] sm:$0xff]
        %v1467 = vld [vmem:[%s818 + $0x5b8] sm:$0xff]
        %v1468 = vld [vmem:[%s818 + $0x5c0] sm:$0xff]
        %v1469 = vld [vmem:[%s818 + $0x5c8] sm:$0xff]
        %v1470 = vld [vmem:[%s818 + $0x5d0] sm:$0xff]
        %v1471 = vld [vmem:[%s818 + $0x5d8] sm:$0xff]
        %v1472 = vld [vmem:[%s818 + $0x5e0] sm:$0xff]
        %v1473 = vld [vmem:[%s818 + $0x5e8] sm:$0xff]
        %v1474 = vld [vmem:[%s818 + $0x5f0] sm:$0xff]
        %v1475 = vld [vmem:[%s818 + $0x5f8] sm:$0xff]
        %v1476 = vld [vmem:[%s818 + $0x600] sm:$0xff]
        %v1477 = vld [vmem:[%s818 + $0x608] sm:$0xff]
        %v1478 = vld [vmem:[%s818 + $0x610] sm:$0xff]
        %v1479 = vld [vmem:[%s818 + $0x618] sm:$0xff]
        %v1480 = vld [vmem:[%s818 + $0x620] sm:$0xff]
        %v1481 = vld [vmem:[%s818 + $0x628] sm:$0xff]
        %v1482 = vld [vmem:[%s818 + $0x630] sm:$0xff]
        %v1483 = vld [vmem:[%s818 + $0x638] sm:$0xff]
        %v1484 = vld [vmem:[%s818 + $0x640] sm:$0xff]
        %v1485 = vld [vmem:[%s818 + $0x648] sm:$0xff]
        %v1486 = vld [vmem:[%s818 + $0x650] sm:$0xff]
        %v1487 = vld [vmem:[%s818 + $0x658] sm:$0xff]
        %v1488 = vld [vmem:[%s818 + $0x660] sm:$0xff]
        %v1489 = vld [vmem:[%s818 + $0x668] sm:$0xff]
        %v1490 = vld [vmem:[%s818 + $0x670] sm:$0xff]
        %v1491 = vld [vmem:[%s818 + $0x678] sm:$0xff]
        %v1492 = vld [vmem:[%s818 + $0x680] sm:$0xff]
        %v1493 = vld [vmem:[%s818 + $0x688] sm:$0xff]
        %v1494 = vld [vmem:[%s818 + $0x690] sm:$0xff]
        %v1495 = vld [vmem:[%s818 + $0x698] sm:$0xff]
        %v1496 = vld [vmem:[%s818 + $0x6a0] sm:$0xff]
        %v1497 = vld [vmem:[%s818 + $0x6a8] sm:$0xff]
        %v1498 = vld [vmem:[%s818 + $0x6b0] sm:$0xff]
        %v1499 = vld [vmem:[%s818 + $0x6b8] sm:$0xff]
        %v1500 = vld [vmem:[%s818 + $0x6c0] sm:$0xff]
        %v1501 = vld [vmem:[%s818 + $0x6c8] sm:$0xff]
        %v1502 = vld [vmem:[%s818 + $0x6d0] sm:$0xff]
        %v1503 = vld [vmem:[%s818 + $0x6d8] sm:$0xff]
        %v1504 = vld [vmem:[%s818 + $0x6e0] sm:$0xff]
        %v1505 = vld [vmem:[%s818 + $0x6e8] sm:$0xff]
        %v1506 = vld [vmem:[%s818 + $0x6f0] sm:$0xff]
        %v1507 = vld [vmem:[%s818 + $0x6f8] sm:$0xff]
        %v1508 = vld [vmem:[%s818 + $0x700] sm:$0xff]
        %v1509 = vld [vmem:[%s818 + $0x708] sm:$0xff]
        %v1510 = vld [vmem:[%s818 + $0x710] sm:$0xff]
        %v1511 = vld [vmem:[%s818 + $0x718] sm:$0xff]
        %v1512 = vld [vmem:[%s818 + $0x720] sm:$0xff]
        %v1513 = vld [vmem:[%s818 + $0x728] sm:$0xff]
        %v1514 = vld [vmem:[%s818 + $0x730] sm:$0xff]
        %v1515 = vld [vmem:[%s818 + $0x738] sm:$0xff]
        %v1516 = vld [vmem:[%s818 + $0x740] sm:$0xff]
        %v1517 = vld [vmem:[%s818 + $0x748] sm:$0xff]
        %v1518 = vld [vmem:[%s818 + $0x750] sm:$0xff]
        %v1519 = vld [vmem:[%s818 + $0x758] sm:$0xff]
        %v1520 = vld [vmem:[%s818 + $0x760] sm:$0xff]
        %v1521 = vld [vmem:[%s818 + $0x768] sm:$0xff]
        %v1522 = vld [vmem:[%s818 + $0x770] sm:$0xff]
        %v1523 = vld [vmem:[%s818 + $0x778] sm:$0xff]
        %v1524 = vld [vmem:[%s818 + $0x780] sm:$0xff]
        %v1525 = vld [vmem:[%s818 + $0x788] sm:$0xff]
        %v1526 = vld [vmem:[%s818 + $0x790] sm:$0xff]
        %v1527 = vld [vmem:[%s818 + $0x798] sm:$0xff]
        %v1528 = vld [vmem:[%s818 + $0x7a0] sm:$0xff]
        %v1529 = vld [vmem:[%s818 + $0x7a8] sm:$0xff]
        %v1530 = vld [vmem:[%s818 + $0x7b0] sm:$0xff]
        %v1531 = vld [vmem:[%s818 + $0x7b8] sm:$0xff]
        %v1532 = vld [vmem:[%s818 + $0x7c0] sm:$0xff]
        %v1533 = vld [vmem:[%s818 + $0x7c8] sm:$0xff]
        %v1534 = vld [vmem:[%s818 + $0x7d0] sm:$0xff]
        %v1535 = vld [vmem:[%s818 + $0x7d8] sm:$0xff]
        %v1536 = vld [vmem:[%s818 + $0x7e0] sm:$0xff]
        %v1537 = vld [vmem:[%s818 + $0x7e8] sm:$0xff]
        %v1538 = vld [vmem:[%s818 + $0x7f0] sm:$0xff]
        %v1539 = vld [vmem:[%s818 + $0x7f8] sm:$0xff]
        %v1540 = vpack.c.bf16 %v1300, %v1284
        %v1541 = vpack.c.bf16 %v1301, %v1285
        %v1542 = vpack.c.bf16 %v1302, %v1286
        %v1543 = vpack.c.bf16 %v1303, %v1287
        %v1544 = vpack.c.bf16 %v1304, %v1288
        %v1545 = vpack.c.bf16 %v1305, %v1289
        %v1546 = vpack.c.bf16 %v1306, %v1290
        %v1547 = vpack.c.bf16 %v1307, %v1291
        %v1548 = vpack.c.bf16 %v1308, %v1292
        %v1549 = vpack.c.bf16 %v1309, %v1293
        %v1550 = vpack.c.bf16 %v1310, %v1294
        %v1551 = vpack.c.bf16 %v1311, %v1295
        %v1552 = vpack.c.bf16 %v1312, %v1296
        %v1553 = vpack.c.bf16 %v1313, %v1297
        %v1554 = vpack.c.bf16 %v1314, %v1298
        %v1555 = vpack.c.bf16 %v1315, %v1299
        %v1556 = vpack.c.bf16 %v1332, %v1316
        %v1557 = vpack.c.bf16 %v1333, %v1317
        %v1558 = vpack.c.bf16 %v1334, %v1318
        %v1559 = vpack.c.bf16 %v1335, %v1319
        %v1560 = vpack.c.bf16 %v1336, %v1320
        %v1561 = vpack.c.bf16 %v1337, %v1321
        %v1562 = vpack.c.bf16 %v1338, %v1322
        %v1563 = vpack.c.bf16 %v1339, %v1323
        %v1564 = vpack.c.bf16 %v1340, %v1324
        %v1565 = vpack.c.bf16 %v1341, %v1325
        %v1566 = vpack.c.bf16 %v1342, %v1326
        %v1567 = vpack.c.bf16 %v1343, %v1327
        %v1568 = vpack.c.bf16 %v1344, %v1328
        %v1569 = vpack.c.bf16 %v1345, %v1329
        %v1570 = vpack.c.bf16 %v1346, %v1330
        %v1571 = vpack.c.bf16 %v1347, %v1331
        %v1572 = vpack.c.bf16 %v1364, %v1348
        %v1573 = vpack.c.bf16 %v1365, %v1349
        %v1574 = vpack.c.bf16 %v1366, %v1350
        %v1575 = vpack.c.bf16 %v1367, %v1351
        %v1576 = vpack.c.bf16 %v1368, %v1352
        %v1577 = vpack.c.bf16 %v1369, %v1353
        %v1578 = vpack.c.bf16 %v1370, %v1354
        %v1579 = vpack.c.bf16 %v1371, %v1355
        %v1580 = vpack.c.bf16 %v1372, %v1356
        %v1581 = vpack.c.bf16 %v1373, %v1357
        %v1582 = vpack.c.bf16 %v1374, %v1358
        %v1583 = vpack.c.bf16 %v1375, %v1359
        %v1584 = vpack.c.bf16 %v1376, %v1360
        %v1585 = vpack.c.bf16 %v1377, %v1361
        %v1586 = vpack.c.bf16 %v1378, %v1362
        %v1587 = vpack.c.bf16 %v1379, %v1363
        %v1588 = vpack.c.bf16 %v1396, %v1380
        %v1589 = vpack.c.bf16 %v1397, %v1381
        %v1590 = vpack.c.bf16 %v1398, %v1382
        %v1591 = vpack.c.bf16 %v1399, %v1383
        %v1592 = vpack.c.bf16 %v1400, %v1384
        %v1593 = vpack.c.bf16 %v1401, %v1385
        %v1594 = vpack.c.bf16 %v1402, %v1386
        %v1595 = vpack.c.bf16 %v1403, %v1387
        %v1596 = vpack.c.bf16 %v1404, %v1388
        %v1597 = vpack.c.bf16 %v1405, %v1389
        %v1598 = vpack.c.bf16 %v1406, %v1390
        %v1599 = vpack.c.bf16 %v1407, %v1391
        %v1600 = vpack.c.bf16 %v1408, %v1392
        %v1601 = vpack.c.bf16 %v1409, %v1393
        %v1602 = vpack.c.bf16 %v1410, %v1394
        %v1603 = vpack.c.bf16 %v1411, %v1395
        %v1604 = vpack.c.bf16 %v1428, %v1412
        %v1605 = vpack.c.bf16 %v1429, %v1413
        %v1606 = vpack.c.bf16 %v1430, %v1414
        %v1607 = vpack.c.bf16 %v1431, %v1415
        %v1608 = vpack.c.bf16 %v1432, %v1416
        %v1609 = vpack.c.bf16 %v1433, %v1417
        %v1610 = vpack.c.bf16 %v1434, %v1418
        %v1611 = vpack.c.bf16 %v1435, %v1419
        %v1612 = vpack.c.bf16 %v1436, %v1420
        %v1613 = vpack.c.bf16 %v1437, %v1421
        %v1614 = vpack.c.bf16 %v1438, %v1422
        %v1615 = vpack.c.bf16 %v1439, %v1423
        %v1616 = vpack.c.bf16 %v1440, %v1424
        %v1617 = vpack.c.bf16 %v1441, %v1425
        %v1618 = vpack.c.bf16 %v1442, %v1426
        %v1619 = vpack.c.bf16 %v1443, %v1427
        %v1620 = vpack.c.bf16 %v1460, %v1444
        %v1621 = vpack.c.bf16 %v1461, %v1445
        %v1622 = vpack.c.bf16 %v1462, %v1446
        %v1623 = vpack.c.bf16 %v1463, %v1447
        %v1624 = vpack.c.bf16 %v1464, %v1448
        %v1625 = vpack.c.bf16 %v1465, %v1449
        %v1626 = vpack.c.bf16 %v1466, %v1450
        %v1627 = vpack.c.bf16 %v1467, %v1451
        %v1628 = vpack.c.bf16 %v1468, %v1452
        %v1629 = vpack.c.bf16 %v1469, %v1453
        %v1630 = vpack.c.bf16 %v1470, %v1454
        %v1631 = vpack.c.bf16 %v1471, %v1455
        %v1632 = vpack.c.bf16 %v1472, %v1456
        %v1633 = vpack.c.bf16 %v1473, %v1457
        %v1634 = vpack.c.bf16 %v1474, %v1458
        %v1635 = vpack.c.bf16 %v1475, %v1459
        %v1636 = vpack.c.bf16 %v1492, %v1476
        %v1637 = vpack.c.bf16 %v1493, %v1477
        %v1638 = vpack.c.bf16 %v1494, %v1478
        %v1639 = vpack.c.bf16 %v1495, %v1479
        %v1640 = vpack.c.bf16 %v1496, %v1480
        %v1641 = vpack.c.bf16 %v1497, %v1481
        %v1642 = vpack.c.bf16 %v1498, %v1482
        %v1643 = vpack.c.bf16 %v1499, %v1483
        %v1644 = vpack.c.bf16 %v1500, %v1484
        %v1645 = vpack.c.bf16 %v1501, %v1485
        %v1646 = vpack.c.bf16 %v1502, %v1486
        %v1647 = vpack.c.bf16 %v1503, %v1487
        %v1648 = vpack.c.bf16 %v1504, %v1488
        %v1649 = vpack.c.bf16 %v1505, %v1489
        %v1650 = vpack.c.bf16 %v1506, %v1490
        %v1651 = vpack.c.bf16 %v1507, %v1491
        %v1652 = vpack.c.bf16 %v1524, %v1508
        %v1653 = vpack.c.bf16 %v1525, %v1509
        %v1654 = vpack.c.bf16 %v1526, %v1510
        %v1655 = vpack.c.bf16 %v1527, %v1511
        %v1656 = vpack.c.bf16 %v1528, %v1512
        %v1657 = vpack.c.bf16 %v1529, %v1513
        %v1658 = vpack.c.bf16 %v1530, %v1514
        %v1659 = vpack.c.bf16 %v1531, %v1515
        %v1660 = vpack.c.bf16 %v1532, %v1516
        %v1661 = vpack.c.bf16 %v1533, %v1517
        %v1662 = vpack.c.bf16 %v1534, %v1518
        %v1663 = vpack.c.bf16 %v1535, %v1519
        %v1664 = vpack.c.bf16 %v1536, %v1520
        %v1665 = vpack.c.bf16 %v1537, %v1521
        %v1666 = vpack.c.bf16 %v1538, %v1522
        %v1667 = vpack.c.bf16 %v1539, %v1523
        %v1668 = vld [vmem:[%s1] sm:$0xf]
        %v1669 = vld [vmem:[%s1 + $0x4] sm:$0xf]
        %v1670 = vld [vmem:[%s1 + $0x8] sm:$0xf]
        %v1671 = vld [vmem:[%s1 + $0xc] sm:$0xf]
        %v1672 = vld [vmem:[%s1 + $0x10] sm:$0xf]
        %v1673 = vld [vmem:[%s1 + $0x14] sm:$0xf]
        %v1674 = vld [vmem:[%s1 + $0x18] sm:$0xf]
        %v1675 = vld [vmem:[%s1 + $0x1c] sm:$0xf]
        %v1676 = vld [vmem:[%s1 + $0x20] sm:$0xf]
        %v1677 = vld [vmem:[%s1 + $0x24] sm:$0xf]
        %v1678 = vld [vmem:[%s1 + $0x28] sm:$0xf]
        %v1679 = vld [vmem:[%s1 + $0x2c] sm:$0xf]
        %v1680 = vld [vmem:[%s1 + $0x30] sm:$0xf]
        %v1681 = vld [vmem:[%s1 + $0x34] sm:$0xf]
        %v1682 = vld [vmem:[%s1 + $0x38] sm:$0xf]
        %v1683 = vld [vmem:[%s1 + $0x3c] sm:$0xf]
        %v1684 = vld [vmem:[%s1 + $0x40] sm:$0xf]
        %v1685 = vld [vmem:[%s1 + $0x44] sm:$0xf]
        %v1686 = vld [vmem:[%s1 + $0x48] sm:$0xf]
        %v1706 = vunpack.c.l.b16 %v1668
        %v1707 = vunpack.c.l.b16 %v1669
        %v1708 = vunpack.c.l.b16 %v1670
        %v1709 = vunpack.c.l.b16 %v1671
        %v1710 = vunpack.c.l.b16 %v1672
        %v1711 = vunpack.c.l.b16 %v1673
        %v1712 = vunpack.c.l.b16 %v1674
        %v1713 = vunpack.c.l.b16 %v1675
        %v1714 = vunpack.c.l.b16 %v1676
        %v1715 = vunpack.c.l.b16 %v1677
        %v1716 = vunpack.c.l.b16 %v1678
        %v1717 = vunpack.c.l.b16 %v1679
        %v1718 = vunpack.c.l.b16 %v1680
        %v1719 = vunpack.c.l.b16 %v1681
        %v1720 = vunpack.c.l.b16 %v1682
        %v1721 = vunpack.c.l.b16 %v1683
        %v1722 = vunpack.c.l.b16 %v1684
        %v1723 = vunpack.c.l.b16 %v1685
        %v1724 = vunpack.c.l.b16 %v1686
        %v1725 = vpack.c.b16 %v1707, %v1706
        %v1726 = vpack.c.b16 %v1709, %v1708
        %v1727 = vpack.c.b16 %v1711, %v1710
        %v1728 = vpack.c.b16 %v1713, %v1712
        %v1729 = vpack.c.b16 %v1715, %v1714
        %v1730 = vpack.c.b16 %v1717, %v1716
        %v1731 = vpack.c.b16 %v1719, %v1718
        %v1732 = vpack.c.b16 %v1721, %v1720
        %v1733 = vpack.c.b16 %v1723, %v1722
        %v1734 = vpack.c.b16 %v1724, %v1724
        %1745 = vmatprep.subr.bf16.mxu0 %v1541
        %1746 = vmatpush1.bf16.msra.mxu0 %v1540
        %1747 = vmatprep.subr.bf16.mxu0 %v1557
        %1748 = vmatpush1.bf16.msra.mxu0 %v1556
        %1749 = vmatprep.subr.bf16.mxu0 %v1573
        %1750 = vmatpush1.bf16.msra.mxu0 %v1572
        %1751 = vmatprep.subr.bf16.mxu0 %v1589
        %1752 = vmatpush1.bf16.msra.mxu0 %v1588
        %1753 = vmatprep.subr.bf16.mxu0 %v1605
        %1754 = vmatpush1.bf16.msra.mxu0 %v1604
        %1755 = vmatprep.subr.bf16.mxu0 %v1621
        %1756 = vmatpush1.bf16.msra.mxu0 %v1620
        %1757 = vmatprep.subr.bf16.mxu0 %v1637
        %1758 = vmatpush1.bf16.msra.mxu0 %v1636
        %1759 = vmatprep.subr.bf16.mxu0 %v1653
        %1760 = vmatpush1.bf16.msra.mxu0 %v1652
        %1761 = vmatprep.subr.bf16.mxu0 0
        %1762 = vmatpush1.bf16.msra.mxu0 0
        %1763 = vmatprep.subr.bf16.mxu0 0
        %1764 = vmatpush1.bf16.msra.mxu0 0
        %1765 = vmatprep.subr.bf16.mxu0 0
        %1766 = vmatpush1.bf16.msra.mxu0 0
        %1767 = vmatprep.subr.bf16.mxu0 0
        %1768 = vmatpush1.bf16.msra.mxu0 0
        %1769 = vmatprep.subr.bf16.mxu0 0
        %1770 = vmatpush1.bf16.msra.mxu0 0
        %1771 = vmatprep.subr.bf16.mxu0 0
        %1772 = vmatpush1.bf16.msra.mxu0 0
        %1773 = vmatprep.subr.bf16.mxu0 0
        %1774 = vmatpush1.bf16.msra.mxu0 0
        %1775 = vmatprep.subr.bf16.mxu0 0
        %1776 = vmatpush1.bf16.msra.mxu0 0
        %1777 = vmatprep.mubr.bf16.mxu0 0
        %1778 = vmatmul.mubr.bf16.gmra.mrb[0].mxu0 %v1725
        %v1779 = vpop.f32.mrb[0].mxu0
        %v1780 = vadd.f32 0.0, %v1779
        %v1781 = vpop.f32.mrb[0].mxu0
        %v1782 = vadd.f32 0.0, %v1781
        %v1783 = vpop.f32.mrb[0].mxu0
        %v1784 = vadd.f32 0.0, %v1783
        %v1785 = vpop.f32.mrb[0].mxu0
        %v1786 = vadd.f32 0.0, %v1785
        %1787 = vmatprep.mubr.bf16.mxu0 0
        %1788 = vmatmul.mubr.bf16.gmra.mrb[0].mxu0 %v1726
        %v1789 = vpop.f32.mrb[0].mxu0
        %v1790 = vadd.f32 0.0, %v1789
        %v1791 = vpop.f32.mrb[0].mxu0
        %v1792 = vadd.f32 0.0, %v1791
        %v1793 = vpop.f32.mrb[0].mxu0
        %v1794 = vadd.f32 0.0, %v1793
        %v1795 = vpop.f32.mrb[0].mxu0
        %v1796 = vadd.f32 0.0, %v1795
        %1797 = vmatprep.mubr.bf16.mxu0 0
        %1798 = vmatmul.mubr.bf16.gmra.mrb[0].mxu0 %v1727
        %v1799 = vpop.f32.mrb[0].mxu0
        %v1800 = vadd.f32 0.0, %v1799
        %v1801 = vpop.f32.mrb[0].mxu0
        %v1802 = vadd.f32 0.0, %v1801
        %v1803 = vpop.f32.mrb[0].mxu0
        %v1804 = vadd.f32 0.0, %v1803
        %v1805 = vpop.f32.mrb[0].mxu0
        %v1806 = vadd.f32 0.0, %v1805
        %1807 = vmatprep.mubr.bf16.mxu0 0
        %1808 = vmatmul.mubr.bf16.gmra.mrb[0].mxu0 %v1728
        %v1809 = vpop.f32.mrb[0].mxu0
        %v1810 = vadd.f32 0.0, %v1809
        %v1811 = vpop.f32.mrb[0].mxu0
        %v1812 = vadd.f32 0.0, %v1811
        %v1813 = vpop.f32.mrb[0].mxu0
        %v1814 = vadd.f32 0.0, %v1813
        %v1815 = vpop.f32.mrb[0].mxu0
        %v1816 = vadd.f32 0.0, %v1815
        %1817 = vmatprep.mubr.bf16.mxu0 0
        %1818 = vmatmul.mubr.bf16.gmra.mrb[0].mxu0 %v1729
        %v1819 = vpop.f32.mrb[0].mxu0
        %v1820 = vadd.f32 0.0, %v1819
        %v1821 = vpop.f32.mrb[0].mxu0
        %v1822 = vadd.f32 0.0, %v1821
        %v1823 = vpop.f32.mrb[0].mxu0
        %v1824 = vadd.f32 0.0, %v1823
        %v1825 = vpop.f32.mrb[0].mxu0
        %v1826 = vadd.f32 0.0, %v1825
        %1827 = vmatprep.mubr.bf16.mxu0 0
        %1828 = vmatmul.mubr.bf16.gmra.mrb[0].mxu0 %v1730
        %v1829 = vpop.f32.mrb[0].mxu0
        %v1830 = vadd.f32 0.0, %v1829
        %v1831 = vpop.f32.mrb[0].mxu0
        %v1832 = vadd.f32 0.0, %v1831
        %v1833 = vpop.f32.mrb[0].mxu0
        %v1834 = vadd.f32 0.0, %v1833
        %v1835 = vpop.f32.mrb[0].mxu0
        %v1836 = vadd.f32 0.0, %v1835
        %1837 = vmatprep.mubr.bf16.mxu0 0
        %1838 = vmatmul.mubr.bf16.gmra.mrb[0].mxu0 %v1731
        %v1839 = vpop.f32.mrb[0].mxu0
        %v1840 = vadd.f32 0.0, %v1839
        %v1841 = vpop.f32.mrb[0].mxu0
        %v1842 = vadd.f32 0.0, %v1841
        %v1843 = vpop.f32.mrb[0].mxu0
        %v1844 = vadd.f32 0.0, %v1843
        %v1845 = vpop.f32.mrb[0].mxu0
        %v1846 = vadd.f32 0.0, %v1845
        %1847 = vmatprep.mubr.bf16.mxu0 0
        %1848 = vmatmul.mubr.bf16.gmra.mrb[0].mxu0 %v1732
        %v1849 = vpop.f32.mrb[0].mxu0
        %v1850 = vadd.f32 0.0, %v1849
        %v1851 = vpop.f32.mrb[0].mxu0
        %v1852 = vadd.f32 0.0, %v1851
        %v1853 = vpop.f32.mrb[0].mxu0
        %v1854 = vadd.f32 0.0, %v1853
        %v1855 = vpop.f32.mrb[0].mxu0
        %v1856 = vadd.f32 0.0, %v1855
        %1857 = vmatprep.mubr.bf16.mxu0 0
        %1858 = vmatmul.mubr.bf16.gmra.mrb[0].mxu0 %v1733
        %v1859 = vpop.f32.mrb[0].mxu0
        %v1860 = vadd.f32 0.0, %v1859
        %v1861 = vpop.f32.mrb[0].mxu0
        %v1862 = vadd.f32 0.0, %v1861
        %v1863 = vpop.f32.mrb[0].mxu0
        %v1864 = vadd.f32 0.0, %v1863
        %v1865 = vpop.f32.mrb[0].mxu0
        %v1866 = vadd.f32 0.0, %v1865
        %1867 = vmatprep.mubr.bf16.mxu0 0
        %1868 = vmatmul.mubr.bf16.gmra.mrb[0].mxu0 %v1734
        %v1869 = vpop.f32.mrb[0].mxu0
        %v1870 = vadd.f32 0.0, %v1869
        %v1871 = vpop.f32.mrb[0].mxu0
        %v1872 = vadd.f32 0.0, %v1871
        %v1873 = vpop.f32.mrb[0].mxu0
        %v1874 = vpop.f32.mrb[0].mxu0
        %1875 = vdwg.mxu0
        %1876 = vmatprep.subr.bf16.mxu0 %v1543
        %1877 = vmatpush1.bf16.msra.mxu0 %v1542
        %1878 = vmatprep.subr.bf16.mxu0 %v1559
        %1879 = vmatpush1.bf16.msra.mxu0 %v1558
        %1880 = vmatprep.subr.bf16.mxu0 %v1575
        %1881 = vmatpush1.bf16.msra.mxu0 %v1574
        %1882 = vmatprep.subr.bf16.mxu0 %v1591
        %1883 = vmatpush1.bf16.msra.mxu0 %v1590
        %1884 = vmatprep.subr.bf16.mxu0 %v1607
        %1885 = vmatpush1.bf16.msra.mxu0 %v1606
        %1886 = vmatprep.subr.bf16.mxu0 %v1623
        %1887 = vmatpush1.bf16.msra.mxu0 %v1622
        %1888 = vmatprep.subr.bf16.mxu0 %v1639
        %1889 = vmatpush1.bf16.msra.mxu0 %v1638
        %1890 = vmatprep.subr.bf16.mxu0 %v1655
        %1891 = vmatpush1.bf16.msra.mxu0 %v1654
        %1892 = vmatprep.subr.bf16.mxu0 0
        %1893 = vmatpush1.bf16.msra.mxu0 0
        %1894 = vmatprep.subr.bf16.mxu0 0
        %1895 = vmatpush1.bf16.msra.mxu0 0
        %1896 = vmatprep.subr.bf16.mxu0 0
        %1897 = vmatpush1.bf16.msra.mxu0 0
        %1898 = vmatprep.subr.bf16.mxu0 0
        %1899 = vmatpush1.bf16.msra.mxu0 0
        %1900 = vmatprep.subr.bf16.mxu0 0
        %1901 = vmatpush1.bf16.msra.mxu0 0
        %1902 = vmatprep.subr.bf16.mxu0 0
        %1903 = vmatpush1.bf16.msra.mxu0 0
        %1904 = vmatprep.subr.bf16.mxu0 0
        %1905 = vmatpush1.bf16.msra.mxu0 0
        %1906 = vmatprep.subr.bf16.mxu0 0
        %1907 = vmatpush1.bf16.msra.mxu0 0
        %1908 = vmatprep.mubr.bf16.mxu0 0
        %1909 = vmatmul.mubr.bf16.gmra.mrb[0].mxu0 %v1725
        %v1910 = vpop.f32.mrb[0].mxu0
        %v1911 = vadd.f32 0.0, %v1910
        %v1912 = vpop.f32.mrb[0].mxu0
        %v1913 = vadd.f32 0.0, %v1912
        %v1914 = vpop.f32.mrb[0].mxu0
        %v1915 = vadd.f32 0.0, %v1914
        %v1916 = vpop.f32.mrb[0].mxu0
        %v1917 = vadd.f32 0.0, %v1916
        %1918 = vmatprep.mubr.bf16.mxu0 0
        %1919 = vmatmul.mubr.bf16.gmra.mrb[0].mxu0 %v1726
        %v1920 = vpop.f32.mrb[0].mxu0
        %v1921 = vadd.f32 0.0, %v1920
        %v1922 = vpop.f32.mrb[0].mxu0
        %v1923 = vadd.f32 0.0, %v1922
        %v1924 = vpop.f32.mrb[0].mxu0
        %v1925 = vadd.f32 0.0, %v1924
        %v1926 = vpop.f32.mrb[0].mxu0
        %v1927 = vadd.f32 0.0, %v1926
        %1928 = vmatprep.mubr.bf16.mxu0 0
        %1929 = vmatmul.mubr.bf16.gmra.mrb[0].mxu0 %v1727
        %v1930 = vpop.f32.mrb[0].mxu0
        %v1931 = vadd.f32 0.0, %v1930
        %v1932 = vpop.f32.mrb[0].mxu0
        %v1933 = vadd.f32 0.0, %v1932
        %v1934 = vpop.f32.mrb[0].mxu0
        %v1935 = vadd.f32 0.0, %v1934
        %v1936 = vpop.f32.mrb[0].mxu0
        %v1937 = vadd.f32 0.0, %v1936
        %1938 = vmatprep.mubr.bf16.mxu0 0
        %1939 = vmatmul.mubr.bf16.gmra.mrb[0].mxu0 %v1728
        %v1940 = vpop.f32.mrb[0].mxu0
        %v1941 = vadd.f32 0.0, %v1940
        %v1942 = vpop.f32.mrb[0].mxu0
        %v1943 = vadd.f32 0.0, %v1942
        %v1944 = vpop.f32.mrb[0].mxu0
        %v1945 = vadd.f32 0.0, %v1944
        %v1946 = vpop.f32.mrb[0].mxu0
        %v1947 = vadd.f32 0.0, %v1946
        %1948 = vmatprep.mubr.bf16.mxu0 0
        %1949 = vmatmul.mubr.bf16.gmra.mrb[0].mxu0 %v1729
        %v1950 = vpop.f32.mrb[0].mxu0
        %v1951 = vadd.f32 0.0, %v1950
        %v1952 = vpop.f32.mrb[0].mxu0
        %v1953 = vadd.f32 0.0, %v1952
        %v1954 = vpop.f32.mrb[0].mxu0
        %v1955 = vadd.f32 0.0, %v1954
        %v1956 = vpop.f32.mrb[0].mxu0
        %v1957 = vadd.f32 0.0, %v1956
        %1958 = vmatprep.mubr.bf16.mxu0 0
        %1959 = vmatmul.mubr.bf16.gmra.mrb[0].mxu0 %v1730
        %v1960 = vpop.f32.mrb[0].mxu0
        %v1961 = vadd.f32 0.0, %v1960
        %v1962 = vpop.f32.mrb[0].mxu0
        %v1963 = vadd.f32 0.0, %v1962
        %v1964 = vpop.f32.mrb[0].mxu0
        %v1965 = vadd.f32 0.0, %v1964
        %v1966 = vpop.f32.mrb[0].mxu0
        %v1967 = vadd.f32 0.0, %v1966
        %1968 = vmatprep.mubr.bf16.mxu0 0
        %1969 = vmatmul.mubr.bf16.gmra.mrb[0].mxu0 %v1731
        %v1970 = vpop.f32.mrb[0].mxu0
        %v1971 = vadd.f32 0.0, %v1970
        %v1972 = vpop.f32.mrb[0].mxu0
        %v1973 = vadd.f32 0.0, %v1972
        %v1974 = vpop.f32.mrb[0].mxu0
        %v1975 = vadd.f32 0.0, %v1974
        %v1976 = vpop.f32.mrb[0].mxu0
        %v1977 = vadd.f32 0.0, %v1976
        %1978 = vmatprep.mubr.bf16.mxu0 0
        %1979 = vmatmul.mubr.bf16.gmra.mrb[0].mxu0 %v1732
        %v1980 = vpop.f32.mrb[0].mxu0
        %v1981 = vadd.f32 0.0, %v1980
        %v1982 = vpop.f32.mrb[0].mxu0
        %v1983 = vadd.f32 0.0, %v1982
        %v1984 = vpop.f32.mrb[0].mxu0
        %v1985 = vadd.f32 0.0, %v1984
        %v1986 = vpop.f32.mrb[0].mxu0
        %v1987 = vadd.f32 0.0, %v1986
        %1988 = vmatprep.mubr.bf16.mxu0 0
        %1989 = vmatmul.mubr.bf16.gmra.mrb[0].mxu0 %v1733
        %v1990 = vpop.f32.mrb[0].mxu0
        %v1991 = vadd.f32 0.0, %v1990
        %v1992 = vpop.f32.mrb[0].mxu0
        %v1993 = vadd.f32 0.0, %v1992
        %v1994 = vpop.f32.mrb[0].mxu0
        %v1995 = vadd.f32 0.0, %v1994
        %v1996 = vpop.f32.mrb[0].mxu0
        %v1997 = vadd.f32 0.0, %v1996
        %1998 = vmatprep.mubr.bf16.mxu0 0
        %1999 = vmatmul.mubr.bf16.gmra.mrb[0].mxu0 %v1734
        %v2000 = vpop.f32.mrb[0].mxu0
        %v2001 = vadd.f32 0.0, %v2000
        %v2002 = vpop.f32.mrb[0].mxu0
        %v2003 = vadd.f32 0.0, %v2002
        %v2004 = vpop.f32.mrb[0].mxu0
        %v2005 = vpop.f32.mrb[0].mxu0
        %2006 = vdwg.mxu0
        %2007 = vmatprep.subr.bf16.mxu0 %v1545
        %2008 = vmatpush1.bf16.msra.mxu0 %v1544
        %2009 = vmatprep.subr.bf16.mxu0 %v1561
        %2010 = vmatpush1.bf16.msra.mxu0 %v1560
        %2011 = vmatprep.subr.bf16.mxu0 %v1577
        %2012 = vmatpush1.bf16.msra.mxu0 %v1576
        %2013 = vmatprep.subr.bf16.mxu0 %v1593
        %2014 = vmatpush1.bf16.msra.mxu0 %v1592
        %2015 = vmatprep.subr.bf16.mxu0 %v1609
        %2016 = vmatpush1.bf16.msra.mxu0 %v1608
        %2017 = vmatprep.subr.bf16.mxu0 %v1625
        %2018 = vmatpush1.bf16.msra.mxu0 %v1624
        %2019 = vmatprep.subr.bf16.mxu0 %v1641
        %2020 = vmatpush1.bf16.msra.mxu0 %v1640
        %2021 = vmatprep.subr.bf16.mxu0 %v1657
        %2022 = vmatpush1.bf16.msra.mxu0 %v1656
        %2023 = vmatprep.subr.bf16.mxu0 0
        %2024 = vmatpush1.bf16.msra.mxu0 0
        %2025 = vmatprep.subr.bf16.mxu0 0
        %2026 = vmatpush1.bf16.msra.mxu0 0
        %2027 = vmatprep.subr.bf16.mxu0 0
        %2028 = vmatpush1.bf16.msra.mxu0 0
        %2029 = vmatprep.subr.bf16.mxu0 0
        %2030 = vmatpush1.bf16.msra.mxu0 0
        %2031 = vmatprep.subr.bf16.mxu0 0
        %2032 = vmatpush1.bf16.msra.mxu0 0
        %2033 = vmatprep.subr.bf16.mxu0 0
        %2034 = vmatpush1.bf16.msra.mxu0 0
        %2035 = vmatprep.subr.bf16.mxu0 0
        %2036 = vmatpush1.bf16.msra.mxu0 0
        %2037 = vmatprep.subr.bf16.mxu0 0
        %2038 = vmatpush1.bf16.msra.mxu0 0
        %2039 = vmatprep.mubr.bf16.mxu0 0
        %2040 = vmatmul.mubr.bf16.gmra.mrb[0].mxu0 %v1725
        %v2041 = vpop.f32.mrb[0].mxu0
        %v2042 = vadd.f32 0.0, %v2041
        %v2043 = vpop.f32.mrb[0].mxu0
        %v2044 = vadd.f32 0.0, %v2043
        %v2045 = vpop.f32.mrb[0].mxu0
        %v2046 = vadd.f32 0.0, %v2045
        %v2047 = vpop.f32.mrb[0].mxu0
        %v2048 = vadd.f32 0.0, %v2047
        %2049 = vmatprep.mubr.bf16.mxu0 0
        %2050 = vmatmul.mubr.bf16.gmra.mrb[0].mxu0 %v1726
        %v2051 = vpop.f32.mrb[0].mxu0
        %v2052 = vadd.f32 0.0, %v2051
        %v2053 = vpop.f32.mrb[0].mxu0
        %v2054 = vadd.f32 0.0, %v2053
        %v2055 = vpop.f32.mrb[0].mxu0
        %v2056 = vadd.f32 0.0, %v2055
        %v2057 = vpop.f32.mrb[0].mxu0
        %v2058 = vadd.f32 0.0, %v2057
        %2059 = vmatprep.mubr.bf16.mxu0 0
        %2060 = vmatmul.mubr.bf16.gmra.mrb[0].mxu0 %v1727
        %v2061 = vpop.f32.mrb[0].mxu0
        %v2062 = vadd.f32 0.0, %v2061
        %v2063 = vpop.f32.mrb[0].mxu0
        %v2064 = vadd.f32 0.0, %v2063
        %v2065 = vpop.f32.mrb[0].mxu0
        %v2066 = vadd.f32 0.0, %v2065
        %v2067 = vpop.f32.mrb[0].mxu0
        %v2068 = vadd.f32 0.0, %v2067
        %2069 = vmatprep.mubr.bf16.mxu0 0
        %2070 = vmatmul.mubr.bf16.gmra.mrb[0].mxu0 %v1728
        %v2071 = vpop.f32.mrb[0].mxu0
        %v2072 = vadd.f32 0.0, %v2071
        %v2073 = vpop.f32.mrb[0].mxu0
        %v2074 = vadd.f32 0.0, %v2073
        %v2075 = vpop.f32.mrb[0].mxu0
        %v2076 = vadd.f32 0.0, %v2075
        %v2077 = vpop.f32.mrb[0].mxu0
        %v2078 = vadd.f32 0.0, %v2077
        %2079 = vmatprep.mubr.bf16.mxu0 0
        %2080 = vmatmul.mubr.bf16.gmra.mrb[0].mxu0 %v1729
        %v2081 = vpop.f32.mrb[0].mxu0
        %v2082 = vadd.f32 0.0, %v2081
        %v2083 = vpop.f32.mrb[0].mxu0
        %v2084 = vadd.f32 0.0, %v2083
        %v2085 = vpop.f32.mrb[0].mxu0
        %v2086 = vadd.f32 0.0, %v2085
        %v2087 = vpop.f32.mrb[0].mxu0
        %v2088 = vadd.f32 0.0, %v2087
        %2089 = vmatprep.mubr.bf16.mxu0 0
        %2090 = vmatmul.mubr.bf16.gmra.mrb[0].mxu0 %v1730
        %v2091 = vpop.f32.mrb[0].mxu0
        %v2092 = vadd.f32 0.0, %v2091
        %v2093 = vpop.f32.mrb[0].mxu0
        %v2094 = vadd.f32 0.0, %v2093
        %v2095 = vpop.f32.mrb[0].mxu0
        %v2096 = vadd.f32 0.0, %v2095
        %v2097 = vpop.f32.mrb[0].mxu0
        %v2098 = vadd.f32 0.0, %v2097
        %2099 = vmatprep.mubr.bf16.mxu0 0
        %2100 = vmatmul.mubr.bf16.gmra.mrb[0].mxu0 %v1731
        %v2101 = vpop.f32.mrb[0].mxu0
        %v2102 = vadd.f32 0.0, %v2101
        %v2103 = vpop.f32.mrb[0].mxu0
        %v2104 = vadd.f32 0.0, %v2103
        %v2105 = vpop.f32.mrb[0].mxu0
        %v2106 = vadd.f32 0.0, %v2105
        %v2107 = vpop.f32.mrb[0].mxu0
        %v2108 = vadd.f32 0.0, %v2107
        %2109 = vmatprep.mubr.bf16.mxu0 0
        %2110 = vmatmul.mubr.bf16.gmra.mrb[0].mxu0 %v1732
        %v2111 = vpop.f32.mrb[0].mxu0
        %v2112 = vadd.f32 0.0, %v2111
        %v2113 = vpop.f32.mrb[0].mxu0
        %v2114 = vadd.f32 0.0, %v2113
        %v2115 = vpop.f32.mrb[0].mxu0
        %v2116 = vadd.f32 0.0, %v2115
        %v2117 = vpop.f32.mrb[0].mxu0
        %v2118 = vadd.f32 0.0, %v2117
        %2119 = vmatprep.mubr.bf16.mxu0 0
        %2120 = vmatmul.mubr.bf16.gmra.mrb[0].mxu0 %v1733
        %v2121 = vpop.f32.mrb[0].mxu0
        %v2122 = vadd.f32 0.0, %v2121
        %v2123 = vpop.f32.mrb[0].mxu0
        %v2124 = vadd.f32 0.0, %v2123
        %v2125 = vpop.f32.mrb[0].mxu0
        %v2126 = vadd.f32 0.0, %v2125
        %v2127 = vpop.f32.mrb[0].mxu0
        %v2128 = vadd.f32 0.0, %v2127
        %2129 = vmatprep.mubr.bf16.mxu0 0
        %2130 = vmatmul.mubr.bf16.gmra.mrb[0].mxu0 %v1734
        %v2131 = vpop.f32.mrb[0].mxu0
        %v2132 = vadd.f32 0.0, %v2131
        %v2133 = vpop.f32.mrb[0].mxu0
        %v2134 = vadd.f32 0.0, %v2133
        %v2135 = vpop.f32.mrb[0].mxu0
        %v2136 = vpop.f32.mrb[0].mxu0
        %2137 = vdwg.mxu0
        %2138 = vmatprep.subr.bf16.mxu0 %v1547
        %2139 = vmatpush1.bf16.msra.mxu0 %v1546
        %2140 = vmatprep.subr.bf16.mxu0 %v1563
        %2141 = vmatpush1.bf16.msra.mxu0 %v1562
        %2142 = vmatprep.subr.bf16.mxu0 %v1579
        %2143 = vmatpush1.bf16.msra.mxu0 %v1578
        %2144 = vmatprep.subr.bf16.mxu0 %v1595
        %2145 = vmatpush1.bf16.msra.mxu0 %v1594
        %2146 = vmatprep.subr.bf16.mxu0 %v1611
        %2147 = vmatpush1.bf16.msra.mxu0 %v1610
        %2148 = vmatprep.subr.bf16.mxu0 %v1627
        %2149 = vmatpush1.bf16.msra.mxu0 %v1626
        %2150 = vmatprep.subr.bf16.mxu0 %v1643
        %2151 = vmatpush1.bf16.msra.mxu0 %v1642
        %2152 = vmatprep.subr.bf16.mxu0 %v1659
        %2153 = vmatpush1.bf16.msra.mxu0 %v1658
        %2154 = vmatprep.subr.bf16.mxu0 0
        %2155 = vmatpush1.bf16.msra.mxu0 0
        %2156 = vmatprep.subr.bf16.mxu0 0
        %2157 = vmatpush1.bf16.msra.mxu0 0
        %2158 = vmatprep.subr.bf16.mxu0 0
        %2159 = vmatpush1.bf16.msra.mxu0 0
        %2160 = vmatprep.subr.bf16.mxu0 0
        %2161 = vmatpush1.bf16.msra.mxu0 0
        %2162 = vmatprep.subr.bf16.mxu0 0
        %2163 = vmatpush1.bf16.msra.mxu0 0
        %2164 = vmatprep.subr.bf16.mxu0 0
        %2165 = vmatpush1.bf16.msra.mxu0 0
        %2166 = vmatprep.subr.bf16.mxu0 0
        %2167 = vmatpush1.bf16.msra.mxu0 0
        %2168 = vmatprep.subr.bf16.mxu0 0
        %2169 = vmatpush1.bf16.msra.mxu0 0
        %2170 = vmatprep.mubr.bf16.mxu0 0
        %2171 = vmatmul.mubr.bf16.gmra.mrb[0].mxu0 %v1725
        %v2172 = vpop.f32.mrb[0].mxu0
        %v2173 = vadd.f32 0.0, %v2172
        %v2174 = vpop.f32.mrb[0].mxu0
        %v2175 = vadd.f32 0.0, %v2174
        %v2176 = vpop.f32.mrb[0].mxu0
        %v2177 = vadd.f32 0.0, %v2176
        %v2178 = vpop.f32.mrb[0].mxu0
        %v2179 = vadd.f32 0.0, %v2178
        %2180 = vmatprep.mubr.bf16.mxu0 0
        %2181 = vmatmul.mubr.bf16.gmra.mrb[0].mxu0 %v1726
        %v2182 = vpop.f32.mrb[0].mxu0
        %v2183 = vadd.f32 0.0, %v2182
        %v2184 = vpop.f32.mrb[0].mxu0
        %v2185 = vadd.f32 0.0, %v2184
        %v2186 = vpop.f32.mrb[0].mxu0
        %v2187 = vadd.f32 0.0, %v2186
        %v2188 = vpop.f32.mrb[0].mxu0
        %v2189 = vadd.f32 0.0, %v2188
        %2190 = vmatprep.mubr.bf16.mxu0 0
        %2191 = vmatmul.mubr.bf16.gmra.mrb[0].mxu0 %v1727
        %v2192 = vpop.f32.mrb[0].mxu0
        %v2193 = vadd.f32 0.0, %v2192
        %v2194 = vpop.f32.mrb[0].mxu0
        %v2195 = vadd.f32 0.0, %v2194
        %v2196 = vpop.f32.mrb[0].mxu0
        %v2197 = vadd.f32 0.0, %v2196
        %v2198 = vpop.f32.mrb[0].mxu0
        %v2199 = vadd.f32 0.0, %v2198
        %2200 = vmatprep.mubr.bf16.mxu0 0
        %2201 = vmatmul.mubr.bf16.gmra.mrb[0].mxu0 %v1728
        %v2202 = vpop.f32.mrb[0].mxu0
        %v2203 = vadd.f32 0.0, %v2202
        %v2204 = vpop.f32.mrb[0].mxu0
        %v2205 = vadd.f32 0.0, %v2204
        %v2206 = vpop.f32.mrb[0].mxu0
        %v2207 = vadd.f32 0.0, %v2206
        %v2208 = vpop.f32.mrb[0].mxu0
        %v2209 = vadd.f32 0.0, %v2208
        %2210 = vmatprep.mubr.bf16.mxu0 0
        %2211 = vmatmul.mubr.bf16.gmra.mrb[0].mxu0 %v1729
        %v2212 = vpop.f32.mrb[0].mxu0
        %v2213 = vadd.f32 0.0, %v2212
        %v2214 = vpop.f32.mrb[0].mxu0
        %v2215 = vadd.f32 0.0, %v2214
        %v2216 = vpop.f32.mrb[0].mxu0
        %v2217 = vadd.f32 0.0, %v2216
        %v2218 = vpop.f32.mrb[0].mxu0
        %v2219 = vadd.f32 0.0, %v2218
        %2220 = vmatprep.mubr.bf16.mxu0 0
        %2221 = vmatmul.mubr.bf16.gmra.mrb[0].mxu0 %v1730
        %v2222 = vpop.f32.mrb[0].mxu0
        %v2223 = vadd.f32 0.0, %v2222
        %v2224 = vpop.f32.mrb[0].mxu0
        %v2225 = vadd.f32 0.0, %v2224
        %v2226 = vpop.f32.mrb[0].mxu0
        %v2227 = vadd.f32 0.0, %v2226
        %v2228 = vpop.f32.mrb[0].mxu0
        %v2229 = vadd.f32 0.0, %v2228
        %2230 = vmatprep.mubr.bf16.mxu0 0
        %2231 = vmatmul.mubr.bf16.gmra.mrb[0].mxu0 %v1731
        %v2232 = vpop.f32.mrb[0].mxu0
        %v2233 = vadd.f32 0.0, %v2232
        %v2234 = vpop.f32.mrb[0].mxu0
        %v2235 = vadd.f32 0.0, %v2234
        %v2236 = vpop.f32.mrb[0].mxu0
        %v2237 = vadd.f32 0.0, %v2236
        %v2238 = vpop.f32.mrb[0].mxu0
        %v2239 = vadd.f32 0.0, %v2238
        %2240 = vmatprep.mubr.bf16.mxu0 0
        %2241 = vmatmul.mubr.bf16.gmra.mrb[0].mxu0 %v1732
        %v2242 = vpop.f32.mrb[0].mxu0
        %v2243 = vadd.f32 0.0, %v2242
        %v2244 = vpop.f32.mrb[0].mxu0
        %v2245 = vadd.f32 0.0, %v2244
        %v2246 = vpop.f32.mrb[0].mxu0
        %v2247 = vadd.f32 0.0, %v2246
        %v2248 = vpop.f32.mrb[0].mxu0
        %v2249 = vadd.f32 0.0, %v2248
        %2250 = vmatprep.mubr.bf16.mxu0 0
        %2251 = vmatmul.mubr.bf16.gmra.mrb[0].mxu0 %v1733
        %v2252 = vpop.f32.mrb[0].mxu0
        %v2253 = vadd.f32 0.0, %v2252
        %v2254 = vpop.f32.mrb[0].mxu0
        %v2255 = vadd.f32 0.0, %v2254
        %v2256 = vpop.f32.mrb[0].mxu0
        %v2257 = vadd.f32 0.0, %v2256
        %v2258 = vpop.f32.mrb[0].mxu0
        %v2259 = vadd.f32 0.0, %v2258
        %2260 = vmatprep.mubr.bf16.mxu0 0
        %2261 = vmatmul.mubr.bf16.gmra.mrb[0].mxu0 %v1734
        %v2262 = vpop.f32.mrb[0].mxu0
        %v2263 = vadd.f32 0.0, %v2262
        %v2264 = vpop.f32.mrb[0].mxu0
        %v2265 = vadd.f32 0.0, %v2264
        %v2266 = vpop.f32.mrb[0].mxu0
        %v2267 = vpop.f32.mrb[0].mxu0
        %2268 = vdwg.mxu0
        %2269 = vmatprep.subr.bf16.mxu0 %v1549
        %2270 = vmatpush1.bf16.msra.mxu0 %v1548
        %2271 = vmatprep.subr.bf16.mxu0 %v1565
        %2272 = vmatpush1.bf16.msra.mxu0 %v1564
        %2273 = vmatprep.subr.bf16.mxu0 %v1581
        %2274 = vmatpush1.bf16.msra.mxu0 %v1580
        %2275 = vmatprep.subr.bf16.mxu0 %v1597
        %2276 = vmatpush1.bf16.msra.mxu0 %v1596
        %2277 = vmatprep.subr.bf16.mxu0 %v1613
        %2278 = vmatpush1.bf16.msra.mxu0 %v1612
        %2279 = vmatprep.subr.bf16.mxu0 %v1629
        %2280 = vmatpush1.bf16.msra.mxu0 %v1628
        %2281 = vmatprep.subr.bf16.mxu0 %v1645
        %2282 = vmatpush1.bf16.msra.mxu0 %v1644
        %2283 = vmatprep.subr.bf16.mxu0 %v1661
        %2284 = vmatpush1.bf16.msra.mxu0 %v1660
        %2285 = vmatprep.subr.bf16.mxu0 0
        %2286 = vmatpush1.bf16.msra.mxu0 0
        %2287 = vmatprep.subr.bf16.mxu0 0
        %2288 = vmatpush1.bf16.msra.mxu0 0
        %2289 = vmatprep.subr.bf16.mxu0 0
        %2290 = vmatpush1.bf16.msra.mxu0 0
        %2291 = vmatprep.subr.bf16.mxu0 0
        %2292 = vmatpush1.bf16.msra.mxu0 0
        %2293 = vmatprep.subr.bf16.mxu0 0
        %2294 = vmatpush1.bf16.msra.mxu0 0
        %2295 = vmatprep.subr.bf16.mxu0 0
        %2296 = vmatpush1.bf16.msra.mxu0 0
        %2297 = vmatprep.subr.bf16.mxu0 0
        %2298 = vmatpush1.bf16.msra.mxu0 0
        %2299 = vmatprep.subr.bf16.mxu0 0
        %2300 = vmatpush1.bf16.msra.mxu0 0
        %2301 = vmatprep.mubr.bf16.mxu0 0
        %2302 = vmatmul.mubr.bf16.gmra.mrb[0].mxu0 %v1725
        %v2303 = vpop.f32.mrb[0].mxu0
        %v2304 = vadd.f32 0.0, %v2303
        %v2305 = vpop.f32.mrb[0].mxu0
        %v2306 = vadd.f32 0.0, %v2305
        %v2307 = vpop.f32.mrb[0].mxu0
        %v2308 = vadd.f32 0.0, %v2307
        %v2309 = vpop.f32.mrb[0].mxu0
        %v2310 = vadd.f32 0.0, %v2309
        %2311 = vmatprep.mubr.bf16.mxu0 0
        %2312 = vmatmul.mubr.bf16.gmra.mrb[0].mxu0 %v1726
        %v2313 = vpop.f32.mrb[0].mxu0
        %v2314 = vadd.f32 0.0, %v2313
        %v2315 = vpop.f32.mrb[0].mxu0
        %v2316 = vadd.f32 0.0, %v2315
        %v2317 = vpop.f32.mrb[0].mxu0
        %v2318 = vadd.f32 0.0, %v2317
        %v2319 = vpop.f32.mrb[0].mxu0
        %v2320 = vadd.f32 0.0, %v2319
        %2321 = vmatprep.mubr.bf16.mxu0 0
        %2322 = vmatmul.mubr.bf16.gmra.mrb[0].mxu0 %v1727
        %v2323 = vpop.f32.mrb[0].mxu0
        %v2324 = vadd.f32 0.0, %v2323
        %v2325 = vpop.f32.mrb[0].mxu0
        %v2326 = vadd.f32 0.0, %v2325
        %v2327 = vpop.f32.mrb[0].mxu0
        %v2328 = vadd.f32 0.0, %v2327
        %v2329 = vpop.f32.mrb[0].mxu0
        %v2330 = vadd.f32 0.0, %v2329
        %2331 = vmatprep.mubr.bf16.mxu0 0
        %2332 = vmatmul.mubr.bf16.gmra.mrb[0].mxu0 %v1728
        %v2333 = vpop.f32.mrb[0].mxu0
        %v2334 = vadd.f32 0.0, %v2333
        %v2335 = vpop.f32.mrb[0].mxu0
        %v2336 = vadd.f32 0.0, %v2335
        %v2337 = vpop.f32.mrb[0].mxu0
        %v2338 = vadd.f32 0.0, %v2337
        %v2339 = vpop.f32.mrb[0].mxu0
        %v2340 = vadd.f32 0.0, %v2339
        %2341 = vmatprep.mubr.bf16.mxu0 0
        %2342 = vmatmul.mubr.bf16.gmra.mrb[0].mxu0 %v1729
        %v2343 = vpop.f32.mrb[0].mxu0
        %v2344 = vadd.f32 0.0, %v2343
        %v2345 = vpop.f32.mrb[0].mxu0
        %v2346 = vadd.f32 0.0, %v2345
        %v2347 = vpop.f32.mrb[0].mxu0
        %v2348 = vadd.f32 0.0, %v2347
        %v2349 = vpop.f32.mrb[0].mxu0
        %v2350 = vadd.f32 0.0, %v2349
        %2351 = vmatprep.mubr.bf16.mxu0 0
        %2352 = vmatmul.mubr.bf16.gmra.mrb[0].mxu0 %v1730
        %v2353 = vpop.f32.mrb[0].mxu0
        %v2354 = vadd.f32 0.0, %v2353
        %v2355 = vpop.f32.mrb[0].mxu0
        %v2356 = vadd.f32 0.0, %v2355
        %v2357 = vpop.f32.mrb[0].mxu0
        %v2358 = vadd.f32 0.0, %v2357
        %v2359 = vpop.f32.mrb[0].mxu0
        %v2360 = vadd.f32 0.0, %v2359
        %2361 = vmatprep.mubr.bf16.mxu0 0
        %2362 = vmatmul.mubr.bf16.gmra.mrb[0].mxu0 %v1731
        %v2363 = vpop.f32.mrb[0].mxu0
        %v2364 = vadd.f32 0.0, %v2363
        %v2365 = vpop.f32.mrb[0].mxu0
        %v2366 = vadd.f32 0.0, %v2365
        %v2367 = vpop.f32.mrb[0].mxu0
        %v2368 = vadd.f32 0.0, %v2367
        %v2369 = vpop.f32.mrb[0].mxu0
        %v2370 = vadd.f32 0.0, %v2369
        %2371 = vmatprep.mubr.bf16.mxu0 0
        %2372 = vmatmul.mubr.bf16.gmra.mrb[0].mxu0 %v1732
        %v2373 = vpop.f32.mrb[0].mxu0
        %v2374 = vadd.f32 0.0, %v2373
        %v2375 = vpop.f32.mrb[0].mxu0
        %v2376 = vadd.f32 0.0, %v2375
        %v2377 = vpop.f32.mrb[0].mxu0
        %v2378 = vadd.f32 0.0, %v2377
        %v2379 = vpop.f32.mrb[0].mxu0
        %v2380 = vadd.f32 0.0, %v2379
        %2381 = vmatprep.mubr.bf16.mxu0 0
        %2382 = vmatmul.mubr.bf16.gmra.mrb[0].mxu0 %v1733
        %v2383 = vpop.f32.mrb[0].mxu0
        %v2384 = vadd.f32 0.0, %v2383
        %v2385 = vpop.f32.mrb[0].mxu0
        %v2386 = vadd.f32 0.0, %v2385
        %v2387 = vpop.f32.mrb[0].mxu0
        %v2388 = vadd.f32 0.0, %v2387
        %v2389 = vpop.f32.mrb[0].mxu0
        %v2390 = vadd.f32 0.0, %v2389
        %2391 = vmatprep.mubr.bf16.mxu0 0
        %2392 = vmatmul.mubr.bf16.gmra.mrb[0].mxu0 %v1734
        %v2393 = vpop.f32.mrb[0].mxu0
        %v2394 = vadd.f32 0.0, %v2393
        %v2395 = vpop.f32.mrb[0].mxu0
        %v2396 = vadd.f32 0.0, %v2395
        %v2397 = vpop.f32.mrb[0].mxu0
        %v2398 = vpop.f32.mrb[0].mxu0
        %2399 = vdwg.mxu0
        %2400 = vmatprep.subr.bf16.mxu0 %v1551
        %2401 = vmatpush1.bf16.msra.mxu0 %v1550
        %2402 = vmatprep.subr.bf16.mxu0 %v1567
        %2403 = vmatpush1.bf16.msra.mxu0 %v1566
        %2404 = vmatprep.subr.bf16.mxu0 %v1583
        %2405 = vmatpush1.bf16.msra.mxu0 %v1582
        %2406 = vmatprep.subr.bf16.mxu0 %v1599
        %2407 = vmatpush1.bf16.msra.mxu0 %v1598
        %2408 = vmatprep.subr.bf16.mxu0 %v1615
        %2409 = vmatpush1.bf16.msra.mxu0 %v1614
        %2410 = vmatprep.subr.bf16.mxu0 %v1631
        %2411 = vmatpush1.bf16.msra.mxu0 %v1630
        %2412 = vmatprep.subr.bf16.mxu0 %v1647
        %2413 = vmatpush1.bf16.msra.mxu0 %v1646
        %2414 = vmatprep.subr.bf16.mxu0 %v1663
        %2415 = vmatpush1.bf16.msra.mxu0 %v1662
        %2416 = vmatprep.subr.bf16.mxu0 0
        %2417 = vmatpush1.bf16.msra.mxu0 0
        %2418 = vmatprep.subr.bf16.mxu0 0
        %2419 = vmatpush1.bf16.msra.mxu0 0
        %2420 = vmatprep.subr.bf16.mxu0 0
        %2421 = vmatpush1.bf16.msra.mxu0 0
        %2422 = vmatprep.subr.bf16.mxu0 0
        %2423 = vmatpush1.bf16.msra.mxu0 0
        %2424 = vmatprep.subr.bf16.mxu0 0
        %2425 = vmatpush1.bf16.msra.mxu0 0
        %2426 = vmatprep.subr.bf16.mxu0 0
        %2427 = vmatpush1.bf16.msra.mxu0 0
        %2428 = vmatprep.subr.bf16.mxu0 0
        %2429 = vmatpush1.bf16.msra.mxu0 0
        %2430 = vmatprep.subr.bf16.mxu0 0
        %2431 = vmatpush1.bf16.msra.mxu0 0
        %2432 = vmatprep.mubr.bf16.mxu0 0
        %2433 = vmatmul.mubr.bf16.gmra.mrb[0].mxu0 %v1725
        %v2434 = vpop.f32.mrb[0].mxu0
        %v2435 = vadd.f32 0.0, %v2434
        %v2436 = vpop.f32.mrb[0].mxu0
        %v2437 = vadd.f32 0.0, %v2436
        %v2438 = vpop.f32.mrb[0].mxu0
        %v2439 = vadd.f32 0.0, %v2438
        %v2440 = vpop.f32.mrb[0].mxu0
        %v2441 = vadd.f32 0.0, %v2440
        %2442 = vmatprep.mubr.bf16.mxu0 0
        %2443 = vmatmul.mubr.bf16.gmra.mrb[0].mxu0 %v1726
        %v2444 = vpop.f32.mrb[0].mxu0
        %v2445 = vadd.f32 0.0, %v2444
        %v2446 = vpop.f32.mrb[0].mxu0
        %v2447 = vadd.f32 0.0, %v2446
        %v2448 = vpop.f32.mrb[0].mxu0
        %v2449 = vadd.f32 0.0, %v2448
        %v2450 = vpop.f32.mrb[0].mxu0
        %v2451 = vadd.f32 0.0, %v2450
        %2452 = vmatprep.mubr.bf16.mxu0 0
        %2453 = vmatmul.mubr.bf16.gmra.mrb[0].mxu0 %v1727
        %v2454 = vpop.f32.mrb[0].mxu0
        %v2455 = vadd.f32 0.0, %v2454
        %v2456 = vpop.f32.mrb[0].mxu0
        %v2457 = vadd.f32 0.0, %v2456
        %v2458 = vpop.f32.mrb[0].mxu0
        %v2459 = vadd.f32 0.0, %v2458
        %v2460 = vpop.f32.mrb[0].mxu0
        %v2461 = vadd.f32 0.0, %v2460
        %2462 = vmatprep.mubr.bf16.mxu0 0
        %2463 = vmatmul.mubr.bf16.gmra.mrb[0].mxu0 %v1728
        %v2464 = vpop.f32.mrb[0].mxu0
        %v2465 = vadd.f32 0.0, %v2464
        %v2466 = vpop.f32.mrb[0].mxu0
        %v2467 = vadd.f32 0.0, %v2466
        %v2468 = vpop.f32.mrb[0].mxu0
        %v2469 = vadd.f32 0.0, %v2468
        %v2470 = vpop.f32.mrb[0].mxu0
        %v2471 = vadd.f32 0.0, %v2470
        %2472 = vmatprep.mubr.bf16.mxu0 0
        %2473 = vmatmul.mubr.bf16.gmra.mrb[0].mxu0 %v1729
        %v2474 = vpop.f32.mrb[0].mxu0
        %v2475 = vadd.f32 0.0, %v2474
        %v2476 = vpop.f32.mrb[0].mxu0
        %v2477 = vadd.f32 0.0, %v2476
        %v2478 = vpop.f32.mrb[0].mxu0
        %v2479 = vadd.f32 0.0, %v2478
        %v2480 = vpop.f32.mrb[0].mxu0
        %v2481 = vadd.f32 0.0, %v2480
        %2482 = vmatprep.mubr.bf16.mxu0 0
        %2483 = vmatmul.mubr.bf16.gmra.mrb[0].mxu0 %v1730
        %v2484 = vpop.f32.mrb[0].mxu0
        %v2485 = vadd.f32 0.0, %v2484
        %v2486 = vpop.f32.mrb[0].mxu0
        %v2487 = vadd.f32 0.0, %v2486
        %v2488 = vpop.f32.mrb[0].mxu0
        %v2489 = vadd.f32 0.0, %v2488
        %v2490 = vpop.f32.mrb[0].mxu0
        %v2491 = vadd.f32 0.0, %v2490
        %2492 = vmatprep.mubr.bf16.mxu0 0
        %2493 = vmatmul.mubr.bf16.gmra.mrb[0].mxu0 %v1731
        %v2494 = vpop.f32.mrb[0].mxu0
        %v2495 = vadd.f32 0.0, %v2494
        %v2496 = vpop.f32.mrb[0].mxu0
        %v2497 = vadd.f32 0.0, %v2496
        %v2498 = vpop.f32.mrb[0].mxu0
        %v2499 = vadd.f32 0.0, %v2498
        %v2500 = vpop.f32.mrb[0].mxu0
        %v2501 = vadd.f32 0.0, %v2500
        %2502 = vmatprep.mubr.bf16.mxu0 0
        %2503 = vmatmul.mubr.bf16.gmra.mrb[0].mxu0 %v1732
        %v2504 = vpop.f32.mrb[0].mxu0
        %v2505 = vadd.f32 0.0, %v2504
        %v2506 = vpop.f32.mrb[0].mxu0
        %v2507 = vadd.f32 0.0, %v2506
        %v2508 = vpop.f32.mrb[0].mxu0
        %v2509 = vadd.f32 0.0, %v2508
        %v2510 = vpop.f32.mrb[0].mxu0
        %v2511 = vadd.f32 0.0, %v2510
        %2512 = vmatprep.mubr.bf16.mxu0 0
        %2513 = vmatmul.mubr.bf16.gmra.mrb[0].mxu0 %v1733
        %v2514 = vpop.f32.mrb[0].mxu0
        %v2515 = vadd.f32 0.0, %v2514
        %v2516 = vpop.f32.mrb[0].mxu0
        %v2517 = vadd.f32 0.0, %v2516
        %v2518 = vpop.f32.mrb[0].mxu0
        %v2519 = vadd.f32 0.0, %v2518
        %v2520 = vpop.f32.mrb[0].mxu0
        %v2521 = vadd.f32 0.0, %v2520
        %2522 = vmatprep.mubr.bf16.mxu0 0
        %2523 = vmatmul.mubr.bf16.gmra.mrb[0].mxu0 %v1734
        %v2524 = vpop.f32.mrb[0].mxu0
        %v2525 = vadd.f32 0.0, %v2524
        %v2526 = vpop.f32.mrb[0].mxu0
        %v2527 = vadd.f32 0.0, %v2526
        %v2528 = vpop.f32.mrb[0].mxu0
        %v2529 = vpop.f32.mrb[0].mxu0
        %2530 = vdwg.mxu0
        %2531 = vmatprep.subr.bf16.mxu0 %v1553
        %2532 = vmatpush1.bf16.msra.mxu0 %v1552
        %2533 = vmatprep.subr.bf16.mxu0 %v1569
        %2534 = vmatpush1.bf16.msra.mxu0 %v1568
        %2535 = vmatprep.subr.bf16.mxu0 %v1585
        %2536 = vmatpush1.bf16.msra.mxu0 %v1584
        %2537 = vmatprep.subr.bf16.mxu0 %v1601
        %2538 = vmatpush1.bf16.msra.mxu0 %v1600
        %2539 = vmatprep.subr.bf16.mxu0 %v1617
        %2540 = vmatpush1.bf16.msra.mxu0 %v1616
        %2541 = vmatprep.subr.bf16.mxu0 %v1633
        %2542 = vmatpush1.bf16.msra.mxu0 %v1632
        %2543 = vmatprep.subr.bf16.mxu0 %v1649
        %2544 = vmatpush1.bf16.msra.mxu0 %v1648
        %2545 = vmatprep.subr.bf16.mxu0 %v1665
        %2546 = vmatpush1.bf16.msra.mxu0 %v1664
        %2547 = vmatprep.subr.bf16.mxu0 0
        %2548 = vmatpush1.bf16.msra.mxu0 0
        %2549 = vmatprep.subr.bf16.mxu0 0
        %2550 = vmatpush1.bf16.msra.mxu0 0
        %2551 = vmatprep.subr.bf16.mxu0 0
        %2552 = vmatpush1.bf16.msra.mxu0 0
        %2553 = vmatprep.subr.bf16.mxu0 0
        %2554 = vmatpush1.bf16.msra.mxu0 0
        %2555 = vmatprep.subr.bf16.mxu0 0
        %2556 = vmatpush1.bf16.msra.mxu0 0
        %2557 = vmatprep.subr.bf16.mxu0 0
        %2558 = vmatpush1.bf16.msra.mxu0 0
        %2559 = vmatprep.subr.bf16.mxu0 0
        %2560 = vmatpush1.bf16.msra.mxu0 0
        %2561 = vmatprep.subr.bf16.mxu0 0
        %2562 = vmatpush1.bf16.msra.mxu0 0
        %2563 = vmatprep.mubr.bf16.mxu0 0
        %2564 = vmatmul.mubr.bf16.gmra.mrb[0].mxu0 %v1725
        %v2565 = vpop.f32.mrb[0].mxu0
        %v2566 = vadd.f32 0.0, %v2565
        %v2567 = vpop.f32.mrb[0].mxu0
        %v2568 = vadd.f32 0.0, %v2567
        %v2569 = vpop.f32.mrb[0].mxu0
        %v2570 = vadd.f32 0.0, %v2569
        %v2571 = vpop.f32.mrb[0].mxu0
        %v2572 = vadd.f32 0.0, %v2571
        %2573 = vmatprep.mubr.bf16.mxu0 0
        %2574 = vmatmul.mubr.bf16.gmra.mrb[0].mxu0 %v1726
        %v2575 = vpop.f32.mrb[0].mxu0
        %v2576 = vadd.f32 0.0, %v2575
        %v2577 = vpop.f32.mrb[0].mxu0
        %v2578 = vadd.f32 0.0, %v2577
        %v2579 = vpop.f32.mrb[0].mxu0
        %v2580 = vadd.f32 0.0, %v2579
        %v2581 = vpop.f32.mrb[0].mxu0
        %v2582 = vadd.f32 0.0, %v2581
        %2583 = vmatprep.mubr.bf16.mxu0 0
        %2584 = vmatmul.mubr.bf16.gmra.mrb[0].mxu0 %v1727
        %v2585 = vpop.f32.mrb[0].mxu0
        %v2586 = vadd.f32 0.0, %v2585
        %v2587 = vpop.f32.mrb[0].mxu0
        %v2588 = vadd.f32 0.0, %v2587
        %v2589 = vpop.f32.mrb[0].mxu0
        %v2590 = vadd.f32 0.0, %v2589
        %v2591 = vpop.f32.mrb[0].mxu0
        %v2592 = vadd.f32 0.0, %v2591
        %2593 = vmatprep.mubr.bf16.mxu0 0
        %2594 = vmatmul.mubr.bf16.gmra.mrb[0].mxu0 %v1728
        %v2595 = vpop.f32.mrb[0].mxu0
        %v2596 = vadd.f32 0.0, %v2595
        %v2597 = vpop.f32.mrb[0].mxu0
        %v2598 = vadd.f32 0.0, %v2597
        %v2599 = vpop.f32.mrb[0].mxu0
        %v2600 = vadd.f32 0.0, %v2599
        %v2601 = vpop.f32.mrb[0].mxu0
        %v2602 = vadd.f32 0.0, %v2601
        %2603 = vmatprep.mubr.bf16.mxu0 0
        %2604 = vmatmul.mubr.bf16.gmra.mrb[0].mxu0 %v1729
        %v2605 = vpop.f32.mrb[0].mxu0
        %v2606 = vadd.f32 0.0, %v2605
        %v2607 = vpop.f32.mrb[0].mxu0
        %v2608 = vadd.f32 0.0, %v2607
        %v2609 = vpop.f32.mrb[0].mxu0
        %v2610 = vadd.f32 0.0, %v2609
        %v2611 = vpop.f32.mrb[0].mxu0
        %v2612 = vadd.f32 0.0, %v2611
        %2613 = vmatprep.mubr.bf16.mxu0 0
        %2614 = vmatmul.mubr.bf16.gmra.mrb[0].mxu0 %v1730
        %v2615 = vpop.f32.mrb[0].mxu0
        %v2616 = vadd.f32 0.0, %v2615
        %v2617 = vpop.f32.mrb[0].mxu0
        %v2618 = vadd.f32 0.0, %v2617
        %v2619 = vpop.f32.mrb[0].mxu0
        %v2620 = vadd.f32 0.0, %v2619
        %v2621 = vpop.f32.mrb[0].mxu0
        %v2622 = vadd.f32 0.0, %v2621
        %2623 = vmatprep.mubr.bf16.mxu0 0
        %2624 = vmatmul.mubr.bf16.gmra.mrb[0].mxu0 %v1731
        %v2625 = vpop.f32.mrb[0].mxu0
        %v2626 = vadd.f32 0.0, %v2625
        %v2627 = vpop.f32.mrb[0].mxu0
        %v2628 = vadd.f32 0.0, %v2627
        %v2629 = vpop.f32.mrb[0].mxu0
        %v2630 = vadd.f32 0.0, %v2629
        %v2631 = vpop.f32.mrb[0].mxu0
        %v2632 = vadd.f32 0.0, %v2631
        %2633 = vmatprep.mubr.bf16.mxu0 0
        %2634 = vmatmul.mubr.bf16.gmra.mrb[0].mxu0 %v1732
        %v2635 = vpop.f32.mrb[0].mxu0
        %v2636 = vadd.f32 0.0, %v2635
        %v2637 = vpop.f32.mrb[0].mxu0
        %v2638 = vadd.f32 0.0, %v2637
        %v2639 = vpop.f32.mrb[0].mxu0
        %v2640 = vadd.f32 0.0, %v2639
        %v2641 = vpop.f32.mrb[0].mxu0
        %v2642 = vadd.f32 0.0, %v2641
        %2643 = vmatprep.mubr.bf16.mxu0 0
        %2644 = vmatmul.mubr.bf16.gmra.mrb[0].mxu0 %v1733
        %v2645 = vpop.f32.mrb[0].mxu0
        %v2646 = vadd.f32 0.0, %v2645
        %v2647 = vpop.f32.mrb[0].mxu0
        %v2648 = vadd.f32 0.0, %v2647
        %v2649 = vpop.f32.mrb[0].mxu0
        %v2650 = vadd.f32 0.0, %v2649
        %v2651 = vpop.f32.mrb[0].mxu0
        %v2652 = vadd.f32 0.0, %v2651
        %2653 = vmatprep.mubr.bf16.mxu0 0
        %2654 = vmatmul.mubr.bf16.gmra.mrb[0].mxu0 %v1734
        %v2655 = vpop.f32.mrb[0].mxu0
        %v2656 = vadd.f32 0.0, %v2655
        %v2657 = vpop.f32.mrb[0].mxu0
        %v2658 = vadd.f32 0.0, %v2657
        %v2659 = vpop.f32.mrb[0].mxu0
        %v2660 = vpop.f32.mrb[0].mxu0
        %2661 = vdwg.mxu0
        %2662 = vmatprep.subr.bf16.mxu0 %v1555
        %2663 = vmatpush1.bf16.msra.mxu0 %v1554
        %2664 = vmatprep.subr.bf16.mxu0 %v1571
        %2665 = vmatpush1.bf16.msra.mxu0 %v1570
        %2666 = vmatprep.subr.bf16.mxu0 %v1587
        %2667 = vmatpush1.bf16.msra.mxu0 %v1586
        %2668 = vmatprep.subr.bf16.mxu0 %v1603
        %2669 = vmatpush1.bf16.msra.mxu0 %v1602
        %2670 = vmatprep.subr.bf16.mxu0 %v1619
        %2671 = vmatpush1.bf16.msra.mxu0 %v1618
        %2672 = vmatprep.subr.bf16.mxu0 %v1635
        %2673 = vmatpush1.bf16.msra.mxu0 %v1634
        %2674 = vmatprep.subr.bf16.mxu0 %v1651
        %2675 = vmatpush1.bf16.msra.mxu0 %v1650
        %2676 = vmatprep.subr.bf16.mxu0 %v1667
        %2677 = vmatpush1.bf16.msra.mxu0 %v1666
        %2678 = vmatprep.subr.bf16.mxu0 0
        %2679 = vmatpush1.bf16.msra.mxu0 0
        %2680 = vmatprep.subr.bf16.mxu0 0
        %2681 = vmatpush1.bf16.msra.mxu0 0
        %2682 = vmatprep.subr.bf16.mxu0 0
        %2683 = vmatpush1.bf16.msra.mxu0 0
        %2684 = vmatprep.subr.bf16.mxu0 0
        %2685 = vmatpush1.bf16.msra.mxu0 0
        %2686 = vmatprep.subr.bf16.mxu0 0
        %2687 = vmatpush1.bf16.msra.mxu0 0
        %2688 = vmatprep.subr.bf16.mxu0 0
        %2689 = vmatpush1.bf16.msra.mxu0 0
        %2690 = vmatprep.subr.bf16.mxu0 0
        %2691 = vmatpush1.bf16.msra.mxu0 0
        %2692 = vmatprep.subr.bf16.mxu0 0
        %2693 = vmatpush1.bf16.msra.mxu0 0
        %2694 = vmatprep.mubr.bf16.mxu0 0
        %2695 = vmatmul.mubr.bf16.gmra.mrb[0].mxu0 %v1725
        %v2696 = vpop.f32.mrb[0].mxu0
        %v2697 = vadd.f32 0.0, %v2696
        %v2698 = vpop.f32.mrb[0].mxu0
        %v2699 = vadd.f32 0.0, %v2698
        %v2700 = vpop.f32.mrb[0].mxu0
        %v2701 = vadd.f32 0.0, %v2700
        %v2702 = vpop.f32.mrb[0].mxu0
        %v2703 = vadd.f32 0.0, %v2702
        %2704 = vmatprep.mubr.bf16.mxu0 0
        %2705 = vmatmul.mubr.bf16.gmra.mrb[0].mxu0 %v1726
        %v2706 = vpop.f32.mrb[0].mxu0
        %v2707 = vadd.f32 0.0, %v2706
        %v2708 = vpop.f32.mrb[0].mxu0
        %v2709 = vadd.f32 0.0, %v2708
        %v2710 = vpop.f32.mrb[0].mxu0
        %v2711 = vadd.f32 0.0, %v2710
        %v2712 = vpop.f32.mrb[0].mxu0
        %v2713 = vadd.f32 0.0, %v2712
        %2714 = vmatprep.mubr.bf16.mxu0 0
        %2715 = vmatmul.mubr.bf16.gmra.mrb[0].mxu0 %v1727
        %v2716 = vpop.f32.mrb[0].mxu0
        %v2717 = vadd.f32 0.0, %v2716
        %v2718 = vpop.f32.mrb[0].mxu0
        %v2719 = vadd.f32 0.0, %v2718
        %v2720 = vpop.f32.mrb[0].mxu0
        %v2721 = vadd.f32 0.0, %v2720
        %v2722 = vpop.f32.mrb[0].mxu0
        %v2723 = vadd.f32 0.0, %v2722
        %2724 = vmatprep.mubr.bf16.mxu0 0
        %2725 = vmatmul.mubr.bf16.gmra.mrb[0].mxu0 %v1728
        %v2726 = vpop.f32.mrb[0].mxu0
        %v2727 = vadd.f32 0.0, %v2726
        %v2728 = vpop.f32.mrb[0].mxu0
        %v2729 = vadd.f32 0.0, %v2728
        %v2730 = vpop.f32.mrb[0].mxu0
        %v2731 = vadd.f32 0.0, %v2730
        %v2732 = vpop.f32.mrb[0].mxu0
        %v2733 = vadd.f32 0.0, %v2732
        %2734 = vmatprep.mubr.bf16.mxu0 0
        %2735 = vmatmul.mubr.bf16.gmra.mrb[0].mxu0 %v1729
        %v2736 = vpop.f32.mrb[0].mxu0
        %v2737 = vadd.f32 0.0, %v2736
        %v2738 = vpop.f32.mrb[0].mxu0
        %v2739 = vadd.f32 0.0, %v2738
        %v2740 = vpop.f32.mrb[0].mxu0
        %v2741 = vadd.f32 0.0, %v2740
        %v2742 = vpop.f32.mrb[0].mxu0
        %v2743 = vadd.f32 0.0, %v2742
        %2744 = vmatprep.mubr.bf16.mxu0 0
        %2745 = vmatmul.mubr.bf16.gmra.mrb[0].mxu0 %v1730
        %v2746 = vpop.f32.mrb[0].mxu0
        %v2747 = vadd.f32 0.0, %v2746
        %v2748 = vpop.f32.mrb[0].mxu0
        %v2749 = vadd.f32 0.0, %v2748
        %v2750 = vpop.f32.mrb[0].mxu0
        %v2751 = vadd.f32 0.0, %v2750
        %v2752 = vpop.f32.mrb[0].mxu0
        %v2753 = vadd.f32 0.0, %v2752
        %2754 = vmatprep.mubr.bf16.mxu0 0
        %2755 = vmatmul.mubr.bf16.gmra.mrb[0].mxu0 %v1731
        %v2756 = vpop.f32.mrb[0].mxu0
        %v2757 = vadd.f32 0.0, %v2756
        %v2758 = vpop.f32.mrb[0].mxu0
        %v2759 = vadd.f32 0.0, %v2758
        %v2760 = vpop.f32.mrb[0].mxu0
        %v2761 = vadd.f32 0.0, %v2760
        %v2762 = vpop.f32.mrb[0].mxu0
        %v2763 = vadd.f32 0.0, %v2762
        %2764 = vmatprep.mubr.bf16.mxu0 0
        %2765 = vmatmul.mubr.bf16.gmra.mrb[0].mxu0 %v1732
        %v2766 = vpop.f32.mrb[0].mxu0
        %v2767 = vadd.f32 0.0, %v2766
        %v2768 = vpop.f32.mrb[0].mxu0
        %v2769 = vadd.f32 0.0, %v2768
        %v2770 = vpop.f32.mrb[0].mxu0
        %v2771 = vadd.f32 0.0, %v2770
        %v2772 = vpop.f32.mrb[0].mxu0
        %v2773 = vadd.f32 0.0, %v2772
        %2774 = vmatprep.mubr.bf16.mxu0 0
        %2775 = vmatmul.mubr.bf16.gmra.mrb[0].mxu0 %v1733
        %v2776 = vpop.f32.mrb[0].mxu0
        %v2777 = vadd.f32 0.0, %v2776
        %v2778 = vpop.f32.mrb[0].mxu0
        %v2779 = vadd.f32 0.0, %v2778
        %v2780 = vpop.f32.mrb[0].mxu0
        %v2781 = vadd.f32 0.0, %v2780
        %v2782 = vpop.f32.mrb[0].mxu0
        %v2783 = vadd.f32 0.0, %v2782
        %2784 = vmatprep.mubr.bf16.mxu0 0
        %2785 = vmatmul.mubr.bf16.gmra.mrb[0].mxu0 %v1734
        %v2786 = vpop.f32.mrb[0].mxu0
        %v2787 = vadd.f32 0.0, %v2786
        %v2788 = vpop.f32.mrb[0].mxu0
        %v2789 = vadd.f32 0.0, %v2788
        %v2790 = vpop.f32.mrb[0].mxu0
        %v2791 = vpop.f32.mrb[0].mxu0
        %2792 = vdwg.mxu0
        %2794 = vset.pattern.permute.xlu0 0
        %2795 = vperm.xlu0 %2794, %v1208
        %v2796 = vpop.permute.xlu0 %2795
        %2799 = vset.pattern.permute.xlu0 0
        %2800 = vperm.xlu0 %2799, %v1209
        %v2801 = vpop.permute.xlu0 %2800
        %2804 = vset.pattern.permute.xlu0 0
        %2805 = vperm.xlu0 %2804, %v1210
        %v2806 = vpop.permute.xlu0 %2805
        %2809 = vset.pattern.permute.xlu0 0
        %2810 = vperm.xlu0 %2809, %v1211
        %v2811 = vpop.permute.xlu0 %2810
        %2814 = vset.pattern.permute.xlu0 0
        %2815 = vperm.xlu0 %2814, %v1212
        %v2816 = vpop.permute.xlu0 %2815
        %2819 = vset.pattern.permute.xlu0 0
        %2820 = vperm.xlu0 %2819, %v1213
        %v2821 = vpop.permute.xlu0 %2820
        %2824 = vset.pattern.permute.xlu0 0
        %2825 = vperm.xlu0 %2824, %v1214
        %v2826 = vpop.permute.xlu0 %2825
        %2829 = vset.pattern.permute.xlu0 0
        %2830 = vperm.xlu0 %2829, %v1215
        %v2831 = vpop.permute.xlu0 %2830
        %2834 = vset.pattern.permute.xlu0 0
        %2835 = vperm.xlu0 %2834, %v1216
        %v2836 = vpop.permute.xlu0 %2835
        %2839 = vset.pattern.permute.xlu0 0
        %2840 = vperm.xlu0 %2839, %v1217
        %v2841 = vpop.permute.xlu0 %2840
        %2844 = vset.pattern.permute.xlu0 0
        %2845 = vperm.xlu0 %2844, %v1218
        %v2846 = vpop.permute.xlu0 %2845
        %2849 = vset.pattern.permute.xlu0 0
        %2850 = vperm.xlu0 %2849, %v1219
        %v2851 = vpop.permute.xlu0 %2850
        %2854 = vset.pattern.permute.xlu0 0
        %2855 = vperm.xlu0 %2854, %v1220
        %v2856 = vpop.permute.xlu0 %2855
        %2859 = vset.pattern.permute.xlu0 0
        %2860 = vperm.xlu0 %2859, %v1221
        %v2861 = vpop.permute.xlu0 %2860
        %2864 = vset.pattern.permute.xlu0 0
        %2865 = vperm.xlu0 %2864, %v1222
        %v2866 = vpop.permute.xlu0 %2865
        %2869 = vset.pattern.permute.xlu0 0
        %2870 = vperm.xlu0 %2869, %v1223
        %v2871 = vpop.permute.xlu0 %2870
        %2874 = vset.pattern.permute.xlu0 0
        %2875 = vperm.xlu0 %2874, %v1224
        %v2876 = vpop.permute.xlu0 %2875
        %2879 = vset.pattern.permute.xlu0 0
        %2880 = vperm.xlu0 %2879, %v1225
        %v2881 = vpop.permute.xlu0 %2880
        %2884 = vset.pattern.permute.xlu0 0
        %2885 = vperm.xlu0 %2884, %v1226
        %v2886 = vpop.permute.xlu0 %2885
        %v2888 = vmul.f32 %v1780, %v2796
        %v2889 = vmul.f32 %v1782, %v2796
        %v2890 = vmul.f32 %v1911, %v2796
        %v2891 = vmul.f32 %v1913, %v2796
        %v2892 = vmul.f32 %v2042, %v2796
        %v2893 = vmul.f32 %v2044, %v2796
        %v2894 = vmul.f32 %v2173, %v2796
        %v2895 = vmul.f32 %v2175, %v2796
        %v2896 = vmul.f32 %v2304, %v2796
        %v2897 = vmul.f32 %v2306, %v2796
        %v2898 = vmul.f32 %v2435, %v2796
        %v2899 = vmul.f32 %v2437, %v2796
        %v2900 = vmul.f32 %v2566, %v2796
        %v2901 = vmul.f32 %v2568, %v2796
        %v2902 = vmul.f32 %v2697, %v2796
        %v2903 = vmul.f32 %v2699, %v2796
        %v2904 = vmul.f32 %v1784, %v2801
        %v2905 = vmul.f32 %v1786, %v2801
        %v2906 = vmul.f32 %v1915, %v2801
        %v2907 = vmul.f32 %v1917, %v2801
        %v2908 = vmul.f32 %v2046, %v2801
        %v2909 = vmul.f32 %v2048, %v2801
        %v2910 = vmul.f32 %v2177, %v2801
        %v2911 = vmul.f32 %v2179, %v2801
        %v2912 = vmul.f32 %v2308, %v2801
        %v2913 = vmul.f32 %v2310, %v2801
        %v2914 = vmul.f32 %v2439, %v2801
        %v2915 = vmul.f32 %v2441, %v2801
        %v2916 = vmul.f32 %v2570, %v2801
        %v2917 = vmul.f32 %v2572, %v2801
        %v2918 = vmul.f32 %v2701, %v2801
        %v2919 = vmul.f32 %v2703, %v2801
        %v2920 = vmul.f32 %v1790, %v2806
        %v2921 = vmul.f32 %v1792, %v2806
        %v2922 = vmul.f32 %v1921, %v2806
        %v2923 = vmul.f32 %v1923, %v2806
        %v2924 = vmul.f32 %v2052, %v2806
        %v2925 = vmul.f32 %v2054, %v2806
        %v2926 = vmul.f32 %v2183, %v2806
        %v2927 = vmul.f32 %v2185, %v2806
        %v2928 = vmul.f32 %v2314, %v2806
        %v2929 = vmul.f32 %v2316, %v2806
        %v2930 = vmul.f32 %v2445, %v2806
        %v2931 = vmul.f32 %v2447, %v2806
        %v2932 = vmul.f32 %v2576, %v2806
        %v2933 = vmul.f32 %v2578, %v2806
        %v2934 = vmul.f32 %v2707, %v2806
        %v2935 = vmul.f32 %v2709, %v2806
        %v2936 = vmul.f32 %v1794, %v2811
        %v2937 = vmul.f32 %v1796, %v2811
        %v2938 = vmul.f32 %v1925, %v2811
        %v2939 = vmul.f32 %v1927, %v2811
        %v2940 = vmul.f32 %v2056, %v2811
        %v2941 = vmul.f32 %v2058, %v2811
        %v2942 = vmul.f32 %v2187, %v2811
        %v2943 = vmul.f32 %v2189, %v2811
        %v2944 = vmul.f32 %v2318, %v2811
        %v2945 = vmul.f32 %v2320, %v2811
        %v2946 = vmul.f32 %v2449, %v2811
        %v2947 = vmul.f32 %v2451, %v2811
        %v2948 = vmul.f32 %v2580, %v2811
        %v2949 = vmul.f32 %v2582, %v2811
        %v2950 = vmul.f32 %v2711, %v2811
        %v2951 = vmul.f32 %v2713, %v2811
        %v2952 = vmul.f32 %v1800, %v2816
        %v2953 = vmul.f32 %v1802, %v2816
        %v2954 = vmul.f32 %v1931, %v2816
        %v2955 = vmul.f32 %v1933, %v2816
        %v2956 = vmul.f32 %v2062, %v2816
        %v2957 = vmul.f32 %v2064, %v2816
        %v2958 = vmul.f32 %v2193, %v2816
        %v2959 = vmul.f32 %v2195, %v2816
        %v2960 = vmul.f32 %v2324, %v2816
        %v2961 = vmul.f32 %v2326, %v2816
        %v2962 = vmul.f32 %v2455, %v2816
        %v2963 = vmul.f32 %v2457, %v2816
        %v2964 = vmul.f32 %v2586, %v2816
        %v2965 = vmul.f32 %v2588, %v2816
        %v2966 = vmul.f32 %v2717, %v2816
        %v2967 = vmul.f32 %v2719, %v2816
        %v2968 = vmul.f32 %v1804, %v2821
        %v2969 = vmul.f32 %v1806, %v2821
        %v2970 = vmul.f32 %v1935, %v2821
        %v2971 = vmul.f32 %v1937, %v2821
        %v2972 = vmul.f32 %v2066, %v2821
        %v2973 = vmul.f32 %v2068, %v2821
        %v2974 = vmul.f32 %v2197, %v2821
        %v2975 = vmul.f32 %v2199, %v2821
        %v2976 = vmul.f32 %v2328, %v2821
        %v2977 = vmul.f32 %v2330, %v2821
        %v2978 = vmul.f32 %v2459, %v2821
        %v2979 = vmul.f32 %v2461, %v2821
        %v2980 = vmul.f32 %v2590, %v2821
        %v2981 = vmul.f32 %v2592, %v2821
        %v2982 = vmul.f32 %v2721, %v2821
        %v2983 = vmul.f32 %v2723, %v2821
        %v2984 = vmul.f32 %v1810, %v2826
        %v2985 = vmul.f32 %v1812, %v2826
        %v2986 = vmul.f32 %v1941, %v2826
        %v2987 = vmul.f32 %v1943, %v2826
        %v2988 = vmul.f32 %v2072, %v2826
        %v2989 = vmul.f32 %v2074, %v2826
        %v2990 = vmul.f32 %v2203, %v2826
        %v2991 = vmul.f32 %v2205, %v2826
        %v2992 = vmul.f32 %v2334, %v2826
        %v2993 = vmul.f32 %v2336, %v2826
        %v2994 = vmul.f32 %v2465, %v2826
        %v2995 = vmul.f32 %v2467, %v2826
        %v2996 = vmul.f32 %v2596, %v2826
        %v2997 = vmul.f32 %v2598, %v2826
        %v2998 = vmul.f32 %v2727, %v2826
        %v2999 = vmul.f32 %v2729, %v2826
        %v3000 = vmul.f32 %v1814, %v2831
        %v3001 = vmul.f32 %v1816, %v2831
        %v3002 = vmul.f32 %v1945, %v2831
        %v3003 = vmul.f32 %v1947, %v2831
        %v3004 = vmul.f32 %v2076, %v2831
        %v3005 = vmul.f32 %v2078, %v2831
        %v3006 = vmul.f32 %v2207, %v2831
        %v3007 = vmul.f32 %v2209, %v2831
        %v3008 = vmul.f32 %v2338, %v2831
        %v3009 = vmul.f32 %v2340, %v2831
        %v3010 = vmul.f32 %v2469, %v2831
        %v3011 = vmul.f32 %v2471, %v2831
        %v3012 = vmul.f32 %v2600, %v2831
        %v3013 = vmul.f32 %v2602, %v2831
        %v3014 = vmul.f32 %v2731, %v2831
        %v3015 = vmul.f32 %v2733, %v2831
        %v3016 = vmul.f32 %v1820, %v2836
        %v3017 = vmul.f32 %v1822, %v2836
        %v3018 = vmul.f32 %v1951, %v2836
        %v3019 = vmul.f32 %v1953, %v2836
        %v3020 = vmul.f32 %v2082, %v2836
        %v3021 = vmul.f32 %v2084, %v2836
        %v3022 = vmul.f32 %v2213, %v2836
        %v3023 = vmul.f32 %v2215, %v2836
        %v3024 = vmul.f32 %v2344, %v2836
        %v3025 = vmul.f32 %v2346, %v2836
        %v3026 = vmul.f32 %v2475, %v2836
        %v3027 = vmul.f32 %v2477, %v2836
        %v3028 = vmul.f32 %v2606, %v2836
        %v3029 = vmul.f32 %v2608, %v2836
        %v3030 = vmul.f32 %v2737, %v2836
        %v3031 = vmul.f32 %v2739, %v2836
        %v3032 = vmul.f32 %v1824, %v2841
        %v3033 = vmul.f32 %v1826, %v2841
        %v3034 = vmul.f32 %v1955, %v2841
        %v3035 = vmul.f32 %v1957, %v2841
        %v3036 = vmul.f32 %v2086, %v2841
        %v3037 = vmul.f32 %v2088, %v2841
        %v3038 = vmul.f32 %v2217, %v2841
        %v3039 = vmul.f32 %v2219, %v2841
        %v3040 = vmul.f32 %v2348, %v2841
        %v3041 = vmul.f32 %v2350, %v2841
        %v3042 = vmul.f32 %v2479, %v2841
        %v3043 = vmul.f32 %v2481, %v2841
        %v3044 = vmul.f32 %v2610, %v2841
        %v3045 = vmul.f32 %v2612, %v2841
        %v3046 = vmul.f32 %v2741, %v2841
        %v3047 = vmul.f32 %v2743, %v2841
        %v3048 = vmul.f32 %v1830, %v2846
        %v3049 = vmul.f32 %v1832, %v2846
        %v3050 = vmul.f32 %v1961, %v2846
        %v3051 = vmul.f32 %v1963, %v2846
        %v3052 = vmul.f32 %v2092, %v2846
        %v3053 = vmul.f32 %v2094, %v2846
        %v3054 = vmul.f32 %v2223, %v2846
        %v3055 = vmul.f32 %v2225, %v2846
        %v3056 = vmul.f32 %v2354, %v2846
        %v3057 = vmul.f32 %v2356, %v2846
        %v3058 = vmul.f32 %v2485, %v2846
        %v3059 = vmul.f32 %v2487, %v2846
        %v3060 = vmul.f32 %v2616, %v2846
        %v3061 = vmul.f32 %v2618, %v2846
        %v3062 = vmul.f32 %v2747, %v2846
        %v3063 = vmul.f32 %v2749, %v2846
        %v3064 = vmul.f32 %v1834, %v2851
        %v3065 = vmul.f32 %v1836, %v2851
        %v3066 = vmul.f32 %v1965, %v2851
        %v3067 = vmul.f32 %v1967, %v2851
        %v3068 = vmul.f32 %v2096, %v2851
        %v3069 = vmul.f32 %v2098, %v2851
        %v3070 = vmul.f32 %v2227, %v2851
        %v3071 = vmul.f32 %v2229, %v2851
        %v3072 = vmul.f32 %v2358, %v2851
        %v3073 = vmul.f32 %v2360, %v2851
        %v3074 = vmul.f32 %v2489, %v2851
        %v3075 = vmul.f32 %v2491, %v2851
        %v3076 = vmul.f32 %v2620, %v2851
        %v3077 = vmul.f32 %v2622, %v2851
        %v3078 = vmul.f32 %v2751, %v2851
        %v3079 = vmul.f32 %v2753, %v2851
        %v3080 = vmul.f32 %v1840, %v2856
        %v3081 = vmul.f32 %v1842, %v2856
        %v3082 = vmul.f32 %v1971, %v2856
        %v3083 = vmul.f32 %v1973, %v2856
        %v3084 = vmul.f32 %v2102, %v2856
        %v3085 = vmul.f32 %v2104, %v2856
        %v3086 = vmul.f32 %v2233, %v2856
        %v3087 = vmul.f32 %v2235, %v2856
        %v3088 = vmul.f32 %v2364, %v2856
        %v3089 = vmul.f32 %v2366, %v2856
        %v3090 = vmul.f32 %v2495, %v2856
        %v3091 = vmul.f32 %v2497, %v2856
        %v3092 = vmul.f32 %v2626, %v2856
        %v3093 = vmul.f32 %v2628, %v2856
        %v3094 = vmul.f32 %v2757, %v2856
        %v3095 = vmul.f32 %v2759, %v2856
        %v3096 = vmul.f32 %v1844, %v2861
        %v3097 = vmul.f32 %v1846, %v2861
        %v3098 = vmul.f32 %v1975, %v2861
        %v3099 = vmul.f32 %v1977, %v2861
        %v3100 = vmul.f32 %v2106, %v2861
        %v3101 = vmul.f32 %v2108, %v2861
        %v3102 = vmul.f32 %v2237, %v2861
        %v3103 = vmul.f32 %v2239, %v2861
        %v3104 = vmul.f32 %v2368, %v2861
        %v3105 = vmul.f32 %v2370, %v2861
        %v3106 = vmul.f32 %v2499, %v2861
        %v3107 = vmul.f32 %v2501, %v2861
        %v3108 = vmul.f32 %v2630, %v2861
        %v3109 = vmul.f32 %v2632, %v2861
        %v3110 = vmul.f32 %v2761, %v2861
        %v3111 = vmul.f32 %v2763, %v2861
        %v3112 = vmul.f32 %v1850, %v2866
        %v3113 = vmul.f32 %v1852, %v2866
        %v3114 = vmul.f32 %v1981, %v2866
        %v3115 = vmul.f32 %v1983, %v2866
        %v3116 = vmul.f32 %v2112, %v2866
        %v3117 = vmul.f32 %v2114, %v2866
        %v3118 = vmul.f32 %v2243, %v2866
        %v3119 = vmul.f32 %v2245, %v2866
        %v3120 = vmul.f32 %v2374, %v2866
        %v3121 = vmul.f32 %v2376, %v2866
        %v3122 = vmul.f32 %v2505, %v2866
        %v3123 = vmul.f32 %v2507, %v2866
        %v3124 = vmul.f32 %v2636, %v2866
        %v3125 = vmul.f32 %v2638, %v2866
        %v3126 = vmul.f32 %v2767, %v2866
        %v3127 = vmul.f32 %v2769, %v2866
        %v3128 = vmul.f32 %v1854, %v2871
        %v3129 = vmul.f32 %v1856, %v2871
        %v3130 = vmul.f32 %v1985, %v2871
        %v3131 = vmul.f32 %v1987, %v2871
        %v3132 = vmul.f32 %v2116, %v2871
        %v3133 = vmul.f32 %v2118, %v2871
        %v3134 = vmul.f32 %v2247, %v2871
        %v3135 = vmul.f32 %v2249, %v2871
        %v3136 = vmul.f32 %v2378, %v2871
        %v3137 = vmul.f32 %v2380, %v2871
        %v3138 = vmul.f32 %v2509, %v2871
        %v3139 = vmul.f32 %v2511, %v2871
        %v3140 = vmul.f32 %v2640, %v2871
        %v3141 = vmul.f32 %v2642, %v2871
        %v3142 = vmul.f32 %v2771, %v2871
        %v3143 = vmul.f32 %v2773, %v2871
        %v3144 = vmul.f32 %v1860, %v2876
        %v3145 = vmul.f32 %v1862, %v2876
        %v3146 = vmul.f32 %v1991, %v2876
        %v3147 = vmul.f32 %v1993, %v2876
        %v3148 = vmul.f32 %v2122, %v2876
        %v3149 = vmul.f32 %v2124, %v2876
        %v3150 = vmul.f32 %v2253, %v2876
        %v3151 = vmul.f32 %v2255, %v2876
        %v3152 = vmul.f32 %v2384, %v2876
        %v3153 = vmul.f32 %v2386, %v2876
        %v3154 = vmul.f32 %v2515, %v2876
        %v3155 = vmul.f32 %v2517, %v2876
        %v3156 = vmul.f32 %v2646, %v2876
        %v3157 = vmul.f32 %v2648, %v2876
        %v3158 = vmul.f32 %v2777, %v2876
        %v3159 = vmul.f32 %v2779, %v2876
        %v3160 = vmul.f32 %v1864, %v2881
        %v3161 = vmul.f32 %v1866, %v2881
        %v3162 = vmul.f32 %v1995, %v2881
        %v3163 = vmul.f32 %v1997, %v2881
        %v3164 = vmul.f32 %v2126, %v2881
        %v3165 = vmul.f32 %v2128, %v2881
        %v3166 = vmul.f32 %v2257, %v2881
        %v3167 = vmul.f32 %v2259, %v2881
        %v3168 = vmul.f32 %v2388, %v2881
        %v3169 = vmul.f32 %v2390, %v2881
        %v3170 = vmul.f32 %v2519, %v2881
        %v3171 = vmul.f32 %v2521, %v2881
        %v3172 = vmul.f32 %v2650, %v2881
        %v3173 = vmul.f32 %v2652, %v2881
        %v3174 = vmul.f32 %v2781, %v2881
        %v3175 = vmul.f32 %v2783, %v2881
        %v3176 = vmul.f32 %v1870, %v2886
        %v3177 = vmul.f32 %v1872, %v2886
        %v3178 = vmul.f32 %v2001, %v2886
        %v3179 = vmul.f32 %v2003, %v2886
        %v3180 = vmul.f32 %v2132, %v2886
        %v3181 = vmul.f32 %v2134, %v2886
        %v3182 = vmul.f32 %v2263, %v2886
        %v3183 = vmul.f32 %v2265, %v2886
        %v3184 = vmul.f32 %v2394, %v2886
        %v3185 = vmul.f32 %v2396, %v2886
        %v3186 = vmul.f32 %v2525, %v2886
        %v3187 = vmul.f32 %v2527, %v2886
        %v3188 = vmul.f32 %v2656, %v2886
        %v3189 = vmul.f32 %v2658, %v2886
        %v3190 = vmul.f32 %v2787, %v2886
        %v3191 = vmul.f32 %v2789, %v2886
        %3193 = vset.pattern.permute.xlu0 0
        %3194 = vperm.xlu0 %3193, %v1265
        %v3195 = vpop.permute.xlu0 %3194
        %3198 = vset.pattern.permute.xlu0 0
        %3199 = vperm.xlu0 %3198, %v1266
        %v3200 = vpop.permute.xlu0 %3199
        %3203 = vset.pattern.permute.xlu0 0
        %3204 = vperm.xlu0 %3203, %v1267
        %v3205 = vpop.permute.xlu0 %3204
        %3208 = vset.pattern.permute.xlu0 0
        %3209 = vperm.xlu0 %3208, %v1268
        %v3210 = vpop.permute.xlu0 %3209
        %3213 = vset.pattern.permute.xlu0 0
        %3214 = vperm.xlu0 %3213, %v1269
        %v3215 = vpop.permute.xlu0 %3214
        %3218 = vset.pattern.permute.xlu0 0
        %3219 = vperm.xlu0 %3218, %v1270
        %v3220 = vpop.permute.xlu0 %3219
        %3223 = vset.pattern.permute.xlu0 0
        %3224 = vperm.xlu0 %3223, %v1271
        %v3225 = vpop.permute.xlu0 %3224
        %3228 = vset.pattern.permute.xlu0 0
        %3229 = vperm.xlu0 %3228, %v1272
        %v3230 = vpop.permute.xlu0 %3229
        %3233 = vset.pattern.permute.xlu0 0
        %3234 = vperm.xlu0 %3233, %v1273
        %v3235 = vpop.permute.xlu0 %3234
        %3238 = vset.pattern.permute.xlu0 0
        %3239 = vperm.xlu0 %3238, %v1274
        %v3240 = vpop.permute.xlu0 %3239
        %3243 = vset.pattern.permute.xlu0 0
        %3244 = vperm.xlu0 %3243, %v1275
        %v3245 = vpop.permute.xlu0 %3244
        %3248 = vset.pattern.permute.xlu0 0
        %3249 = vperm.xlu0 %3248, %v1276
        %v3250 = vpop.permute.xlu0 %3249
        %3253 = vset.pattern.permute.xlu0 0
        %3254 = vperm.xlu0 %3253, %v1277
        %v3255 = vpop.permute.xlu0 %3254
        %3258 = vset.pattern.permute.xlu0 0
        %3259 = vperm.xlu0 %3258, %v1278
        %v3260 = vpop.permute.xlu0 %3259
        %3263 = vset.pattern.permute.xlu0 0
        %3264 = vperm.xlu0 %3263, %v1279
        %v3265 = vpop.permute.xlu0 %3264
        %3268 = vset.pattern.permute.xlu0 0
        %3269 = vperm.xlu0 %3268, %v1280
        %v3270 = vpop.permute.xlu0 %3269
        %3273 = vset.pattern.permute.xlu0 0
        %3274 = vperm.xlu0 %3273, %v1281
        %v3275 = vpop.permute.xlu0 %3274
        %3278 = vset.pattern.permute.xlu0 0
        %3279 = vperm.xlu0 %3278, %v1282
        %v3280 = vpop.permute.xlu0 %3279
        %3283 = vset.pattern.permute.xlu0 0
        %3284 = vperm.xlu0 %3283, %v1283
        %v3285 = vpop.permute.xlu0 %3284
        %v3287 = vadd.f32 %v2888, %v3195
        %v3288 = vadd.f32 %v2889, %v3195
        %v3289 = vadd.f32 %v2890, %v3195
        %v3290 = vadd.f32 %v2891, %v3195
        %v3291 = vadd.f32 %v2892, %v3195
        %v3292 = vadd.f32 %v2893, %v3195
        %v3293 = vadd.f32 %v2894, %v3195
        %v3294 = vadd.f32 %v2895, %v3195
        %v3295 = vadd.f32 %v2896, %v3195
        %v3296 = vadd.f32 %v2897, %v3195
        %v3297 = vadd.f32 %v2898, %v3195
        %v3298 = vadd.f32 %v2899, %v3195
        %v3299 = vadd.f32 %v2900, %v3195
        %v3300 = vadd.f32 %v2901, %v3195
        %v3301 = vadd.f32 %v2902, %v3195
        %v3302 = vadd.f32 %v2903, %v3195
        %v3303 = vadd.f32 %v2904, %v3200
        %v3304 = vadd.f32 %v2905, %v3200
        %v3305 = vadd.f32 %v2906, %v3200
        %v3306 = vadd.f32 %v2907, %v3200
        %v3307 = vadd.f32 %v2908, %v3200
        %v3308 = vadd.f32 %v2909, %v3200
        %v3309 = vadd.f32 %v2910, %v3200
        %v3310 = vadd.f32 %v2911, %v3200
        %v3311 = vadd.f32 %v2912, %v3200
        %v3312 = vadd.f32 %v2913, %v3200
        %v3313 = vadd.f32 %v2914, %v3200
        %v3314 = vadd.f32 %v2915, %v3200
        %v3315 = vadd.f32 %v2916, %v3200
        %v3316 = vadd.f32 %v2917, %v3200
        %v3317 = vadd.f32 %v2918, %v3200
        %v3318 = vadd.f32 %v2919, %v3200
        %v3319 = vadd.f32 %v2920, %v3205
        %v3320 = vadd.f32 %v2921, %v3205
        %v3321 = vadd.f32 %v2922, %v3205
        %v3322 = vadd.f32 %v2923, %v3205
        %v3323 = vadd.f32 %v2924, %v3205
        %v3324 = vadd.f32 %v2925, %v3205
        %v3325 = vadd.f32 %v2926, %v3205
        %v3326 = vadd.f32 %v2927, %v3205
        %v3327 = vadd.f32 %v2928, %v3205
        %v3328 = vadd.f32 %v2929, %v3205
        %v3329 = vadd.f32 %v2930, %v3205
        %v3330 = vadd.f32 %v2931, %v3205
        %v3331 = vadd.f32 %v2932, %v3205
        %v3332 = vadd.f32 %v2933, %v3205
        %v3333 = vadd.f32 %v2934, %v3205
        %v3334 = vadd.f32 %v2935, %v3205
        %v3335 = vadd.f32 %v2936, %v3210
        %v3336 = vadd.f32 %v2937, %v3210
        %v3337 = vadd.f32 %v2938, %v3210
        %v3338 = vadd.f32 %v2939, %v3210
        %v3339 = vadd.f32 %v2940, %v3210
        %v3340 = vadd.f32 %v2941, %v3210
        %v3341 = vadd.f32 %v2942, %v3210
        %v3342 = vadd.f32 %v2943, %v3210
        %v3343 = vadd.f32 %v2944, %v3210
        %v3344 = vadd.f32 %v2945, %v3210
        %v3345 = vadd.f32 %v2946, %v3210
        %v3346 = vadd.f32 %v2947, %v3210
        %v3347 = vadd.f32 %v2948, %v3210
        %v3348 = vadd.f32 %v2949, %v3210
        %v3349 = vadd.f32 %v2950, %v3210
        %v3350 = vadd.f32 %v2951, %v3210
        %v3351 = vadd.f32 %v2952, %v3215
        %v3352 = vadd.f32 %v2953, %v3215
        %v3353 = vadd.f32 %v2954, %v3215
        %v3354 = vadd.f32 %v2955, %v3215
        %v3355 = vadd.f32 %v2956, %v3215
        %v3356 = vadd.f32 %v2957, %v3215
        %v3357 = vadd.f32 %v2958, %v3215
        %v3358 = vadd.f32 %v2959, %v3215
        %v3359 = vadd.f32 %v2960, %v3215
        %v3360 = vadd.f32 %v2961, %v3215
        %v3361 = vadd.f32 %v2962, %v3215
        %v3362 = vadd.f32 %v2963, %v3215
        %v3363 = vadd.f32 %v2964, %v3215
        %v3364 = vadd.f32 %v2965, %v3215
        %v3365 = vadd.f32 %v2966, %v3215
        %v3366 = vadd.f32 %v2967, %v3215
        %v3367 = vadd.f32 %v2968, %v3220
        %v3368 = vadd.f32 %v2969, %v3220
        %v3369 = vadd.f32 %v2970, %v3220
        %v3370 = vadd.f32 %v2971, %v3220
        %v3371 = vadd.f32 %v2972, %v3220
        %v3372 = vadd.f32 %v2973, %v3220
        %v3373 = vadd.f32 %v2974, %v3220
        %v3374 = vadd.f32 %v2975, %v3220
        %v3375 = vadd.f32 %v2976, %v3220
        %v3376 = vadd.f32 %v2977, %v3220
        %v3377 = vadd.f32 %v2978, %v3220
        %v3378 = vadd.f32 %v2979, %v3220
        %v3379 = vadd.f32 %v2980, %v3220
        %v3380 = vadd.f32 %v2981, %v3220
        %v3381 = vadd.f32 %v2982, %v3220
        %v3382 = vadd.f32 %v2983, %v3220
        %v3383 = vadd.f32 %v2984, %v3225
        %v3384 = vadd.f32 %v2985, %v3225
        %v3385 = vadd.f32 %v2986, %v3225
        %v3386 = vadd.f32 %v2987, %v3225
        %v3387 = vadd.f32 %v2988, %v3225
        %v3388 = vadd.f32 %v2989, %v3225
        %v3389 = vadd.f32 %v2990, %v3225
        %v3390 = vadd.f32 %v2991, %v3225
        %v3391 = vadd.f32 %v2992, %v3225
        %v3392 = vadd.f32 %v2993, %v3225
        %v3393 = vadd.f32 %v2994, %v3225
        %v3394 = vadd.f32 %v2995, %v3225
        %v3395 = vadd.f32 %v2996, %v3225
        %v3396 = vadd.f32 %v2997, %v3225
        %v3397 = vadd.f32 %v2998, %v3225
        %v3398 = vadd.f32 %v2999, %v3225
        %v3399 = vadd.f32 %v3000, %v3230
        %v3400 = vadd.f32 %v3001, %v3230
        %v3401 = vadd.f32 %v3002, %v3230
        %v3402 = vadd.f32 %v3003, %v3230
        %v3403 = vadd.f32 %v3004, %v3230
        %v3404 = vadd.f32 %v3005, %v3230
        %v3405 = vadd.f32 %v3006, %v3230
        %v3406 = vadd.f32 %v3007, %v3230
        %v3407 = vadd.f32 %v3008, %v3230
        %v3408 = vadd.f32 %v3009, %v3230
        %v3409 = vadd.f32 %v3010, %v3230
        %v3410 = vadd.f32 %v3011, %v3230
        %v3411 = vadd.f32 %v3012, %v3230
        %v3412 = vadd.f32 %v3013, %v3230
        %v3413 = vadd.f32 %v3014, %v3230
        %v3414 = vadd.f32 %v3015, %v3230
        %v3415 = vadd.f32 %v3016, %v3235
        %v3416 = vadd.f32 %v3017, %v3235
        %v3417 = vadd.f32 %v3018, %v3235
        %v3418 = vadd.f32 %v3019, %v3235
        %v3419 = vadd.f32 %v3020, %v3235
        %v3420 = vadd.f32 %v3021, %v3235
        %v3421 = vadd.f32 %v3022, %v3235
        %v3422 = vadd.f32 %v3023, %v3235
        %v3423 = vadd.f32 %v3024, %v3235
        %v3424 = vadd.f32 %v3025, %v3235
        %v3425 = vadd.f32 %v3026, %v3235
        %v3426 = vadd.f32 %v3027, %v3235
        %v3427 = vadd.f32 %v3028, %v3235
        %v3428 = vadd.f32 %v3029, %v3235
        %v3429 = vadd.f32 %v3030, %v3235
        %v3430 = vadd.f32 %v3031, %v3235
        %v3431 = vadd.f32 %v3032, %v3240
        %v3432 = vadd.f32 %v3033, %v3240
        %v3433 = vadd.f32 %v3034, %v3240
        %v3434 = vadd.f32 %v3035, %v3240
        %v3435 = vadd.f32 %v3036, %v3240
        %v3436 = vadd.f32 %v3037, %v3240
        %v3437 = vadd.f32 %v3038, %v3240
        %v3438 = vadd.f32 %v3039, %v3240
        %v3439 = vadd.f32 %v3040, %v3240
        %v3440 = vadd.f32 %v3041, %v3240
        %v3441 = vadd.f32 %v3042, %v3240
        %v3442 = vadd.f32 %v3043, %v3240
        %v3443 = vadd.f32 %v3044, %v3240
        %v3444 = vadd.f32 %v3045, %v3240
        %v3445 = vadd.f32 %v3046, %v3240
        %v3446 = vadd.f32 %v3047, %v3240
        %v3447 = vadd.f32 %v3048, %v3245
        %v3448 = vadd.f32 %v3049, %v3245
        %v3449 = vadd.f32 %v3050, %v3245
        %v3450 = vadd.f32 %v3051, %v3245
        %v3451 = vadd.f32 %v3052, %v3245
        %v3452 = vadd.f32 %v3053, %v3245
        %v3453 = vadd.f32 %v3054, %v3245
        %v3454 = vadd.f32 %v3055, %v3245
        %v3455 = vadd.f32 %v3056, %v3245
        %v3456 = vadd.f32 %v3057, %v3245
        %v3457 = vadd.f32 %v3058, %v3245
        %v3458 = vadd.f32 %v3059, %v3245
        %v3459 = vadd.f32 %v3060, %v3245
        %v3460 = vadd.f32 %v3061, %v3245
        %v3461 = vadd.f32 %v3062, %v3245
        %v3462 = vadd.f32 %v3063, %v3245
        %v3463 = vadd.f32 %v3064, %v3250
        %v3464 = vadd.f32 %v3065, %v3250
        %v3465 = vadd.f32 %v3066, %v3250
        %v3466 = vadd.f32 %v3067, %v3250
        %v3467 = vadd.f32 %v3068, %v3250
        %v3468 = vadd.f32 %v3069, %v3250
        %v3469 = vadd.f32 %v3070, %v3250
        %v3470 = vadd.f32 %v3071, %v3250
        %v3471 = vadd.f32 %v3072, %v3250
        %v3472 = vadd.f32 %v3073, %v3250
        %v3473 = vadd.f32 %v3074, %v3250
        %v3474 = vadd.f32 %v3075, %v3250
        %v3475 = vadd.f32 %v3076, %v3250
        %v3476 = vadd.f32 %v3077, %v3250
        %v3477 = vadd.f32 %v3078, %v3250
        %v3478 = vadd.f32 %v3079, %v3250
        %v3479 = vadd.f32 %v3080, %v3255
        %v3480 = vadd.f32 %v3081, %v3255
        %v3481 = vadd.f32 %v3082, %v3255
        %v3482 = vadd.f32 %v3083, %v3255
        %v3483 = vadd.f32 %v3084, %v3255
        %v3484 = vadd.f32 %v3085, %v3255
        %v3485 = vadd.f32 %v3086, %v3255
        %v3486 = vadd.f32 %v3087, %v3255
        %v3487 = vadd.f32 %v3088, %v3255
        %v3488 = vadd.f32 %v3089, %v3255
        %v3489 = vadd.f32 %v3090, %v3255
        %v3490 = vadd.f32 %v3091, %v3255
        %v3491 = vadd.f32 %v3092, %v3255
        %v3492 = vadd.f32 %v3093, %v3255
        %v3493 = vadd.f32 %v3094, %v3255
        %v3494 = vadd.f32 %v3095, %v3255
        %v3495 = vadd.f32 %v3096, %v3260
        %v3496 = vadd.f32 %v3097, %v3260
        %v3497 = vadd.f32 %v3098, %v3260
        %v3498 = vadd.f32 %v3099, %v3260
        %v3499 = vadd.f32 %v3100, %v3260
        %v3500 = vadd.f32 %v3101, %v3260
        %v3501 = vadd.f32 %v3102, %v3260
        %v3502 = vadd.f32 %v3103, %v3260
        %v3503 = vadd.f32 %v3104, %v3260
        %v3504 = vadd.f32 %v3105, %v3260
        %v3505 = vadd.f32 %v3106, %v3260
        %v3506 = vadd.f32 %v3107, %v3260
        %v3507 = vadd.f32 %v3108, %v3260
        %v3508 = vadd.f32 %v3109, %v3260
        %v3509 = vadd.f32 %v3110, %v3260
        %v3510 = vadd.f32 %v3111, %v3260
        %v3511 = vadd.f32 %v3112, %v3265
        %v3512 = vadd.f32 %v3113, %v3265
        %v3513 = vadd.f32 %v3114, %v3265
        %v3514 = vadd.f32 %v3115, %v3265
        %v3515 = vadd.f32 %v3116, %v3265
        %v3516 = vadd.f32 %v3117, %v3265
        %v3517 = vadd.f32 %v3118, %v3265
        %v3518 = vadd.f32 %v3119, %v3265
        %v3519 = vadd.f32 %v3120, %v3265
        %v3520 = vadd.f32 %v3121, %v3265
        %v3521 = vadd.f32 %v3122, %v3265
        %v3522 = vadd.f32 %v3123, %v3265
        %v3523 = vadd.f32 %v3124, %v3265
        %v3524 = vadd.f32 %v3125, %v3265
        %v3525 = vadd.f32 %v3126, %v3265
        %v3526 = vadd.f32 %v3127, %v3265
        %v3527 = vadd.f32 %v3128, %v3270
        %v3528 = vadd.f32 %v3129, %v3270
        %v3529 = vadd.f32 %v3130, %v3270
        %v3530 = vadd.f32 %v3131, %v3270
        %v3531 = vadd.f32 %v3132, %v3270
        %v3532 = vadd.f32 %v3133, %v3270
        %v3533 = vadd.f32 %v3134, %v3270
        %v3534 = vadd.f32 %v3135, %v3270
        %v3535 = vadd.f32 %v3136, %v3270
        %v3536 = vadd.f32 %v3137, %v3270
        %v3537 = vadd.f32 %v3138, %v3270
        %v3538 = vadd.f32 %v3139, %v3270
        %v3539 = vadd.f32 %v3140, %v3270
        %v3540 = vadd.f32 %v3141, %v3270
        %v3541 = vadd.f32 %v3142, %v3270
        %v3542 = vadd.f32 %v3143, %v3270
        %v3543 = vadd.f32 %v3144, %v3275
        %v3544 = vadd.f32 %v3145, %v3275
        %v3545 = vadd.f32 %v3146, %v3275
        %v3546 = vadd.f32 %v3147, %v3275
        %v3547 = vadd.f32 %v3148, %v3275
        %v3548 = vadd.f32 %v3149, %v3275
        %v3549 = vadd.f32 %v3150, %v3275
        %v3550 = vadd.f32 %v3151, %v3275
        %v3551 = vadd.f32 %v3152, %v3275
        %v3552 = vadd.f32 %v3153, %v3275
        %v3553 = vadd.f32 %v3154, %v3275
        %v3554 = vadd.f32 %v3155, %v3275
        %v3555 = vadd.f32 %v3156, %v3275
        %v3556 = vadd.f32 %v3157, %v3275
        %v3557 = vadd.f32 %v3158, %v3275
        %v3558 = vadd.f32 %v3159, %v3275
        %v3559 = vadd.f32 %v3160, %v3280
        %v3560 = vadd.f32 %v3161, %v3280
        %v3561 = vadd.f32 %v3162, %v3280
        %v3562 = vadd.f32 %v3163, %v3280
        %v3563 = vadd.f32 %v3164, %v3280
        %v3564 = vadd.f32 %v3165, %v3280
        %v3565 = vadd.f32 %v3166, %v3280
        %v3566 = vadd.f32 %v3167, %v3280
        %v3567 = vadd.f32 %v3168, %v3280
        %v3568 = vadd.f32 %v3169, %v3280
        %v3569 = vadd.f32 %v3170, %v3280
        %v3570 = vadd.f32 %v3171, %v3280
        %v3571 = vadd.f32 %v3172, %v3280
        %v3572 = vadd.f32 %v3173, %v3280
        %v3573 = vadd.f32 %v3174, %v3280
        %v3574 = vadd.f32 %v3175, %v3280
        %v3575 = vadd.f32 %v3176, %v3285
        %v3576 = vadd.f32 %v3177, %v3285
        %v3577 = vadd.f32 %v3178, %v3285
        %v3578 = vadd.f32 %v3179, %v3285
        %v3579 = vadd.f32 %v3180, %v3285
        %v3580 = vadd.f32 %v3181, %v3285
        %v3581 = vadd.f32 %v3182, %v3285
        %v3582 = vadd.f32 %v3183, %v3285
        %v3583 = vadd.f32 %v3184, %v3285
        %v3584 = vadd.f32 %v3185, %v3285
        %v3585 = vadd.f32 %v3186, %v3285
        %v3586 = vadd.f32 %v3187, %v3285
        %v3587 = vadd.f32 %v3188, %v3285
        %v3588 = vadd.f32 %v3189, %v3285
        %v3589 = vadd.f32 %v3190, %v3285
        %v3590 = vadd.f32 %v3191, %v3285
        %v3591 = vmax.f32 %v3287, 0.0
        %v3592 = vmax.f32 %v3288, 0.0
        %v3593 = vmax.f32 %v3289, 0.0
        %v3594 = vmax.f32 %v3290, 0.0
        %v3595 = vmax.f32 %v3291, 0.0
        %v3596 = vmax.f32 %v3292, 0.0
        %v3597 = vmax.f32 %v3293, 0.0
        %v3598 = vmax.f32 %v3294, 0.0
        %v3599 = vmax.f32 %v3295, 0.0
        %v3600 = vmax.f32 %v3296, 0.0
        %v3601 = vmax.f32 %v3297, 0.0
        %v3602 = vmax.f32 %v3298, 0.0
        %v3603 = vmax.f32 %v3299, 0.0
        %v3604 = vmax.f32 %v3300, 0.0
        %v3605 = vmax.f32 %v3301, 0.0
        %v3606 = vmax.f32 %v3302, 0.0
        %v3607 = vmax.f32 %v3303, 0.0
        %v3608 = vmax.f32 %v3304, 0.0
        %v3609 = vmax.f32 %v3305, 0.0
        %v3610 = vmax.f32 %v3306, 0.0
        %v3611 = vmax.f32 %v3307, 0.0
        %v3612 = vmax.f32 %v3308, 0.0
        %v3613 = vmax.f32 %v3309, 0.0
        %v3614 = vmax.f32 %v3310, 0.0
        %v3615 = vmax.f32 %v3311, 0.0
        %v3616 = vmax.f32 %v3312, 0.0
        %v3617 = vmax.f32 %v3313, 0.0
        %v3618 = vmax.f32 %v3314, 0.0
        %v3619 = vmax.f32 %v3315, 0.0
        %v3620 = vmax.f32 %v3316, 0.0
        %v3621 = vmax.f32 %v3317, 0.0
        %v3622 = vmax.f32 %v3318, 0.0
        %v3623 = vmax.f32 %v3319, 0.0
        %v3624 = vmax.f32 %v3320, 0.0
        %v3625 = vmax.f32 %v3321, 0.0
        %v3626 = vmax.f32 %v3322, 0.0
        %v3627 = vmax.f32 %v3323, 0.0
        %v3628 = vmax.f32 %v3324, 0.0
        %v3629 = vmax.f32 %v3325, 0.0
        %v3630 = vmax.f32 %v3326, 0.0
        %v3631 = vmax.f32 %v3327, 0.0
        %v3632 = vmax.f32 %v3328, 0.0
        %v3633 = vmax.f32 %v3329, 0.0
        %v3634 = vmax.f32 %v3330, 0.0
        %v3635 = vmax.f32 %v3331, 0.0
        %v3636 = vmax.f32 %v3332, 0.0
        %v3637 = vmax.f32 %v3333, 0.0
        %v3638 = vmax.f32 %v3334, 0.0
        %v3639 = vmax.f32 %v3335, 0.0
        %v3640 = vmax.f32 %v3336, 0.0
        %v3641 = vmax.f32 %v3337, 0.0
        %v3642 = vmax.f32 %v3338, 0.0
        %v3643 = vmax.f32 %v3339, 0.0
        %v3644 = vmax.f32 %v3340, 0.0
        %v3645 = vmax.f32 %v3341, 0.0
        %v3646 = vmax.f32 %v3342, 0.0
        %v3647 = vmax.f32 %v3343, 0.0
        %v3648 = vmax.f32 %v3344, 0.0
        %v3649 = vmax.f32 %v3345, 0.0
        %v3650 = vmax.f32 %v3346, 0.0
        %v3651 = vmax.f32 %v3347, 0.0
        %v3652 = vmax.f32 %v3348, 0.0
        %v3653 = vmax.f32 %v3349, 0.0
        %v3654 = vmax.f32 %v3350, 0.0
        %v3655 = vmax.f32 %v3351, 0.0
        %v3656 = vmax.f32 %v3352, 0.0
        %v3657 = vmax.f32 %v3353, 0.0
        %v3658 = vmax.f32 %v3354, 0.0
        %v3659 = vmax.f32 %v3355, 0.0
        %v3660 = vmax.f32 %v3356, 0.0
        %v3661 = vmax.f32 %v3357, 0.0
        %v3662 = vmax.f32 %v3358, 0.0
        %v3663 = vmax.f32 %v3359, 0.0
        %v3664 = vmax.f32 %v3360, 0.0
        %v3665 = vmax.f32 %v3361, 0.0
        %v3666 = vmax.f32 %v3362, 0.0
        %v3667 = vmax.f32 %v3363, 0.0
        %v3668 = vmax.f32 %v3364, 0.0
        %v3669 = vmax.f32 %v3365, 0.0
        %v3670 = vmax.f32 %v3366, 0.0
        %v3671 = vmax.f32 %v3367, 0.0
        %v3672 = vmax.f32 %v3368, 0.0
        %v3673 = vmax.f32 %v3369, 0.0
        %v3674 = vmax.f32 %v3370, 0.0
        %v3675 = vmax.f32 %v3371, 0.0
        %v3676 = vmax.f32 %v3372, 0.0
        %v3677 = vmax.f32 %v3373, 0.0
        %v3678 = vmax.f32 %v3374, 0.0
        %v3679 = vmax.f32 %v3375, 0.0
        %v3680 = vmax.f32 %v3376, 0.0
        %v3681 = vmax.f32 %v3377, 0.0
        %v3682 = vmax.f32 %v3378, 0.0
        %v3683 = vmax.f32 %v3379, 0.0
        %v3684 = vmax.f32 %v3380, 0.0
        %v3685 = vmax.f32 %v3381, 0.0
        %v3686 = vmax.f32 %v3382, 0.0
        %v3687 = vmax.f32 %v3383, 0.0
        %v3688 = vmax.f32 %v3384, 0.0
        %v3689 = vmax.f32 %v3385, 0.0
        %v3690 = vmax.f32 %v3386, 0.0
        %v3691 = vmax.f32 %v3387, 0.0
        %v3692 = vmax.f32 %v3388, 0.0
        %v3693 = vmax.f32 %v3389, 0.0
        %v3694 = vmax.f32 %v3390, 0.0
        %v3695 = vmax.f32 %v3391, 0.0
        %v3696 = vmax.f32 %v3392, 0.0
        %v3697 = vmax.f32 %v3393, 0.0
        %v3698 = vmax.f32 %v3394, 0.0
        %v3699 = vmax.f32 %v3395, 0.0
        %v3700 = vmax.f32 %v3396, 0.0
        %v3701 = vmax.f32 %v3397, 0.0
        %v3702 = vmax.f32 %v3398, 0.0
        %v3703 = vmax.f32 %v3399, 0.0
        %v3704 = vmax.f32 %v3400, 0.0
        %v3705 = vmax.f32 %v3401, 0.0
        %v3706 = vmax.f32 %v3402, 0.0
        %v3707 = vmax.f32 %v3403, 0.0
        %v3708 = vmax.f32 %v3404, 0.0
        %v3709 = vmax.f32 %v3405, 0.0
        %v3710 = vmax.f32 %v3406, 0.0
        %v3711 = vmax.f32 %v3407, 0.0
        %v3712 = vmax.f32 %v3408, 0.0
        %v3713 = vmax.f32 %v3409, 0.0
        %v3714 = vmax.f32 %v3410, 0.0
        %v3715 = vmax.f32 %v3411, 0.0
        %v3716 = vmax.f32 %v3412, 0.0
        %v3717 = vmax.f32 %v3413, 0.0
        %v3718 = vmax.f32 %v3414, 0.0
        %v3719 = vmax.f32 %v3415, 0.0
        %v3720 = vmax.f32 %v3416, 0.0
        %v3721 = vmax.f32 %v3417, 0.0
        %v3722 = vmax.f32 %v3418, 0.0
        %v3723 = vmax.f32 %v3419, 0.0
        %v3724 = vmax.f32 %v3420, 0.0
        %v3725 = vmax.f32 %v3421, 0.0
        %v3726 = vmax.f32 %v3422, 0.0
        %v3727 = vmax.f32 %v3423, 0.0
        %v3728 = vmax.f32 %v3424, 0.0
        %v3729 = vmax.f32 %v3425, 0.0
        %v3730 = vmax.f32 %v3426, 0.0
        %v3731 = vmax.f32 %v3427, 0.0
        %v3732 = vmax.f32 %v3428, 0.0
        %v3733 = vmax.f32 %v3429, 0.0
        %v3734 = vmax.f32 %v3430, 0.0
        %v3735 = vmax.f32 %v3431, 0.0
        %v3736 = vmax.f32 %v3432, 0.0
        %v3737 = vmax.f32 %v3433, 0.0
        %v3738 = vmax.f32 %v3434, 0.0
        %v3739 = vmax.f32 %v3435, 0.0
        %v3740 = vmax.f32 %v3436, 0.0
        %v3741 = vmax.f32 %v3437, 0.0
        %v3742 = vmax.f32 %v3438, 0.0
        %v3743 = vmax.f32 %v3439, 0.0
        %v3744 = vmax.f32 %v3440, 0.0
        %v3745 = vmax.f32 %v3441, 0.0
        %v3746 = vmax.f32 %v3442, 0.0
        %v3747 = vmax.f32 %v3443, 0.0
        %v3748 = vmax.f32 %v3444, 0.0
        %v3749 = vmax.f32 %v3445, 0.0
        %v3750 = vmax.f32 %v3446, 0.0
        %v3751 = vmax.f32 %v3447, 0.0
        %v3752 = vmax.f32 %v3448, 0.0
        %v3753 = vmax.f32 %v3449, 0.0
        %v3754 = vmax.f32 %v3450, 0.0
        %v3755 = vmax.f32 %v3451, 0.0
        %v3756 = vmax.f32 %v3452, 0.0
        %v3757 = vmax.f32 %v3453, 0.0
        %v3758 = vmax.f32 %v3454, 0.0
        %v3759 = vmax.f32 %v3455, 0.0
        %v3760 = vmax.f32 %v3456, 0.0
        %v3761 = vmax.f32 %v3457, 0.0
        %v3762 = vmax.f32 %v3458, 0.0
        %v3763 = vmax.f32 %v3459, 0.0
        %v3764 = vmax.f32 %v3460, 0.0
        %v3765 = vmax.f32 %v3461, 0.0
        %v3766 = vmax.f32 %v3462, 0.0
        %v3767 = vmax.f32 %v3463, 0.0
        %v3768 = vmax.f32 %v3464, 0.0
        %v3769 = vmax.f32 %v3465, 0.0
        %v3770 = vmax.f32 %v3466, 0.0
        %v3771 = vmax.f32 %v3467, 0.0
        %v3772 = vmax.f32 %v3468, 0.0
        %v3773 = vmax.f32 %v3469, 0.0
        %v3774 = vmax.f32 %v3470, 0.0
        %v3775 = vmax.f32 %v3471, 0.0
        %v3776 = vmax.f32 %v3472, 0.0
        %v3777 = vmax.f32 %v3473, 0.0
        %v3778 = vmax.f32 %v3474, 0.0
        %v3779 = vmax.f32 %v3475, 0.0
        %v3780 = vmax.f32 %v3476, 0.0
        %v3781 = vmax.f32 %v3477, 0.0
        %v3782 = vmax.f32 %v3478, 0.0
        %v3783 = vmax.f32 %v3479, 0.0
        %v3784 = vmax.f32 %v3480, 0.0
        %v3785 = vmax.f32 %v3481, 0.0
        %v3786 = vmax.f32 %v3482, 0.0
        %v3787 = vmax.f32 %v3483, 0.0
        %v3788 = vmax.f32 %v3484, 0.0
        %v3789 = vmax.f32 %v3485, 0.0
        %v3790 = vmax.f32 %v3486, 0.0
        %v3791 = vmax.f32 %v3487, 0.0
        %v3792 = vmax.f32 %v3488, 0.0
        %v3793 = vmax.f32 %v3489, 0.0
        %v3794 = vmax.f32 %v3490, 0.0
        %v3795 = vmax.f32 %v3491, 0.0
        %v3796 = vmax.f32 %v3492, 0.0
        %v3797 = vmax.f32 %v3493, 0.0
        %v3798 = vmax.f32 %v3494, 0.0
        %v3799 = vmax.f32 %v3495, 0.0
        %v3800 = vmax.f32 %v3496, 0.0
        %v3801 = vmax.f32 %v3497, 0.0
        %v3802 = vmax.f32 %v3498, 0.0
        %v3803 = vmax.f32 %v3499, 0.0
        %v3804 = vmax.f32 %v3500, 0.0
        %v3805 = vmax.f32 %v3501, 0.0
        %v3806 = vmax.f32 %v3502, 0.0
        %v3807 = vmax.f32 %v3503, 0.0
        %v3808 = vmax.f32 %v3504, 0.0
        %v3809 = vmax.f32 %v3505, 0.0
        %v3810 = vmax.f32 %v3506, 0.0
        %v3811 = vmax.f32 %v3507, 0.0
        %v3812 = vmax.f32 %v3508, 0.0
        %v3813 = vmax.f32 %v3509, 0.0
        %v3814 = vmax.f32 %v3510, 0.0
        %v3815 = vmax.f32 %v3511, 0.0
        %v3816 = vmax.f32 %v3512, 0.0
        %v3817 = vmax.f32 %v3513, 0.0
        %v3818 = vmax.f32 %v3514, 0.0
        %v3819 = vmax.f32 %v3515, 0.0
        %v3820 = vmax.f32 %v3516, 0.0
        %v3821 = vmax.f32 %v3517, 0.0
        %v3822 = vmax.f32 %v3518, 0.0
        %v3823 = vmax.f32 %v3519, 0.0
        %v3824 = vmax.f32 %v3520, 0.0
        %v3825 = vmax.f32 %v3521, 0.0
        %v3826 = vmax.f32 %v3522, 0.0
        %v3827 = vmax.f32 %v3523, 0.0
        %v3828 = vmax.f32 %v3524, 0.0
        %v3829 = vmax.f32 %v3525, 0.0
        %v3830 = vmax.f32 %v3526, 0.0
        %v3831 = vmax.f32 %v3527, 0.0
        %v3832 = vmax.f32 %v3528, 0.0
        %v3833 = vmax.f32 %v3529, 0.0
        %v3834 = vmax.f32 %v3530, 0.0
        %v3835 = vmax.f32 %v3531, 0.0
        %v3836 = vmax.f32 %v3532, 0.0
        %v3837 = vmax.f32 %v3533, 0.0
        %v3838 = vmax.f32 %v3534, 0.0
        %v3839 = vmax.f32 %v3535, 0.0
        %v3840 = vmax.f32 %v3536, 0.0
        %v3841 = vmax.f32 %v3537, 0.0
        %v3842 = vmax.f32 %v3538, 0.0
        %v3843 = vmax.f32 %v3539, 0.0
        %v3844 = vmax.f32 %v3540, 0.0
        %v3845 = vmax.f32 %v3541, 0.0
        %v3846 = vmax.f32 %v3542, 0.0
        %v3847 = vmax.f32 %v3543, 0.0
        %v3848 = vmax.f32 %v3544, 0.0
        %v3849 = vmax.f32 %v3545, 0.0
        %v3850 = vmax.f32 %v3546, 0.0
        %v3851 = vmax.f32 %v3547, 0.0
        %v3852 = vmax.f32 %v3548, 0.0
        %v3853 = vmax.f32 %v3549, 0.0
        %v3854 = vmax.f32 %v3550, 0.0
        %v3855 = vmax.f32 %v3551, 0.0
        %v3856 = vmax.f32 %v3552, 0.0
        %v3857 = vmax.f32 %v3553, 0.0
        %v3858 = vmax.f32 %v3554, 0.0
        %v3859 = vmax.f32 %v3555, 0.0
        %v3860 = vmax.f32 %v3556, 0.0
        %v3861 = vmax.f32 %v3557, 0.0
        %v3862 = vmax.f32 %v3558, 0.0
        %v3863 = vmax.f32 %v3559, 0.0
        %v3864 = vmax.f32 %v3560, 0.0
        %v3865 = vmax.f32 %v3561, 0.0
        %v3866 = vmax.f32 %v3562, 0.0
        %v3867 = vmax.f32 %v3563, 0.0
        %v3868 = vmax.f32 %v3564, 0.0
        %v3869 = vmax.f32 %v3565, 0.0
        %v3870 = vmax.f32 %v3566, 0.0
        %v3871 = vmax.f32 %v3567, 0.0
        %v3872 = vmax.f32 %v3568, 0.0
        %v3873 = vmax.f32 %v3569, 0.0
        %v3874 = vmax.f32 %v3570, 0.0
        %v3875 = vmax.f32 %v3571, 0.0
        %v3876 = vmax.f32 %v3572, 0.0
        %v3877 = vmax.f32 %v3573, 0.0
        %v3878 = vmax.f32 %v3574, 0.0
        %v3879 = vmax.f32 %v3575, 0.0
        %v3880 = vmax.f32 %v3576, 0.0
        %v3881 = vmax.f32 %v3577, 0.0
        %v3882 = vmax.f32 %v3578, 0.0
        %v3883 = vmax.f32 %v3579, 0.0
        %v3884 = vmax.f32 %v3580, 0.0
        %v3885 = vmax.f32 %v3581, 0.0
        %v3886 = vmax.f32 %v3582, 0.0
        %v3887 = vmax.f32 %v3583, 0.0
        %v3888 = vmax.f32 %v3584, 0.0
        %v3889 = vmax.f32 %v3585, 0.0
        %v3890 = vmax.f32 %v3586, 0.0
        %v3891 = vmax.f32 %v3587, 0.0
        %v3892 = vmax.f32 %v3588, 0.0
        %v3893 = vmax.f32 %v3589, 0.0
        %v3894 = vmax.f32 %v3590, 0.0
        %v3895 = vld [vmem:[%s6] sm:$0xff]
        %v3896 = vpack.c.bf16 %v3607, %v3591
        %v3897 = vpack.c.bf16 %v3608, %v3592
        %v3898 = vpack.c.bf16 %v3609, %v3593
        %v3899 = vpack.c.bf16 %v3610, %v3594
        %v3900 = vpack.c.bf16 %v3611, %v3595
        %v3901 = vpack.c.bf16 %v3612, %v3596
        %v3902 = vpack.c.bf16 %v3613, %v3597
        %v3903 = vpack.c.bf16 %v3614, %v3598
        %v3904 = vpack.c.bf16 %v3615, %v3599
        %v3905 = vpack.c.bf16 %v3616, %v3600
        %v3906 = vpack.c.bf16 %v3617, %v3601
        %v3907 = vpack.c.bf16 %v3618, %v3602
        %v3908 = vpack.c.bf16 %v3619, %v3603
        %v3909 = vpack.c.bf16 %v3620, %v3604
        %v3910 = vpack.c.bf16 %v3621, %v3605
        %v3911 = vpack.c.bf16 %v3622, %v3606
        %v3912 = vpack.c.bf16 %v3639, %v3623
        %v3913 = vpack.c.bf16 %v3640, %v3624
        %v3914 = vpack.c.bf16 %v3641, %v3625
        %v3915 = vpack.c.bf16 %v3642, %v3626
        %v3916 = vpack.c.bf16 %v3643, %v3627
        %v3917 = vpack.c.bf16 %v3644, %v3628
        %v3918 = vpack.c.bf16 %v3645, %v3629
        %v3919 = vpack.c.bf16 %v3646, %v3630
        %v3920 = vpack.c.bf16 %v3647, %v3631
        %v3921 = vpack.c.bf16 %v3648, %v3632
        %v3922 = vpack.c.bf16 %v3649, %v3633
        %v3923 = vpack.c.bf16 %v3650, %v3634
        %v3924 = vpack.c.bf16 %v3651, %v3635
        %v3925 = vpack.c.bf16 %v3652, %v3636
        %v3926 = vpack.c.bf16 %v3653, %v3637
        %v3927 = vpack.c.bf16 %v3654, %v3638
        %v3928 = vpack.c.bf16 %v3671, %v3655
        %v3929 = vpack.c.bf16 %v3672, %v3656
        %v3930 = vpack.c.bf16 %v3673, %v3657
        %v3931 = vpack.c.bf16 %v3674, %v3658
        %v3932 = vpack.c.bf16 %v3675, %v3659
        %v3933 = vpack.c.bf16 %v3676, %v3660
        %v3934 = vpack.c.bf16 %v3677, %v3661
        %v3935 = vpack.c.bf16 %v3678, %v3662
        %v3936 = vpack.c.bf16 %v3679, %v3663
        %v3937 = vpack.c.bf16 %v3680, %v3664
        %v3938 = vpack.c.bf16 %v3681, %v3665
        %v3939 = vpack.c.bf16 %v3682, %v3666
        %v3940 = vpack.c.bf16 %v3683, %v3667
        %v3941 = vpack.c.bf16 %v3684, %v3668
        %v3942 = vpack.c.bf16 %v3685, %v3669
        %v3943 = vpack.c.bf16 %v3686, %v3670
        %v3944 = vpack.c.bf16 %v3703, %v3687
        %v3945 = vpack.c.bf16 %v3704, %v3688
        %v3946 = vpack.c.bf16 %v3705, %v3689
        %v3947 = vpack.c.bf16 %v3706, %v3690
        %v3948 = vpack.c.bf16 %v3707, %v3691
        %v3949 = vpack.c.bf16 %v3708, %v3692
        %v3950 = vpack.c.bf16 %v3709, %v3693
        %v3951 = vpack.c.bf16 %v3710, %v3694
        %v3952 = vpack.c.bf16 %v3711, %v3695
        %v3953 = vpack.c.bf16 %v3712, %v3696
        %v3954 = vpack.c.bf16 %v3713, %v3697
        %v3955 = vpack.c.bf16 %v3714, %v3698
        %v3956 = vpack.c.bf16 %v3715, %v3699
        %v3957 = vpack.c.bf16 %v3716, %v3700
        %v3958 = vpack.c.bf16 %v3717, %v3701
        %v3959 = vpack.c.bf16 %v3718, %v3702
        %v3960 = vpack.c.bf16 %v3735, %v3719
        %v3961 = vpack.c.bf16 %v3736, %v3720
        %v3962 = vpack.c.bf16 %v3737, %v3721
        %v3963 = vpack.c.bf16 %v3738, %v3722
        %v3964 = vpack.c.bf16 %v3739, %v3723
        %v3965 = vpack.c.bf16 %v3740, %v3724
        %v3966 = vpack.c.bf16 %v3741, %v3725
        %v3967 = vpack.c.bf16 %v3742, %v3726
        %v3968 = vpack.c.bf16 %v3743, %v3727
        %v3969 = vpack.c.bf16 %v3744, %v3728
        %v3970 = vpack.c.bf16 %v3745, %v3729
        %v3971 = vpack.c.bf16 %v3746, %v3730
        %v3972 = vpack.c.bf16 %v3747, %v3731
        %v3973 = vpack.c.bf16 %v3748, %v3732
        %v3974 = vpack.c.bf16 %v3749, %v3733
        %v3975 = vpack.c.bf16 %v3750, %v3734
        %v3976 = vpack.c.bf16 %v3767, %v3751
        %v3977 = vpack.c.bf16 %v3768, %v3752
        %v3978 = vpack.c.bf16 %v3769, %v3753
        %v3979 = vpack.c.bf16 %v3770, %v3754
        %v3980 = vpack.c.bf16 %v3771, %v3755
        %v3981 = vpack.c.bf16 %v3772, %v3756
        %v3982 = vpack.c.bf16 %v3773, %v3757
        %v3983 = vpack.c.bf16 %v3774, %v3758
        %v3984 = vpack.c.bf16 %v3775, %v3759
        %v3985 = vpack.c.bf16 %v3776, %v3760
        %v3986 = vpack.c.bf16 %v3777, %v3761
        %v3987 = vpack.c.bf16 %v3778, %v3762
        %v3988 = vpack.c.bf16 %v3779, %v3763
        %v3989 = vpack.c.bf16 %v3780, %v3764
        %v3990 = vpack.c.bf16 %v3781, %v3765
        %v3991 = vpack.c.bf16 %v3782, %v3766
        %v3992 = vpack.c.bf16 %v3799, %v3783
        %v3993 = vpack.c.bf16 %v3800, %v3784
        %v3994 = vpack.c.bf16 %v3801, %v3785
        %v3995 = vpack.c.bf16 %v3802, %v3786
        %v3996 = vpack.c.bf16 %v3803, %v3787
        %v3997 = vpack.c.bf16 %v3804, %v3788
        %v3998 = vpack.c.bf16 %v3805, %v3789
        %v3999 = vpack.c.bf16 %v3806, %v3790
        %v4000 = vpack.c.bf16 %v3807, %v3791
        %v4001 = vpack.c.bf16 %v3808, %v3792
        %v4002 = vpack.c.bf16 %v3809, %v3793
        %v4003 = vpack.c.bf16 %v3810, %v3794
        %v4004 = vpack.c.bf16 %v3811, %v3795
        %v4005 = vpack.c.bf16 %v3812, %v3796
        %v4006 = vpack.c.bf16 %v3813, %v3797
        %v4007 = vpack.c.bf16 %v3814, %v3798
        %v4008 = vpack.c.bf16 %v3831, %v3815
        %v4009 = vpack.c.bf16 %v3832, %v3816
        %v4010 = vpack.c.bf16 %v3833, %v3817
        %v4011 = vpack.c.bf16 %v3834, %v3818
        %v4012 = vpack.c.bf16 %v3835, %v3819
        %v4013 = vpack.c.bf16 %v3836, %v3820
        %v4014 = vpack.c.bf16 %v3837, %v3821
        %v4015 = vpack.c.bf16 %v3838, %v3822
        %v4016 = vpack.c.bf16 %v3839, %v3823
        %v4017 = vpack.c.bf16 %v3840, %v3824
        %v4018 = vpack.c.bf16 %v3841, %v3825
        %v4019 = vpack.c.bf16 %v3842, %v3826
        %v4020 = vpack.c.bf16 %v3843, %v3827
        %v4021 = vpack.c.bf16 %v3844, %v3828
        %v4022 = vpack.c.bf16 %v3845, %v3829
        %v4023 = vpack.c.bf16 %v3846, %v3830
        %v4024 = vpack.c.bf16 %v3863, %v3847
        %v4025 = vpack.c.bf16 %v3864, %v3848
        %v4026 = vpack.c.bf16 %v3865, %v3849
        %v4027 = vpack.c.bf16 %v3866, %v3850
        %v4028 = vpack.c.bf16 %v3867, %v3851
        %v4029 = vpack.c.bf16 %v3868, %v3852
        %v4030 = vpack.c.bf16 %v3869, %v3853
        %v4031 = vpack.c.bf16 %v3870, %v3854
        %v4032 = vpack.c.bf16 %v3871, %v3855
        %v4033 = vpack.c.bf16 %v3872, %v3856
        %v4034 = vpack.c.bf16 %v3873, %v3857
        %v4035 = vpack.c.bf16 %v3874, %v3858
        %v4036 = vpack.c.bf16 %v3875, %v3859
        %v4037 = vpack.c.bf16 %v3876, %v3860
        %v4038 = vpack.c.bf16 %v3877, %v3861
        %v4039 = vpack.c.bf16 %v3878, %v3862
        %v4040 = vpack.c.bf16 %v3879, %v3879
        %v4041 = vpack.c.bf16 %v3880, %v3880
        %v4042 = vpack.c.bf16 %v3881, %v3881
        %v4043 = vpack.c.bf16 %v3882, %v3882
        %v4044 = vpack.c.bf16 %v3883, %v3883
        %v4045 = vpack.c.bf16 %v3884, %v3884
        %v4046 = vpack.c.bf16 %v3885, %v3885
        %v4047 = vpack.c.bf16 %v3886, %v3886
        %v4048 = vpack.c.bf16 %v3887, %v3887
        %v4049 = vpack.c.bf16 %v3888, %v3888
        %v4050 = vpack.c.bf16 %v3889, %v3889
        %v4051 = vpack.c.bf16 %v3890, %v3890
        %v4052 = vpack.c.bf16 %v3891, %v3891
        %v4053 = vpack.c.bf16 %v3892, %v3892
        %v4054 = vpack.c.bf16 %v3893, %v3893
        %v4055 = vpack.c.bf16 %v3894, %v3894
        %v4056 = vld [vmem:[%s7] sm:$0xff]
        %4058 = vset.pattern.permute.xlu0 0
        %4059 = vperm.xlu0 %4058, %v4056
        %v4060 = vpop.permute.xlu0 %4059
        %v4063 = vunpack.c.l.b16 %v3895
        %v4064 = vunpack.c.h.b16 %v3895
        %v4065 = vpack.c.b16 %v4063, %v4063
        %v4066 = vpack.c.b16 %v4064, %v4064
        %vm4068 = vcmask 195584
        %v4070 = vsel %vm4068, %v4066, 0
        %vm4072 = vcmask 1043456
        %v4074 = vsel %vm4072, %v4040, 0
        %v4077 = vsel %vm4072, %v4041, 0
        %v4080 = vsel %vm4072, %v4042, 0
        %v4083 = vsel %vm4072, %v4043, 0
        %v4086 = vsel %vm4072, %v4044, 0
        %v4089 = vsel %vm4072, %v4045, 0
        %v4092 = vsel %vm4072, %v4046, 0
        %v4095 = vsel %vm4072, %v4047, 0
        %v4098 = vsel %vm4072, %v4048, 0
        %v4101 = vsel %vm4072, %v4049, 0
        %v4104 = vsel %vm4072, %v4050, 0
        %v4107 = vsel %vm4072, %v4051, 0
        %v4110 = vsel %vm4072, %v4052, 0
        %v4113 = vsel %vm4072, %v4053, 0
        %v4116 = vsel %vm4072, %v4054, 0
        %v4119 = vsel %vm4072, %v4055, 0
        %4121 = vmatprep.subr.bf16.mxu0 %v3897
        %4122 = vmatpush1.bf16.msra.mxu0 %v3896
        %4123 = vmatprep.subr.bf16.mxu0 %v3913
        %4124 = vmatpush1.bf16.msra.mxu0 %v3912
        %4125 = vmatprep.subr.bf16.mxu0 %v3929
        %4126 = vmatpush1.bf16.msra.mxu0 %v3928
        %4127 = vmatprep.subr.bf16.mxu0 %v3945
        %4128 = vmatpush1.bf16.msra.mxu0 %v3944
        %4129 = vmatprep.subr.bf16.mxu0 %v3961
        %4130 = vmatpush1.bf16.msra.mxu0 %v3960
        %4131 = vmatprep.subr.bf16.mxu0 %v3977
        %4132 = vmatpush1.bf16.msra.mxu0 %v3976
        %4133 = vmatprep.subr.bf16.mxu0 %v3993
        %4134 = vmatpush1.bf16.msra.mxu0 %v3992
        %4135 = vmatprep.subr.bf16.mxu0 %v4009
        %4136 = vmatpush1.bf16.msra.mxu0 %v4008
        %4137 = vmatprep.subr.bf16.mxu0 %v4025
        %4138 = vmatpush1.bf16.msra.mxu0 %v4024
        %4139 = vmatprep.subr.bf16.mxu0 %v4077
        %4140 = vmatpush1.bf16.msra.mxu0 %v4074
        %4141 = vmatprep.subr.bf16.mxu0 0
        %4142 = vmatpush1.bf16.msra.mxu0 0
        %4143 = vmatprep.subr.bf16.mxu0 0
        %4144 = vmatpush1.bf16.msra.mxu0 0
        %4145 = vmatprep.subr.bf16.mxu0 0
        %4146 = vmatpush1.bf16.msra.mxu0 0
        %4147 = vmatprep.subr.bf16.mxu0 0
        %4148 = vmatpush1.bf16.msra.mxu0 0
        %4149 = vmatprep.subr.bf16.mxu0 0
        %4150 = vmatpush1.bf16.msra.mxu0 0
        %4151 = vmatprep.subr.bf16.mxu0 0
        %4152 = vmatpush1.bf16.msra.mxu0 0
        %4153 = vmatprep.mubr.bf16.mxu0 %v4070
        %4154 = vmatmul.mubr.bf16.gmra.mrb[0].mxu0 %v4065
        %v4155 = vpop.f32.mrb[0].mxu0
        %v4156 = vadd.f32 %v4060, %v4155
        %v4157 = vpop.f32.mrb[0].mxu0
        %v4158 = vadd.f32 %v4060, %v4157
        %v4159 = vpop.f32.mrb[0].mxu0
        %v4160 = vpop.f32.mrb[0].mxu0
        %4161 = vdwg.mxu0
        %4162 = vmatprep.subr.bf16.mxu0 %v3899
        %4163 = vmatpush1.bf16.msra.mxu0 %v3898
        %4164 = vmatprep.subr.bf16.mxu0 %v3915
        %4165 = vmatpush1.bf16.msra.mxu0 %v3914
        %4166 = vmatprep.subr.bf16.mxu0 %v3931
        %4167 = vmatpush1.bf16.msra.mxu0 %v3930
        %4168 = vmatprep.subr.bf16.mxu0 %v3947
        %4169 = vmatpush1.bf16.msra.mxu0 %v3946
        %4170 = vmatprep.subr.bf16.mxu0 %v3963
        %4171 = vmatpush1.bf16.msra.mxu0 %v3962
        %4172 = vmatprep.subr.bf16.mxu0 %v3979
        %4173 = vmatpush1.bf16.msra.mxu0 %v3978
        %4174 = vmatprep.subr.bf16.mxu0 %v3995
        %4175 = vmatpush1.bf16.msra.mxu0 %v3994
        %4176 = vmatprep.subr.bf16.mxu0 %v4011
        %4177 = vmatpush1.bf16.msra.mxu0 %v4010
        %4178 = vmatprep.subr.bf16.mxu0 %v4027
        %4179 = vmatpush1.bf16.msra.mxu0 %v4026
        %4180 = vmatprep.subr.bf16.mxu0 %v4083
        %4181 = vmatpush1.bf16.msra.mxu0 %v4080
        %4182 = vmatprep.subr.bf16.mxu0 0
        %4183 = vmatpush1.bf16.msra.mxu0 0
        %4184 = vmatprep.subr.bf16.mxu0 0
        %4185 = vmatpush1.bf16.msra.mxu0 0
        %4186 = vmatprep.subr.bf16.mxu0 0
        %4187 = vmatpush1.bf16.msra.mxu0 0
        %4188 = vmatprep.subr.bf16.mxu0 0
        %4189 = vmatpush1.bf16.msra.mxu0 0
        %4190 = vmatprep.subr.bf16.mxu0 0
        %4191 = vmatpush1.bf16.msra.mxu0 0
        %4192 = vmatprep.subr.bf16.mxu0 0
        %4193 = vmatpush1.bf16.msra.mxu0 0
        %4194 = vmatprep.mubr.bf16.mxu0 %v4070
        %4195 = vmatmul.mubr.bf16.gmra.mrb[0].mxu0 %v4065
        %v4196 = vpop.f32.mrb[0].mxu0
        %v4197 = vadd.f32 %v4060, %v4196
        %v4198 = vpop.f32.mrb[0].mxu0
        %v4199 = vadd.f32 %v4060, %v4198
        %v4200 = vpop.f32.mrb[0].mxu0
        %v4201 = vpop.f32.mrb[0].mxu0
        %4202 = vdwg.mxu0
        %4203 = vmatprep.subr.bf16.mxu0 %v3901
        %4204 = vmatpush1.bf16.msra.mxu0 %v3900
        %4205 = vmatprep.subr.bf16.mxu0 %v3917
        %4206 = vmatpush1.bf16.msra.mxu0 %v3916
        %4207 = vmatprep.subr.bf16.mxu0 %v3933
        %4208 = vmatpush1.bf16.msra.mxu0 %v3932
        %4209 = vmatprep.subr.bf16.mxu0 %v3949
        %4210 = vmatpush1.bf16.msra.mxu0 %v3948
        %4211 = vmatprep.subr.bf16.mxu0 %v3965
        %4212 = vmatpush1.bf16.msra.mxu0 %v3964
        %4213 = vmatprep.subr.bf16.mxu0 %v3981
        %4214 = vmatpush1.bf16.msra.mxu0 %v3980
        %4215 = vmatprep.subr.bf16.mxu0 %v3997
        %4216 = vmatpush1.bf16.msra.mxu0 %v3996
        %4217 = vmatprep.subr.bf16.mxu0 %v4013
        %4218 = vmatpush1.bf16.msra.mxu0 %v4012
        %4219 = vmatprep.subr.bf16.mxu0 %v4029
        %4220 = vmatpush1.bf16.msra.mxu0 %v4028
        %4221 = vmatprep.subr.bf16.mxu0 %v4089
        %4222 = vmatpush1.bf16.msra.mxu0 %v4086
        %4223 = vmatprep.subr.bf16.mxu0 0
        %4224 = vmatpush1.bf16.msra.mxu0 0
        %4225 = vmatprep.subr.bf16.mxu0 0
        %4226 = vmatpush1.bf16.msra.mxu0 0
        %4227 = vmatprep.subr.bf16.mxu0 0
        %4228 = vmatpush1.bf16.msra.mxu0 0
        %4229 = vmatprep.subr.bf16.mxu0 0
        %4230 = vmatpush1.bf16.msra.mxu0 0
        %4231 = vmatprep.subr.bf16.mxu0 0
        %4232 = vmatpush1.bf16.msra.mxu0 0
        %4233 = vmatprep.subr.bf16.mxu0 0
        %4234 = vmatpush1.bf16.msra.mxu0 0
        %4235 = vmatprep.mubr.bf16.mxu0 %v4070
        %4236 = vmatmul.mubr.bf16.gmra.mrb[0].mxu0 %v4065
        %v4237 = vpop.f32.mrb[0].mxu0
        %v4238 = vadd.f32 %v4060, %v4237
        %v4239 = vpop.f32.mrb[0].mxu0
        %v4240 = vadd.f32 %v4060, %v4239
        %v4241 = vpop.f32.mrb[0].mxu0
        %v4242 = vpop.f32.mrb[0].mxu0
        %4243 = vdwg.mxu0
        %4244 = vmatprep.subr.bf16.mxu0 %v3903
        %4245 = vmatpush1.bf16.msra.mxu0 %v3902
        %4246 = vmatprep.subr.bf16.mxu0 %v3919
        %4247 = vmatpush1.bf16.msra.mxu0 %v3918
        %4248 = vmatprep.subr.bf16.mxu0 %v3935
        %4249 = vmatpush1.bf16.msra.mxu0 %v3934
        %4250 = vmatprep.subr.bf16.mxu0 %v3951
        %4251 = vmatpush1.bf16.msra.mxu0 %v3950
        %4252 = vmatprep.subr.bf16.mxu0 %v3967
        %4253 = vmatpush1.bf16.msra.mxu0 %v3966
        %4254 = vmatprep.subr.bf16.mxu0 %v3983
        %4255 = vmatpush1.bf16.msra.mxu0 %v3982
        %4256 = vmatprep.subr.bf16.mxu0 %v3999
        %4257 = vmatpush1.bf16.msra.mxu0 %v3998
        %4258 = vmatprep.subr.bf16.mxu0 %v4015
        %4259 = vmatpush1.bf16.msra.mxu0 %v4014
        %4260 = vmatprep.subr.bf16.mxu0 %v4031
        %4261 = vmatpush1.bf16.msra.mxu0 %v4030
        %4262 = vmatprep.subr.bf16.mxu0 %v4095
        %4263 = vmatpush1.bf16.msra.mxu0 %v4092
        %4264 = vmatprep.subr.bf16.mxu0 0
        %4265 = vmatpush1.bf16.msra.mxu0 0
        %4266 = vmatprep.subr.bf16.mxu0 0
        %4267 = vmatpush1.bf16.msra.mxu0 0
        %4268 = vmatprep.subr.bf16.mxu0 0
        %4269 = vmatpush1.bf16.msra.mxu0 0
        %4270 = vmatprep.subr.bf16.mxu0 0
        %4271 = vmatpush1.bf16.msra.mxu0 0
        %4272 = vmatprep.subr.bf16.mxu0 0
        %4273 = vmatpush1.bf16.msra.mxu0 0
        %4274 = vmatprep.subr.bf16.mxu0 0
        %4275 = vmatpush1.bf16.msra.mxu0 0
        %4276 = vmatprep.mubr.bf16.mxu0 %v4070
        %4277 = vmatmul.mubr.bf16.gmra.mrb[0].mxu0 %v4065
        %v4278 = vpop.f32.mrb[0].mxu0
        %v4279 = vadd.f32 %v4060, %v4278
        %v4280 = vpop.f32.mrb[0].mxu0
        %v4281 = vadd.f32 %v4060, %v4280
        %v4282 = vpop.f32.mrb[0].mxu0
        %v4283 = vpop.f32.mrb[0].mxu0
        %4284 = vdwg.mxu0
        %4285 = vmatprep.subr.bf16.mxu0 %v3905
        %4286 = vmatpush1.bf16.msra.mxu0 %v3904
        %4287 = vmatprep.subr.bf16.mxu0 %v3921
        %4288 = vmatpush1.bf16.msra.mxu0 %v3920
        %4289 = vmatprep.subr.bf16.mxu0 %v3937
        %4290 = vmatpush1.bf16.msra.mxu0 %v3936
        %4291 = vmatprep.subr.bf16.mxu0 %v3953
        %4292 = vmatpush1.bf16.msra.mxu0 %v3952
        %4293 = vmatprep.subr.bf16.mxu0 %v3969
        %4294 = vmatpush1.bf16.msra.mxu0 %v3968
        %4295 = vmatprep.subr.bf16.mxu0 %v3985
        %4296 = vmatpush1.bf16.msra.mxu0 %v3984
        %4297 = vmatprep.subr.bf16.mxu0 %v4001
        %4298 = vmatpush1.bf16.msra.mxu0 %v4000
        %4299 = vmatprep.subr.bf16.mxu0 %v4017
        %4300 = vmatpush1.bf16.msra.mxu0 %v4016
        %4301 = vmatprep.subr.bf16.mxu0 %v4033
        %4302 = vmatpush1.bf16.msra.mxu0 %v4032
        %4303 = vmatprep.subr.bf16.mxu0 %v4101
        %4304 = vmatpush1.bf16.msra.mxu0 %v4098
        %4305 = vmatprep.subr.bf16.mxu0 0
        %4306 = vmatpush1.bf16.msra.mxu0 0
        %4307 = vmatprep.subr.bf16.mxu0 0
        %4308 = vmatpush1.bf16.msra.mxu0 0
        %4309 = vmatprep.subr.bf16.mxu0 0
        %4310 = vmatpush1.bf16.msra.mxu0 0
        %4311 = vmatprep.subr.bf16.mxu0 0
        %4312 = vmatpush1.bf16.msra.mxu0 0
        %4313 = vmatprep.subr.bf16.mxu0 0
        %4314 = vmatpush1.bf16.msra.mxu0 0
        %4315 = vmatprep.subr.bf16.mxu0 0
        %4316 = vmatpush1.bf16.msra.mxu0 0
        %4317 = vmatprep.mubr.bf16.mxu0 %v4070
        %4318 = vmatmul.mubr.bf16.gmra.mrb[0].mxu0 %v4065
        %v4319 = vpop.f32.mrb[0].mxu0
        %v4320 = vadd.f32 %v4060, %v4319
        %v4321 = vpop.f32.mrb[0].mxu0
        %v4322 = vadd.f32 %v4060, %v4321
        %v4323 = vpop.f32.mrb[0].mxu0
        %v4324 = vpop.f32.mrb[0].mxu0
        %4325 = vdwg.mxu0
        %4326 = vmatprep.subr.bf16.mxu0 %v3907
        %4327 = vmatpush1.bf16.msra.mxu0 %v3906
        %4328 = vmatprep.subr.bf16.mxu0 %v3923
        %4329 = vmatpush1.bf16.msra.mxu0 %v3922
        %4330 = vmatprep.subr.bf16.mxu0 %v3939
        %4331 = vmatpush1.bf16.msra.mxu0 %v3938
        %4332 = vmatprep.subr.bf16.mxu0 %v3955
        %4333 = vmatpush1.bf16.msra.mxu0 %v3954
        %4334 = vmatprep.subr.bf16.mxu0 %v3971
        %4335 = vmatpush1.bf16.msra.mxu0 %v3970
        %4336 = vmatprep.subr.bf16.mxu0 %v3987
        %4337 = vmatpush1.bf16.msra.mxu0 %v3986
        %4338 = vmatprep.subr.bf16.mxu0 %v4003
        %4339 = vmatpush1.bf16.msra.mxu0 %v4002
        %4340 = vmatprep.subr.bf16.mxu0 %v4019
        %4341 = vmatpush1.bf16.msra.mxu0 %v4018
        %4342 = vmatprep.subr.bf16.mxu0 %v4035
        %4343 = vmatpush1.bf16.msra.mxu0 %v4034
        %4344 = vmatprep.subr.bf16.mxu0 %v4107
        %4345 = vmatpush1.bf16.msra.mxu0 %v4104
        %4346 = vmatprep.subr.bf16.mxu0 0
        %4347 = vmatpush1.bf16.msra.mxu0 0
        %4348 = vmatprep.subr.bf16.mxu0 0
        %4349 = vmatpush1.bf16.msra.mxu0 0
        %4350 = vmatprep.subr.bf16.mxu0 0
        %4351 = vmatpush1.bf16.msra.mxu0 0
        %4352 = vmatprep.subr.bf16.mxu0 0
        %4353 = vmatpush1.bf16.msra.mxu0 0
        %4354 = vmatprep.subr.bf16.mxu0 0
        %4355 = vmatpush1.bf16.msra.mxu0 0
        %4356 = vmatprep.subr.bf16.mxu0 0
        %4357 = vmatpush1.bf16.msra.mxu0 0
        %4358 = vmatprep.mubr.bf16.mxu0 %v4070
        %4359 = vmatmul.mubr.bf16.gmra.mrb[0].mxu0 %v4065
        %v4360 = vpop.f32.mrb[0].mxu0
        %v4361 = vadd.f32 %v4060, %v4360
        %v4362 = vpop.f32.mrb[0].mxu0
        %v4363 = vadd.f32 %v4060, %v4362
        %v4364 = vpop.f32.mrb[0].mxu0
        %v4365 = vpop.f32.mrb[0].mxu0
        %4366 = vdwg.mxu0
        %4367 = vmatprep.subr.bf16.mxu0 %v3909
        %4368 = vmatpush1.bf16.msra.mxu0 %v3908
        %4369 = vmatprep.subr.bf16.mxu0 %v3925
        %4370 = vmatpush1.bf16.msra.mxu0 %v3924
        %4371 = vmatprep.subr.bf16.mxu0 %v3941
        %4372 = vmatpush1.bf16.msra.mxu0 %v3940
        %4373 = vmatprep.subr.bf16.mxu0 %v3957
        %4374 = vmatpush1.bf16.msra.mxu0 %v3956
        %4375 = vmatprep.subr.bf16.mxu0 %v3973
        %4376 = vmatpush1.bf16.msra.mxu0 %v3972
        %4377 = vmatprep.subr.bf16.mxu0 %v3989
        %4378 = vmatpush1.bf16.msra.mxu0 %v3988
        %4379 = vmatprep.subr.bf16.mxu0 %v4005
        %4380 = vmatpush1.bf16.msra.mxu0 %v4004
        %4381 = vmatprep.subr.bf16.mxu0 %v4021
        %4382 = vmatpush1.bf16.msra.mxu0 %v4020
        %4383 = vmatprep.subr.bf16.mxu0 %v4037
        %4384 = vmatpush1.bf16.msra.mxu0 %v4036
        %4385 = vmatprep.subr.bf16.mxu0 %v4113
        %4386 = vmatpush1.bf16.msra.mxu0 %v4110
        %4387 = vmatprep.subr.bf16.mxu0 0
        %4388 = vmatpush1.bf16.msra.mxu0 0
        %4389 = vmatprep.subr.bf16.mxu0 0
        %4390 = vmatpush1.bf16.msra.mxu0 0
        %4391 = vmatprep.subr.bf16.mxu0 0
        %4392 = vmatpush1.bf16.msra.mxu0 0
        %4393 = vmatprep.subr.bf16.mxu0 0
        %4394 = vmatpush1.bf16.msra.mxu0 0
        %4395 = vmatprep.subr.bf16.mxu0 0
        %4396 = vmatpush1.bf16.msra.mxu0 0
        %4397 = vmatprep.subr.bf16.mxu0 0
        %4398 = vmatpush1.bf16.msra.mxu0 0
        %4399 = vmatprep.mubr.bf16.mxu0 %v4070
        %4400 = vmatmul.mubr.bf16.gmra.mrb[0].mxu0 %v4065
        %v4401 = vpop.f32.mrb[0].mxu0
        %v4402 = vadd.f32 %v4060, %v4401
        %v4403 = vpop.f32.mrb[0].mxu0
        %v4404 = vadd.f32 %v4060, %v4403
        %v4405 = vpop.f32.mrb[0].mxu0
        %v4406 = vpop.f32.mrb[0].mxu0
        %4407 = vdwg.mxu0
        %4408 = vmatprep.subr.bf16.mxu0 %v3911
        %4409 = vmatpush1.bf16.msra.mxu0 %v3910
        %4410 = vmatprep.subr.bf16.mxu0 %v3927
        %4411 = vmatpush1.bf16.msra.mxu0 %v3926
        %4412 = vmatprep.subr.bf16.mxu0 %v3943
        %4413 = vmatpush1.bf16.msra.mxu0 %v3942
        %4414 = vmatprep.subr.bf16.mxu0 %v3959
        %4415 = vmatpush1.bf16.msra.mxu0 %v3958
        %4416 = vmatprep.subr.bf16.mxu0 %v3975
        %4417 = vmatpush1.bf16.msra.mxu0 %v3974
        %4418 = vmatprep.subr.bf16.mxu0 %v3991
        %4419 = vmatpush1.bf16.msra.mxu0 %v3990
        %4420 = vmatprep.subr.bf16.mxu0 %v4007
        %4421 = vmatpush1.bf16.msra.mxu0 %v4006
        %4422 = vmatprep.subr.bf16.mxu0 %v4023
        %4423 = vmatpush1.bf16.msra.mxu0 %v4022
        %4424 = vmatprep.subr.bf16.mxu0 %v4039
        %4425 = vmatpush1.bf16.msra.mxu0 %v4038
        %4426 = vmatprep.subr.bf16.mxu0 %v4119
        %4427 = vmatpush1.bf16.msra.mxu0 %v4116
        %4428 = vmatprep.subr.bf16.mxu0 0
        %4429 = vmatpush1.bf16.msra.mxu0 0
        %4430 = vmatprep.subr.bf16.mxu0 0
        %4431 = vmatpush1.bf16.msra.mxu0 0
        %4432 = vmatprep.subr.bf16.mxu0 0
        %4433 = vmatpush1.bf16.msra.mxu0 0
        %4434 = vmatprep.subr.bf16.mxu0 0
        %4435 = vmatpush1.bf16.msra.mxu0 0
        %4436 = vmatprep.subr.bf16.mxu0 0
        %4437 = vmatpush1.bf16.msra.mxu0 0
        %4438 = vmatprep.subr.bf16.mxu0 0
        %4439 = vmatpush1.bf16.msra.mxu0 0
        %4440 = vmatprep.mubr.bf16.mxu0 %v4070
        %4441 = vmatmul.mubr.bf16.gmra.mrb[0].mxu0 %v4065
        %v4442 = vpop.f32.mrb[0].mxu0
        %v4443 = vadd.f32 %v4060, %v4442
        %v4444 = vpop.f32.mrb[0].mxu0
        %v4445 = vadd.f32 %v4060, %v4444
        %v4446 = vpop.f32.mrb[0].mxu0
        %v4447 = vpop.f32.mrb[0].mxu0
        %4448 = vdwg.mxu0
        %4449 = vst [vmem:[%s862] sm:$0xff] %v4156
        %4450 = vst [vmem:[%s862 + $0x8] sm:$0xff] %v4158
        %4451 = vst [vmem:[%s862 + $0x10] sm:$0xff] %v4197
        %4452 = vst [vmem:[%s862 + $0x18] sm:$0xff] %v4199
        %4453 = vst [vmem:[%s862 + $0x20] sm:$0xff] %v4238
        %4454 = vst [vmem:[%s862 + $0x28] sm:$0xff] %v4240
        %4455 = vst [vmem:[%s862 + $0x30] sm:$0xff] %v4279
        %4456 = vst [vmem:[%s862 + $0x38] sm:$0xff] %v4281
        %4457 = vst [vmem:[%s862 + $0x40] sm:$0xff] %v4320
        %4458 = vst [vmem:[%s862 + $0x48] sm:$0xff] %v4322
        %4459 = vst [vmem:[%s862 + $0x50] sm:$0xff] %v4361
        %4460 = vst [vmem:[%s862 + $0x58] sm:$0xff] %v4363
        %4461 = vst [vmem:[%s862 + $0x60] sm:$0xff] %v4402
        %4462 = vst [vmem:[%s862 + $0x68] sm:$0xff] %v4404
        %4463 = vst [vmem:[%s862 + $0x70] sm:$0xff] %v4443
        %4464 = vst [vmem:[%s862 + $0x78] sm:$0xff] %v4445
        %s4465 = smul.u32 16, %s24
        %p4466 = scmp.lt.s32.totalorder %s23, 1
        %s4467 = scalar_select %p4466, %s23, 1
        %p4468 = scmp.lt.s32.totalorder %s4465, 31
        %s4469 = scalar_select %p4468, %s4465, 31
        %s4470 = smul.addr %s4467, 32
        %s4471 = sadd.s32 %s4469, %s4470
        %s4472 = smul.addr %s4471, 8
        %s4473 = scalar_lea.vmem %s8, %s4472
        // Predicated region
        $region76: #{conv_block_final_double_forward.3} parent=70 // pred_check
          %p4474 = pneg %p226
        $region77: #{conv_block_final_double_forward.3} parent=70 // pred_check_branch
          %4476 = sbr.rel (%p4474) target = $region79
        $region78: #{conv_block_final_double_forward.3} parent=70 // pred_region
          %s4477 = smul.u32 16, %s24
        $region79: #{conv_block_final_double_forward.3} parent=70 // pred_fallthru
          _
      $region71: #{conv_block_final_double_forward.3} parent=5 // pred_fallthru
        _
      %p4478 = scmp.le.s32.totalorder 2, %s14
      // Predicated region
      $region80: #{conv_block_final_double_forward.3} parent=5 // pred_check
        %p4479 = pneg %p4478
      $region81: #{conv_block_final_double_forward.3} parent=5 // pred_check_branch
        %4481 = sbr.rel (%p4479) target = $region83
      $region82: #{conv_block_final_double_forward.3} parent=5 // pred_region
        %s4482 = ssub.s32 %s14, 2
        // Predicated region
        $region84: #{conv_block_final_double_forward.3} parent=82 // pred_check
          %p4483 = pneg %p232
        $region85: #{conv_block_final_double_forward.3} parent=82 // pred_check_branch
          %4485 = sbr.rel (%p4483) target = $region87
        $region86: #{conv_block_final_double_forward.3} parent=82 // pred_region
          %s4486 = smul.u32 16, %s26
          %p4487 = scmp.lt.s32.totalorder %s25, 1
          %s4488 = scalar_select %p4487, %s25, 1
          %p4489 = scmp.lt.s32.totalorder %s4486, 31
          %s4490 = scalar_select %p4489, %s4486, 31
          %s4491 = smul.addr %s4488, 32
          %s4492 = sadd.s32 %s4490, %s4491
          %s4493 = smul.addr %s4492, 8
          %s4494 = scalar_lea.vmem %s8, %s4493
        $region87: #{conv_block_final_double_forward.3} parent=82 // pred_fallthru
          _
      $region83: #{conv_block_final_double_forward.3} parent=5 // pred_fallthru
        _
    $region6: #{conv_block_final_double_forward.3} parent=1 // loop_footer
      %s18 = sadd.s32 1, %s14
    $region7: #{conv_block_final_double_forward.3} parent=1 // loop_footer_branch
      %13 = sbr.rel target = $region3
    $region8: #{conv_block_final_double_forward.3} parent=1 // loop_exit
      _

// kernel: conv_block_final_double_forward.2
$region0: #{conv_block_final_double_forward.2}
  #allocation0 [shape = 'u32[]', space=smem, size = 0x4, offset = 0x4, fixed_abs, tag = 'smem constant byte address 0x4 - core index']
  #allocation1 [shape = 'u32[144,128]{1,0:T(1,128)}', space=vmem, size = 0x12000, scoped, tag = 'internal scratch']
  %s0 = inlined_call_operand.vmem [shape: f32[2,128,4096], index: 0, kind: input, shape index: {}]
  %s1 = inlined_call_operand.vmem [shape: bf16[152,128], index: 1, kind: input, shape index: {}]
  %s2 = inlined_call_operand.vmem [shape: f32[2,152,1], index: 2, kind: output, shape index: {0}]
  %s3 = inlined_call_operand.vmem [shape: f32[2,152,1], index: 3, kind: output, shape index: {1}]
  %4 = xla_tuple %s2, %s3
  %s5 = sld [smem:[#allocation0]]
  $region76: #{conv_block_final_double_forward.2} parent=0
    _
  %s7 = ssub.s32 1, %s5
  %s8 = scalar_select 0, %s7, %s5
  $region1: #{conv_block_final_double_forward.2} parent=0
    #allocation2 [shape = 'u8[2097152]{0}', space=vmem, size = 0x200000, scoped, tag = 'input window, operand 0']
    loop: start=0, step=1, limit=6
    $region2: #{conv_block_final_double_forward.2} parent=1 // loop_pre_header
      _
    $region3: #{conv_block_final_double_forward.2} parent=1 // loop_header
      %s10 = sphi 0, %s14
      %p11 = scmp.ge.s32.totalorder %s10, 6
      %s17 = sphi 0, %s29
      %s18 = sphi 0, %s25
      %s19 = sphi 0, %s17
      %s20 = sphi 0, %s18
      %s21 = sphi 0, %s19
      %s22 = sphi 0, %s20
      %s34 = sphi 0, %s36
      %s37 = sphi 0, %s34
      %s38 = sphi 0, %s37
      %s54 = sphi 0, %s38
      %s58 = sphi 0, %s58
      %s60 = sphi 0, %s58
      %s61 = sphi 0, %s60
      %s75 = sphi 0, %s61
      %s81 = sphi 0, %s83
      %s84 = sphi 0, %s81
      %s85 = sphi 0, %s84
      %s101 = sphi 0, %s85
      %s107 = sphi 0, %s109
      %s110 = sphi 0, %s107
      %s111 = sphi 0, %s110
      %s127 = sphi 0, %s111
    $region4: #{conv_block_final_double_forward.2} parent=1 // loop_header_branch
      %13 = sbr.rel (%p11) target = $region8
    $region5: #{conv_block_final_double_forward.2} parent=1 // loop_body
      %s15 = ssub.s32 %s10, 1
      %s16 = ssub.s32 %s10, 2
      %s23 = sadd.s32 1, %s18
      %p24 = scmp.ge.s32.totalorder %s23, 2
      %s25 = scalar_select %p24, 0, %s23
      %s26 = sadd.s32 1, %s17
      %s27 = scalar_select %p24, %s26, %s17
      %p28 = scmp.ge.s32.totalorder %s27, 2
      %s29 = scalar_select %p28, 0, %s27
      %s30 = ssub.s32 %s17, %s29
      %s31 = ssub.s32 %s18, %s25
      %s32 = sor.u32 %s30, %s31
      %p33 = scmp.eq.s32.totalorder %s32, 0
      %s35 = sadd.s32 %s34, 1
      %s36 = scalar_select %p33, %s34, %s35
      %p39 = pneg %p33
      %p40 = scmp.eq.s32.totalorder %s10, 3
      %p41 = por %p39, %p40
      %p42 = scmp.ne.s32.totalorder %s34, %s37
      %p43 = scmp.eq.s32.totalorder %s10, 0
      %p44 = por %p42, %p43
      %p45 = scmp.ne.s32.totalorder %s34, %s37
      %p46 = scmp.eq.s32.totalorder %s15, 3
      %p47 = por %p45, %p46
      %p48 = scmp.ne.s32.totalorder %s37, %s38
      %p49 = scmp.eq.s32.totalorder %s15, 0
      %p50 = por %p48, %p49
      %p51 = scmp.ne.s32.totalorder %s37, %s38
      %p52 = scmp.eq.s32.totalorder %s16, 3
      %p53 = por %p51, %p52
      %p55 = scmp.ne.s32.totalorder %s38, %s54
      %p56 = scmp.eq.s32.totalorder %s16, 0
      %p57 = por %p55, %p56
      %s59 = sadd.s32 %s58, 1
      %p62 = scmp.eq.s32.totalorder %s10, 3
      %p63 = scmp.ne.s32.totalorder %s58, %s60
      %p64 = scmp.eq.s32.totalorder %s10, 0
      %p65 = por %p63, %p64
      %p66 = scmp.ne.s32.totalorder %s58, %s60
      %p67 = scmp.eq.s32.totalorder %s15, 3
      %p68 = por %p66, %p67
      %p69 = scmp.ne.s32.totalorder %s60, %s61
      %p70 = scmp.eq.s32.totalorder %s15, 0
      %p71 = por %p69, %p70
      %p72 = scmp.ne.s32.totalorder %s60, %s61
      %p73 = scmp.eq.s32.totalorder %s16, 3
      %p74 = por %p72, %p73
      %p76 = scmp.ne.s32.totalorder %s61, %s75
      %p77 = scmp.eq.s32.totalorder %s16, 0
      %p78 = por %p76, %p77
      %s79 = ssub.s32 %s17, %s29
      %p80 = scmp.eq.s32.totalorder %s79, 0
      %s82 = sadd.s32 %s81, 1
      %s83 = scalar_select %p80, %s81, %s82
      %p86 = pneg %p80
      %p87 = scmp.eq.s32.totalorder %s10, 3
      %p88 = por %p86, %p87
      %p89 = scmp.ne.s32.totalorder %s81, %s84
      %p90 = scmp.eq.s32.totalorder %s10, 0
      %p91 = por %p89, %p90
      %p92 = scmp.ne.s32.totalorder %s81, %s84
      %p93 = scmp.eq.s32.totalorder %s15, 3
      %p94 = por %p92, %p93
      %p95 = scmp.ne.s32.totalorder %s84, %s85
      %p96 = scmp.eq.s32.totalorder %s15, 0
      %p97 = por %p95, %p96
      %p98 = scmp.ne.s32.totalorder %s84, %s85
      %p99 = scmp.eq.s32.totalorder %s16, 3
      %p100 = por %p98, %p99
      %p102 = scmp.ne.s32.totalorder %s85, %s101
      %p103 = scmp.eq.s32.totalorder %s16, 0
      %p104 = por %p102, %p103
      %s105 = ssub.s32 %s17, %s29
      %p106 = scmp.eq.s32.totalorder %s105, 0
      %s108 = sadd.s32 %s107, 1
      %s109 = scalar_select %p106, %s107, %s108
      %p112 = pneg %p106
      %p113 = scmp.eq.s32.totalorder %s10, 3
      %p114 = por %p112, %p113
      %p115 = scmp.ne.s32.totalorder %s107, %s110
      %p116 = scmp.eq.s32.totalorder %s10, 0
      %p117 = por %p115, %p116
      %p118 = scmp.ne.s32.totalorder %s107, %s110
      %p119 = scmp.eq.s32.totalorder %s15, 3
      %p120 = por %p118, %p119
      %p121 = scmp.ne.s32.totalorder %s110, %s111
      %p122 = scmp.eq.s32.totalorder %s15, 0
      %p123 = por %p121, %p122
      %p124 = scmp.ne.s32.totalorder %s110, %s111
      %p125 = scmp.eq.s32.totalorder %s16, 3
      %p126 = por %p124, %p125
      %p128 = scmp.ne.s32.totalorder %s111, %s127
      %p129 = scmp.eq.s32.totalorder %s16, 0
      %p130 = por %p128, %p129
      %p131 = scmp.le.s32.totalorder 1, %s10
      %p132 = scmp.lt.s32.totalorder %s10, 5
      %p133 = pnand %p131, %p132
      %p134 = pneg %p133
      // Predicated region
      $region9: #{conv_block_final_double_forward.2} parent=5 // pred_check
        _
      $region10: #{conv_block_final_double_forward.2} parent=5 // pred_check_branch
        %136 = sbr.rel (%p133) target = $region12
      $region11: #{conv_block_final_double_forward.2} parent=5 // pred_region
        %s137 = ssub.s32 %s10, 1
        // Predicated region
        $region13: #{conv_block_final_double_forward.2} parent=11 // pred_check
          %p138 = pneg %p71
        $region14: #{conv_block_final_double_forward.2} parent=11 // pred_check_branch
          %140 = sbr.rel (%p138) target = $region16
        $region15: #{conv_block_final_double_forward.2} parent=11 // pred_region
          _
        $region16: #{conv_block_final_double_forward.2} parent=11 // pred_fallthru
          _
      $region12: #{conv_block_final_double_forward.2} parent=5 // pred_fallthru
        _
      %p141 = scmp.lt.s32.totalorder %s10, 4
      // Predicated region
      $region17: #{conv_block_final_double_forward.2} parent=5 // pred_check
        %p142 = pneg %p141
      $region18: #{conv_block_final_double_forward.2} parent=5 // pred_check_branch
        %144 = sbr.rel (%p142) target = $region20
      $region19: #{conv_block_final_double_forward.2} parent=5 // pred_region
        // Predicated region
        $region21: #{conv_block_final_double_forward.2} parent=19 // pred_check
          %p145 = pneg %p44
        $region22: #{conv_block_final_double_forward.2} parent=19 // pred_check_branch
          %147 = sbr.rel (%p145) target = $region24
        $region23: #{conv_block_final_double_forward.2} parent=19 // pred_region
          %s148 = sand.u32 %s34, 1
          %s149 = sand.u32 %s34, 1
          %s150 = smul.addr %s149, 2048
          %s151 = scalar_lea.vmem [#allocation2], %s150
          %s152 = smul.u32 16, %s18
          %s153 = smul.addr %s17, 512
          %s154 = sadd.s32 %s152, %s153
          %s155 = smul.addr %s154, 8
          %s156 = scalar_lea.vmem %s0, %s155
          // Predicated region
          $region25: #{conv_block_final_double_forward.2} parent=23 // pred_check
            _
          $region26: #{conv_block_final_double_forward.2} parent=23 // pred_check_branch
            %158 = sbr.rel (0) target = $region28
          $region27: #{conv_block_final_double_forward.2} parent=23 // pred_region
            // Predicated region
            $region29: #{conv_block_final_double_forward.2} parent=27 // pred_check
              _
            $region30: #{conv_block_final_double_forward.2} parent=27 // pred_check_branch
              %160 = sbr.rel (0) target = $region32
            $region31: #{conv_block_final_double_forward.2} parent=27 // pred_region
              loop: start=0, step=1, limit=1
              $region33: #{conv_block_final_double_forward.2} parent=31 // loop_pre_header
                _
              $region34: #{conv_block_final_double_forward.2} parent=31 // loop_header
                %s162 = sphi 0, %s166
                %p163 = scmp.ge.s32.totalorder %s162, 1
                %s167 = sphi %s156, %s156
                %s168 = sphi %s151, %s151
              $region35: #{conv_block_final_double_forward.2} parent=31 // loop_header_branch
                %165 = sbr.rel (%p163) target = $region39
              $region36: #{conv_block_final_double_forward.2} parent=31 // loop_body
                %v169 = vld [vmem:[%s167] sm:$0xff]
                %170 = vst [vmem:[%s168] sm:$0xff] %v169
                %v171 = vld [vmem:[%s167 + $0x8] sm:$0xff]
                %172 = vst [vmem:[%s168 + $0x8] sm:$0xff] %v171
                %v173 = vld [vmem:[%s167 + $0x10] sm:$0xff]
                %174 = vst [vmem:[%s168 + $0x10] sm:$0xff] %v173
                %v175 = vld [vmem:[%s167 + $0x18] sm:$0xff]
                %176 = vst [vmem:[%s168 + $0x18] sm:$0xff] %v175
                %v177 = vld [vmem:[%s167 + $0x20] sm:$0xff]
                %178 = vst [vmem:[%s168 + $0x20] sm:$0xff] %v177
                %v179 = vld [vmem:[%s167 + $0x28] sm:$0xff]
                %180 = vst [vmem:[%s168 + $0x28] sm:$0xff] %v179
                %v181 = vld [vmem:[%s167 + $0x30] sm:$0xff]
                %182 = vst [vmem:[%s168 + $0x30] sm:$0xff] %v181
                %v183 = vld [vmem:[%s167 + $0x38] sm:$0xff]
                %184 = vst [vmem:[%s168 + $0x38] sm:$0xff] %v183
                %v185 = vld [vmem:[%s167 + $0x40] sm:$0xff]
                %186 = vst [vmem:[%s168 + $0x40] sm:$0xff] %v185
                %v187 = vld [vmem:[%s167 + $0x48] sm:$0xff]
                %188 = vst [vmem:[%s168 + $0x48] sm:$0xff] %v187
                %v189 = vld [vmem:[%s167 + $0x50] sm:$0xff]
                %190 = vst [vmem:[%s168 + $0x50] sm:$0xff] %v189
                %v191 = vld [vmem:[%s167 + $0x58] sm:$0xff]
                %192 = vst [vmem:[%s168 + $0x58] sm:$0xff] %v191
                %v193 = vld [vmem:[%s167 + $0x60] sm:$0xff]
                %194 = vst [vmem:[%s168 + $0x60] sm:$0xff] %v193
                %v195 = vld [vmem:[%s167 + $0x68] sm:$0xff]
                %196 = vst [vmem:[%s168 + $0x68] sm:$0xff] %v195
                %v197 = vld [vmem:[%s167 + $0x70] sm:$0xff]
                %198 = vst [vmem:[%s168 + $0x70] sm:$0xff] %v197
                %v199 = vld [vmem:[%s167 + $0x78] sm:$0xff]
                %200 = vst [vmem:[%s168 + $0x78] sm:$0xff] %v199
                %v201 = vld [vmem:[%s167 + $0x100] sm:$0xff]
                %202 = vst [vmem:[%s168 + $0x80] sm:$0xff] %v201
                %v203 = vld [vmem:[%s167 + $0x108] sm:$0xff]
                %204 = vst [vmem:[%s168 + $0x88] sm:$0xff] %v203
                %v205 = vld [vmem:[%s167 + $0x110] sm:$0xff]
                %206 = vst [vmem:[%s168 + $0x90] sm:$0xff] %v205
                %v207 = vld [vmem:[%s167 + $0x118] sm:$0xff]
                %208 = vst [vmem:[%s168 + $0x98] sm:$0xff] %v207
                %v209 = vld [vmem:[%s167 + $0x120] sm:$0xff]
                %210 = vst [vmem:[%s168 + $0xa0] sm:$0xff] %v209
                %v211 = vld [vmem:[%s167 + $0x128] sm:$0xff]
                %212 = vst [vmem:[%s168 + $0xa8] sm:$0xff] %v211
                %v213 = vld [vmem:[%s167 + $0x130] sm:$0xff]
                %214 = vst [vmem:[%s168 + $0xb0] sm:$0xff] %v213
                %v215 = vld [vmem:[%s167 + $0x138] sm:$0xff]
                %216 = vst [vmem:[%s168 + $0xb8] sm:$0xff] %v215
                %v217 = vld [vmem:[%s167 + $0x140] sm:$0xff]
                %218 = vst [vmem:[%s168 + $0xc0] sm:$0xff] %v217
                %v219 = vld [vmem:[%s167 + $0x148] sm:$0xff]
                %220 = vst [vmem:[%s168 + $0xc8] sm:$0xff] %v219
                %v221 = vld [vmem:[%s167 + $0x150] sm:$0xff]
                %222 = vst [vmem:[%s168 + $0xd0] sm:$0xff] %v221
                %v223 = vld [vmem:[%s167 + $0x158] sm:$0xff]
                %224 = vst [vmem:[%s168 + $0xd8] sm:$0xff] %v223
                %v225 = vld [vmem:[%s167 + $0x160] sm:$0xff]
                %226 = vst [vmem:[%s168 + $0xe0] sm:$0xff] %v225
                %v227 = vld [vmem:[%s167 + $0x168] sm:$0xff]
                %228 = vst [vmem:[%s168 + $0xe8] sm:$0xff] %v227
                %v229 = vld [vmem:[%s167 + $0x170] sm:$0xff]
                %230 = vst [vmem:[%s168 + $0xf0] sm:$0xff] %v229
                %v231 = vld [vmem:[%s167 + $0x178] sm:$0xff]
                %232 = vst [vmem:[%s168 + $0xf8] sm:$0xff] %v231
                %v233 = vld [vmem:[%s167 + $0x200] sm:$0xff]
                %234 = vst [vmem:[%s168 + $0x100] sm:$0xff] %v233
                %v235 = vld [vmem:[%s167 + $0x208] sm:$0xff]
                %236 = vst [vmem:[%s168 + $0x108] sm:$0xff] %v235
                %v237 = vld [vmem:[%s167 + $0x210] sm:$0xff]
                %238 = vst [vmem:[%s168 + $0x110] sm:$0xff] %v237
                %v239 = vld [vmem:[%s167 + $0x218] sm:$0xff]
                %240 = vst [vmem:[%s168 + $0x118] sm:$0xff] %v239
                %v241 = vld [vmem:[%s167 + $0x220] sm:$0xff]
                %242 = vst [vmem:[%s168 + $0x120] sm:$0xff] %v241
                %v243 = vld [vmem:[%s167 + $0x228] sm:$0xff]
                %244 = vst [vmem:[%s168 + $0x128] sm:$0xff] %v243
                %v245 = vld [vmem:[%s167 + $0x230] sm:$0xff]
                %246 = vst [vmem:[%s168 + $0x130] sm:$0xff] %v245
                %v247 = vld [vmem:[%s167 + $0x238] sm:$0xff]
                %248 = vst [vmem:[%s168 + $0x138] sm:$0xff] %v247
                %v249 = vld [vmem:[%s167 + $0x240] sm:$0xff]
                %250 = vst [vmem:[%s168 + $0x140] sm:$0xff] %v249
                %v251 = vld [vmem:[%s167 + $0x248] sm:$0xff]
                %252 = vst [vmem:[%s168 + $0x148] sm:$0xff] %v251
                %v253 = vld [vmem:[%s167 + $0x250] sm:$0xff]
                %254 = vst [vmem:[%s168 + $0x150] sm:$0xff] %v253
                %v255 = vld [vmem:[%s167 + $0x258] sm:$0xff]
                %256 = vst [vmem:[%s168 + $0x158] sm:$0xff] %v255
                %v257 = vld [vmem:[%s167 + $0x260] sm:$0xff]
                %258 = vst [vmem:[%s168 + $0x160] sm:$0xff] %v257
                %v259 = vld [vmem:[%s167 + $0x268] sm:$0xff]
                %260 = vst [vmem:[%s168 + $0x168] sm:$0xff] %v259
                %v261 = vld [vmem:[%s167 + $0x270] sm:$0xff]
                %262 = vst [vmem:[%s168 + $0x170] sm:$0xff] %v261
                %v263 = vld [vmem:[%s167 + $0x278] sm:$0xff]
                %264 = vst [vmem:[%s168 + $0x178] sm:$0xff] %v263
                %v265 = vld [vmem:[%s167 + $0x300] sm:$0xff]
                %266 = vst [vmem:[%s168 + $0x180] sm:$0xff] %v265
                %v267 = vld [vmem:[%s167 + $0x308] sm:$0xff]
                %268 = vst [vmem:[%s168 + $0x188] sm:$0xff] %v267
                %v269 = vld [vmem:[%s167 + $0x310] sm:$0xff]
                %270 = vst [vmem:[%s168 + $0x190] sm:$0xff] %v269
                %v271 = vld [vmem:[%s167 + $0x318] sm:$0xff]
                %272 = vst [vmem:[%s168 + $0x198] sm:$0xff] %v271
                %v273 = vld [vmem:[%s167 + $0x320] sm:$0xff]
                %274 = vst [vmem:[%s168 + $0x1a0] sm:$0xff] %v273
                %v275 = vld [vmem:[%s167 + $0x328] sm:$0xff]
                %276 = vst [vmem:[%s168 + $0x1a8] sm:$0xff] %v275
                %v277 = vld [vmem:[%s167 + $0x330] sm:$0xff]
                %278 = vst [vmem:[%s168 + $0x1b0] sm:$0xff] %v277
                %v279 = vld [vmem:[%s167 + $0x338] sm:$0xff]
                %280 = vst [vmem:[%s168 + $0x1b8] sm:$0xff] %v279
                %v281 = vld [vmem:[%s167 + $0x340] sm:$0xff]
                %282 = vst [vmem:[%s168 + $0x1c0] sm:$0xff] %v281
                %v283 = vld [vmem:[%s167 + $0x348] sm:$0xff]
                %284 = vst [vmem:[%s168 + $0x1c8] sm:$0xff] %v283
                %v285 = vld [vmem:[%s167 + $0x350] sm:$0xff]
                %286 = vst [vmem:[%s168 + $0x1d0] sm:$0xff] %v285
                %v287 = vld [vmem:[%s167 + $0x358] sm:$0xff]
                %288 = vst [vmem:[%s168 + $0x1d8] sm:$0xff] %v287
                %v289 = vld [vmem:[%s167 + $0x360] sm:$0xff]
                %290 = vst [vmem:[%s168 + $0x1e0] sm:$0xff] %v289
                %v291 = vld [vmem:[%s167 + $0x368] sm:$0xff]
                %292 = vst [vmem:[%s168 + $0x1e8] sm:$0xff] %v291
                %v293 = vld [vmem:[%s167 + $0x370] sm:$0xff]
                %294 = vst [vmem:[%s168 + $0x1f0] sm:$0xff] %v293
                %v295 = vld [vmem:[%s167 + $0x378] sm:$0xff]
                %296 = vst [vmem:[%s168 + $0x1f8] sm:$0xff] %v295
                %v297 = vld [vmem:[%s167 + $0x400] sm:$0xff]
                %298 = vst [vmem:[%s168 + $0x200] sm:$0xff] %v297
                %v299 = vld [vmem:[%s167 + $0x408] sm:$0xff]
                %300 = vst [vmem:[%s168 + $0x208] sm:$0xff] %v299
                %v301 = vld [vmem:[%s167 + $0x410] sm:$0xff]
                %302 = vst [vmem:[%s168 + $0x210] sm:$0xff] %v301
                %v303 = vld [vmem:[%s167 + $0x418] sm:$0xff]
                %304 = vst [vmem:[%s168 + $0x218] sm:$0xff] %v303
                %v305 = vld [vmem:[%s167 + $0x420] sm:$0xff]
                %306 = vst [vmem:[%s168 + $0x220] sm:$0xff] %v305
                %v307 = vld [vmem:[%s167 + $0x428] sm:$0xff]
                %308 = vst [vmem:[%s168 + $0x228] sm:$0xff] %v307
                %v309 = vld [vmem:[%s167 + $0x430] sm:$0xff]
                %310 = vst [vmem:[%s168 + $0x230] sm:$0xff] %v309
                %v311 = vld [vmem:[%s167 + $0x438] sm:$0xff]
                %312 = vst [vmem:[%s168 + $0x238] sm:$0xff] %v311
                %v313 = vld [vmem:[%s167 + $0x440] sm:$0xff]
                %314 = vst [vmem:[%s168 + $0x240] sm:$0xff] %v313
                %v315 = vld [vmem:[%s167 + $0x448] sm:$0xff]
                %316 = vst [vmem:[%s168 + $0x248] sm:$0xff] %v315
                %v317 = vld [vmem:[%s167 + $0x450] sm:$0xff]
                %318 = vst [vmem:[%s168 + $0x250] sm:$0xff] %v317
                %v319 = vld [vmem:[%s167 + $0x458] sm:$0xff]
                %320 = vst [vmem:[%s168 + $0x258] sm:$0xff] %v319
                %v321 = vld [vmem:[%s167 + $0x460] sm:$0xff]
                %322 = vst [vmem:[%s168 + $0x260] sm:$0xff] %v321
                %v323 = vld [vmem:[%s167 + $0x468] sm:$0xff]
                %324 = vst [vmem:[%s168 + $0x268] sm:$0xff] %v323
                %v325 = vld [vmem:[%s167 + $0x470] sm:$0xff]
                %326 = vst [vmem:[%s168 + $0x270] sm:$0xff] %v325
                %v327 = vld [vmem:[%s167 + $0x478] sm:$0xff]
                %328 = vst [vmem:[%s168 + $0x278] sm:$0xff] %v327
                %v329 = vld [vmem:[%s167 + $0x500] sm:$0xff]
                %330 = vst [vmem:[%s168 + $0x280] sm:$0xff] %v329
                %v331 = vld [vmem:[%s167 + $0x508] sm:$0xff]
                %332 = vst [vmem:[%s168 + $0x288] sm:$0xff] %v331
                %v333 = vld [vmem:[%s167 + $0x510] sm:$0xff]
                %334 = vst [vmem:[%s168 + $0x290] sm:$0xff] %v333
                %v335 = vld [vmem:[%s167 + $0x518] sm:$0xff]
                %336 = vst [vmem:[%s168 + $0x298] sm:$0xff] %v335
                %v337 = vld [vmem:[%s167 + $0x520] sm:$0xff]
                %338 = vst [vmem:[%s168 + $0x2a0] sm:$0xff] %v337
                %v339 = vld [vmem:[%s167 + $0x528] sm:$0xff]
                %340 = vst [vmem:[%s168 + $0x2a8] sm:$0xff] %v339
                %v341 = vld [vmem:[%s167 + $0x530] sm:$0xff]
                %342 = vst [vmem:[%s168 + $0x2b0] sm:$0xff] %v341
                %v343 = vld [vmem:[%s167 + $0x538] sm:$0xff]
                %344 = vst [vmem:[%s168 + $0x2b8] sm:$0xff] %v343
                %v345 = vld [vmem:[%s167 + $0x540] sm:$0xff]
                %346 = vst [vmem:[%s168 + $0x2c0] sm:$0xff] %v345
                %v347 = vld [vmem:[%s167 + $0x548] sm:$0xff]
                %348 = vst [vmem:[%s168 + $0x2c8] sm:$0xff] %v347
                %v349 = vld [vmem:[%s167 + $0x550] sm:$0xff]
                %350 = vst [vmem:[%s168 + $0x2d0] sm:$0xff] %v349
                %v351 = vld [vmem:[%s167 + $0x558] sm:$0xff]
                %352 = vst [vmem:[%s168 + $0x2d8] sm:$0xff] %v351
                %v353 = vld [vmem:[%s167 + $0x560] sm:$0xff]
                %354 = vst [vmem:[%s168 + $0x2e0] sm:$0xff] %v353
                %v355 = vld [vmem:[%s167 + $0x568] sm:$0xff]
                %356 = vst [vmem:[%s168 + $0x2e8] sm:$0xff] %v355
                %v357 = vld [vmem:[%s167 + $0x570] sm:$0xff]
                %358 = vst [vmem:[%s168 + $0x2f0] sm:$0xff] %v357
                %v359 = vld [vmem:[%s167 + $0x578] sm:$0xff]
                %360 = vst [vmem:[%s168 + $0x2f8] sm:$0xff] %v359
                %v361 = vld [vmem:[%s167 + $0x600] sm:$0xff]
                %362 = vst [vmem:[%s168 + $0x300] sm:$0xff] %v361
                %v363 = vld [vmem:[%s167 + $0x608] sm:$0xff]
                %364 = vst [vmem:[%s168 + $0x308] sm:$0xff] %v363
                %v365 = vld [vmem:[%s167 + $0x610] sm:$0xff]
                %366 = vst [vmem:[%s168 + $0x310] sm:$0xff] %v365
                %v367 = vld [vmem:[%s167 + $0x618] sm:$0xff]
                %368 = vst [vmem:[%s168 + $0x318] sm:$0xff] %v367
                %v369 = vld [vmem:[%s167 + $0x620] sm:$0xff]
                %370 = vst [vmem:[%s168 + $0x320] sm:$0xff] %v369
                %v371 = vld [vmem:[%s167 + $0x628] sm:$0xff]
                %372 = vst [vmem:[%s168 + $0x328] sm:$0xff] %v371
                %v373 = vld [vmem:[%s167 + $0x630] sm:$0xff]
                %374 = vst [vmem:[%s168 + $0x330] sm:$0xff] %v373
                %v375 = vld [vmem:[%s167 + $0x638] sm:$0xff]
                %376 = vst [vmem:[%s168 + $0x338] sm:$0xff] %v375
                %v377 = vld [vmem:[%s167 + $0x640] sm:$0xff]
                %378 = vst [vmem:[%s168 + $0x340] sm:$0xff] %v377
                %v379 = vld [vmem:[%s167 + $0x648] sm:$0xff]
                %380 = vst [vmem:[%s168 + $0x348] sm:$0xff] %v379
                %v381 = vld [vmem:[%s167 + $0x650] sm:$0xff]
                %382 = vst [vmem:[%s168 + $0x350] sm:$0xff] %v381
                %v383 = vld [vmem:[%s167 + $0x658] sm:$0xff]
                %384 = vst [vmem:[%s168 + $0x358] sm:$0xff] %v383
                %v385 = vld [vmem:[%s167 + $0x660] sm:$0xff]
                %386 = vst [vmem:[%s168 + $0x360] sm:$0xff] %v385
                %v387 = vld [vmem:[%s167 + $0x668] sm:$0xff]
                %388 = vst [vmem:[%s168 + $0x368] sm:$0xff] %v387
                %v389 = vld [vmem:[%s167 + $0x670] sm:$0xff]
                %390 = vst [vmem:[%s168 + $0x370] sm:$0xff] %v389
                %v391 = vld [vmem:[%s167 + $0x678] sm:$0xff]
                %392 = vst [vmem:[%s168 + $0x378] sm:$0xff] %v391
                %v393 = vld [vmem:[%s167 + $0x700] sm:$0xff]
                %394 = vst [vmem:[%s168 + $0x380] sm:$0xff] %v393
                %v395 = vld [vmem:[%s167 + $0x708] sm:$0xff]
                %396 = vst [vmem:[%s168 + $0x388] sm:$0xff] %v395
                %v397 = vld [vmem:[%s167 + $0x710] sm:$0xff]
                %398 = vst [vmem:[%s168 + $0x390] sm:$0xff] %v397
                %v399 = vld [vmem:[%s167 + $0x718] sm:$0xff]
                %400 = vst [vmem:[%s168 + $0x398] sm:$0xff] %v399
                %v401 = vld [vmem:[%s167 + $0x720] sm:$0xff]
                %402 = vst [vmem:[%s168 + $0x3a0] sm:$0xff] %v401
                %v403 = vld [vmem:[%s167 + $0x728] sm:$0xff]
                %404 = vst [vmem:[%s168 + $0x3a8] sm:$0xff] %v403
                %v405 = vld [vmem:[%s167 + $0x730] sm:$0xff]
                %406 = vst [vmem:[%s168 + $0x3b0] sm:$0xff] %v405
                %v407 = vld [vmem:[%s167 + $0x738] sm:$0xff]
                %408 = vst [vmem:[%s168 + $0x3b8] sm:$0xff] %v407
                %v409 = vld [vmem:[%s167 + $0x740] sm:$0xff]
                %410 = vst [vmem:[%s168 + $0x3c0] sm:$0xff] %v409
                %v411 = vld [vmem:[%s167 + $0x748] sm:$0xff]
                %412 = vst [vmem:[%s168 + $0x3c8] sm:$0xff] %v411
                %v413 = vld [vmem:[%s167 + $0x750] sm:$0xff]
                %414 = vst [vmem:[%s168 + $0x3d0] sm:$0xff] %v413
                %v415 = vld [vmem:[%s167 + $0x758] sm:$0xff]
                %416 = vst [vmem:[%s168 + $0x3d8] sm:$0xff] %v415
                %v417 = vld [vmem:[%s167 + $0x760] sm:$0xff]
                %418 = vst [vmem:[%s168 + $0x3e0] sm:$0xff] %v417
                %v419 = vld [vmem:[%s167 + $0x768] sm:$0xff]
                %420 = vst [vmem:[%s168 + $0x3e8] sm:$0xff] %v419
                %v421 = vld [vmem:[%s167 + $0x770] sm:$0xff]
                %422 = vst [vmem:[%s168 + $0x3f0] sm:$0xff] %v421
                %v423 = vld [vmem:[%s167 + $0x778] sm:$0xff]
                %424 = vst [vmem:[%s168 + $0x3f8] sm:$0xff] %v423
                %v425 = vld [vmem:[%s167 + $0x800] sm:$0xff]
                %426 = vst [vmem:[%s168 + $0x400] sm:$0xff] %v425
                %v427 = vld [vmem:[%s167 + $0x808] sm:$0xff]
                %428 = vst [vmem:[%s168 + $0x408] sm:$0xff] %v427
                %v429 = vld [vmem:[%s167 + $0x810] sm:$0xff]
                %430 = vst [vmem:[%s168 + $0x410] sm:$0xff] %v429
                %v431 = vld [vmem:[%s167 + $0x818] sm:$0xff]
                %432 = vst [vmem:[%s168 + $0x418] sm:$0xff] %v431
                %v433 = vld [vmem:[%s167 + $0x820] sm:$0xff]
                %434 = vst [vmem:[%s168 + $0x420] sm:$0xff] %v433
                %v435 = vld [vmem:[%s167 + $0x828] sm:$0xff]
                %436 = vst [vmem:[%s168 + $0x428] sm:$0xff] %v435
                %v437 = vld [vmem:[%s167 + $0x830] sm:$0xff]
                %438 = vst [vmem:[%s168 + $0x430] sm:$0xff] %v437
                %v439 = vld [vmem:[%s167 + $0x838] sm:$0xff]
                %440 = vst [vmem:[%s168 + $0x438] sm:$0xff] %v439
                %v441 = vld [vmem:[%s167 + $0x840] sm:$0xff]
                %442 = vst [vmem:[%s168 + $0x440] sm:$0xff] %v441
                %v443 = vld [vmem:[%s167 + $0x848] sm:$0xff]
                %444 = vst [vmem:[%s168 + $0x448] sm:$0xff] %v443
                %v445 = vld [vmem:[%s167 + $0x850] sm:$0xff]
                %446 = vst [vmem:[%s168 + $0x450] sm:$0xff] %v445
                %v447 = vld [vmem:[%s167 + $0x858] sm:$0xff]
                %448 = vst [vmem:[%s168 + $0x458] sm:$0xff] %v447
                %v449 = vld [vmem:[%s167 + $0x860] sm:$0xff]
                %450 = vst [vmem:[%s168 + $0x460] sm:$0xff] %v449
                %v451 = vld [vmem:[%s167 + $0x868] sm:$0xff]
                %452 = vst [vmem:[%s168 + $0x468] sm:$0xff] %v451
                %v453 = vld [vmem:[%s167 + $0x870] sm:$0xff]
                %454 = vst [vmem:[%s168 + $0x470] sm:$0xff] %v453
                %v455 = vld [vmem:[%s167 + $0x878] sm:$0xff]
                %456 = vst [vmem:[%s168 + $0x478] sm:$0xff] %v455
                %v457 = vld [vmem:[%s167 + $0x900] sm:$0xff]
                %458 = vst [vmem:[%s168 + $0x480] sm:$0xff] %v457
                %v459 = vld [vmem:[%s167 + $0x908] sm:$0xff]
                %460 = vst [vmem:[%s168 + $0x488] sm:$0xff] %v459
                %v461 = vld [vmem:[%s167 + $0x910] sm:$0xff]
                %462 = vst [vmem:[%s168 + $0x490] sm:$0xff] %v461
                %v463 = vld [vmem:[%s167 + $0x918] sm:$0xff]
                %464 = vst [vmem:[%s168 + $0x498] sm:$0xff] %v463
                %v465 = vld [vmem:[%s167 + $0x920] sm:$0xff]
                %466 = vst [vmem:[%s168 + $0x4a0] sm:$0xff] %v465
                %v467 = vld [vmem:[%s167 + $0x928] sm:$0xff]
                %468 = vst [vmem:[%s168 + $0x4a8] sm:$0xff] %v467
                %v469 = vld [vmem:[%s167 + $0x930] sm:$0xff]
                %470 = vst [vmem:[%s168 + $0x4b0] sm:$0xff] %v469
                %v471 = vld [vmem:[%s167 + $0x938] sm:$0xff]
                %472 = vst [vmem:[%s168 + $0x4b8] sm:$0xff] %v471
                %v473 = vld [vmem:[%s167 + $0x940] sm:$0xff]
                %474 = vst [vmem:[%s168 + $0x4c0] sm:$0xff] %v473
                %v475 = vld [vmem:[%s167 + $0x948] sm:$0xff]
                %476 = vst [vmem:[%s168 + $0x4c8] sm:$0xff] %v475
                %v477 = vld [vmem:[%s167 + $0x950] sm:$0xff]
                %478 = vst [vmem:[%s168 + $0x4d0] sm:$0xff] %v477
                %v479 = vld [vmem:[%s167 + $0x958] sm:$0xff]
                %480 = vst [vmem:[%s168 + $0x4d8] sm:$0xff] %v479
                %v481 = vld [vmem:[%s167 + $0x960] sm:$0xff]
                %482 = vst [vmem:[%s168 + $0x4e0] sm:$0xff] %v481
                %v483 = vld [vmem:[%s167 + $0x968] sm:$0xff]
                %484 = vst [vmem:[%s168 + $0x4e8] sm:$0xff] %v483
                %v485 = vld [vmem:[%s167 + $0x970] sm:$0xff]
                %486 = vst [vmem:[%s168 + $0x4f0] sm:$0xff] %v485
                %v487 = vld [vmem:[%s167 + $0x978] sm:$0xff]
                %488 = vst [vmem:[%s168 + $0x4f8] sm:$0xff] %v487
                %v489 = vld [vmem:[%s167 + $0xa00] sm:$0xff]
                %490 = vst [vmem:[%s168 + $0x500] sm:$0xff] %v489
                %v491 = vld [vmem:[%s167 + $0xa08] sm:$0xff]
                %492 = vst [vmem:[%s168 + $0x508] sm:$0xff] %v491
                %v493 = vld [vmem:[%s167 + $0xa10] sm:$0xff]
                %494 = vst [vmem:[%s168 + $0x510] sm:$0xff] %v493
                %v495 = vld [vmem:[%s167 + $0xa18] sm:$0xff]
                %496 = vst [vmem:[%s168 + $0x518] sm:$0xff] %v495
                %v497 = vld [vmem:[%s167 + $0xa20] sm:$0xff]
                %498 = vst [vmem:[%s168 + $0x520] sm:$0xff] %v497
                %v499 = vld [vmem:[%s167 + $0xa28] sm:$0xff]
                %500 = vst [vmem:[%s168 + $0x528] sm:$0xff] %v499
                %v501 = vld [vmem:[%s167 + $0xa30] sm:$0xff]
                %502 = vst [vmem:[%s168 + $0x530] sm:$0xff] %v501
                %v503 = vld [vmem:[%s167 + $0xa38] sm:$0xff]
                %504 = vst [vmem:[%s168 + $0x538] sm:$0xff] %v503
                %v505 = vld [vmem:[%s167 + $0xa40] sm:$0xff]
                %506 = vst [vmem:[%s168 + $0x540] sm:$0xff] %v505
                %v507 = vld [vmem:[%s167 + $0xa48] sm:$0xff]
                %508 = vst [vmem:[%s168 + $0x548] sm:$0xff] %v507
                %v509 = vld [vmem:[%s167 + $0xa50] sm:$0xff]
                %510 = vst [vmem:[%s168 + $0x550] sm:$0xff] %v509
                %v511 = vld [vmem:[%s167 + $0xa58] sm:$0xff]
                %512 = vst [vmem:[%s168 + $0x558] sm:$0xff] %v511
                %v513 = vld [vmem:[%s167 + $0xa60] sm:$0xff]
                %514 = vst [vmem:[%s168 + $0x560] sm:$0xff] %v513
                %v515 = vld [vmem:[%s167 + $0xa68] sm:$0xff]
                %516 = vst [vmem:[%s168 + $0x568] sm:$0xff] %v515
                %v517 = vld [vmem:[%s167 + $0xa70] sm:$0xff]
                %518 = vst [vmem:[%s168 + $0x570] sm:$0xff] %v517
                %v519 = vld [vmem:[%s167 + $0xa78] sm:$0xff]
                %520 = vst [vmem:[%s168 + $0x578] sm:$0xff] %v519
                %v521 = vld [vmem:[%s167 + $0xb00] sm:$0xff]
                %522 = vst [vmem:[%s168 + $0x580] sm:$0xff] %v521
                %v523 = vld [vmem:[%s167 + $0xb08] sm:$0xff]
                %524 = vst [vmem:[%s168 + $0x588] sm:$0xff] %v523
                %v525 = vld [vmem:[%s167 + $0xb10] sm:$0xff]
                %526 = vst [vmem:[%s168 + $0x590] sm:$0xff] %v525
                %v527 = vld [vmem:[%s167 + $0xb18] sm:$0xff]
                %528 = vst [vmem:[%s168 + $0x598] sm:$0xff] %v527
                %v529 = vld [vmem:[%s167 + $0xb20] sm:$0xff]
                %530 = vst [vmem:[%s168 + $0x5a0] sm:$0xff] %v529
                %v531 = vld [vmem:[%s167 + $0xb28] sm:$0xff]
                %532 = vst [vmem:[%s168 + $0x5a8] sm:$0xff] %v531
                %v533 = vld [vmem:[%s167 + $0xb30] sm:$0xff]
                %534 = vst [vmem:[%s168 + $0x5b0] sm:$0xff] %v533
                %v535 = vld [vmem:[%s167 + $0xb38] sm:$0xff]
                %536 = vst [vmem:[%s168 + $0x5b8] sm:$0xff] %v535
                %v537 = vld [vmem:[%s167 + $0xb40] sm:$0xff]
                %538 = vst [vmem:[%s168 + $0x5c0] sm:$0xff] %v537
                %v539 = vld [vmem:[%s167 + $0xb48] sm:$0xff]
                %540 = vst [vmem:[%s168 + $0x5c8] sm:$0xff] %v539
                %v541 = vld [vmem:[%s167 + $0xb50] sm:$0xff]
                %542 = vst [vmem:[%s168 + $0x5d0] sm:$0xff] %v541
                %v543 = vld [vmem:[%s167 + $0xb58] sm:$0xff]
                %544 = vst [vmem:[%s168 + $0x5d8] sm:$0xff] %v543
                %v545 = vld [vmem:[%s167 + $0xb60] sm:$0xff]
                %546 = vst [vmem:[%s168 + $0x5e0] sm:$0xff] %v545
                %v547 = vld [vmem:[%s167 + $0xb68] sm:$0xff]
                %548 = vst [vmem:[%s168 + $0x5e8] sm:$0xff] %v547
                %v549 = vld [vmem:[%s167 + $0xb70] sm:$0xff]
                %550 = vst [vmem:[%s168 + $0x5f0] sm:$0xff] %v549
                %v551 = vld [vmem:[%s167 + $0xb78] sm:$0xff]
                %552 = vst [vmem:[%s168 + $0x5f8] sm:$0xff] %v551
                %v553 = vld [vmem:[%s167 + $0xc00] sm:$0xff]
                %554 = vst [vmem:[%s168 + $0x600] sm:$0xff] %v553
                %v555 = vld [vmem:[%s167 + $0xc08] sm:$0xff]
                %556 = vst [vmem:[%s168 + $0x608] sm:$0xff] %v555
                %v557 = vld [vmem:[%s167 + $0xc10] sm:$0xff]
                %558 = vst [vmem:[%s168 + $0x610] sm:$0xff] %v557
                %v559 = vld [vmem:[%s167 + $0xc18] sm:$0xff]
                %560 = vst [vmem:[%s168 + $0x618] sm:$0xff] %v559
                %v561 = vld [vmem:[%s167 + $0xc20] sm:$0xff]
                %562 = vst [vmem:[%s168 + $0x620] sm:$0xff] %v561
                %v563 = vld [vmem:[%s167 + $0xc28] sm:$0xff]
                %564 = vst [vmem:[%s168 + $0x628] sm:$0xff] %v563
                %v565 = vld [vmem:[%s167 + $0xc30] sm:$0xff]
                %566 = vst [vmem:[%s168 + $0x630] sm:$0xff] %v565
                %v567 = vld [vmem:[%s167 + $0xc38] sm:$0xff]
                %568 = vst [vmem:[%s168 + $0x638] sm:$0xff] %v567
                %v569 = vld [vmem:[%s167 + $0xc40] sm:$0xff]
                %570 = vst [vmem:[%s168 + $0x640] sm:$0xff] %v569
                %v571 = vld [vmem:[%s167 + $0xc48] sm:$0xff]
                %572 = vst [vmem:[%s168 + $0x648] sm:$0xff] %v571
                %v573 = vld [vmem:[%s167 + $0xc50] sm:$0xff]
                %574 = vst [vmem:[%s168 + $0x650] sm:$0xff] %v573
                %v575 = vld [vmem:[%s167 + $0xc58] sm:$0xff]
                %576 = vst [vmem:[%s168 + $0x658] sm:$0xff] %v575
                %v577 = vld [vmem:[%s167 + $0xc60] sm:$0xff]
                %578 = vst [vmem:[%s168 + $0x660] sm:$0xff] %v577
                %v579 = vld [vmem:[%s167 + $0xc68] sm:$0xff]
                %580 = vst [vmem:[%s168 + $0x668] sm:$0xff] %v579
                %v581 = vld [vmem:[%s167 + $0xc70] sm:$0xff]
                %582 = vst [vmem:[%s168 + $0x670] sm:$0xff] %v581
                %v583 = vld [vmem:[%s167 + $0xc78] sm:$0xff]
                %584 = vst [vmem:[%s168 + $0x678] sm:$0xff] %v583
                %v585 = vld [vmem:[%s167 + $0xd00] sm:$0xff]
                %586 = vst [vmem:[%s168 + $0x680] sm:$0xff] %v585
                %v587 = vld [vmem:[%s167 + $0xd08] sm:$0xff]
                %588 = vst [vmem:[%s168 + $0x688] sm:$0xff] %v587
                %v589 = vld [vmem:[%s167 + $0xd10] sm:$0xff]
                %590 = vst [vmem:[%s168 + $0x690] sm:$0xff] %v589
                %v591 = vld [vmem:[%s167 + $0xd18] sm:$0xff]
                %592 = vst [vmem:[%s168 + $0x698] sm:$0xff] %v591
                %v593 = vld [vmem:[%s167 + $0xd20] sm:$0xff]
                %594 = vst [vmem:[%s168 + $0x6a0] sm:$0xff] %v593
                %v595 = vld [vmem:[%s167 + $0xd28] sm:$0xff]
                %596 = vst [vmem:[%s168 + $0x6a8] sm:$0xff] %v595
                %v597 = vld [vmem:[%s167 + $0xd30] sm:$0xff]
                %598 = vst [vmem:[%s168 + $0x6b0] sm:$0xff] %v597
                %v599 = vld [vmem:[%s167 + $0xd38] sm:$0xff]
                %600 = vst [vmem:[%s168 + $0x6b8] sm:$0xff] %v599
                %v601 = vld [vmem:[%s167 + $0xd40] sm:$0xff]
                %602 = vst [vmem:[%s168 + $0x6c0] sm:$0xff] %v601
                %v603 = vld [vmem:[%s167 + $0xd48] sm:$0xff]
                %604 = vst [vmem:[%s168 + $0x6c8] sm:$0xff] %v603
                %v605 = vld [vmem:[%s167 + $0xd50] sm:$0xff]
                %606 = vst [vmem:[%s168 + $0x6d0] sm:$0xff] %v605
                %v607 = vld [vmem:[%s167 + $0xd58] sm:$0xff]
                %608 = vst [vmem:[%s168 + $0x6d8] sm:$0xff] %v607
                %v609 = vld [vmem:[%s167 + $0xd60] sm:$0xff]
                %610 = vst [vmem:[%s168 + $0x6e0] sm:$0xff] %v609
                %v611 = vld [vmem:[%s167 + $0xd68] sm:$0xff]
                %612 = vst [vmem:[%s168 + $0x6e8] sm:$0xff] %v611
                %v613 = vld [vmem:[%s167 + $0xd70] sm:$0xff]
                %614 = vst [vmem:[%s168 + $0x6f0] sm:$0xff] %v613
                %v615 = vld [vmem:[%s167 + $0xd78] sm:$0xff]
                %616 = vst [vmem:[%s168 + $0x6f8] sm:$0xff] %v615
                %v617 = vld [vmem:[%s167 + $0xe00] sm:$0xff]
                %618 = vst [vmem:[%s168 + $0x700] sm:$0xff] %v617
                %v619 = vld [vmem:[%s167 + $0xe08] sm:$0xff]
                %620 = vst [vmem:[%s168 + $0x708] sm:$0xff] %v619
                %v621 = vld [vmem:[%s167 + $0xe10] sm:$0xff]
                %622 = vst [vmem:[%s168 + $0x710] sm:$0xff] %v621
                %v623 = vld [vmem:[%s167 + $0xe18] sm:$0xff]
                %624 = vst [vmem:[%s168 + $0x718] sm:$0xff] %v623
                %v625 = vld [vmem:[%s167 + $0xe20] sm:$0xff]
                %626 = vst [vmem:[%s168 + $0x720] sm:$0xff] %v625
                %v627 = vld [vmem:[%s167 + $0xe28] sm:$0xff]
                %628 = vst [vmem:[%s168 + $0x728] sm:$0xff] %v627
                %v629 = vld [vmem:[%s167 + $0xe30] sm:$0xff]
                %630 = vst [vmem:[%s168 + $0x730] sm:$0xff] %v629
                %v631 = vld [vmem:[%s167 + $0xe38] sm:$0xff]
                %632 = vst [vmem:[%s168 + $0x738] sm:$0xff] %v631
                %v633 = vld [vmem:[%s167 + $0xe40] sm:$0xff]
                %634 = vst [vmem:[%s168 + $0x740] sm:$0xff] %v633
                %v635 = vld [vmem:[%s167 + $0xe48] sm:$0xff]
                %636 = vst [vmem:[%s168 + $0x748] sm:$0xff] %v635
                %v637 = vld [vmem:[%s167 + $0xe50] sm:$0xff]
                %638 = vst [vmem:[%s168 + $0x750] sm:$0xff] %v637
                %v639 = vld [vmem:[%s167 + $0xe58] sm:$0xff]
                %640 = vst [vmem:[%s168 + $0x758] sm:$0xff] %v639
                %v641 = vld [vmem:[%s167 + $0xe60] sm:$0xff]
                %642 = vst [vmem:[%s168 + $0x760] sm:$0xff] %v641
                %v643 = vld [vmem:[%s167 + $0xe68] sm:$0xff]
                %644 = vst [vmem:[%s168 + $0x768] sm:$0xff] %v643
                %v645 = vld [vmem:[%s167 + $0xe70] sm:$0xff]
                %646 = vst [vmem:[%s168 + $0x770] sm:$0xff] %v645
                %v647 = vld [vmem:[%s167 + $0xe78] sm:$0xff]
                %648 = vst [vmem:[%s168 + $0x778] sm:$0xff] %v647
                %v649 = vld [vmem:[%s167 + $0xf00] sm:$0xff]
                %650 = vst [vmem:[%s168 + $0x780] sm:$0xff] %v649
                %v651 = vld [vmem:[%s167 + $0xf08] sm:$0xff]
                %652 = vst [vmem:[%s168 + $0x788] sm:$0xff] %v651
                %v653 = vld [vmem:[%s167 + $0xf10] sm:$0xff]
                %654 = vst [vmem:[%s168 + $0x790] sm:$0xff] %v653
                %v655 = vld [vmem:[%s167 + $0xf18] sm:$0xff]
                %656 = vst [vmem:[%s168 + $0x798] sm:$0xff] %v655
                %v657 = vld [vmem:[%s167 + $0xf20] sm:$0xff]
                %658 = vst [vmem:[%s168 + $0x7a0] sm:$0xff] %v657
                %v659 = vld [vmem:[%s167 + $0xf28] sm:$0xff]
                %660 = vst [vmem:[%s168 + $0x7a8] sm:$0xff] %v659
                %v661 = vld [vmem:[%s167 + $0xf30] sm:$0xff]
                %662 = vst [vmem:[%s168 + $0x7b0] sm:$0xff] %v661
                %v663 = vld [vmem:[%s167 + $0xf38] sm:$0xff]
                %664 = vst [vmem:[%s168 + $0x7b8] sm:$0xff] %v663
                %v665 = vld [vmem:[%s167 + $0xf40] sm:$0xff]
                %666 = vst [vmem:[%s168 + $0x7c0] sm:$0xff] %v665
                %v667 = vld [vmem:[%s167 + $0xf48] sm:$0xff]
                %668 = vst [vmem:[%s168 + $0x7c8] sm:$0xff] %v667
                %v669 = vld [vmem:[%s167 + $0xf50] sm:$0xff]
                %670 = vst [vmem:[%s168 + $0x7d0] sm:$0xff] %v669
                %v671 = vld [vmem:[%s167 + $0xf58] sm:$0xff]
                %672 = vst [vmem:[%s168 + $0x7d8] sm:$0xff] %v671
                %v673 = vld [vmem:[%s167 + $0xf60] sm:$0xff]
                %674 = vst [vmem:[%s168 + $0x7e0] sm:$0xff] %v673
                %v675 = vld [vmem:[%s167 + $0xf68] sm:$0xff]
                %676 = vst [vmem:[%s168 + $0x7e8] sm:$0xff] %v675
                %v677 = vld [vmem:[%s167 + $0xf70] sm:$0xff]
                %678 = vst [vmem:[%s168 + $0x7f0] sm:$0xff] %v677
                %v679 = vld [vmem:[%s167 + $0xf78] sm:$0xff]
                %680 = vst [vmem:[%s168 + $0x7f8] sm:$0xff] %v679
              $region37: #{conv_block_final_double_forward.2} parent=31 // loop_footer
                %s166 = sadd.s32 1, %s162
              $region38: #{conv_block_final_double_forward.2} parent=31 // loop_footer_branch
                %161 = sbr.rel target = $region34
              $region39: #{conv_block_final_double_forward.2} parent=31 // loop_exit
                _
            $region32: #{conv_block_final_double_forward.2} parent=27 // pred_fallthru
              _
            // Predicated region
            $region40: #{conv_block_final_double_forward.2} parent=27 // pred_check
              _
            $region41: #{conv_block_final_double_forward.2} parent=27 // pred_check_branch
              %682 = sbr.rel target = $region43
            $region42: #{conv_block_final_double_forward.2} parent=27 // pred_region
              _
            $region43: #{conv_block_final_double_forward.2} parent=27 // pred_fallthru
              _
          $region28: #{conv_block_final_double_forward.2} parent=23 // pred_fallthru
            _
          %683 = vnop
        $region24: #{conv_block_final_double_forward.2} parent=19 // pred_fallthru
          _
      $region20: #{conv_block_final_double_forward.2} parent=5 // pred_fallthru
        _
      %p684 = scmp.le.s32.totalorder 1, %s10
      %p685 = scmp.lt.s32.totalorder %s10, 5
      %p686 = pnand %p684, %p685
      %p687 = pneg %p686
      // Predicated region
      $region44: #{conv_block_final_double_forward.2} parent=5 // pred_check
        _
      $region45: #{conv_block_final_double_forward.2} parent=5 // pred_check_branch
        %689 = sbr.rel (%p686) target = $region47
      $region46: #{conv_block_final_double_forward.2} parent=5 // pred_region
        %s690 = ssub.s32 %s10, 1
        %s691 = sand.u32 %s37, 1
        %s692 = sand.u32 %s37, 1
        %s693 = smul.addr %s692, 2048
        %s694 = scalar_lea.vmem [#allocation2], %s693
        // Predicated region
        $region48: #{conv_block_final_double_forward.2} parent=46 // pred_check
          %p695 = pneg %p50
        $region49: #{conv_block_final_double_forward.2} parent=46 // pred_check_branch
          %697 = sbr.rel (%p695) target = $region51
        $region50: #{conv_block_final_double_forward.2} parent=46 // pred_region
          _
        $region51: #{conv_block_final_double_forward.2} parent=46 // pred_fallthru
          _
        %s698 = sand.u32 %s37, 1
        %s699 = sand.u32 %s37, 1
        %s700 = smul.addr %s699, 2048
        %s701 = scalar_lea.vmem [#allocation2], %s700
        %p702 = pneg %p50
        %p703 = pneg %p47
        %p704 = pneg %p71
        %p705 = pneg %p68
        %p706 = pneg %p97
        %p707 = pneg %p94
        %p708 = scmp.lt.s32.totalorder %s19, 1
        %s709 = scalar_select %p708, %s19, 1
        %s710 = smul.addr %s709, 19
        %s711 = smul.addr %s710, 8
        %s712 = scalar_lea.vmem %s2, %s711
        %p713 = pneg %p123
        %p714 = pneg %p120
        %p715 = scmp.lt.s32.totalorder %s19, 1
        %s716 = scalar_select %p715, %s19, 1
        %s717 = smul.addr %s716, 19
        %s718 = smul.addr %s717, 8
        %s719 = scalar_lea.vmem %s3, %s718
        %s720 = smul.u32 16, %s20
        %p721 = scmp.lt.s32.totalorder %s19, 1
        %s722 = scalar_select %p721, %s19, 1
        %s723 = smul.addr %s722, 19
        %s724 = smul.addr %s723, 8
        %s725 = scalar_lea.vmem %s2, %s724
        %p726 = scmp.lt.s32.totalorder %s19, 1
        %s727 = scalar_select %p726, %s19, 1
        %s728 = smul.addr %s727, 19
        %s729 = smul.addr %s728, 8
        %s730 = scalar_lea.vmem %s3, %s729
        %p732 = scmp.eq.s32.totalorder %s20, 0
        // Predicated region
        $region52: #{conv_block_final_double_forward.2} parent=46 // pred_check
          %p733 = pneg %p732
        $region53: #{conv_block_final_double_forward.2} parent=46 // pred_check_branch
          %735 = sbr.rel (%p733) target = $region55
        $region54: #{conv_block_final_double_forward.2} parent=46 // pred_region
          %vm736 = vcmask 7168
          %737 = vst.msk [vmem:[%s725] sm:$0xff] %vm736, 0.0
          %738 = vst.msk [vmem:[%s725 + $0x8] sm:$0xff] %vm736, 0.0
          %739 = vst.msk [vmem:[%s725 + $0x10] sm:$0xff] %vm736, 0.0
          %740 = vst.msk [vmem:[%s725 + $0x18] sm:$0xff] %vm736, 0.0
          %741 = vst.msk [vmem:[%s725 + $0x20] sm:$0xff] %vm736, 0.0
          %742 = vst.msk [vmem:[%s725 + $0x28] sm:$0xff] %vm736, 0.0
          %743 = vst.msk [vmem:[%s725 + $0x30] sm:$0xff] %vm736, 0.0
          %744 = vst.msk [vmem:[%s725 + $0x38] sm:$0xff] %vm736, 0.0
          %745 = vst.msk [vmem:[%s725 + $0x40] sm:$0xff] %vm736, 0.0
          %746 = vst.msk [vmem:[%s725 + $0x48] sm:$0xff] %vm736, 0.0
          %747 = vst.msk [vmem:[%s725 + $0x50] sm:$0xff] %vm736, 0.0
          %748 = vst.msk [vmem:[%s725 + $0x58] sm:$0xff] %vm736, 0.0
          %749 = vst.msk [vmem:[%s725 + $0x60] sm:$0xff] %vm736, 0.0
          %750 = vst.msk [vmem:[%s725 + $0x68] sm:$0xff] %vm736, 0.0
          %751 = vst.msk [vmem:[%s725 + $0x70] sm:$0xff] %vm736, 0.0
          %752 = vst.msk [vmem:[%s725 + $0x78] sm:$0xff] %vm736, 0.0
          %753 = vst.msk [vmem:[%s725 + $0x80] sm:$0xff] %vm736, 0.0
          %754 = vst.msk [vmem:[%s725 + $0x88] sm:$0xff] %vm736, 0.0
          %755 = vst.msk [vmem:[%s725 + $0x90] sm:$0xff] %vm736, 0.0
          %756 = vst.msk [vmem:[%s730] sm:$0xff] %vm736, 0.0
          %757 = vst.msk [vmem:[%s730 + $0x8] sm:$0xff] %vm736, 0.0
          %758 = vst.msk [vmem:[%s730 + $0x10] sm:$0xff] %vm736, 0.0
          %759 = vst.msk [vmem:[%s730 + $0x18] sm:$0xff] %vm736, 0.0
          %760 = vst.msk [vmem:[%s730 + $0x20] sm:$0xff] %vm736, 0.0
          %761 = vst.msk [vmem:[%s730 + $0x28] sm:$0xff] %vm736, 0.0
          %762 = vst.msk [vmem:[%s730 + $0x30] sm:$0xff] %vm736, 0.0
          %763 = vst.msk [vmem:[%s730 + $0x38] sm:$0xff] %vm736, 0.0
          %764 = vst.msk [vmem:[%s730 + $0x40] sm:$0xff] %vm736, 0.0
          %765 = vst.msk [vmem:[%s730 + $0x48] sm:$0xff] %vm736, 0.0
          %766 = vst.msk [vmem:[%s730 + $0x50] sm:$0xff] %vm736, 0.0
          %767 = vst.msk [vmem:[%s730 + $0x58] sm:$0xff] %vm736, 0.0
          %768 = vst.msk [vmem:[%s730 + $0x60] sm:$0xff] %vm736, 0.0
          %769 = vst.msk [vmem:[%s730 + $0x68] sm:$0xff] %vm736, 0.0
          %770 = vst.msk [vmem:[%s730 + $0x70] sm:$0xff] %vm736, 0.0
          %771 = vst.msk [vmem:[%s730 + $0x78] sm:$0xff] %vm736, 0.0
          %772 = vst.msk [vmem:[%s730 + $0x80] sm:$0xff] %vm736, 0.0
          %773 = vst.msk [vmem:[%s730 + $0x88] sm:$0xff] %vm736, 0.0
          %774 = vst.msk [vmem:[%s730 + $0x90] sm:$0xff] %vm736, 0.0
        $region55: #{conv_block_final_double_forward.2} parent=46 // pred_fallthru
          _
        %v775 = vld [vmem:[%s694] sm:$0xff]
        %v776 = vld [vmem:[%s694 + $0x8] sm:$0xff]
        %v777 = vld [vmem:[%s694 + $0x10] sm:$0xff]
        %v778 = vld [vmem:[%s694 + $0x18] sm:$0xff]
        %v779 = vld [vmem:[%s694 + $0x20] sm:$0xff]
        %v780 = vld [vmem:[%s694 + $0x28] sm:$0xff]
        %v781 = vld [vmem:[%s694 + $0x30] sm:$0xff]
        %v782 = vld [vmem:[%s694 + $0x38] sm:$0xff]
        %v783 = vld [vmem:[%s694 + $0x40] sm:$0xff]
        %v784 = vld [vmem:[%s694 + $0x48] sm:$0xff]
        %v785 = vld [vmem:[%s694 + $0x50] sm:$0xff]
        %v786 = vld [vmem:[%s694 + $0x58] sm:$0xff]
        %v787 = vld [vmem:[%s694 + $0x60] sm:$0xff]
        %v788 = vld [vmem:[%s694 + $0x68] sm:$0xff]
        %v789 = vld [vmem:[%s694 + $0x70] sm:$0xff]
        %v790 = vld [vmem:[%s694 + $0x78] sm:$0xff]
        %v791 = vld [vmem:[%s694 + $0x80] sm:$0xff]
        %v792 = vld [vmem:[%s694 + $0x88] sm:$0xff]
        %v793 = vld [vmem:[%s694 + $0x90] sm:$0xff]
        %v794 = vld [vmem:[%s694 + $0x98] sm:$0xff]
        %v795 = vld [vmem:[%s694 + $0xa0] sm:$0xff]
        %v796 = vld [vmem:[%s694 + $0xa8] sm:$0xff]
        %v797 = vld [vmem:[%s694 + $0xb0] sm:$0xff]
        %v798 = vld [vmem:[%s694 + $0xb8] sm:$0xff]
        %v799 = vld [vmem:[%s694 + $0xc0] sm:$0xff]
        %v800 = vld [vmem:[%s694 + $0xc8] sm:$0xff]
        %v801 = vld [vmem:[%s694 + $0xd0] sm:$0xff]
        %v802 = vld [vmem:[%s694 + $0xd8] sm:$0xff]
        %v803 = vld [vmem:[%s694 + $0xe0] sm:$0xff]
        %v804 = vld [vmem:[%s694 + $0xe8] sm:$0xff]
        %v805 = vld [vmem:[%s694 + $0xf0] sm:$0xff]
        %v806 = vld [vmem:[%s694 + $0xf8] sm:$0xff]
        %v807 = vld [vmem:[%s694 + $0x100] sm:$0xff]
        %v808 = vld [vmem:[%s694 + $0x108] sm:$0xff]
        %v809 = vld [vmem:[%s694 + $0x110] sm:$0xff]
        %v810 = vld [vmem:[%s694 + $0x118] sm:$0xff]
        %v811 = vld [vmem:[%s694 + $0x120] sm:$0xff]
        %v812 = vld [vmem:[%s694 + $0x128] sm:$0xff]
        %v813 = vld [vmem:[%s694 + $0x130] sm:$0xff]
        %v814 = vld [vmem:[%s694 + $0x138] sm:$0xff]
        %v815 = vld [vmem:[%s694 + $0x140] sm:$0xff]
        %v816 = vld [vmem:[%s694 + $0x148] sm:$0xff]
        %v817 = vld [vmem:[%s694 + $0x150] sm:$0xff]
        %v818 = vld [vmem:[%s694 + $0x158] sm:$0xff]
        %v819 = vld [vmem:[%s694 + $0x160] sm:$0xff]
        %v820 = vld [vmem:[%s694 + $0x168] sm:$0xff]
        %v821 = vld [vmem:[%s694 + $0x170] sm:$0xff]
        %v822 = vld [vmem:[%s694 + $0x178] sm:$0xff]
        %v823 = vld [vmem:[%s694 + $0x180] sm:$0xff]
        %v824 = vld [vmem:[%s694 + $0x188] sm:$0xff]
        %v825 = vld [vmem:[%s694 + $0x190] sm:$0xff]
        %v826 = vld [vmem:[%s694 + $0x198] sm:$0xff]
        %v827 = vld [vmem:[%s694 + $0x1a0] sm:$0xff]
        %v828 = vld [vmem:[%s694 + $0x1a8] sm:$0xff]
        %v829 = vld [vmem:[%s694 + $0x1b0] sm:$0xff]
        %v830 = vld [vmem:[%s694 + $0x1b8] sm:$0xff]
        %v831 = vld [vmem:[%s694 + $0x1c0] sm:$0xff]
        %v832 = vld [vmem:[%s694 + $0x1c8] sm:$0xff]
        %v833 = vld [vmem:[%s694 + $0x1d0] sm:$0xff]
        %v834 = vld [vmem:[%s694 + $0x1d8] sm:$0xff]
        %v835 = vld [vmem:[%s694 + $0x1e0] sm:$0xff]
        %v836 = vld [vmem:[%s694 + $0x1e8] sm:$0xff]
        %v837 = vld [vmem:[%s694 + $0x1f0] sm:$0xff]
        %v838 = vld [vmem:[%s694 + $0x1f8] sm:$0xff]
        %v839 = vld [vmem:[%s694 + $0x200] sm:$0xff]
        %v840 = vld [vmem:[%s694 + $0x208] sm:$0xff]
        %v841 = vld [vmem:[%s694 + $0x210] sm:$0xff]
        %v842 = vld [vmem:[%s694 + $0x218] sm:$0xff]
        %v843 = vld [vmem:[%s694 + $0x220] sm:$0xff]
        %v844 = vld [vmem:[%s694 + $0x228] sm:$0xff]
        %v845 = vld [vmem:[%s694 + $0x230] sm:$0xff]
        %v846 = vld [vmem:[%s694 + $0x238] sm:$0xff]
        %v847 = vld [vmem:[%s694 + $0x240] sm:$0xff]
        %v848 = vld [vmem:[%s694 + $0x248] sm:$0xff]
        %v849 = vld [vmem:[%s694 + $0x250] sm:$0xff]
        %v850 = vld [vmem:[%s694 + $0x258] sm:$0xff]
        %v851 = vld [vmem:[%s694 + $0x260] sm:$0xff]
        %v852 = vld [vmem:[%s694 + $0x268] sm:$0xff]
        %v853 = vld [vmem:[%s694 + $0x270] sm:$0xff]
        %v854 = vld [vmem:[%s694 + $0x278] sm:$0xff]
        %v855 = vld [vmem:[%s694 + $0x280] sm:$0xff]
        %v856 = vld [vmem:[%s694 + $0x288] sm:$0xff]
        %v857 = vld [vmem:[%s694 + $0x290] sm:$0xff]
        %v858 = vld [vmem:[%s694 + $0x298] sm:$0xff]
        %v859 = vld [vmem:[%s694 + $0x2a0] sm:$0xff]
        %v860 = vld [vmem:[%s694 + $0x2a8] sm:$0xff]
        %v861 = vld [vmem:[%s694 + $0x2b0] sm:$0xff]
        %v862 = vld [vmem:[%s694 + $0x2b8] sm:$0xff]
        %v863 = vld [vmem:[%s694 + $0x2c0] sm:$0xff]
        %v864 = vld [vmem:[%s694 + $0x2c8] sm:$0xff]
        %v865 = vld [vmem:[%s694 + $0x2d0] sm:$0xff]
        %v866 = vld [vmem:[%s694 + $0x2d8] sm:$0xff]
        %v867 = vld [vmem:[%s694 + $0x2e0] sm:$0xff]
        %v868 = vld [vmem:[%s694 + $0x2e8] sm:$0xff]
        %v869 = vld [vmem:[%s694 + $0x2f0] sm:$0xff]
        %v870 = vld [vmem:[%s694 + $0x2f8] sm:$0xff]
        %v871 = vld [vmem:[%s694 + $0x300] sm:$0xff]
        %v872 = vld [vmem:[%s694 + $0x308] sm:$0xff]
        %v873 = vld [vmem:[%s694 + $0x310] sm:$0xff]
        %v874 = vld [vmem:[%s694 + $0x318] sm:$0xff]
        %v875 = vld [vmem:[%s694 + $0x320] sm:$0xff]
        %v876 = vld [vmem:[%s694 + $0x328] sm:$0xff]
        %v877 = vld [vmem:[%s694 + $0x330] sm:$0xff]
        %v878 = vld [vmem:[%s694 + $0x338] sm:$0xff]
        %v879 = vld [vmem:[%s694 + $0x340] sm:$0xff]
        %v880 = vld [vmem:[%s694 + $0x348] sm:$0xff]
        %v881 = vld [vmem:[%s694 + $0x350] sm:$0xff]
        %v882 = vld [vmem:[%s694 + $0x358] sm:$0xff]
        %v883 = vld [vmem:[%s694 + $0x360] sm:$0xff]
        %v884 = vld [vmem:[%s694 + $0x368] sm:$0xff]
        %v885 = vld [vmem:[%s694 + $0x370] sm:$0xff]
        %v886 = vld [vmem:[%s694 + $0x378] sm:$0xff]
        %v887 = vld [vmem:[%s694 + $0x380] sm:$0xff]
        %v888 = vld [vmem:[%s694 + $0x388] sm:$0xff]
        %v889 = vld [vmem:[%s694 + $0x390] sm:$0xff]
        %v890 = vld [vmem:[%s694 + $0x398] sm:$0xff]
        %v891 = vld [vmem:[%s694 + $0x3a0] sm:$0xff]
        %v892 = vld [vmem:[%s694 + $0x3a8] sm:$0xff]
        %v893 = vld [vmem:[%s694 + $0x3b0] sm:$0xff]
        %v894 = vld [vmem:[%s694 + $0x3b8] sm:$0xff]
        %v895 = vld [vmem:[%s694 + $0x3c0] sm:$0xff]
        %v896 = vld [vmem:[%s694 + $0x3c8] sm:$0xff]
        %v897 = vld [vmem:[%s694 + $0x3d0] sm:$0xff]
        %v898 = vld [vmem:[%s694 + $0x3d8] sm:$0xff]
        %v899 = vld [vmem:[%s694 + $0x3e0] sm:$0xff]
        %v900 = vld [vmem:[%s694 + $0x3e8] sm:$0xff]
        %v901 = vld [vmem:[%s694 + $0x3f0] sm:$0xff]
        %v902 = vld [vmem:[%s694 + $0x3f8] sm:$0xff]
        %v903 = vld [vmem:[%s694 + $0x400] sm:$0xff]
        %v904 = vld [vmem:[%s694 + $0x408] sm:$0xff]
        %v905 = vld [vmem:[%s694 + $0x410] sm:$0xff]
        %v906 = vld [vmem:[%s694 + $0x418] sm:$0xff]
        %v907 = vld [vmem:[%s694 + $0x420] sm:$0xff]
        %v908 = vld [vmem:[%s694 + $0x428] sm:$0xff]
        %v909 = vld [vmem:[%s694 + $0x430] sm:$0xff]
        %v910 = vld [vmem:[%s694 + $0x438] sm:$0xff]
        %v911 = vld [vmem:[%s694 + $0x440] sm:$0xff]
        %v912 = vld [vmem:[%s694 + $0x448] sm:$0xff]
        %v913 = vld [vmem:[%s694 + $0x450] sm:$0xff]
        %v914 = vld [vmem:[%s694 + $0x458] sm:$0xff]
        %v915 = vld [vmem:[%s694 + $0x460] sm:$0xff]
        %v916 = vld [vmem:[%s694 + $0x468] sm:$0xff]
        %v917 = vld [vmem:[%s694 + $0x470] sm:$0xff]
        %v918 = vld [vmem:[%s694 + $0x478] sm:$0xff]
        %v919 = vld [vmem:[%s694 + $0x480] sm:$0xff]
        %v920 = vld [vmem:[%s694 + $0x488] sm:$0xff]
        %v921 = vld [vmem:[%s694 + $0x490] sm:$0xff]
        %v922 = vld [vmem:[%s694 + $0x498] sm:$0xff]
        %v923 = vld [vmem:[%s694 + $0x4a0] sm:$0xff]
        %v924 = vld [vmem:[%s694 + $0x4a8] sm:$0xff]
        %v925 = vld [vmem:[%s694 + $0x4b0] sm:$0xff]
        %v926 = vld [vmem:[%s694 + $0x4b8] sm:$0xff]
        %v927 = vld [vmem:[%s694 + $0x4c0] sm:$0xff]
        %v928 = vld [vmem:[%s694 + $0x4c8] sm:$0xff]
        %v929 = vld [vmem:[%s694 + $0x4d0] sm:$0xff]
        %v930 = vld [vmem:[%s694 + $0x4d8] sm:$0xff]
        %v931 = vld [vmem:[%s694 + $0x4e0] sm:$0xff]
        %v932 = vld [vmem:[%s694 + $0x4e8] sm:$0xff]
        %v933 = vld [vmem:[%s694 + $0x4f0] sm:$0xff]
        %v934 = vld [vmem:[%s694 + $0x4f8] sm:$0xff]
        %v935 = vld [vmem:[%s694 + $0x500] sm:$0xff]
        %v936 = vld [vmem:[%s694 + $0x508] sm:$0xff]
        %v937 = vld [vmem:[%s694 + $0x510] sm:$0xff]
        %v938 = vld [vmem:[%s694 + $0x518] sm:$0xff]
        %v939 = vld [vmem:[%s694 + $0x520] sm:$0xff]
        %v940 = vld [vmem:[%s694 + $0x528] sm:$0xff]
        %v941 = vld [vmem:[%s694 + $0x530] sm:$0xff]
        %v942 = vld [vmem:[%s694 + $0x538] sm:$0xff]
        %v943 = vld [vmem:[%s694 + $0x540] sm:$0xff]
        %v944 = vld [vmem:[%s694 + $0x548] sm:$0xff]
        %v945 = vld [vmem:[%s694 + $0x550] sm:$0xff]
        %v946 = vld [vmem:[%s694 + $0x558] sm:$0xff]
        %v947 = vld [vmem:[%s694 + $0x560] sm:$0xff]
        %v948 = vld [vmem:[%s694 + $0x568] sm:$0xff]
        %v949 = vld [vmem:[%s694 + $0x570] sm:$0xff]
        %v950 = vld [vmem:[%s694 + $0x578] sm:$0xff]
        %v951 = vld [vmem:[%s694 + $0x580] sm:$0xff]
        %v952 = vld [vmem:[%s694 + $0x588] sm:$0xff]
        %v953 = vld [vmem:[%s694 + $0x590] sm:$0xff]
        %v954 = vld [vmem:[%s694 + $0x598] sm:$0xff]
        %v955 = vld [vmem:[%s694 + $0x5a0] sm:$0xff]
        %v956 = vld [vmem:[%s694 + $0x5a8] sm:$0xff]
        %v957 = vld [vmem:[%s694 + $0x5b0] sm:$0xff]
        %v958 = vld [vmem:[%s694 + $0x5b8] sm:$0xff]
        %v959 = vld [vmem:[%s694 + $0x5c0] sm:$0xff]
        %v960 = vld [vmem:[%s694 + $0x5c8] sm:$0xff]
        %v961 = vld [vmem:[%s694 + $0x5d0] sm:$0xff]
        %v962 = vld [vmem:[%s694 + $0x5d8] sm:$0xff]
        %v963 = vld [vmem:[%s694 + $0x5e0] sm:$0xff]
        %v964 = vld [vmem:[%s694 + $0x5e8] sm:$0xff]
        %v965 = vld [vmem:[%s694 + $0x5f0] sm:$0xff]
        %v966 = vld [vmem:[%s694 + $0x5f8] sm:$0xff]
        %v967 = vld [vmem:[%s694 + $0x600] sm:$0xff]
        %v968 = vld [vmem:[%s694 + $0x608] sm:$0xff]
        %v969 = vld [vmem:[%s694 + $0x610] sm:$0xff]
        %v970 = vld [vmem:[%s694 + $0x618] sm:$0xff]
        %v971 = vld [vmem:[%s694 + $0x620] sm:$0xff]
        %v972 = vld [vmem:[%s694 + $0x628] sm:$0xff]
        %v973 = vld [vmem:[%s694 + $0x630] sm:$0xff]
        %v974 = vld [vmem:[%s694 + $0x638] sm:$0xff]
        %v975 = vld [vmem:[%s694 + $0x640] sm:$0xff]
        %v976 = vld [vmem:[%s694 + $0x648] sm:$0xff]
        %v977 = vld [vmem:[%s694 + $0x650] sm:$0xff]
        %v978 = vld [vmem:[%s694 + $0x658] sm:$0xff]
        %v979 = vld [vmem:[%s694 + $0x660] sm:$0xff]
        %v980 = vld [vmem:[%s694 + $0x668] sm:$0xff]
        %v981 = vld [vmem:[%s694 + $0x670] sm:$0xff]
        %v982 = vld [vmem:[%s694 + $0x678] sm:$0xff]
        %v983 = vld [vmem:[%s694 + $0x680] sm:$0xff]
        %v984 = vld [vmem:[%s694 + $0x688] sm:$0xff]
        %v985 = vld [vmem:[%s694 + $0x690] sm:$0xff]
        %v986 = vld [vmem:[%s694 + $0x698] sm:$0xff]
        %v987 = vld [vmem:[%s694 + $0x6a0] sm:$0xff]
        %v988 = vld [vmem:[%s694 + $0x6a8] sm:$0xff]
        %v989 = vld [vmem:[%s694 + $0x6b0] sm:$0xff]
        %v990 = vld [vmem:[%s694 + $0x6b8] sm:$0xff]
        %v991 = vld [vmem:[%s694 + $0x6c0] sm:$0xff]
        %v992 = vld [vmem:[%s694 + $0x6c8] sm:$0xff]
        %v993 = vld [vmem:[%s694 + $0x6d0] sm:$0xff]
        %v994 = vld [vmem:[%s694 + $0x6d8] sm:$0xff]
        %v995 = vld [vmem:[%s694 + $0x6e0] sm:$0xff]
        %v996 = vld [vmem:[%s694 + $0x6e8] sm:$0xff]
        %v997 = vld [vmem:[%s694 + $0x6f0] sm:$0xff]
        %v998 = vld [vmem:[%s694 + $0x6f8] sm:$0xff]
        %v999 = vld [vmem:[%s694 + $0x700] sm:$0xff]
        %v1000 = vld [vmem:[%s694 + $0x708] sm:$0xff]
        %v1001 = vld [vmem:[%s694 + $0x710] sm:$0xff]
        %v1002 = vld [vmem:[%s694 + $0x718] sm:$0xff]
        %v1003 = vld [vmem:[%s694 + $0x720] sm:$0xff]
        %v1004 = vld [vmem:[%s694 + $0x728] sm:$0xff]
        %v1005 = vld [vmem:[%s694 + $0x730] sm:$0xff]
        %v1006 = vld [vmem:[%s694 + $0x738] sm:$0xff]
        %v1007 = vld [vmem:[%s694 + $0x740] sm:$0xff]
        %v1008 = vld [vmem:[%s694 + $0x748] sm:$0xff]
        %v1009 = vld [vmem:[%s694 + $0x750] sm:$0xff]
        %v1010 = vld [vmem:[%s694 + $0x758] sm:$0xff]
        %v1011 = vld [vmem:[%s694 + $0x760] sm:$0xff]
        %v1012 = vld [vmem:[%s694 + $0x768] sm:$0xff]
        %v1013 = vld [vmem:[%s694 + $0x770] sm:$0xff]
        %v1014 = vld [vmem:[%s694 + $0x778] sm:$0xff]
        %v1015 = vld [vmem:[%s694 + $0x780] sm:$0xff]
        %v1016 = vld [vmem:[%s694 + $0x788] sm:$0xff]
        %v1017 = vld [vmem:[%s694 + $0x790] sm:$0xff]
        %v1018 = vld [vmem:[%s694 + $0x798] sm:$0xff]
        %v1019 = vld [vmem:[%s694 + $0x7a0] sm:$0xff]
        %v1020 = vld [vmem:[%s694 + $0x7a8] sm:$0xff]
        %v1021 = vld [vmem:[%s694 + $0x7b0] sm:$0xff]
        %v1022 = vld [vmem:[%s694 + $0x7b8] sm:$0xff]
        %v1023 = vld [vmem:[%s694 + $0x7c0] sm:$0xff]
        %v1024 = vld [vmem:[%s694 + $0x7c8] sm:$0xff]
        %v1025 = vld [vmem:[%s694 + $0x7d0] sm:$0xff]
        %v1026 = vld [vmem:[%s694 + $0x7d8] sm:$0xff]
        %v1027 = vld [vmem:[%s694 + $0x7e0] sm:$0xff]
        %v1028 = vld [vmem:[%s694 + $0x7e8] sm:$0xff]
        %v1029 = vld [vmem:[%s694 + $0x7f0] sm:$0xff]
        %v1030 = vld [vmem:[%s694 + $0x7f8] sm:$0xff]
        %v1031 = vpack.c.bf16 %v791, %v775
        %v1032 = vpack.c.bf16 %v792, %v776
        %v1033 = vpack.c.bf16 %v793, %v777
        %v1034 = vpack.c.bf16 %v794, %v778
        %v1035 = vpack.c.bf16 %v795, %v779
        %v1036 = vpack.c.bf16 %v796, %v780
        %v1037 = vpack.c.bf16 %v797, %v781
        %v1038 = vpack.c.bf16 %v798, %v782
        %v1039 = vpack.c.bf16 %v799, %v783
        %v1040 = vpack.c.bf16 %v800, %v784
        %v1041 = vpack.c.bf16 %v801, %v785
        %v1042 = vpack.c.bf16 %v802, %v786
        %v1043 = vpack.c.bf16 %v803, %v787
        %v1044 = vpack.c.bf16 %v804, %v788
        %v1045 = vpack.c.bf16 %v805, %v789
        %v1046 = vpack.c.bf16 %v806, %v790
        %v1047 = vpack.c.bf16 %v823, %v807
        %v1048 = vpack.c.bf16 %v824, %v808
        %v1049 = vpack.c.bf16 %v825, %v809
        %v1050 = vpack.c.bf16 %v826, %v810
        %v1051 = vpack.c.bf16 %v827, %v811
        %v1052 = vpack.c.bf16 %v828, %v812
        %v1053 = vpack.c.bf16 %v829, %v813
        %v1054 = vpack.c.bf16 %v830, %v814
        %v1055 = vpack.c.bf16 %v831, %v815
        %v1056 = vpack.c.bf16 %v832, %v816
        %v1057 = vpack.c.bf16 %v833, %v817
        %v1058 = vpack.c.bf16 %v834, %v818
        %v1059 = vpack.c.bf16 %v835, %v819
        %v1060 = vpack.c.bf16 %v836, %v820
        %v1061 = vpack.c.bf16 %v837, %v821
        %v1062 = vpack.c.bf16 %v838, %v822
        %v1063 = vpack.c.bf16 %v855, %v839
        %v1064 = vpack.c.bf16 %v856, %v840
        %v1065 = vpack.c.bf16 %v857, %v841
        %v1066 = vpack.c.bf16 %v858, %v842
        %v1067 = vpack.c.bf16 %v859, %v843
        %v1068 = vpack.c.bf16 %v860, %v844
        %v1069 = vpack.c.bf16 %v861, %v845
        %v1070 = vpack.c.bf16 %v862, %v846
        %v1071 = vpack.c.bf16 %v863, %v847
        %v1072 = vpack.c.bf16 %v864, %v848
        %v1073 = vpack.c.bf16 %v865, %v849
        %v1074 = vpack.c.bf16 %v866, %v850
        %v1075 = vpack.c.bf16 %v867, %v851
        %v1076 = vpack.c.bf16 %v868, %v852
        %v1077 = vpack.c.bf16 %v869, %v853
        %v1078 = vpack.c.bf16 %v870, %v854
        %v1079 = vpack.c.bf16 %v887, %v871
        %v1080 = vpack.c.bf16 %v888, %v872
        %v1081 = vpack.c.bf16 %v889, %v873
        %v1082 = vpack.c.bf16 %v890, %v874
        %v1083 = vpack.c.bf16 %v891, %v875
        %v1084 = vpack.c.bf16 %v892, %v876
        %v1085 = vpack.c.bf16 %v893, %v877
        %v1086 = vpack.c.bf16 %v894, %v878
        %v1087 = vpack.c.bf16 %v895, %v879
        %v1088 = vpack.c.bf16 %v896, %v880
        %v1089 = vpack.c.bf16 %v897, %v881
        %v1090 = vpack.c.bf16 %v898, %v882
        %v1091 = vpack.c.bf16 %v899, %v883
        %v1092 = vpack.c.bf16 %v900, %v884
        %v1093 = vpack.c.bf16 %v901, %v885
        %v1094 = vpack.c.bf16 %v902, %v886
        %v1095 = vpack.c.bf16 %v919, %v903
        %v1096 = vpack.c.bf16 %v920, %v904
        %v1097 = vpack.c.bf16 %v921, %v905
        %v1098 = vpack.c.bf16 %v922, %v906
        %v1099 = vpack.c.bf16 %v923, %v907
        %v1100 = vpack.c.bf16 %v924, %v908
        %v1101 = vpack.c.bf16 %v925, %v909
        %v1102 = vpack.c.bf16 %v926, %v910
        %v1103 = vpack.c.bf16 %v927, %v911
        %v1104 = vpack.c.bf16 %v928, %v912
        %v1105 = vpack.c.bf16 %v929, %v913
        %v1106 = vpack.c.bf16 %v930, %v914
        %v1107 = vpack.c.bf16 %v931, %v915
        %v1108 = vpack.c.bf16 %v932, %v916
        %v1109 = vpack.c.bf16 %v933, %v917
        %v1110 = vpack.c.bf16 %v934, %v918
        %v1111 = vpack.c.bf16 %v951, %v935
        %v1112 = vpack.c.bf16 %v952, %v936
        %v1113 = vpack.c.bf16 %v953, %v937
        %v1114 = vpack.c.bf16 %v954, %v938
        %v1115 = vpack.c.bf16 %v955, %v939
        %v1116 = vpack.c.bf16 %v956, %v940
        %v1117 = vpack.c.bf16 %v957, %v941
        %v1118 = vpack.c.bf16 %v958, %v942
        %v1119 = vpack.c.bf16 %v959, %v943
        %v1120 = vpack.c.bf16 %v960, %v944
        %v1121 = vpack.c.bf16 %v961, %v945
        %v1122 = vpack.c.bf16 %v962, %v946
        %v1123 = vpack.c.bf16 %v963, %v947
        %v1124 = vpack.c.bf16 %v964, %v948
        %v1125 = vpack.c.bf16 %v965, %v949
        %v1126 = vpack.c.bf16 %v966, %v950
        %v1127 = vpack.c.bf16 %v983, %v967
        %v1128 = vpack.c.bf16 %v984, %v968
        %v1129 = vpack.c.bf16 %v985, %v969
        %v1130 = vpack.c.bf16 %v986, %v970
        %v1131 = vpack.c.bf16 %v987, %v971
        %v1132 = vpack.c.bf16 %v988, %v972
        %v1133 = vpack.c.bf16 %v989, %v973
        %v1134 = vpack.c.bf16 %v990, %v974
        %v1135 = vpack.c.bf16 %v991, %v975
        %v1136 = vpack.c.bf16 %v992, %v976
        %v1137 = vpack.c.bf16 %v993, %v977
        %v1138 = vpack.c.bf16 %v994, %v978
        %v1139 = vpack.c.bf16 %v995, %v979
        %v1140 = vpack.c.bf16 %v996, %v980
        %v1141 = vpack.c.bf16 %v997, %v981
        %v1142 = vpack.c.bf16 %v998, %v982
        %v1143 = vpack.c.bf16 %v1015, %v999
        %v1144 = vpack.c.bf16 %v1016, %v1000
        %v1145 = vpack.c.bf16 %v1017, %v1001
        %v1146 = vpack.c.bf16 %v1018, %v1002
        %v1147 = vpack.c.bf16 %v1019, %v1003
        %v1148 = vpack.c.bf16 %v1020, %v1004
        %v1149 = vpack.c.bf16 %v1021, %v1005
        %v1150 = vpack.c.bf16 %v1022, %v1006
        %v1151 = vpack.c.bf16 %v1023, %v1007
        %v1152 = vpack.c.bf16 %v1024, %v1008
        %v1153 = vpack.c.bf16 %v1025, %v1009
        %v1154 = vpack.c.bf16 %v1026, %v1010
        %v1155 = vpack.c.bf16 %v1027, %v1011
        %v1156 = vpack.c.bf16 %v1028, %v1012
        %v1157 = vpack.c.bf16 %v1029, %v1013
        %v1158 = vpack.c.bf16 %v1030, %v1014
        %v1159 = vld [vmem:[%s1] sm:$0xf]
        %v1160 = vld [vmem:[%s1 + $0x4] sm:$0xf]
        %v1161 = vld [vmem:[%s1 + $0x8] sm:$0xf]
        %v1162 = vld [vmem:[%s1 + $0xc] sm:$0xf]
        %v1163 = vld [vmem:[%s1 + $0x10] sm:$0xf]
        %v1164 = vld [vmem:[%s1 + $0x14] sm:$0xf]
        %v1165 = vld [vmem:[%s1 + $0x18] sm:$0xf]
        %v1166 = vld [vmem:[%s1 + $0x1c] sm:$0xf]
        %v1167 = vld [vmem:[%s1 + $0x20] sm:$0xf]
        %v1168 = vld [vmem:[%s1 + $0x24] sm:$0xf]
        %v1169 = vld [vmem:[%s1 + $0x28] sm:$0xf]
        %v1170 = vld [vmem:[%s1 + $0x2c] sm:$0xf]
        %v1171 = vld [vmem:[%s1 + $0x30] sm:$0xf]
        %v1172 = vld [vmem:[%s1 + $0x34] sm:$0xf]
        %v1173 = vld [vmem:[%s1 + $0x38] sm:$0xf]
        %v1174 = vld [vmem:[%s1 + $0x3c] sm:$0xf]
        %v1175 = vld [vmem:[%s1 + $0x40] sm:$0xf]
        %v1176 = vld [vmem:[%s1 + $0x44] sm:$0xf]
        %v1177 = vld [vmem:[%s1 + $0x48] sm:$0xf]
        %v1197 = vunpack.c.l.b16 %v1159
        %v1198 = vunpack.c.l.b16 %v1160
        %v1199 = vunpack.c.l.b16 %v1161
        %v1200 = vunpack.c.l.b16 %v1162
        %v1201 = vunpack.c.l.b16 %v1163
        %v1202 = vunpack.c.l.b16 %v1164
        %v1203 = vunpack.c.l.b16 %v1165
        %v1204 = vunpack.c.l.b16 %v1166
        %v1205 = vunpack.c.l.b16 %v1167
        %v1206 = vunpack.c.l.b16 %v1168
        %v1207 = vunpack.c.l.b16 %v1169
        %v1208 = vunpack.c.l.b16 %v1170
        %v1209 = vunpack.c.l.b16 %v1171
        %v1210 = vunpack.c.l.b16 %v1172
        %v1211 = vunpack.c.l.b16 %v1173
        %v1212 = vunpack.c.l.b16 %v1174
        %v1213 = vunpack.c.l.b16 %v1175
        %v1214 = vunpack.c.l.b16 %v1176
        %v1215 = vunpack.c.l.b16 %v1177
        %v1216 = vpack.c.b16 %v1198, %v1197
        %v1217 = vpack.c.b16 %v1200, %v1199
        %v1218 = vpack.c.b16 %v1202, %v1201
        %v1219 = vpack.c.b16 %v1204, %v1203
        %v1220 = vpack.c.b16 %v1206, %v1205
        %v1221 = vpack.c.b16 %v1208, %v1207
        %v1222 = vpack.c.b16 %v1210, %v1209
        %v1223 = vpack.c.b16 %v1212, %v1211
        %v1224 = vpack.c.b16 %v1214, %v1213
        %v1225 = vpack.c.b16 %v1215, %v1215
        %1236 = vmatprep.subr.bf16.mxu0 %v1032
        %1237 = vmatpush1.bf16.msra.mxu0 %v1031
        %1238 = vmatprep.subr.bf16.mxu0 %v1048
        %1239 = vmatpush1.bf16.msra.mxu0 %v1047
        %1240 = vmatprep.subr.bf16.mxu0 %v1064
        %1241 = vmatpush1.bf16.msra.mxu0 %v1063
        %1242 = vmatprep.subr.bf16.mxu0 %v1080
        %1243 = vmatpush1.bf16.msra.mxu0 %v1079
        %1244 = vmatprep.subr.bf16.mxu0 %v1096
        %1245 = vmatpush1.bf16.msra.mxu0 %v1095
        %1246 = vmatprep.subr.bf16.mxu0 %v1112
        %1247 = vmatpush1.bf16.msra.mxu0 %v1111
        %1248 = vmatprep.subr.bf16.mxu0 %v1128
        %1249 = vmatpush1.bf16.msra.mxu0 %v1127
        %1250 = vmatprep.subr.bf16.mxu0 %v1144
        %1251 = vmatpush1.bf16.msra.mxu0 %v1143
        %1252 = vmatprep.subr.bf16.mxu0 0
        %1253 = vmatpush1.bf16.msra.mxu0 0
        %1254 = vmatprep.subr.bf16.mxu0 0
        %1255 = vmatpush1.bf16.msra.mxu0 0
        %1256 = vmatprep.subr.bf16.mxu0 0
        %1257 = vmatpush1.bf16.msra.mxu0 0
        %1258 = vmatprep.subr.bf16.mxu0 0
        %1259 = vmatpush1.bf16.msra.mxu0 0
        %1260 = vmatprep.subr.bf16.mxu0 0
        %1261 = vmatpush1.bf16.msra.mxu0 0
        %1262 = vmatprep.subr.bf16.mxu0 0
        %1263 = vmatpush1.bf16.msra.mxu0 0
        %1264 = vmatprep.subr.bf16.mxu0 0
        %1265 = vmatpush1.bf16.msra.mxu0 0
        %1266 = vmatprep.subr.bf16.mxu0 0
        %1267 = vmatpush1.bf16.msra.mxu0 0
        %1268 = vmatprep.mubr.bf16.mxu0 0
        %1269 = vmatmul.mubr.bf16.gmra.mrb[0].mxu0 %v1216
        %v1270 = vpop.f32.mrb[0].mxu0
        %v1271 = vadd.f32 0.0, %v1270
        %v1272 = vpop.f32.mrb[0].mxu0
        %v1273 = vadd.f32 0.0, %v1272
        %v1274 = vpop.f32.mrb[0].mxu0
        %v1275 = vadd.f32 0.0, %v1274
        %v1276 = vpop.f32.mrb[0].mxu0
        %v1277 = vadd.f32 0.0, %v1276
        %1278 = vmatprep.mubr.bf16.mxu0 0
        %1279 = vmatmul.mubr.bf16.gmra.mrb[0].mxu0 %v1217
        %v1280 = vpop.f32.mrb[0].mxu0
        %v1281 = vadd.f32 0.0, %v1280
        %v1282 = vpop.f32.mrb[0].mxu0
        %v1283 = vadd.f32 0.0, %v1282
        %v1284 = vpop.f32.mrb[0].mxu0
        %v1285 = vadd.f32 0.0, %v1284
        %v1286 = vpop.f32.mrb[0].mxu0
        %v1287 = vadd.f32 0.0, %v1286
        %1288 = vmatprep.mubr.bf16.mxu0 0
        %1289 = vmatmul.mubr.bf16.gmra.mrb[0].mxu0 %v1218
        %v1290 = vpop.f32.mrb[0].mxu0
        %v1291 = vadd.f32 0.0, %v1290
        %v1292 = vpop.f32.mrb[0].mxu0
        %v1293 = vadd.f32 0.0, %v1292
        %v1294 = vpop.f32.mrb[0].mxu0
        %v1295 = vadd.f32 0.0, %v1294
        %v1296 = vpop.f32.mrb[0].mxu0
        %v1297 = vadd.f32 0.0, %v1296
        %1298 = vmatprep.mubr.bf16.mxu0 0
        %1299 = vmatmul.mubr.bf16.gmra.mrb[0].mxu0 %v1219
        %v1300 = vpop.f32.mrb[0].mxu0
        %v1301 = vadd.f32 0.0, %v1300
        %v1302 = vpop.f32.mrb[0].mxu0
        %v1303 = vadd.f32 0.0, %v1302
        %v1304 = vpop.f32.mrb[0].mxu0
        %v1305 = vadd.f32 0.0, %v1304
        %v1306 = vpop.f32.mrb[0].mxu0
        %v1307 = vadd.f32 0.0, %v1306
        %1308 = vmatprep.mubr.bf16.mxu0 0
        %1309 = vmatmul.mubr.bf16.gmra.mrb[0].mxu0 %v1220
        %v1310 = vpop.f32.mrb[0].mxu0
        %v1311 = vadd.f32 0.0, %v1310
        %v1312 = vpop.f32.mrb[0].mxu0
        %v1313 = vadd.f32 0.0, %v1312
        %v1314 = vpop.f32.mrb[0].mxu0
        %v1315 = vadd.f32 0.0, %v1314
        %v1316 = vpop.f32.mrb[0].mxu0
        %v1317 = vadd.f32 0.0, %v1316
        %1318 = vmatprep.mubr.bf16.mxu0 0
        %1319 = vmatmul.mubr.bf16.gmra.mrb[0].mxu0 %v1221
        %v1320 = vpop.f32.mrb[0].mxu0
        %v1321 = vadd.f32 0.0, %v1320
        %v1322 = vpop.f32.mrb[0].mxu0
        %v1323 = vadd.f32 0.0, %v1322
        %v1324 = vpop.f32.mrb[0].mxu0
        %v1325 = vadd.f32 0.0, %v1324
        %v1326 = vpop.f32.mrb[0].mxu0
        %v1327 = vadd.f32 0.0, %v1326
        %1328 = vmatprep.mubr.bf16.mxu0 0
        %1329 = vmatmul.mubr.bf16.gmra.mrb[0].mxu0 %v1222
        %v1330 = vpop.f32.mrb[0].mxu0
        %v1331 = vadd.f32 0.0, %v1330
        %v1332 = vpop.f32.mrb[0].mxu0
        %v1333 = vadd.f32 0.0, %v1332
        %v1334 = vpop.f32.mrb[0].mxu0
        %v1335 = vadd.f32 0.0, %v1334
        %v1336 = vpop.f32.mrb[0].mxu0
        %v1337 = vadd.f32 0.0, %v1336
        %1338 = vmatprep.mubr.bf16.mxu0 0
        %1339 = vmatmul.mubr.bf16.gmra.mrb[0].mxu0 %v1223
        %v1340 = vpop.f32.mrb[0].mxu0
        %v1341 = vadd.f32 0.0, %v1340
        %v1342 = vpop.f32.mrb[0].mxu0
        %v1343 = vadd.f32 0.0, %v1342
        %v1344 = vpop.f32.mrb[0].mxu0
        %v1345 = vadd.f32 0.0, %v1344
        %v1346 = vpop.f32.mrb[0].mxu0
        %v1347 = vadd.f32 0.0, %v1346
        %1348 = vmatprep.mubr.bf16.mxu0 0
        %1349 = vmatmul.mubr.bf16.gmra.mrb[0].mxu0 %v1224
        %v1350 = vpop.f32.mrb[0].mxu0
        %v1351 = vadd.f32 0.0, %v1350
        %v1352 = vpop.f32.mrb[0].mxu0
        %v1353 = vadd.f32 0.0, %v1352
        %v1354 = vpop.f32.mrb[0].mxu0
        %v1355 = vadd.f32 0.0, %v1354
        %v1356 = vpop.f32.mrb[0].mxu0
        %v1357 = vadd.f32 0.0, %v1356
        %1358 = vmatprep.mubr.bf16.mxu0 0
        %1359 = vmatmul.mubr.bf16.gmra.mrb[0].mxu0 %v1225
        %v1360 = vpop.f32.mrb[0].mxu0
        %v1361 = vadd.f32 0.0, %v1360
        %v1362 = vpop.f32.mrb[0].mxu0
        %v1363 = vadd.f32 0.0, %v1362
        %v1364 = vpop.f32.mrb[0].mxu0
        %v1365 = vpop.f32.mrb[0].mxu0
        %1366 = vdwg.mxu0
        %1367 = vmatprep.subr.bf16.mxu0 %v1034
        %1368 = vmatpush1.bf16.msra.mxu0 %v1033
        %1369 = vmatprep.subr.bf16.mxu0 %v1050
        %1370 = vmatpush1.bf16.msra.mxu0 %v1049
        %1371 = vmatprep.subr.bf16.mxu0 %v1066
        %1372 = vmatpush1.bf16.msra.mxu0 %v1065
        %1373 = vmatprep.subr.bf16.mxu0 %v1082
        %1374 = vmatpush1.bf16.msra.mxu0 %v1081
        %1375 = vmatprep.subr.bf16.mxu0 %v1098
        %1376 = vmatpush1.bf16.msra.mxu0 %v1097
        %1377 = vmatprep.subr.bf16.mxu0 %v1114
        %1378 = vmatpush1.bf16.msra.mxu0 %v1113
        %1379 = vmatprep.subr.bf16.mxu0 %v1130
        %1380 = vmatpush1.bf16.msra.mxu0 %v1129
        %1381 = vmatprep.subr.bf16.mxu0 %v1146
        %1382 = vmatpush1.bf16.msra.mxu0 %v1145
        %1383 = vmatprep.subr.bf16.mxu0 0
        %1384 = vmatpush1.bf16.msra.mxu0 0
        %1385 = vmatprep.subr.bf16.mxu0 0
        %1386 = vmatpush1.bf16.msra.mxu0 0
        %1387 = vmatprep.subr.bf16.mxu0 0
        %1388 = vmatpush1.bf16.msra.mxu0 0
        %1389 = vmatprep.subr.bf16.mxu0 0
        %1390 = vmatpush1.bf16.msra.mxu0 0
        %1391 = vmatprep.subr.bf16.mxu0 0
        %1392 = vmatpush1.bf16.msra.mxu0 0
        %1393 = vmatprep.subr.bf16.mxu0 0
        %1394 = vmatpush1.bf16.msra.mxu0 0
        %1395 = vmatprep.subr.bf16.mxu0 0
        %1396 = vmatpush1.bf16.msra.mxu0 0
        %1397 = vmatprep.subr.bf16.mxu0 0
        %1398 = vmatpush1.bf16.msra.mxu0 0
        %1399 = vmatprep.mubr.bf16.mxu0 0
        %1400 = vmatmul.mubr.bf16.gmra.mrb[0].mxu0 %v1216
        %v1401 = vpop.f32.mrb[0].mxu0
        %v1402 = vadd.f32 0.0, %v1401
        %v1403 = vpop.f32.mrb[0].mxu0
        %v1404 = vadd.f32 0.0, %v1403
        %v1405 = vpop.f32.mrb[0].mxu0
        %v1406 = vadd.f32 0.0, %v1405
        %v1407 = vpop.f32.mrb[0].mxu0
        %v1408 = vadd.f32 0.0, %v1407
        %1409 = vmatprep.mubr.bf16.mxu0 0
        %1410 = vmatmul.mubr.bf16.gmra.mrb[0].mxu0 %v1217
        %v1411 = vpop.f32.mrb[0].mxu0
        %v1412 = vadd.f32 0.0, %v1411
        %v1413 = vpop.f32.mrb[0].mxu0
        %v1414 = vadd.f32 0.0, %v1413
        %v1415 = vpop.f32.mrb[0].mxu0
        %v1416 = vadd.f32 0.0, %v1415
        %v1417 = vpop.f32.mrb[0].mxu0
        %v1418 = vadd.f32 0.0, %v1417
        %1419 = vmatprep.mubr.bf16.mxu0 0
        %1420 = vmatmul.mubr.bf16.gmra.mrb[0].mxu0 %v1218
        %v1421 = vpop.f32.mrb[0].mxu0
        %v1422 = vadd.f32 0.0, %v1421
        %v1423 = vpop.f32.mrb[0].mxu0
        %v1424 = vadd.f32 0.0, %v1423
        %v1425 = vpop.f32.mrb[0].mxu0
        %v1426 = vadd.f32 0.0, %v1425
        %v1427 = vpop.f32.mrb[0].mxu0
        %v1428 = vadd.f32 0.0, %v1427
        %1429 = vmatprep.mubr.bf16.mxu0 0
        %1430 = vmatmul.mubr.bf16.gmra.mrb[0].mxu0 %v1219
        %v1431 = vpop.f32.mrb[0].mxu0
        %v1432 = vadd.f32 0.0, %v1431
        %v1433 = vpop.f32.mrb[0].mxu0
        %v1434 = vadd.f32 0.0, %v1433
        %v1435 = vpop.f32.mrb[0].mxu0
        %v1436 = vadd.f32 0.0, %v1435
        %v1437 = vpop.f32.mrb[0].mxu0
        %v1438 = vadd.f32 0.0, %v1437
        %1439 = vmatprep.mubr.bf16.mxu0 0
        %1440 = vmatmul.mubr.bf16.gmra.mrb[0].mxu0 %v1220
        %v1441 = vpop.f32.mrb[0].mxu0
        %v1442 = vadd.f32 0.0, %v1441
        %v1443 = vpop.f32.mrb[0].mxu0
        %v1444 = vadd.f32 0.0, %v1443
        %v1445 = vpop.f32.mrb[0].mxu0
        %v1446 = vadd.f32 0.0, %v1445
        %v1447 = vpop.f32.mrb[0].mxu0
        %v1448 = vadd.f32 0.0, %v1447
        %1449 = vmatprep.mubr.bf16.mxu0 0
        %1450 = vmatmul.mubr.bf16.gmra.mrb[0].mxu0 %v1221
        %v1451 = vpop.f32.mrb[0].mxu0
        %v1452 = vadd.f32 0.0, %v1451
        %v1453 = vpop.f32.mrb[0].mxu0
        %v1454 = vadd.f32 0.0, %v1453
        %v1455 = vpop.f32.mrb[0].mxu0
        %v1456 = vadd.f32 0.0, %v1455
        %v1457 = vpop.f32.mrb[0].mxu0
        %v1458 = vadd.f32 0.0, %v1457
        %1459 = vmatprep.mubr.bf16.mxu0 0
        %1460 = vmatmul.mubr.bf16.gmra.mrb[0].mxu0 %v1222
        %v1461 = vpop.f32.mrb[0].mxu0
        %v1462 = vadd.f32 0.0, %v1461
        %v1463 = vpop.f32.mrb[0].mxu0
        %v1464 = vadd.f32 0.0, %v1463
        %v1465 = vpop.f32.mrb[0].mxu0
        %v1466 = vadd.f32 0.0, %v1465
        %v1467 = vpop.f32.mrb[0].mxu0
        %v1468 = vadd.f32 0.0, %v1467
        %1469 = vmatprep.mubr.bf16.mxu0 0
        %1470 = vmatmul.mubr.bf16.gmra.mrb[0].mxu0 %v1223
        %v1471 = vpop.f32.mrb[0].mxu0
        %v1472 = vadd.f32 0.0, %v1471
        %v1473 = vpop.f32.mrb[0].mxu0
        %v1474 = vadd.f32 0.0, %v1473
        %v1475 = vpop.f32.mrb[0].mxu0
        %v1476 = vadd.f32 0.0, %v1475
        %v1477 = vpop.f32.mrb[0].mxu0
        %v1478 = vadd.f32 0.0, %v1477
        %1479 = vmatprep.mubr.bf16.mxu0 0
        %1480 = vmatmul.mubr.bf16.gmra.mrb[0].mxu0 %v1224
        %v1481 = vpop.f32.mrb[0].mxu0
        %v1482 = vadd.f32 0.0, %v1481
        %v1483 = vpop.f32.mrb[0].mxu0
        %v1484 = vadd.f32 0.0, %v1483
        %v1485 = vpop.f32.mrb[0].mxu0
        %v1486 = vadd.f32 0.0, %v1485
        %v1487 = vpop.f32.mrb[0].mxu0
        %v1488 = vadd.f32 0.0, %v1487
        %1489 = vmatprep.mubr.bf16.mxu0 0
        %1490 = vmatmul.mubr.bf16.gmra.mrb[0].mxu0 %v1225
        %v1491 = vpop.f32.mrb[0].mxu0
        %v1492 = vadd.f32 0.0, %v1491
        %v1493 = vpop.f32.mrb[0].mxu0
        %v1494 = vadd.f32 0.0, %v1493
        %v1495 = vpop.f32.mrb[0].mxu0
        %v1496 = vpop.f32.mrb[0].mxu0
        %1497 = vdwg.mxu0
        %1498 = vmatprep.subr.bf16.mxu0 %v1036
        %1499 = vmatpush1.bf16.msra.mxu0 %v1035
        %1500 = vmatprep.subr.bf16.mxu0 %v1052
        %1501 = vmatpush1.bf16.msra.mxu0 %v1051
        %1502 = vmatprep.subr.bf16.mxu0 %v1068
        %1503 = vmatpush1.bf16.msra.mxu0 %v1067
        %1504 = vmatprep.subr.bf16.mxu0 %v1084
        %1505 = vmatpush1.bf16.msra.mxu0 %v1083
        %1506 = vmatprep.subr.bf16.mxu0 %v1100
        %1507 = vmatpush1.bf16.msra.mxu0 %v1099
        %1508 = vmatprep.subr.bf16.mxu0 %v1116
        %1509 = vmatpush1.bf16.msra.mxu0 %v1115
        %1510 = vmatprep.subr.bf16.mxu0 %v1132
        %1511 = vmatpush1.bf16.msra.mxu0 %v1131
        %1512 = vmatprep.subr.bf16.mxu0 %v1148
        %1513 = vmatpush1.bf16.msra.mxu0 %v1147
        %1514 = vmatprep.subr.bf16.mxu0 0
        %1515 = vmatpush1.bf16.msra.mxu0 0
        %1516 = vmatprep.subr.bf16.mxu0 0
        %1517 = vmatpush1.bf16.msra.mxu0 0
        %1518 = vmatprep.subr.bf16.mxu0 0
        %1519 = vmatpush1.bf16.msra.mxu0 0
        %1520 = vmatprep.subr.bf16.mxu0 0
        %1521 = vmatpush1.bf16.msra.mxu0 0
        %1522 = vmatprep.subr.bf16.mxu0 0
        %1523 = vmatpush1.bf16.msra.mxu0 0
        %1524 = vmatprep.subr.bf16.mxu0 0
        %1525 = vmatpush1.bf16.msra.mxu0 0
        %1526 = vmatprep.subr.bf16.mxu0 0
        %1527 = vmatpush1.bf16.msra.mxu0 0
        %1528 = vmatprep.subr.bf16.mxu0 0
        %1529 = vmatpush1.bf16.msra.mxu0 0
        %1530 = vmatprep.mubr.bf16.mxu0 0
        %1531 = vmatmul.mubr.bf16.gmra.mrb[0].mxu0 %v1216
        %v1532 = vpop.f32.mrb[0].mxu0
        %v1533 = vadd.f32 0.0, %v1532
        %v1534 = vpop.f32.mrb[0].mxu0
        %v1535 = vadd.f32 0.0, %v1534
        %v1536 = vpop.f32.mrb[0].mxu0
        %v1537 = vadd.f32 0.0, %v1536
        %v1538 = vpop.f32.mrb[0].mxu0
        %v1539 = vadd.f32 0.0, %v1538
        %1540 = vmatprep.mubr.bf16.mxu0 0
        %1541 = vmatmul.mubr.bf16.gmra.mrb[0].mxu0 %v1217
        %v1542 = vpop.f32.mrb[0].mxu0
        %v1543 = vadd.f32 0.0, %v1542
        %v1544 = vpop.f32.mrb[0].mxu0
        %v1545 = vadd.f32 0.0, %v1544
        %v1546 = vpop.f32.mrb[0].mxu0
        %v1547 = vadd.f32 0.0, %v1546
        %v1548 = vpop.f32.mrb[0].mxu0
        %v1549 = vadd.f32 0.0, %v1548
        %1550 = vmatprep.mubr.bf16.mxu0 0
        %1551 = vmatmul.mubr.bf16.gmra.mrb[0].mxu0 %v1218
        %v1552 = vpop.f32.mrb[0].mxu0
        %v1553 = vadd.f32 0.0, %v1552
        %v1554 = vpop.f32.mrb[0].mxu0
        %v1555 = vadd.f32 0.0, %v1554
        %v1556 = vpop.f32.mrb[0].mxu0
        %v1557 = vadd.f32 0.0, %v1556
        %v1558 = vpop.f32.mrb[0].mxu0
        %v1559 = vadd.f32 0.0, %v1558
        %1560 = vmatprep.mubr.bf16.mxu0 0
        %1561 = vmatmul.mubr.bf16.gmra.mrb[0].mxu0 %v1219
        %v1562 = vpop.f32.mrb[0].mxu0
        %v1563 = vadd.f32 0.0, %v1562
        %v1564 = vpop.f32.mrb[0].mxu0
        %v1565 = vadd.f32 0.0, %v1564
        %v1566 = vpop.f32.mrb[0].mxu0
        %v1567 = vadd.f32 0.0, %v1566
        %v1568 = vpop.f32.mrb[0].mxu0
        %v1569 = vadd.f32 0.0, %v1568
        %1570 = vmatprep.mubr.bf16.mxu0 0
        %1571 = vmatmul.mubr.bf16.gmra.mrb[0].mxu0 %v1220
        %v1572 = vpop.f32.mrb[0].mxu0
        %v1573 = vadd.f32 0.0, %v1572
        %v1574 = vpop.f32.mrb[0].mxu0
        %v1575 = vadd.f32 0.0, %v1574
        %v1576 = vpop.f32.mrb[0].mxu0
        %v1577 = vadd.f32 0.0, %v1576
        %v1578 = vpop.f32.mrb[0].mxu0
        %v1579 = vadd.f32 0.0, %v1578
        %1580 = vmatprep.mubr.bf16.mxu0 0
        %1581 = vmatmul.mubr.bf16.gmra.mrb[0].mxu0 %v1221
        %v1582 = vpop.f32.mrb[0].mxu0
        %v1583 = vadd.f32 0.0, %v1582
        %v1584 = vpop.f32.mrb[0].mxu0
        %v1585 = vadd.f32 0.0, %v1584
        %v1586 = vpop.f32.mrb[0].mxu0
        %v1587 = vadd.f32 0.0, %v1586
        %v1588 = vpop.f32.mrb[0].mxu0
        %v1589 = vadd.f32 0.0, %v1588
        %1590 = vmatprep.mubr.bf16.mxu0 0
        %1591 = vmatmul.mubr.bf16.gmra.mrb[0].mxu0 %v1222
        %v1592 = vpop.f32.mrb[0].mxu0
        %v1593 = vadd.f32 0.0, %v1592
        %v1594 = vpop.f32.mrb[0].mxu0
        %v1595 = vadd.f32 0.0, %v1594
        %v1596 = vpop.f32.mrb[0].mxu0
        %v1597 = vadd.f32 0.0, %v1596
        %v1598 = vpop.f32.mrb[0].mxu0
        %v1599 = vadd.f32 0.0, %v1598
        %1600 = vmatprep.mubr.bf16.mxu0 0
        %1601 = vmatmul.mubr.bf16.gmra.mrb[0].mxu0 %v1223
        %v1602 = vpop.f32.mrb[0].mxu0
        %v1603 = vadd.f32 0.0, %v1602
        %v1604 = vpop.f32.mrb[0].mxu0
        %v1605 = vadd.f32 0.0, %v1604
        %v1606 = vpop.f32.mrb[0].mxu0
        %v1607 = vadd.f32 0.0, %v1606
        %v1608 = vpop.f32.mrb[0].mxu0
        %v1609 = vadd.f32 0.0, %v1608
        %1610 = vmatprep.mubr.bf16.mxu0 0
        %1611 = vmatmul.mubr.bf16.gmra.mrb[0].mxu0 %v1224
        %v1612 = vpop.f32.mrb[0].mxu0
        %v1613 = vadd.f32 0.0, %v1612
        %v1614 = vpop.f32.mrb[0].mxu0
        %v1615 = vadd.f32 0.0, %v1614
        %v1616 = vpop.f32.mrb[0].mxu0
        %v1617 = vadd.f32 0.0, %v1616
        %v1618 = vpop.f32.mrb[0].mxu0
        %v1619 = vadd.f32 0.0, %v1618
        %1620 = vmatprep.mubr.bf16.mxu0 0
        %1621 = vmatmul.mubr.bf16.gmra.mrb[0].mxu0 %v1225
        %v1622 = vpop.f32.mrb[0].mxu0
        %v1623 = vadd.f32 0.0, %v1622
        %v1624 = vpop.f32.mrb[0].mxu0
        %v1625 = vadd.f32 0.0, %v1624
        %v1626 = vpop.f32.mrb[0].mxu0
        %v1627 = vpop.f32.mrb[0].mxu0
        %1628 = vdwg.mxu0
        %1629 = vmatprep.subr.bf16.mxu0 %v1038
        %1630 = vmatpush1.bf16.msra.mxu0 %v1037
        %1631 = vmatprep.subr.bf16.mxu0 %v1054
        %1632 = vmatpush1.bf16.msra.mxu0 %v1053
        %1633 = vmatprep.subr.bf16.mxu0 %v1070
        %1634 = vmatpush1.bf16.msra.mxu0 %v1069
        %1635 = vmatprep.subr.bf16.mxu0 %v1086
        %1636 = vmatpush1.bf16.msra.mxu0 %v1085
        %1637 = vmatprep.subr.bf16.mxu0 %v1102
        %1638 = vmatpush1.bf16.msra.mxu0 %v1101
        %1639 = vmatprep.subr.bf16.mxu0 %v1118
        %1640 = vmatpush1.bf16.msra.mxu0 %v1117
        %1641 = vmatprep.subr.bf16.mxu0 %v1134
        %1642 = vmatpush1.bf16.msra.mxu0 %v1133
        %1643 = vmatprep.subr.bf16.mxu0 %v1150
        %1644 = vmatpush1.bf16.msra.mxu0 %v1149
        %1645 = vmatprep.subr.bf16.mxu0 0
        %1646 = vmatpush1.bf16.msra.mxu0 0
        %1647 = vmatprep.subr.bf16.mxu0 0
        %1648 = vmatpush1.bf16.msra.mxu0 0
        %1649 = vmatprep.subr.bf16.mxu0 0
        %1650 = vmatpush1.bf16.msra.mxu0 0
        %1651 = vmatprep.subr.bf16.mxu0 0
        %1652 = vmatpush1.bf16.msra.mxu0 0
        %1653 = vmatprep.subr.bf16.mxu0 0
        %1654 = vmatpush1.bf16.msra.mxu0 0
        %1655 = vmatprep.subr.bf16.mxu0 0
        %1656 = vmatpush1.bf16.msra.mxu0 0
        %1657 = vmatprep.subr.bf16.mxu0 0
        %1658 = vmatpush1.bf16.msra.mxu0 0
        %1659 = vmatprep.subr.bf16.mxu0 0
        %1660 = vmatpush1.bf16.msra.mxu0 0
        %1661 = vmatprep.mubr.bf16.mxu0 0
        %1662 = vmatmul.mubr.bf16.gmra.mrb[0].mxu0 %v1216
        %v1663 = vpop.f32.mrb[0].mxu0
        %v1664 = vadd.f32 0.0, %v1663
        %v1665 = vpop.f32.mrb[0].mxu0
        %v1666 = vadd.f32 0.0, %v1665
        %v1667 = vpop.f32.mrb[0].mxu0
        %v1668 = vadd.f32 0.0, %v1667
        %v1669 = vpop.f32.mrb[0].mxu0
        %v1670 = vadd.f32 0.0, %v1669
        %1671 = vmatprep.mubr.bf16.mxu0 0
        %1672 = vmatmul.mubr.bf16.gmra.mrb[0].mxu0 %v1217
        %v1673 = vpop.f32.mrb[0].mxu0
        %v1674 = vadd.f32 0.0, %v1673
        %v1675 = vpop.f32.mrb[0].mxu0
        %v1676 = vadd.f32 0.0, %v1675
        %v1677 = vpop.f32.mrb[0].mxu0
        %v1678 = vadd.f32 0.0, %v1677
        %v1679 = vpop.f32.mrb[0].mxu0
        %v1680 = vadd.f32 0.0, %v1679
        %1681 = vmatprep.mubr.bf16.mxu0 0
        %1682 = vmatmul.mubr.bf16.gmra.mrb[0].mxu0 %v1218
        %v1683 = vpop.f32.mrb[0].mxu0
        %v1684 = vadd.f32 0.0, %v1683
        %v1685 = vpop.f32.mrb[0].mxu0
        %v1686 = vadd.f32 0.0, %v1685
        %v1687 = vpop.f32.mrb[0].mxu0
        %v1688 = vadd.f32 0.0, %v1687
        %v1689 = vpop.f32.mrb[0].mxu0
        %v1690 = vadd.f32 0.0, %v1689
        %1691 = vmatprep.mubr.bf16.mxu0 0
        %1692 = vmatmul.mubr.bf16.gmra.mrb[0].mxu0 %v1219
        %v1693 = vpop.f32.mrb[0].mxu0
        %v1694 = vadd.f32 0.0, %v1693
        %v1695 = vpop.f32.mrb[0].mxu0
        %v1696 = vadd.f32 0.0, %v1695
        %v1697 = vpop.f32.mrb[0].mxu0
        %v1698 = vadd.f32 0.0, %v1697
        %v1699 = vpop.f32.mrb[0].mxu0
        %v1700 = vadd.f32 0.0, %v1699
        %1701 = vmatprep.mubr.bf16.mxu0 0
        %1702 = vmatmul.mubr.bf16.gmra.mrb[0].mxu0 %v1220
        %v1703 = vpop.f32.mrb[0].mxu0
        %v1704 = vadd.f32 0.0, %v1703
        %v1705 = vpop.f32.mrb[0].mxu0
        %v1706 = vadd.f32 0.0, %v1705
        %v1707 = vpop.f32.mrb[0].mxu0
        %v1708 = vadd.f32 0.0, %v1707
        %v1709 = vpop.f32.mrb[0].mxu0
        %v1710 = vadd.f32 0.0, %v1709
        %1711 = vmatprep.mubr.bf16.mxu0 0
        %1712 = vmatmul.mubr.bf16.gmra.mrb[0].mxu0 %v1221
        %v1713 = vpop.f32.mrb[0].mxu0
        %v1714 = vadd.f32 0.0, %v1713
        %v1715 = vpop.f32.mrb[0].mxu0
        %v1716 = vadd.f32 0.0, %v1715
        %v1717 = vpop.f32.mrb[0].mxu0
        %v1718 = vadd.f32 0.0, %v1717
        %v1719 = vpop.f32.mrb[0].mxu0
        %v1720 = vadd.f32 0.0, %v1719
        %1721 = vmatprep.mubr.bf16.mxu0 0
        %1722 = vmatmul.mubr.bf16.gmra.mrb[0].mxu0 %v1222
        %v1723 = vpop.f32.mrb[0].mxu0
        %v1724 = vadd.f32 0.0, %v1723
        %v1725 = vpop.f32.mrb[0].mxu0
        %v1726 = vadd.f32 0.0, %v1725
        %v1727 = vpop.f32.mrb[0].mxu0
        %v1728 = vadd.f32 0.0, %v1727
        %v1729 = vpop.f32.mrb[0].mxu0
        %v1730 = vadd.f32 0.0, %v1729
        %1731 = vmatprep.mubr.bf16.mxu0 0
        %1732 = vmatmul.mubr.bf16.gmra.mrb[0].mxu0 %v1223
        %v1733 = vpop.f32.mrb[0].mxu0
        %v1734 = vadd.f32 0.0, %v1733
        %v1735 = vpop.f32.mrb[0].mxu0
        %v1736 = vadd.f32 0.0, %v1735
        %v1737 = vpop.f32.mrb[0].mxu0
        %v1738 = vadd.f32 0.0, %v1737
        %v1739 = vpop.f32.mrb[0].mxu0
        %v1740 = vadd.f32 0.0, %v1739
        %1741 = vmatprep.mubr.bf16.mxu0 0
        %1742 = vmatmul.mubr.bf16.gmra.mrb[0].mxu0 %v1224
        %v1743 = vpop.f32.mrb[0].mxu0
        %v1744 = vadd.f32 0.0, %v1743
        %v1745 = vpop.f32.mrb[0].mxu0
        %v1746 = vadd.f32 0.0, %v1745
        %v1747 = vpop.f32.mrb[0].mxu0
        %v1748 = vadd.f32 0.0, %v1747
        %v1749 = vpop.f32.mrb[0].mxu0
        %v1750 = vadd.f32 0.0, %v1749
        %1751 = vmatprep.mubr.bf16.mxu0 0
        %1752 = vmatmul.mubr.bf16.gmra.mrb[0].mxu0 %v1225
        %v1753 = vpop.f32.mrb[0].mxu0
        %v1754 = vadd.f32 0.0, %v1753
        %v1755 = vpop.f32.mrb[0].mxu0
        %v1756 = vadd.f32 0.0, %v1755
        %v1757 = vpop.f32.mrb[0].mxu0
        %v1758 = vpop.f32.mrb[0].mxu0
        %1759 = vdwg.mxu0
        %1760 = vmatprep.subr.bf16.mxu0 %v1040
        %1761 = vmatpush1.bf16.msra.mxu0 %v1039
        %1762 = vmatprep.subr.bf16.mxu0 %v1056
        %1763 = vmatpush1.bf16.msra.mxu0 %v1055
        %1764 = vmatprep.subr.bf16.mxu0 %v1072
        %1765 = vmatpush1.bf16.msra.mxu0 %v1071
        %1766 = vmatprep.subr.bf16.mxu0 %v1088
        %1767 = vmatpush1.bf16.msra.mxu0 %v1087
        %1768 = vmatprep.subr.bf16.mxu0 %v1104
        %1769 = vmatpush1.bf16.msra.mxu0 %v1103
        %1770 = vmatprep.subr.bf16.mxu0 %v1120
        %1771 = vmatpush1.bf16.msra.mxu0 %v1119
        %1772 = vmatprep.subr.bf16.mxu0 %v1136
        %1773 = vmatpush1.bf16.msra.mxu0 %v1135
        %1774 = vmatprep.subr.bf16.mxu0 %v1152
        %1775 = vmatpush1.bf16.msra.mxu0 %v1151
        %1776 = vmatprep.subr.bf16.mxu0 0
        %1777 = vmatpush1.bf16.msra.mxu0 0
        %1778 = vmatprep.subr.bf16.mxu0 0
        %1779 = vmatpush1.bf16.msra.mxu0 0
        %1780 = vmatprep.subr.bf16.mxu0 0
        %1781 = vmatpush1.bf16.msra.mxu0 0
        %1782 = vmatprep.subr.bf16.mxu0 0
        %1783 = vmatpush1.bf16.msra.mxu0 0
        %1784 = vmatprep.subr.bf16.mxu0 0
        %1785 = vmatpush1.bf16.msra.mxu0 0
        %1786 = vmatprep.subr.bf16.mxu0 0
        %1787 = vmatpush1.bf16.msra.mxu0 0
        %1788 = vmatprep.subr.bf16.mxu0 0
        %1789 = vmatpush1.bf16.msra.mxu0 0
        %1790 = vmatprep.subr.bf16.mxu0 0
        %1791 = vmatpush1.bf16.msra.mxu0 0
        %1792 = vmatprep.mubr.bf16.mxu0 0
        %1793 = vmatmul.mubr.bf16.gmra.mrb[0].mxu0 %v1216
        %v1794 = vpop.f32.mrb[0].mxu0
        %v1795 = vadd.f32 0.0, %v1794
        %v1796 = vpop.f32.mrb[0].mxu0
        %v1797 = vadd.f32 0.0, %v1796
        %v1798 = vpop.f32.mrb[0].mxu0
        %v1799 = vadd.f32 0.0, %v1798
        %v1800 = vpop.f32.mrb[0].mxu0
        %v1801 = vadd.f32 0.0, %v1800
        %1802 = vmatprep.mubr.bf16.mxu0 0
        %1803 = vmatmul.mubr.bf16.gmra.mrb[0].mxu0 %v1217
        %v1804 = vpop.f32.mrb[0].mxu0
        %v1805 = vadd.f32 0.0, %v1804
        %v1806 = vpop.f32.mrb[0].mxu0
        %v1807 = vadd.f32 0.0, %v1806
        %v1808 = vpop.f32.mrb[0].mxu0
        %v1809 = vadd.f32 0.0, %v1808
        %v1810 = vpop.f32.mrb[0].mxu0
        %v1811 = vadd.f32 0.0, %v1810
        %1812 = vmatprep.mubr.bf16.mxu0 0
        %1813 = vmatmul.mubr.bf16.gmra.mrb[0].mxu0 %v1218
        %v1814 = vpop.f32.mrb[0].mxu0
        %v1815 = vadd.f32 0.0, %v1814
        %v1816 = vpop.f32.mrb[0].mxu0
        %v1817 = vadd.f32 0.0, %v1816
        %v1818 = vpop.f32.mrb[0].mxu0
        %v1819 = vadd.f32 0.0, %v1818
        %v1820 = vpop.f32.mrb[0].mxu0
        %v1821 = vadd.f32 0.0, %v1820
        %1822 = vmatprep.mubr.bf16.mxu0 0
        %1823 = vmatmul.mubr.bf16.gmra.mrb[0].mxu0 %v1219
        %v1824 = vpop.f32.mrb[0].mxu0
        %v1825 = vadd.f32 0.0, %v1824
        %v1826 = vpop.f32.mrb[0].mxu0
        %v1827 = vadd.f32 0.0, %v1826
        %v1828 = vpop.f32.mrb[0].mxu0
        %v1829 = vadd.f32 0.0, %v1828
        %v1830 = vpop.f32.mrb[0].mxu0
        %v1831 = vadd.f32 0.0, %v1830
        %1832 = vmatprep.mubr.bf16.mxu0 0
        %1833 = vmatmul.mubr.bf16.gmra.mrb[0].mxu0 %v1220
        %v1834 = vpop.f32.mrb[0].mxu0
        %v1835 = vadd.f32 0.0, %v1834
        %v1836 = vpop.f32.mrb[0].mxu0
        %v1837 = vadd.f32 0.0, %v1836
        %v1838 = vpop.f32.mrb[0].mxu0
        %v1839 = vadd.f32 0.0, %v1838
        %v1840 = vpop.f32.mrb[0].mxu0
        %v1841 = vadd.f32 0.0, %v1840
        %1842 = vmatprep.mubr.bf16.mxu0 0
        %1843 = vmatmul.mubr.bf16.gmra.mrb[0].mxu0 %v1221
        %v1844 = vpop.f32.mrb[0].mxu0
        %v1845 = vadd.f32 0.0, %v1844
        %v1846 = vpop.f32.mrb[0].mxu0
        %v1847 = vadd.f32 0.0, %v1846
        %v1848 = vpop.f32.mrb[0].mxu0
        %v1849 = vadd.f32 0.0, %v1848
        %v1850 = vpop.f32.mrb[0].mxu0
        %v1851 = vadd.f32 0.0, %v1850
        %1852 = vmatprep.mubr.bf16.mxu0 0
        %1853 = vmatmul.mubr.bf16.gmra.mrb[0].mxu0 %v1222
        %v1854 = vpop.f32.mrb[0].mxu0
        %v1855 = vadd.f32 0.0, %v1854
        %v1856 = vpop.f32.mrb[0].mxu0
        %v1857 = vadd.f32 0.0, %v1856
        %v1858 = vpop.f32.mrb[0].mxu0
        %v1859 = vadd.f32 0.0, %v1858
        %v1860 = vpop.f32.mrb[0].mxu0
        %v1861 = vadd.f32 0.0, %v1860
        %1862 = vmatprep.mubr.bf16.mxu0 0
        %1863 = vmatmul.mubr.bf16.gmra.mrb[0].mxu0 %v1223
        %v1864 = vpop.f32.mrb[0].mxu0
        %v1865 = vadd.f32 0.0, %v1864
        %v1866 = vpop.f32.mrb[0].mxu0
        %v1867 = vadd.f32 0.0, %v1866
        %v1868 = vpop.f32.mrb[0].mxu0
        %v1869 = vadd.f32 0.0, %v1868
        %v1870 = vpop.f32.mrb[0].mxu0
        %v1871 = vadd.f32 0.0, %v1870
        %1872 = vmatprep.mubr.bf16.mxu0 0
        %1873 = vmatmul.mubr.bf16.gmra.mrb[0].mxu0 %v1224
        %v1874 = vpop.f32.mrb[0].mxu0
        %v1875 = vadd.f32 0.0, %v1874
        %v1876 = vpop.f32.mrb[0].mxu0
        %v1877 = vadd.f32 0.0, %v1876
        %v1878 = vpop.f32.mrb[0].mxu0
        %v1879 = vadd.f32 0.0, %v1878
        %v1880 = vpop.f32.mrb[0].mxu0
        %v1881 = vadd.f32 0.0, %v1880
        %1882 = vmatprep.mubr.bf16.mxu0 0
        %1883 = vmatmul.mubr.bf16.gmra.mrb[0].mxu0 %v1225
        %v1884 = vpop.f32.mrb[0].mxu0
        %v1885 = vadd.f32 0.0, %v1884
        %v1886 = vpop.f32.mrb[0].mxu0
        %v1887 = vadd.f32 0.0, %v1886
        %v1888 = vpop.f32.mrb[0].mxu0
        %v1889 = vpop.f32.mrb[0].mxu0
        %1890 = vdwg.mxu0
        %1891 = vmatprep.subr.bf16.mxu0 %v1042
        %1892 = vmatpush1.bf16.msra.mxu0 %v1041
        %1893 = vmatprep.subr.bf16.mxu0 %v1058
        %1894 = vmatpush1.bf16.msra.mxu0 %v1057
        %1895 = vmatprep.subr.bf16.mxu0 %v1074
        %1896 = vmatpush1.bf16.msra.mxu0 %v1073
        %1897 = vmatprep.subr.bf16.mxu0 %v1090
        %1898 = vmatpush1.bf16.msra.mxu0 %v1089
        %1899 = vmatprep.subr.bf16.mxu0 %v1106
        %1900 = vmatpush1.bf16.msra.mxu0 %v1105
        %1901 = vmatprep.subr.bf16.mxu0 %v1122
        %1902 = vmatpush1.bf16.msra.mxu0 %v1121
        %1903 = vmatprep.subr.bf16.mxu0 %v1138
        %1904 = vmatpush1.bf16.msra.mxu0 %v1137
        %1905 = vmatprep.subr.bf16.mxu0 %v1154
        %1906 = vmatpush1.bf16.msra.mxu0 %v1153
        %1907 = vmatprep.subr.bf16.mxu0 0
        %1908 = vmatpush1.bf16.msra.mxu0 0
        %1909 = vmatprep.subr.bf16.mxu0 0
        %1910 = vmatpush1.bf16.msra.mxu0 0
        %1911 = vmatprep.subr.bf16.mxu0 0
        %1912 = vmatpush1.bf16.msra.mxu0 0
        %1913 = vmatprep.subr.bf16.mxu0 0
        %1914 = vmatpush1.bf16.msra.mxu0 0
        %1915 = vmatprep.subr.bf16.mxu0 0
        %1916 = vmatpush1.bf16.msra.mxu0 0
        %1917 = vmatprep.subr.bf16.mxu0 0
        %1918 = vmatpush1.bf16.msra.mxu0 0
        %1919 = vmatprep.subr.bf16.mxu0 0
        %1920 = vmatpush1.bf16.msra.mxu0 0
        %1921 = vmatprep.subr.bf16.mxu0 0
        %1922 = vmatpush1.bf16.msra.mxu0 0
        %1923 = vmatprep.mubr.bf16.mxu0 0
        %1924 = vmatmul.mubr.bf16.gmra.mrb[0].mxu0 %v1216
        %v1925 = vpop.f32.mrb[0].mxu0
        %v1926 = vadd.f32 0.0, %v1925
        %v1927 = vpop.f32.mrb[0].mxu0
        %v1928 = vadd.f32 0.0, %v1927
        %v1929 = vpop.f32.mrb[0].mxu0
        %v1930 = vadd.f32 0.0, %v1929
        %v1931 = vpop.f32.mrb[0].mxu0
        %v1932 = vadd.f32 0.0, %v1931
        %1933 = vmatprep.mubr.bf16.mxu0 0
        %1934 = vmatmul.mubr.bf16.gmra.mrb[0].mxu0 %v1217
        %v1935 = vpop.f32.mrb[0].mxu0
        %v1936 = vadd.f32 0.0, %v1935
        %v1937 = vpop.f32.mrb[0].mxu0
        %v1938 = vadd.f32 0.0, %v1937
        %v1939 = vpop.f32.mrb[0].mxu0
        %v1940 = vadd.f32 0.0, %v1939
        %v1941 = vpop.f32.mrb[0].mxu0
        %v1942 = vadd.f32 0.0, %v1941
        %1943 = vmatprep.mubr.bf16.mxu0 0
        %1944 = vmatmul.mubr.bf16.gmra.mrb[0].mxu0 %v1218
        %v1945 = vpop.f32.mrb[0].mxu0
        %v1946 = vadd.f32 0.0, %v1945
        %v1947 = vpop.f32.mrb[0].mxu0
        %v1948 = vadd.f32 0.0, %v1947
        %v1949 = vpop.f32.mrb[0].mxu0
        %v1950 = vadd.f32 0.0, %v1949
        %v1951 = vpop.f32.mrb[0].mxu0
        %v1952 = vadd.f32 0.0, %v1951
        %1953 = vmatprep.mubr.bf16.mxu0 0
        %1954 = vmatmul.mubr.bf16.gmra.mrb[0].mxu0 %v1219
        %v1955 = vpop.f32.mrb[0].mxu0
        %v1956 = vadd.f32 0.0, %v1955
        %v1957 = vpop.f32.mrb[0].mxu0
        %v1958 = vadd.f32 0.0, %v1957
        %v1959 = vpop.f32.mrb[0].mxu0
        %v1960 = vadd.f32 0.0, %v1959
        %v1961 = vpop.f32.mrb[0].mxu0
        %v1962 = vadd.f32 0.0, %v1961
        %1963 = vmatprep.mubr.bf16.mxu0 0
        %1964 = vmatmul.mubr.bf16.gmra.mrb[0].mxu0 %v1220
        %v1965 = vpop.f32.mrb[0].mxu0
        %v1966 = vadd.f32 0.0, %v1965
        %v1967 = vpop.f32.mrb[0].mxu0
        %v1968 = vadd.f32 0.0, %v1967
        %v1969 = vpop.f32.mrb[0].mxu0
        %v1970 = vadd.f32 0.0, %v1969
        %v1971 = vpop.f32.mrb[0].mxu0
        %v1972 = vadd.f32 0.0, %v1971
        %1973 = vmatprep.mubr.bf16.mxu0 0
        %1974 = vmatmul.mubr.bf16.gmra.mrb[0].mxu0 %v1221
        %v1975 = vpop.f32.mrb[0].mxu0
        %v1976 = vadd.f32 0.0, %v1975
        %v1977 = vpop.f32.mrb[0].mxu0
        %v1978 = vadd.f32 0.0, %v1977
        %v1979 = vpop.f32.mrb[0].mxu0
        %v1980 = vadd.f32 0.0, %v1979
        %v1981 = vpop.f32.mrb[0].mxu0
        %v1982 = vadd.f32 0.0, %v1981
        %1983 = vmatprep.mubr.bf16.mxu0 0
        %1984 = vmatmul.mubr.bf16.gmra.mrb[0].mxu0 %v1222
        %v1985 = vpop.f32.mrb[0].mxu0
        %v1986 = vadd.f32 0.0, %v1985
        %v1987 = vpop.f32.mrb[0].mxu0
        %v1988 = vadd.f32 0.0, %v1987
        %v1989 = vpop.f32.mrb[0].mxu0
        %v1990 = vadd.f32 0.0, %v1989
        %v1991 = vpop.f32.mrb[0].mxu0
        %v1992 = vadd.f32 0.0, %v1991
        %1993 = vmatprep.mubr.bf16.mxu0 0
        %1994 = vmatmul.mubr.bf16.gmra.mrb[0].mxu0 %v1223
        %v1995 = vpop.f32.mrb[0].mxu0
        %v1996 = vadd.f32 0.0, %v1995
        %v1997 = vpop.f32.mrb[0].mxu0
        %v1998 = vadd.f32 0.0, %v1997
        %v1999 = vpop.f32.mrb[0].mxu0
        %v2000 = vadd.f32 0.0, %v1999
        %v2001 = vpop.f32.mrb[0].mxu0
        %v2002 = vadd.f32 0.0, %v2001
        %2003 = vmatprep.mubr.bf16.mxu0 0
        %2004 = vmatmul.mubr.bf16.gmra.mrb[0].mxu0 %v1224
        %v2005 = vpop.f32.mrb[0].mxu0
        %v2006 = vadd.f32 0.0, %v2005
        %v2007 = vpop.f32.mrb[0].mxu0
        %v2008 = vadd.f32 0.0, %v2007
        %v2009 = vpop.f32.mrb[0].mxu0
        %v2010 = vadd.f32 0.0, %v2009
        %v2011 = vpop.f32.mrb[0].mxu0
        %v2012 = vadd.f32 0.0, %v2011
        %2013 = vmatprep.mubr.bf16.mxu0 0
        %2014 = vmatmul.mubr.bf16.gmra.mrb[0].mxu0 %v1225
        %v2015 = vpop.f32.mrb[0].mxu0
        %v2016 = vadd.f32 0.0, %v2015
        %v2017 = vpop.f32.mrb[0].mxu0
        %v2018 = vadd.f32 0.0, %v2017
        %v2019 = vpop.f32.mrb[0].mxu0
        %v2020 = vpop.f32.mrb[0].mxu0
        %2021 = vdwg.mxu0
        %2022 = vmatprep.subr.bf16.mxu0 %v1044
        %2023 = vmatpush1.bf16.msra.mxu0 %v1043
        %2024 = vmatprep.subr.bf16.mxu0 %v1060
        %2025 = vmatpush1.bf16.msra.mxu0 %v1059
        %2026 = vmatprep.subr.bf16.mxu0 %v1076
        %2027 = vmatpush1.bf16.msra.mxu0 %v1075
        %2028 = vmatprep.subr.bf16.mxu0 %v1092
        %2029 = vmatpush1.bf16.msra.mxu0 %v1091
        %2030 = vmatprep.subr.bf16.mxu0 %v1108
        %2031 = vmatpush1.bf16.msra.mxu0 %v1107
        %2032 = vmatprep.subr.bf16.mxu0 %v1124
        %2033 = vmatpush1.bf16.msra.mxu0 %v1123
        %2034 = vmatprep.subr.bf16.mxu0 %v1140
        %2035 = vmatpush1.bf16.msra.mxu0 %v1139
        %2036 = vmatprep.subr.bf16.mxu0 %v1156
        %2037 = vmatpush1.bf16.msra.mxu0 %v1155
        %2038 = vmatprep.subr.bf16.mxu0 0
        %2039 = vmatpush1.bf16.msra.mxu0 0
        %2040 = vmatprep.subr.bf16.mxu0 0
        %2041 = vmatpush1.bf16.msra.mxu0 0
        %2042 = vmatprep.subr.bf16.mxu0 0
        %2043 = vmatpush1.bf16.msra.mxu0 0
        %2044 = vmatprep.subr.bf16.mxu0 0
        %2045 = vmatpush1.bf16.msra.mxu0 0
        %2046 = vmatprep.subr.bf16.mxu0 0
        %2047 = vmatpush1.bf16.msra.mxu0 0
        %2048 = vmatprep.subr.bf16.mxu0 0
        %2049 = vmatpush1.bf16.msra.mxu0 0
        %2050 = vmatprep.subr.bf16.mxu0 0
        %2051 = vmatpush1.bf16.msra.mxu0 0
        %2052 = vmatprep.subr.bf16.mxu0 0
        %2053 = vmatpush1.bf16.msra.mxu0 0
        %2054 = vmatprep.mubr.bf16.mxu0 0
        %2055 = vmatmul.mubr.bf16.gmra.mrb[0].mxu0 %v1216
        %v2056 = vpop.f32.mrb[0].mxu0
        %v2057 = vadd.f32 0.0, %v2056
        %v2058 = vpop.f32.mrb[0].mxu0
        %v2059 = vadd.f32 0.0, %v2058
        %v2060 = vpop.f32.mrb[0].mxu0
        %v2061 = vadd.f32 0.0, %v2060
        %v2062 = vpop.f32.mrb[0].mxu0
        %v2063 = vadd.f32 0.0, %v2062
        %2064 = vmatprep.mubr.bf16.mxu0 0
        %2065 = vmatmul.mubr.bf16.gmra.mrb[0].mxu0 %v1217
        %v2066 = vpop.f32.mrb[0].mxu0
        %v2067 = vadd.f32 0.0, %v2066
        %v2068 = vpop.f32.mrb[0].mxu0
        %v2069 = vadd.f32 0.0, %v2068
        %v2070 = vpop.f32.mrb[0].mxu0
        %v2071 = vadd.f32 0.0, %v2070
        %v2072 = vpop.f32.mrb[0].mxu0
        %v2073 = vadd.f32 0.0, %v2072
        %2074 = vmatprep.mubr.bf16.mxu0 0
        %2075 = vmatmul.mubr.bf16.gmra.mrb[0].mxu0 %v1218
        %v2076 = vpop.f32.mrb[0].mxu0
        %v2077 = vadd.f32 0.0, %v2076
        %v2078 = vpop.f32.mrb[0].mxu0
        %v2079 = vadd.f32 0.0, %v2078
        %v2080 = vpop.f32.mrb[0].mxu0
        %v2081 = vadd.f32 0.0, %v2080
        %v2082 = vpop.f32.mrb[0].mxu0
        %v2083 = vadd.f32 0.0, %v2082
        %2084 = vmatprep.mubr.bf16.mxu0 0
        %2085 = vmatmul.mubr.bf16.gmra.mrb[0].mxu0 %v1219
        %v2086 = vpop.f32.mrb[0].mxu0
        %v2087 = vadd.f32 0.0, %v2086
        %v2088 = vpop.f32.mrb[0].mxu0
        %v2089 = vadd.f32 0.0, %v2088
        %v2090 = vpop.f32.mrb[0].mxu0
        %v2091 = vadd.f32 0.0, %v2090
        %v2092 = vpop.f32.mrb[0].mxu0
        %v2093 = vadd.f32 0.0, %v2092
        %2094 = vmatprep.mubr.bf16.mxu0 0
        %2095 = vmatmul.mubr.bf16.gmra.mrb[0].mxu0 %v1220
        %v2096 = vpop.f32.mrb[0].mxu0
        %v2097 = vadd.f32 0.0, %v2096
        %v2098 = vpop.f32.mrb[0].mxu0
        %v2099 = vadd.f32 0.0, %v2098
        %v2100 = vpop.f32.mrb[0].mxu0
        %v2101 = vadd.f32 0.0, %v2100
        %v2102 = vpop.f32.mrb[0].mxu0
        %v2103 = vadd.f32 0.0, %v2102
        %2104 = vmatprep.mubr.bf16.mxu0 0
        %2105 = vmatmul.mubr.bf16.gmra.mrb[0].mxu0 %v1221
        %v2106 = vpop.f32.mrb[0].mxu0
        %v2107 = vadd.f32 0.0, %v2106
        %v2108 = vpop.f32.mrb[0].mxu0
        %v2109 = vadd.f32 0.0, %v2108
        %v2110 = vpop.f32.mrb[0].mxu0
        %v2111 = vadd.f32 0.0, %v2110
        %v2112 = vpop.f32.mrb[0].mxu0
        %v2113 = vadd.f32 0.0, %v2112
        %2114 = vmatprep.mubr.bf16.mxu0 0
        %2115 = vmatmul.mubr.bf16.gmra.mrb[0].mxu0 %v1222
        %v2116 = vpop.f32.mrb[0].mxu0
        %v2117 = vadd.f32 0.0, %v2116
        %v2118 = vpop.f32.mrb[0].mxu0
        %v2119 = vadd.f32 0.0, %v2118
        %v2120 = vpop.f32.mrb[0].mxu0
        %v2121 = vadd.f32 0.0, %v2120
        %v2122 = vpop.f32.mrb[0].mxu0
        %v2123 = vadd.f32 0.0, %v2122
        %2124 = vmatprep.mubr.bf16.mxu0 0
        %2125 = vmatmul.mubr.bf16.gmra.mrb[0].mxu0 %v1223
        %v2126 = vpop.f32.mrb[0].mxu0
        %v2127 = vadd.f32 0.0, %v2126
        %v2128 = vpop.f32.mrb[0].mxu0
        %v2129 = vadd.f32 0.0, %v2128
        %v2130 = vpop.f32.mrb[0].mxu0
        %v2131 = vadd.f32 0.0, %v2130
        %v2132 = vpop.f32.mrb[0].mxu0
        %v2133 = vadd.f32 0.0, %v2132
        %2134 = vmatprep.mubr.bf16.mxu0 0
        %2135 = vmatmul.mubr.bf16.gmra.mrb[0].mxu0 %v1224
        %v2136 = vpop.f32.mrb[0].mxu0
        %v2137 = vadd.f32 0.0, %v2136
        %v2138 = vpop.f32.mrb[0].mxu0
        %v2139 = vadd.f32 0.0, %v2138
        %v2140 = vpop.f32.mrb[0].mxu0
        %v2141 = vadd.f32 0.0, %v2140
        %v2142 = vpop.f32.mrb[0].mxu0
        %v2143 = vadd.f32 0.0, %v2142
        %2144 = vmatprep.mubr.bf16.mxu0 0
        %2145 = vmatmul.mubr.bf16.gmra.mrb[0].mxu0 %v1225
        %v2146 = vpop.f32.mrb[0].mxu0
        %v2147 = vadd.f32 0.0, %v2146
        %v2148 = vpop.f32.mrb[0].mxu0
        %v2149 = vadd.f32 0.0, %v2148
        %v2150 = vpop.f32.mrb[0].mxu0
        %v2151 = vpop.f32.mrb[0].mxu0
        %2152 = vdwg.mxu0
        %2153 = vmatprep.subr.bf16.mxu0 %v1046
        %2154 = vmatpush1.bf16.msra.mxu0 %v1045
        %2155 = vmatprep.subr.bf16.mxu0 %v1062
        %2156 = vmatpush1.bf16.msra.mxu0 %v1061
        %2157 = vmatprep.subr.bf16.mxu0 %v1078
        %2158 = vmatpush1.bf16.msra.mxu0 %v1077
        %2159 = vmatprep.subr.bf16.mxu0 %v1094
        %2160 = vmatpush1.bf16.msra.mxu0 %v1093
        %2161 = vmatprep.subr.bf16.mxu0 %v1110
        %2162 = vmatpush1.bf16.msra.mxu0 %v1109
        %2163 = vmatprep.subr.bf16.mxu0 %v1126
        %2164 = vmatpush1.bf16.msra.mxu0 %v1125
        %2165 = vmatprep.subr.bf16.mxu0 %v1142
        %2166 = vmatpush1.bf16.msra.mxu0 %v1141
        %2167 = vmatprep.subr.bf16.mxu0 %v1158
        %2168 = vmatpush1.bf16.msra.mxu0 %v1157
        %2169 = vmatprep.subr.bf16.mxu0 0
        %2170 = vmatpush1.bf16.msra.mxu0 0
        %2171 = vmatprep.subr.bf16.mxu0 0
        %2172 = vmatpush1.bf16.msra.mxu0 0
        %2173 = vmatprep.subr.bf16.mxu0 0
        %2174 = vmatpush1.bf16.msra.mxu0 0
        %2175 = vmatprep.subr.bf16.mxu0 0
        %2176 = vmatpush1.bf16.msra.mxu0 0
        %2177 = vmatprep.subr.bf16.mxu0 0
        %2178 = vmatpush1.bf16.msra.mxu0 0
        %2179 = vmatprep.subr.bf16.mxu0 0
        %2180 = vmatpush1.bf16.msra.mxu0 0
        %2181 = vmatprep.subr.bf16.mxu0 0
        %2182 = vmatpush1.bf16.msra.mxu0 0
        %2183 = vmatprep.subr.bf16.mxu0 0
        %2184 = vmatpush1.bf16.msra.mxu0 0
        %2185 = vmatprep.mubr.bf16.mxu0 0
        %2186 = vmatmul.mubr.bf16.gmra.mrb[0].mxu0 %v1216
        %v2187 = vpop.f32.mrb[0].mxu0
        %v2188 = vadd.f32 0.0, %v2187
        %v2189 = vpop.f32.mrb[0].mxu0
        %v2190 = vadd.f32 0.0, %v2189
        %v2191 = vpop.f32.mrb[0].mxu0
        %v2192 = vadd.f32 0.0, %v2191
        %v2193 = vpop.f32.mrb[0].mxu0
        %v2194 = vadd.f32 0.0, %v2193
        %2195 = vmatprep.mubr.bf16.mxu0 0
        %2196 = vmatmul.mubr.bf16.gmra.mrb[0].mxu0 %v1217
        %v2197 = vpop.f32.mrb[0].mxu0
        %v2198 = vadd.f32 0.0, %v2197
        %v2199 = vpop.f32.mrb[0].mxu0
        %v2200 = vadd.f32 0.0, %v2199
        %v2201 = vpop.f32.mrb[0].mxu0
        %v2202 = vadd.f32 0.0, %v2201
        %v2203 = vpop.f32.mrb[0].mxu0
        %v2204 = vadd.f32 0.0, %v2203
        %2205 = vmatprep.mubr.bf16.mxu0 0
        %2206 = vmatmul.mubr.bf16.gmra.mrb[0].mxu0 %v1218
        %v2207 = vpop.f32.mrb[0].mxu0
        %v2208 = vadd.f32 0.0, %v2207
        %v2209 = vpop.f32.mrb[0].mxu0
        %v2210 = vadd.f32 0.0, %v2209
        %v2211 = vpop.f32.mrb[0].mxu0
        %v2212 = vadd.f32 0.0, %v2211
        %v2213 = vpop.f32.mrb[0].mxu0
        %v2214 = vadd.f32 0.0, %v2213
        %2215 = vmatprep.mubr.bf16.mxu0 0
        %2216 = vmatmul.mubr.bf16.gmra.mrb[0].mxu0 %v1219
        %v2217 = vpop.f32.mrb[0].mxu0
        %v2218 = vadd.f32 0.0, %v2217
        %v2219 = vpop.f32.mrb[0].mxu0
        %v2220 = vadd.f32 0.0, %v2219
        %v2221 = vpop.f32.mrb[0].mxu0
        %v2222 = vadd.f32 0.0, %v2221
        %v2223 = vpop.f32.mrb[0].mxu0
        %v2224 = vadd.f32 0.0, %v2223
        %2225 = vmatprep.mubr.bf16.mxu0 0
        %2226 = vmatmul.mubr.bf16.gmra.mrb[0].mxu0 %v1220
        %v2227 = vpop.f32.mrb[0].mxu0
        %v2228 = vadd.f32 0.0, %v2227
        %v2229 = vpop.f32.mrb[0].mxu0
        %v2230 = vadd.f32 0.0, %v2229
        %v2231 = vpop.f32.mrb[0].mxu0
        %v2232 = vadd.f32 0.0, %v2231
        %v2233 = vpop.f32.mrb[0].mxu0
        %v2234 = vadd.f32 0.0, %v2233
        %2235 = vmatprep.mubr.bf16.mxu0 0
        %2236 = vmatmul.mubr.bf16.gmra.mrb[0].mxu0 %v1221
        %v2237 = vpop.f32.mrb[0].mxu0
        %v2238 = vadd.f32 0.0, %v2237
        %v2239 = vpop.f32.mrb[0].mxu0
        %v2240 = vadd.f32 0.0, %v2239
        %v2241 = vpop.f32.mrb[0].mxu0
        %v2242 = vadd.f32 0.0, %v2241
        %v2243 = vpop.f32.mrb[0].mxu0
        %v2244 = vadd.f32 0.0, %v2243
        %2245 = vmatprep.mubr.bf16.mxu0 0
        %2246 = vmatmul.mubr.bf16.gmra.mrb[0].mxu0 %v1222
        %v2247 = vpop.f32.mrb[0].mxu0
        %v2248 = vadd.f32 0.0, %v2247
        %v2249 = vpop.f32.mrb[0].mxu0
        %v2250 = vadd.f32 0.0, %v2249
        %v2251 = vpop.f32.mrb[0].mxu0
        %v2252 = vadd.f32 0.0, %v2251
        %v2253 = vpop.f32.mrb[0].mxu0
        %v2254 = vadd.f32 0.0, %v2253
        %2255 = vmatprep.mubr.bf16.mxu0 0
        %2256 = vmatmul.mubr.bf16.gmra.mrb[0].mxu0 %v1223
        %v2257 = vpop.f32.mrb[0].mxu0
        %v2258 = vadd.f32 0.0, %v2257
        %v2259 = vpop.f32.mrb[0].mxu0
        %v2260 = vadd.f32 0.0, %v2259
        %v2261 = vpop.f32.mrb[0].mxu0
        %v2262 = vadd.f32 0.0, %v2261
        %v2263 = vpop.f32.mrb[0].mxu0
        %v2264 = vadd.f32 0.0, %v2263
        %2265 = vmatprep.mubr.bf16.mxu0 0
        %2266 = vmatmul.mubr.bf16.gmra.mrb[0].mxu0 %v1224
        %v2267 = vpop.f32.mrb[0].mxu0
        %v2268 = vadd.f32 0.0, %v2267
        %v2269 = vpop.f32.mrb[0].mxu0
        %v2270 = vadd.f32 0.0, %v2269
        %v2271 = vpop.f32.mrb[0].mxu0
        %v2272 = vadd.f32 0.0, %v2271
        %v2273 = vpop.f32.mrb[0].mxu0
        %v2274 = vadd.f32 0.0, %v2273
        %2275 = vmatprep.mubr.bf16.mxu0 0
        %2276 = vmatmul.mubr.bf16.gmra.mrb[0].mxu0 %v1225
        %v2277 = vpop.f32.mrb[0].mxu0
        %v2278 = vadd.f32 0.0, %v2277
        %v2279 = vpop.f32.mrb[0].mxu0
        %v2280 = vadd.f32 0.0, %v2279
        %v2281 = vpop.f32.mrb[0].mxu0
        %v2282 = vpop.f32.mrb[0].mxu0
        %2283 = vdwg.mxu0
        %v2284 = vld [vmem:[%s725] sm:$0xff]
        %v2285 = vld [vmem:[%s725 + $0x8] sm:$0xff]
        %v2286 = vld [vmem:[%s725 + $0x10] sm:$0xff]
        %v2287 = vld [vmem:[%s725 + $0x18] sm:$0xff]
        %v2288 = vld [vmem:[%s725 + $0x20] sm:$0xff]
        %v2289 = vld [vmem:[%s725 + $0x28] sm:$0xff]
        %v2290 = vld [vmem:[%s725 + $0x30] sm:$0xff]
        %v2291 = vld [vmem:[%s725 + $0x38] sm:$0xff]
        %v2292 = vld [vmem:[%s725 + $0x40] sm:$0xff]
        %v2293 = vld [vmem:[%s725 + $0x48] sm:$0xff]
        %v2294 = vld [vmem:[%s725 + $0x50] sm:$0xff]
        %v2295 = vld [vmem:[%s725 + $0x58] sm:$0xff]
        %v2296 = vld [vmem:[%s725 + $0x60] sm:$0xff]
        %v2297 = vld [vmem:[%s725 + $0x68] sm:$0xff]
        %v2298 = vld [vmem:[%s725 + $0x70] sm:$0xff]
        %v2299 = vld [vmem:[%s725 + $0x78] sm:$0xff]
        %v2300 = vld [vmem:[%s725 + $0x80] sm:$0xff]
        %v2301 = vld [vmem:[%s725 + $0x88] sm:$0xff]
        %v2302 = vld [vmem:[%s725 + $0x90] sm:$0xff]
        %v2303 = vadd.f32 %v1271, %v1273
        %v2304 = vadd.f32 %v2303, %v1402
        %v2305 = vadd.f32 %v2304, %v1404
        %v2306 = vadd.f32 %v2305, %v1533
        %v2307 = vadd.f32 %v2306, %v1535
        %v2308 = vadd.f32 %v2307, %v1664
        %v2309 = vadd.f32 %v2308, %v1666
        %v2310 = vadd.f32 %v2309, %v1795
        %v2311 = vadd.f32 %v2310, %v1797
        %v2312 = vadd.f32 %v2311, %v1926
        %v2313 = vadd.f32 %v2312, %v1928
        %v2314 = vadd.f32 %v2313, %v2057
        %v2315 = vadd.f32 %v2314, %v2059
        %v2316 = vadd.f32 %v2315, %v2188
        %v2317 = vadd.f32 %v2316, %v2190
        %2318 = vadd.xlane.f32.xlu0 %v2317
        %v2319 = vpop.xlane.xlu0 %2318
        %v2320 = vadd.f32 %v1275, %v1277
        %v2321 = vadd.f32 %v2320, %v1406
        %v2322 = vadd.f32 %v2321, %v1408
        %v2323 = vadd.f32 %v2322, %v1537
        %v2324 = vadd.f32 %v2323, %v1539
        %v2325 = vadd.f32 %v2324, %v1668
        %v2326 = vadd.f32 %v2325, %v1670
        %v2327 = vadd.f32 %v2326, %v1799
        %v2328 = vadd.f32 %v2327, %v1801
        %v2329 = vadd.f32 %v2328, %v1930
        %v2330 = vadd.f32 %v2329, %v1932
        %v2331 = vadd.f32 %v2330, %v2061
        %v2332 = vadd.f32 %v2331, %v2063
        %v2333 = vadd.f32 %v2332, %v2192
        %v2334 = vadd.f32 %v2333, %v2194
        %2335 = vadd.xlane.f32.xlu0 %v2334
        %v2336 = vpop.xlane.xlu0 %2335
        %v2337 = vadd.f32 %v1281, %v1283
        %v2338 = vadd.f32 %v2337, %v1412
        %v2339 = vadd.f32 %v2338, %v1414
        %v2340 = vadd.f32 %v2339, %v1543
        %v2341 = vadd.f32 %v2340, %v1545
        %v2342 = vadd.f32 %v2341, %v1674
        %v2343 = vadd.f32 %v2342, %v1676
        %v2344 = vadd.f32 %v2343, %v1805
        %v2345 = vadd.f32 %v2344, %v1807
        %v2346 = vadd.f32 %v2345, %v1936
        %v2347 = vadd.f32 %v2346, %v1938
        %v2348 = vadd.f32 %v2347, %v2067
        %v2349 = vadd.f32 %v2348, %v2069
        %v2350 = vadd.f32 %v2349, %v2198
        %v2351 = vadd.f32 %v2350, %v2200
        %2352 = vadd.xlane.f32.xlu0 %v2351
        %v2353 = vpop.xlane.xlu0 %2352
        %v2354 = vadd.f32 %v1285, %v1287
        %v2355 = vadd.f32 %v2354, %v1416
        %v2356 = vadd.f32 %v2355, %v1418
        %v2357 = vadd.f32 %v2356, %v1547
        %v2358 = vadd.f32 %v2357, %v1549
        %v2359 = vadd.f32 %v2358, %v1678
        %v2360 = vadd.f32 %v2359, %v1680
        %v2361 = vadd.f32 %v2360, %v1809
        %v2362 = vadd.f32 %v2361, %v1811
        %v2363 = vadd.f32 %v2362, %v1940
        %v2364 = vadd.f32 %v2363, %v1942
        %v2365 = vadd.f32 %v2364, %v2071
        %v2366 = vadd.f32 %v2365, %v2073
        %v2367 = vadd.f32 %v2366, %v2202
        %v2368 = vadd.f32 %v2367, %v2204
        %2369 = vadd.xlane.f32.xlu0 %v2368
        %v2370 = vpop.xlane.xlu0 %2369
        %v2371 = vadd.f32 %v1291, %v1293
        %v2372 = vadd.f32 %v2371, %v1422
        %v2373 = vadd.f32 %v2372, %v1424
        %v2374 = vadd.f32 %v2373, %v1553
        %v2375 = vadd.f32 %v2374, %v1555
        %v2376 = vadd.f32 %v2375, %v1684
        %v2377 = vadd.f32 %v2376, %v1686
        %v2378 = vadd.f32 %v2377, %v1815
        %v2379 = vadd.f32 %v2378, %v1817
        %v2380 = vadd.f32 %v2379, %v1946
        %v2381 = vadd.f32 %v2380, %v1948
        %v2382 = vadd.f32 %v2381, %v2077
        %v2383 = vadd.f32 %v2382, %v2079
        %v2384 = vadd.f32 %v2383, %v2208
        %v2385 = vadd.f32 %v2384, %v2210
        %2386 = vadd.xlane.f32.xlu0 %v2385
        %v2387 = vpop.xlane.xlu0 %2386
        %v2388 = vadd.f32 %v1295, %v1297
        %v2389 = vadd.f32 %v2388, %v1426
        %v2390 = vadd.f32 %v2389, %v1428
        %v2391 = vadd.f32 %v2390, %v1557
        %v2392 = vadd.f32 %v2391, %v1559
        %v2393 = vadd.f32 %v2392, %v1688
        %v2394 = vadd.f32 %v2393, %v1690
        %v2395 = vadd.f32 %v2394, %v1819
        %v2396 = vadd.f32 %v2395, %v1821
        %v2397 = vadd.f32 %v2396, %v1950
        %v2398 = vadd.f32 %v2397, %v1952
        %v2399 = vadd.f32 %v2398, %v2081
        %v2400 = vadd.f32 %v2399, %v2083
        %v2401 = vadd.f32 %v2400, %v2212
        %v2402 = vadd.f32 %v2401, %v2214
        %2403 = vadd.xlane.f32.xlu0 %v2402
        %v2404 = vpop.xlane.xlu0 %2403
        %v2405 = vadd.f32 %v1301, %v1303
        %v2406 = vadd.f32 %v2405, %v1432
        %v2407 = vadd.f32 %v2406, %v1434
        %v2408 = vadd.f32 %v2407, %v1563
        %v2409 = vadd.f32 %v2408, %v1565
        %v2410 = vadd.f32 %v2409, %v1694
        %v2411 = vadd.f32 %v2410, %v1696
        %v2412 = vadd.f32 %v2411, %v1825
        %v2413 = vadd.f32 %v2412, %v1827
        %v2414 = vadd.f32 %v2413, %v1956
        %v2415 = vadd.f32 %v2414, %v1958
        %v2416 = vadd.f32 %v2415, %v2087
        %v2417 = vadd.f32 %v2416, %v2089
        %v2418 = vadd.f32 %v2417, %v2218
        %v2419 = vadd.f32 %v2418, %v2220
        %2420 = vadd.xlane.f32.xlu0 %v2419
        %v2421 = vpop.xlane.xlu0 %2420
        %v2422 = vadd.f32 %v1305, %v1307
        %v2423 = vadd.f32 %v2422, %v1436
        %v2424 = vadd.f32 %v2423, %v1438
        %v2425 = vadd.f32 %v2424, %v1567
        %v2426 = vadd.f32 %v2425, %v1569
        %v2427 = vadd.f32 %v2426, %v1698
        %v2428 = vadd.f32 %v2427, %v1700
        %v2429 = vadd.f32 %v2428, %v1829
        %v2430 = vadd.f32 %v2429, %v1831
        %v2431 = vadd.f32 %v2430, %v1960
        %v2432 = vadd.f32 %v2431, %v1962
        %v2433 = vadd.f32 %v2432, %v2091
        %v2434 = vadd.f32 %v2433, %v2093
        %v2435 = vadd.f32 %v2434, %v2222
        %v2436 = vadd.f32 %v2435, %v2224
        %2437 = vadd.xlane.f32.xlu0 %v2436
        %v2438 = vpop.xlane.xlu0 %2437
        %v2439 = vadd.f32 %v1311, %v1313
        %v2440 = vadd.f32 %v2439, %v1442
        %v2441 = vadd.f32 %v2440, %v1444
        %v2442 = vadd.f32 %v2441, %v1573
        %v2443 = vadd.f32 %v2442, %v1575
        %v2444 = vadd.f32 %v2443, %v1704
        %v2445 = vadd.f32 %v2444, %v1706
        %v2446 = vadd.f32 %v2445, %v1835
        %v2447 = vadd.f32 %v2446, %v1837
        %v2448 = vadd.f32 %v2447, %v1966
        %v2449 = vadd.f32 %v2448, %v1968
        %v2450 = vadd.f32 %v2449, %v2097
        %v2451 = vadd.f32 %v2450, %v2099
        %v2452 = vadd.f32 %v2451, %v2228
        %v2453 = vadd.f32 %v2452, %v2230
        %2454 = vadd.xlane.f32.xlu0 %v2453
        %v2455 = vpop.xlane.xlu0 %2454
        %v2456 = vadd.f32 %v1315, %v1317
        %v2457 = vadd.f32 %v2456, %v1446
        %v2458 = vadd.f32 %v2457, %v1448
        %v2459 = vadd.f32 %v2458, %v1577
        %v2460 = vadd.f32 %v2459, %v1579
        %v2461 = vadd.f32 %v2460, %v1708
        %v2462 = vadd.f32 %v2461, %v1710
        %v2463 = vadd.f32 %v2462, %v1839
        %v2464 = vadd.f32 %v2463, %v1841
        %v2465 = vadd.f32 %v2464, %v1970
        %v2466 = vadd.f32 %v2465, %v1972
        %v2467 = vadd.f32 %v2466, %v2101
        %v2468 = vadd.f32 %v2467, %v2103
        %v2469 = vadd.f32 %v2468, %v2232
        %v2470 = vadd.f32 %v2469, %v2234
        %2471 = vadd.xlane.f32.xlu0 %v2470
        %v2472 = vpop.xlane.xlu0 %2471
        %v2473 = vadd.f32 %v1321, %v1323
        %v2474 = vadd.f32 %v2473, %v1452
        %v2475 = vadd.f32 %v2474, %v1454
        %v2476 = vadd.f32 %v2475, %v1583
        %v2477 = vadd.f32 %v2476, %v1585
        %v2478 = vadd.f32 %v2477, %v1714
        %v2479 = vadd.f32 %v2478, %v1716
        %v2480 = vadd.f32 %v2479, %v1845
        %v2481 = vadd.f32 %v2480, %v1847
        %v2482 = vadd.f32 %v2481, %v1976
        %v2483 = vadd.f32 %v2482, %v1978
        %v2484 = vadd.f32 %v2483, %v2107
        %v2485 = vadd.f32 %v2484, %v2109
        %v2486 = vadd.f32 %v2485, %v2238
        %v2487 = vadd.f32 %v2486, %v2240
        %2488 = vadd.xlane.f32.xlu0 %v2487
        %v2489 = vpop.xlane.xlu0 %2488
        %v2490 = vadd.f32 %v1325, %v1327
        %v2491 = vadd.f32 %v2490, %v1456
        %v2492 = vadd.f32 %v2491, %v1458
        %v2493 = vadd.f32 %v2492, %v1587
        %v2494 = vadd.f32 %v2493, %v1589
        %v2495 = vadd.f32 %v2494, %v1718
        %v2496 = vadd.f32 %v2495, %v1720
        %v2497 = vadd.f32 %v2496, %v1849
        %v2498 = vadd.f32 %v2497, %v1851
        %v2499 = vadd.f32 %v2498, %v1980
        %v2500 = vadd.f32 %v2499, %v1982
        %v2501 = vadd.f32 %v2500, %v2111
        %v2502 = vadd.f32 %v2501, %v2113
        %v2503 = vadd.f32 %v2502, %v2242
        %v2504 = vadd.f32 %v2503, %v2244
        %2505 = vadd.xlane.f32.xlu0 %v2504
        %v2506 = vpop.xlane.xlu0 %2505
        %v2507 = vadd.f32 %v1331, %v1333
        %v2508 = vadd.f32 %v2507, %v1462
        %v2509 = vadd.f32 %v2508, %v1464
        %v2510 = vadd.f32 %v2509, %v1593
        %v2511 = vadd.f32 %v2510, %v1595
        %v2512 = vadd.f32 %v2511, %v1724
        %v2513 = vadd.f32 %v2512, %v1726
        %v2514 = vadd.f32 %v2513, %v1855
        %v2515 = vadd.f32 %v2514, %v1857
        %v2516 = vadd.f32 %v2515, %v1986
        %v2517 = vadd.f32 %v2516, %v1988
        %v2518 = vadd.f32 %v2517, %v2117
        %v2519 = vadd.f32 %v2518, %v2119
        %v2520 = vadd.f32 %v2519, %v2248
        %v2521 = vadd.f32 %v2520, %v2250
        %2522 = vadd.xlane.f32.xlu0 %v2521
        %v2523 = vpop.xlane.xlu0 %2522
        %v2524 = vadd.f32 %v1335, %v1337
        %v2525 = vadd.f32 %v2524, %v1466
        %v2526 = vadd.f32 %v2525, %v1468
        %v2527 = vadd.f32 %v2526, %v1597
        %v2528 = vadd.f32 %v2527, %v1599
        %v2529 = vadd.f32 %v2528, %v1728
        %v2530 = vadd.f32 %v2529, %v1730
        %v2531 = vadd.f32 %v2530, %v1859
        %v2532 = vadd.f32 %v2531, %v1861
        %v2533 = vadd.f32 %v2532, %v1990
        %v2534 = vadd.f32 %v2533, %v1992
        %v2535 = vadd.f32 %v2534, %v2121
        %v2536 = vadd.f32 %v2535, %v2123
        %v2537 = vadd.f32 %v2536, %v2252
        %v2538 = vadd.f32 %v2537, %v2254
        %2539 = vadd.xlane.f32.xlu0 %v2538
        %v2540 = vpop.xlane.xlu0 %2539
        %v2541 = vadd.f32 %v1341, %v1343
        %v2542 = vadd.f32 %v2541, %v1472
        %v2543 = vadd.f32 %v2542, %v1474
        %v2544 = vadd.f32 %v2543, %v1603
        %v2545 = vadd.f32 %v2544, %v1605
        %v2546 = vadd.f32 %v2545, %v1734
        %v2547 = vadd.f32 %v2546, %v1736
        %v2548 = vadd.f32 %v2547, %v1865
        %v2549 = vadd.f32 %v2548, %v1867
        %v2550 = vadd.f32 %v2549, %v1996
        %v2551 = vadd.f32 %v2550, %v1998
        %v2552 = vadd.f32 %v2551, %v2127
        %v2553 = vadd.f32 %v2552, %v2129
        %v2554 = vadd.f32 %v2553, %v2258
        %v2555 = vadd.f32 %v2554, %v2260
        %2556 = vadd.xlane.f32.xlu0 %v2555
        %v2557 = vpop.xlane.xlu0 %2556
        %v2558 = vadd.f32 %v1345, %v1347
        %v2559 = vadd.f32 %v2558, %v1476
        %v2560 = vadd.f32 %v2559, %v1478
        %v2561 = vadd.f32 %v2560, %v1607
        %v2562 = vadd.f32 %v2561, %v1609
        %v2563 = vadd.f32 %v2562, %v1738
        %v2564 = vadd.f32 %v2563, %v1740
        %v2565 = vadd.f32 %v2564, %v1869
        %v2566 = vadd.f32 %v2565, %v1871
        %v2567 = vadd.f32 %v2566, %v2000
        %v2568 = vadd.f32 %v2567, %v2002
        %v2569 = vadd.f32 %v2568, %v2131
        %v2570 = vadd.f32 %v2569, %v2133
        %v2571 = vadd.f32 %v2570, %v2262
        %v2572 = vadd.f32 %v2571, %v2264
        %2573 = vadd.xlane.f32.xlu0 %v2572
        %v2574 = vpop.xlane.xlu0 %2573
        %v2575 = vadd.f32 %v1351, %v1353
        %v2576 = vadd.f32 %v2575, %v1482
        %v2577 = vadd.f32 %v2576, %v1484
        %v2578 = vadd.f32 %v2577, %v1613
        %v2579 = vadd.f32 %v2578, %v1615
        %v2580 = vadd.f32 %v2579, %v1744
        %v2581 = vadd.f32 %v2580, %v1746
        %v2582 = vadd.f32 %v2581, %v1875
        %v2583 = vadd.f32 %v2582, %v1877
        %v2584 = vadd.f32 %v2583, %v2006
        %v2585 = vadd.f32 %v2584, %v2008
        %v2586 = vadd.f32 %v2585, %v2137
        %v2587 = vadd.f32 %v2586, %v2139
        %v2588 = vadd.f32 %v2587, %v2268
        %v2589 = vadd.f32 %v2588, %v2270
        %2590 = vadd.xlane.f32.xlu0 %v2589
        %v2591 = vpop.xlane.xlu0 %2590
        %v2592 = vadd.f32 %v1355, %v1357
        %v2593 = vadd.f32 %v2592, %v1486
        %v2594 = vadd.f32 %v2593, %v1488
        %v2595 = vadd.f32 %v2594, %v1617
        %v2596 = vadd.f32 %v2595, %v1619
        %v2597 = vadd.f32 %v2596, %v1748
        %v2598 = vadd.f32 %v2597, %v1750
        %v2599 = vadd.f32 %v2598, %v1879
        %v2600 = vadd.f32 %v2599, %v1881
        %v2601 = vadd.f32 %v2600, %v2010
        %v2602 = vadd.f32 %v2601, %v2012
        %v2603 = vadd.f32 %v2602, %v2141
        %v2604 = vadd.f32 %v2603, %v2143
        %v2605 = vadd.f32 %v2604, %v2272
        %v2606 = vadd.f32 %v2605, %v2274
        %2607 = vadd.xlane.f32.xlu0 %v2606
        %v2608 = vpop.xlane.xlu0 %2607
        %v2609 = vadd.f32 %v1361, %v1363
        %v2610 = vadd.f32 %v2609, %v1492
        %v2611 = vadd.f32 %v2610, %v1494
        %v2612 = vadd.f32 %v2611, %v1623
        %v2613 = vadd.f32 %v2612, %v1625
        %v2614 = vadd.f32 %v2613, %v1754
        %v2615 = vadd.f32 %v2614, %v1756
        %v2616 = vadd.f32 %v2615, %v1885
        %v2617 = vadd.f32 %v2616, %v1887
        %v2618 = vadd.f32 %v2617, %v2016
        %v2619 = vadd.f32 %v2618, %v2018
        %v2620 = vadd.f32 %v2619, %v2147
        %v2621 = vadd.f32 %v2620, %v2149
        %v2622 = vadd.f32 %v2621, %v2278
        %v2623 = vadd.f32 %v2622, %v2280
        %2624 = vadd.xlane.f32.xlu0 %v2623
        %v2625 = vpop.xlane.xlu0 %2624
        %v2626 = vadd.f32 %v2284, %v2319
        %v2627 = vadd.f32 %v2285, %v2336
        %v2628 = vadd.f32 %v2286, %v2353
        %v2629 = vadd.f32 %v2287, %v2370
        %v2630 = vadd.f32 %v2288, %v2387
        %v2631 = vadd.f32 %v2289, %v2404
        %v2632 = vadd.f32 %v2290, %v2421
        %v2633 = vadd.f32 %v2291, %v2438
        %v2634 = vadd.f32 %v2292, %v2455
        %v2635 = vadd.f32 %v2293, %v2472
        %v2636 = vadd.f32 %v2294, %v2489
        %v2637 = vadd.f32 %v2295, %v2506
        %v2638 = vadd.f32 %v2296, %v2523
        %v2639 = vadd.f32 %v2297, %v2540
        %v2640 = vadd.f32 %v2298, %v2557
        %v2641 = vadd.f32 %v2299, %v2574
        %v2642 = vadd.f32 %v2300, %v2591
        %v2643 = vadd.f32 %v2301, %v2608
        %v2644 = vadd.f32 %v2302, %v2625
        %vm2645 = vcmask 7168
        %2646 = vst.msk [vmem:[%s725] sm:$0xff] %vm2645, %v2626
        %2647 = vst.msk [vmem:[%s725 + $0x8] sm:$0xff] %vm2645, %v2627
        %2648 = vst.msk [vmem:[%s725 + $0x10] sm:$0xff] %vm2645, %v2628
        %2649 = vst.msk [vmem:[%s725 + $0x18] sm:$0xff] %vm2645, %v2629
        %2650 = vst.msk [vmem:[%s725 + $0x20] sm:$0xff] %vm2645, %v2630
        %2651 = vst.msk [vmem:[%s725 + $0x28] sm:$0xff] %vm2645, %v2631
        %2652 = vst.msk [vmem:[%s725 + $0x30] sm:$0xff] %vm2645, %v2632
        %2653 = vst.msk [vmem:[%s725 + $0x38] sm:$0xff] %vm2645, %v2633
        %2654 = vst.msk [vmem:[%s725 + $0x40] sm:$0xff] %vm2645, %v2634
        %2655 = vst.msk [vmem:[%s725 + $0x48] sm:$0xff] %vm2645, %v2635
        %2656 = vst.msk [vmem:[%s725 + $0x50] sm:$0xff] %vm2645, %v2636
        %2657 = vst.msk [vmem:[%s725 + $0x58] sm:$0xff] %vm2645, %v2637
        %2658 = vst.msk [vmem:[%s725 + $0x60] sm:$0xff] %vm2645, %v2638
        %2659 = vst.msk [vmem:[%s725 + $0x68] sm:$0xff] %vm2645, %v2639
        %2660 = vst.msk [vmem:[%s725 + $0x70] sm:$0xff] %vm2645, %v2640
        %2661 = vst.msk [vmem:[%s725 + $0x78] sm:$0xff] %vm2645, %v2641
        %2662 = vst.msk [vmem:[%s725 + $0x80] sm:$0xff] %vm2645, %v2642
        %2663 = vst.msk [vmem:[%s725 + $0x88] sm:$0xff] %vm2645, %v2643
        %2664 = vst.msk [vmem:[%s725 + $0x90] sm:$0xff] %vm2645, %v2644
        %v2665 = vld [vmem:[%s730] sm:$0xff]
        %v2666 = vld [vmem:[%s730 + $0x8] sm:$0xff]
        %v2667 = vld [vmem:[%s730 + $0x10] sm:$0xff]
        %v2668 = vld [vmem:[%s730 + $0x18] sm:$0xff]
        %v2669 = vld [vmem:[%s730 + $0x20] sm:$0xff]
        %v2670 = vld [vmem:[%s730 + $0x28] sm:$0xff]
        %v2671 = vld [vmem:[%s730 + $0x30] sm:$0xff]
        %v2672 = vld [vmem:[%s730 + $0x38] sm:$0xff]
        %v2673 = vld [vmem:[%s730 + $0x40] sm:$0xff]
        %v2674 = vld [vmem:[%s730 + $0x48] sm:$0xff]
        %v2675 = vld [vmem:[%s730 + $0x50] sm:$0xff]
        %v2676 = vld [vmem:[%s730 + $0x58] sm:$0xff]
        %v2677 = vld [vmem:[%s730 + $0x60] sm:$0xff]
        %v2678 = vld [vmem:[%s730 + $0x68] sm:$0xff]
        %v2679 = vld [vmem:[%s730 + $0x70] sm:$0xff]
        %v2680 = vld [vmem:[%s730 + $0x78] sm:$0xff]
        %v2681 = vld [vmem:[%s730 + $0x80] sm:$0xff]
        %v2682 = vld [vmem:[%s730 + $0x88] sm:$0xff]
        %v2683 = vld [vmem:[%s730 + $0x90] sm:$0xff]
        %v2684 = vmul.f32 %v1271, %v1271
        %v2685 = vmul.f32 %v1273, %v1273
        %v2686 = vmul.f32 %v1402, %v1402
        %v2687 = vmul.f32 %v1404, %v1404
        %v2688 = vmul.f32 %v1533, %v1533
        %v2689 = vmul.f32 %v1535, %v1535
        %v2690 = vmul.f32 %v1664, %v1664
        %v2691 = vmul.f32 %v1666, %v1666
        %v2692 = vmul.f32 %v1795, %v1795
        %v2693 = vmul.f32 %v1797, %v1797
        %v2694 = vmul.f32 %v1926, %v1926
        %v2695 = vmul.f32 %v1928, %v1928
        %v2696 = vmul.f32 %v2057, %v2057
        %v2697 = vmul.f32 %v2059, %v2059
        %v2698 = vmul.f32 %v2188, %v2188
        %v2699 = vmul.f32 %v2190, %v2190
        %v2700 = vmul.f32 %v1275, %v1275
        %v2701 = vmul.f32 %v1277, %v1277
        %v2702 = vmul.f32 %v1406, %v1406
        %v2703 = vmul.f32 %v1408, %v1408
        %v2704 = vmul.f32 %v1537, %v1537
        %v2705 = vmul.f32 %v1539, %v1539
        %v2706 = vmul.f32 %v1668, %v1668
        %v2707 = vmul.f32 %v1670, %v1670
        %v2708 = vmul.f32 %v1799, %v1799
        %v2709 = vmul.f32 %v1801, %v1801
        %v2710 = vmul.f32 %v1930, %v1930
        %v2711 = vmul.f32 %v1932, %v1932
        %v2712 = vmul.f32 %v2061, %v2061
        %v2713 = vmul.f32 %v2063, %v2063
        %v2714 = vmul.f32 %v2192, %v2192
        %v2715 = vmul.f32 %v2194, %v2194
        %v2716 = vmul.f32 %v1281, %v1281
        %v2717 = vmul.f32 %v1283, %v1283
        %v2718 = vmul.f32 %v1412, %v1412
        %v2719 = vmul.f32 %v1414, %v1414
        %v2720 = vmul.f32 %v1543, %v1543
        %v2721 = vmul.f32 %v1545, %v1545
        %v2722 = vmul.f32 %v1674, %v1674
        %v2723 = vmul.f32 %v1676, %v1676
        %v2724 = vmul.f32 %v1805, %v1805
        %v2725 = vmul.f32 %v1807, %v1807
        %v2726 = vmul.f32 %v1936, %v1936
        %v2727 = vmul.f32 %v1938, %v1938
        %v2728 = vmul.f32 %v2067, %v2067
        %v2729 = vmul.f32 %v2069, %v2069
        %v2730 = vmul.f32 %v2198, %v2198
        %v2731 = vmul.f32 %v2200, %v2200
        %v2732 = vmul.f32 %v1285, %v1285
        %v2733 = vmul.f32 %v1287, %v1287
        %v2734 = vmul.f32 %v1416, %v1416
        %v2735 = vmul.f32 %v1418, %v1418
        %v2736 = vmul.f32 %v1547, %v1547
        %v2737 = vmul.f32 %v1549, %v1549
        %v2738 = vmul.f32 %v1678, %v1678
        %v2739 = vmul.f32 %v1680, %v1680
        %v2740 = vmul.f32 %v1809, %v1809
        %v2741 = vmul.f32 %v1811, %v1811
        %v2742 = vmul.f32 %v1940, %v1940
        %v2743 = vmul.f32 %v1942, %v1942
        %v2744 = vmul.f32 %v2071, %v2071
        %v2745 = vmul.f32 %v2073, %v2073
        %v2746 = vmul.f32 %v2202, %v2202
        %v2747 = vmul.f32 %v2204, %v2204
        %v2748 = vmul.f32 %v1291, %v1291
        %v2749 = vmul.f32 %v1293, %v1293
        %v2750 = vmul.f32 %v1422, %v1422
        %v2751 = vmul.f32 %v1424, %v1424
        %v2752 = vmul.f32 %v1553, %v1553
        %v2753 = vmul.f32 %v1555, %v1555
        %v2754 = vmul.f32 %v1684, %v1684
        %v2755 = vmul.f32 %v1686, %v1686
        %v2756 = vmul.f32 %v1815, %v1815
        %v2757 = vmul.f32 %v1817, %v1817
        %v2758 = vmul.f32 %v1946, %v1946
        %v2759 = vmul.f32 %v1948, %v1948
        %v2760 = vmul.f32 %v2077, %v2077
        %v2761 = vmul.f32 %v2079, %v2079
        %v2762 = vmul.f32 %v2208, %v2208
        %v2763 = vmul.f32 %v2210, %v2210
        %v2764 = vmul.f32 %v1295, %v1295
        %v2765 = vmul.f32 %v1297, %v1297
        %v2766 = vmul.f32 %v1426, %v1426
        %v2767 = vmul.f32 %v1428, %v1428
        %v2768 = vmul.f32 %v1557, %v1557
        %v2769 = vmul.f32 %v1559, %v1559
        %v2770 = vmul.f32 %v1688, %v1688
        %v2771 = vmul.f32 %v1690, %v1690
        %v2772 = vmul.f32 %v1819, %v1819
        %v2773 = vmul.f32 %v1821, %v1821
        %v2774 = vmul.f32 %v1950, %v1950
        %v2775 = vmul.f32 %v1952, %v1952
        %v2776 = vmul.f32 %v2081, %v2081
        %v2777 = vmul.f32 %v2083, %v2083
        %v2778 = vmul.f32 %v2212, %v2212
        %v2779 = vmul.f32 %v2214, %v2214
        %v2780 = vmul.f32 %v1301, %v1301
        %v2781 = vmul.f32 %v1303, %v1303
        %v2782 = vmul.f32 %v1432, %v1432
        %v2783 = vmul.f32 %v1434, %v1434
        %v2784 = vmul.f32 %v1563, %v1563
        %v2785 = vmul.f32 %v1565, %v1565
        %v2786 = vmul.f32 %v1694, %v1694
        %v2787 = vmul.f32 %v1696, %v1696
        %v2788 = vmul.f32 %v1825, %v1825
        %v2789 = vmul.f32 %v1827, %v1827
        %v2790 = vmul.f32 %v1956, %v1956
        %v2791 = vmul.f32 %v1958, %v1958
        %v2792 = vmul.f32 %v2087, %v2087
        %v2793 = vmul.f32 %v2089, %v2089
        %v2794 = vmul.f32 %v2218, %v2218
        %v2795 = vmul.f32 %v2220, %v2220
        %v2796 = vmul.f32 %v1305, %v1305
        %v2797 = vmul.f32 %v1307, %v1307
        %v2798 = vmul.f32 %v1436, %v1436
        %v2799 = vmul.f32 %v1438, %v1438
        %v2800 = vmul.f32 %v1567, %v1567
        %v2801 = vmul.f32 %v1569, %v1569
        %v2802 = vmul.f32 %v1698, %v1698
        %v2803 = vmul.f32 %v1700, %v1700
        %v2804 = vmul.f32 %v1829, %v1829
        %v2805 = vmul.f32 %v1831, %v1831
        %v2806 = vmul.f32 %v1960, %v1960
        %v2807 = vmul.f32 %v1962, %v1962
        %v2808 = vmul.f32 %v2091, %v2091
        %v2809 = vmul.f32 %v2093, %v2093
        %v2810 = vmul.f32 %v2222, %v2222
        %v2811 = vmul.f32 %v2224, %v2224
        %v2812 = vmul.f32 %v1311, %v1311
        %v2813 = vmul.f32 %v1313, %v1313
        %v2814 = vmul.f32 %v1442, %v1442
        %v2815 = vmul.f32 %v1444, %v1444
        %v2816 = vmul.f32 %v1573, %v1573
        %v2817 = vmul.f32 %v1575, %v1575
        %v2818 = vmul.f32 %v1704, %v1704
        %v2819 = vmul.f32 %v1706, %v1706
        %v2820 = vmul.f32 %v1835, %v1835
        %v2821 = vmul.f32 %v1837, %v1837
        %v2822 = vmul.f32 %v1966, %v1966
        %v2823 = vmul.f32 %v1968, %v1968
        %v2824 = vmul.f32 %v2097, %v2097
        %v2825 = vmul.f32 %v2099, %v2099
        %v2826 = vmul.f32 %v2228, %v2228
        %v2827 = vmul.f32 %v2230, %v2230
        %v2828 = vmul.f32 %v1315, %v1315
        %v2829 = vmul.f32 %v1317, %v1317
        %v2830 = vmul.f32 %v1446, %v1446
        %v2831 = vmul.f32 %v1448, %v1448
        %v2832 = vmul.f32 %v1577, %v1577
        %v2833 = vmul.f32 %v1579, %v1579
        %v2834 = vmul.f32 %v1708, %v1708
        %v2835 = vmul.f32 %v1710, %v1710
        %v2836 = vmul.f32 %v1839, %v1839
        %v2837 = vmul.f32 %v1841, %v1841
        %v2838 = vmul.f32 %v1970, %v1970
        %v2839 = vmul.f32 %v1972, %v1972
        %v2840 = vmul.f32 %v2101, %v2101
        %v2841 = vmul.f32 %v2103, %v2103
        %v2842 = vmul.f32 %v2232, %v2232
        %v2843 = vmul.f32 %v2234, %v2234
        %v2844 = vmul.f32 %v1321, %v1321
        %v2845 = vmul.f32 %v1323, %v1323
        %v2846 = vmul.f32 %v1452, %v1452
        %v2847 = vmul.f32 %v1454, %v1454
        %v2848 = vmul.f32 %v1583, %v1583
        %v2849 = vmul.f32 %v1585, %v1585
        %v2850 = vmul.f32 %v1714, %v1714
        %v2851 = vmul.f32 %v1716, %v1716
        %v2852 = vmul.f32 %v1845, %v1845
        %v2853 = vmul.f32 %v1847, %v1847
        %v2854 = vmul.f32 %v1976, %v1976
        %v2855 = vmul.f32 %v1978, %v1978
        %v2856 = vmul.f32 %v2107, %v2107
        %v2857 = vmul.f32 %v2109, %v2109
        %v2858 = vmul.f32 %v2238, %v2238
        %v2859 = vmul.f32 %v2240, %v2240
        %v2860 = vmul.f32 %v1325, %v1325
        %v2861 = vmul.f32 %v1327, %v1327
        %v2862 = vmul.f32 %v1456, %v1456
        %v2863 = vmul.f32 %v1458, %v1458
        %v2864 = vmul.f32 %v1587, %v1587
        %v2865 = vmul.f32 %v1589, %v1589
        %v2866 = vmul.f32 %v1718, %v1718
        %v2867 = vmul.f32 %v1720, %v1720
        %v2868 = vmul.f32 %v1849, %v1849
        %v2869 = vmul.f32 %v1851, %v1851
        %v2870 = vmul.f32 %v1980, %v1980
        %v2871 = vmul.f32 %v1982, %v1982
        %v2872 = vmul.f32 %v2111, %v2111
        %v2873 = vmul.f32 %v2113, %v2113
        %v2874 = vmul.f32 %v2242, %v2242
        %v2875 = vmul.f32 %v2244, %v2244
        %v2876 = vmul.f32 %v1331, %v1331
        %v2877 = vmul.f32 %v1333, %v1333
        %v2878 = vmul.f32 %v1462, %v1462
        %v2879 = vmul.f32 %v1464, %v1464
        %v2880 = vmul.f32 %v1593, %v1593
        %v2881 = vmul.f32 %v1595, %v1595
        %v2882 = vmul.f32 %v1724, %v1724
        %v2883 = vmul.f32 %v1726, %v1726
        %v2884 = vmul.f32 %v1855, %v1855
        %v2885 = vmul.f32 %v1857, %v1857
        %v2886 = vmul.f32 %v1986, %v1986
        %v2887 = vmul.f32 %v1988, %v1988
        %v2888 = vmul.f32 %v2117, %v2117
        %v2889 = vmul.f32 %v2119, %v2119
        %v2890 = vmul.f32 %v2248, %v2248
        %v2891 = vmul.f32 %v2250, %v2250
        %v2892 = vmul.f32 %v1335, %v1335
        %v2893 = vmul.f32 %v1337, %v1337
        %v2894 = vmul.f32 %v1466, %v1466
        %v2895 = vmul.f32 %v1468, %v1468
        %v2896 = vmul.f32 %v1597, %v1597
        %v2897 = vmul.f32 %v1599, %v1599
        %v2898 = vmul.f32 %v1728, %v1728
        %v2899 = vmul.f32 %v1730, %v1730
        %v2900 = vmul.f32 %v1859, %v1859
        %v2901 = vmul.f32 %v1861, %v1861
        %v2902 = vmul.f32 %v1990, %v1990
        %v2903 = vmul.f32 %v1992, %v1992
        %v2904 = vmul.f32 %v2121, %v2121
        %v2905 = vmul.f32 %v2123, %v2123
        %v2906 = vmul.f32 %v2252, %v2252
        %v2907 = vmul.f32 %v2254, %v2254
        %v2908 = vmul.f32 %v1341, %v1341
        %v2909 = vmul.f32 %v1343, %v1343
        %v2910 = vmul.f32 %v1472, %v1472
        %v2911 = vmul.f32 %v1474, %v1474
        %v2912 = vmul.f32 %v1603, %v1603
        %v2913 = vmul.f32 %v1605, %v1605
        %v2914 = vmul.f32 %v1734, %v1734
        %v2915 = vmul.f32 %v1736, %v1736
        %v2916 = vmul.f32 %v1865, %v1865
        %v2917 = vmul.f32 %v1867, %v1867
        %v2918 = vmul.f32 %v1996, %v1996
        %v2919 = vmul.f32 %v1998, %v1998
        %v2920 = vmul.f32 %v2127, %v2127
        %v2921 = vmul.f32 %v2129, %v2129
        %v2922 = vmul.f32 %v2258, %v2258
        %v2923 = vmul.f32 %v2260, %v2260
        %v2924 = vmul.f32 %v1345, %v1345
        %v2925 = vmul.f32 %v1347, %v1347
        %v2926 = vmul.f32 %v1476, %v1476
        %v2927 = vmul.f32 %v1478, %v1478
        %v2928 = vmul.f32 %v1607, %v1607
        %v2929 = vmul.f32 %v1609, %v1609
        %v2930 = vmul.f32 %v1738, %v1738
        %v2931 = vmul.f32 %v1740, %v1740
        %v2932 = vmul.f32 %v1869, %v1869
        %v2933 = vmul.f32 %v1871, %v1871
        %v2934 = vmul.f32 %v2000, %v2000
        %v2935 = vmul.f32 %v2002, %v2002
        %v2936 = vmul.f32 %v2131, %v2131
        %v2937 = vmul.f32 %v2133, %v2133
        %v2938 = vmul.f32 %v2262, %v2262
        %v2939 = vmul.f32 %v2264, %v2264
        %v2940 = vmul.f32 %v1351, %v1351
        %v2941 = vmul.f32 %v1353, %v1353
        %v2942 = vmul.f32 %v1482, %v1482
        %v2943 = vmul.f32 %v1484, %v1484
        %v2944 = vmul.f32 %v1613, %v1613
        %v2945 = vmul.f32 %v1615, %v1615
        %v2946 = vmul.f32 %v1744, %v1744
        %v2947 = vmul.f32 %v1746, %v1746
        %v2948 = vmul.f32 %v1875, %v1875
        %v2949 = vmul.f32 %v1877, %v1877
        %v2950 = vmul.f32 %v2006, %v2006
        %v2951 = vmul.f32 %v2008, %v2008
        %v2952 = vmul.f32 %v2137, %v2137
        %v2953 = vmul.f32 %v2139, %v2139
        %v2954 = vmul.f32 %v2268, %v2268
        %v2955 = vmul.f32 %v2270, %v2270
        %v2956 = vmul.f32 %v1355, %v1355
        %v2957 = vmul.f32 %v1357, %v1357
        %v2958 = vmul.f32 %v1486, %v1486
        %v2959 = vmul.f32 %v1488, %v1488
        %v2960 = vmul.f32 %v1617, %v1617
        %v2961 = vmul.f32 %v1619, %v1619
        %v2962 = vmul.f32 %v1748, %v1748
        %v2963 = vmul.f32 %v1750, %v1750
        %v2964 = vmul.f32 %v1879, %v1879
        %v2965 = vmul.f32 %v1881, %v1881
        %v2966 = vmul.f32 %v2010, %v2010
        %v2967 = vmul.f32 %v2012, %v2012
        %v2968 = vmul.f32 %v2141, %v2141
        %v2969 = vmul.f32 %v2143, %v2143
        %v2970 = vmul.f32 %v2272, %v2272
        %v2971 = vmul.f32 %v2274, %v2274
        %v2972 = vmul.f32 %v1361, %v1361
        %v2973 = vmul.f32 %v1363, %v1363
        %v2974 = vmul.f32 %v1492, %v1492
        %v2975 = vmul.f32 %v1494, %v1494
        %v2976 = vmul.f32 %v1623, %v1623
        %v2977 = vmul.f32 %v1625, %v1625
        %v2978 = vmul.f32 %v1754, %v1754
        %v2979 = vmul.f32 %v1756, %v1756
        %v2980 = vmul.f32 %v1885, %v1885
        %v2981 = vmul.f32 %v1887, %v1887
        %v2982 = vmul.f32 %v2016, %v2016
        %v2983 = vmul.f32 %v2018, %v2018
        %v2984 = vmul.f32 %v2147, %v2147
        %v2985 = vmul.f32 %v2149, %v2149
        %v2986 = vmul.f32 %v2278, %v2278
        %v2987 = vmul.f32 %v2280, %v2280
        %v2988 = vadd.f32 %v2684, %v2685
        %v2989 = vadd.f32 %v2988, %v2686
        %v2990 = vadd.f32 %v2989, %v2687
        %v2991 = vadd.f32 %v2990, %v2688
        %v2992 = vadd.f32 %v2991, %v2689
        %v2993 = vadd.f32 %v2992, %v2690
        %v2994 = vadd.f32 %v2993, %v2691
        %v2995 = vadd.f32 %v2994, %v2692
        %v2996 = vadd.f32 %v2995, %v2693
        %v2997 = vadd.f32 %v2996, %v2694
        %v2998 = vadd.f32 %v2997, %v2695
        %v2999 = vadd.f32 %v2998, %v2696
        %v3000 = vadd.f32 %v2999, %v2697
        %v3001 = vadd.f32 %v3000, %v2698
        %v3002 = vadd.f32 %v3001, %v2699
        %3003 = vadd.xlane.f32.xlu0 %v3002
        %v3004 = vpop.xlane.xlu0 %3003
        %v3005 = vadd.f32 %v2700, %v2701
        %v3006 = vadd.f32 %v3005, %v2702
        %v3007 = vadd.f32 %v3006, %v2703
        %v3008 = vadd.f32 %v3007, %v2704
        %v3009 = vadd.f32 %v3008, %v2705
        %v3010 = vadd.f32 %v3009, %v2706
        %v3011 = vadd.f32 %v3010, %v2707
        %v3012 = vadd.f32 %v3011, %v2708
        %v3013 = vadd.f32 %v3012, %v2709
        %v3014 = vadd.f32 %v3013, %v2710
        %v3015 = vadd.f32 %v3014, %v2711
        %v3016 = vadd.f32 %v3015, %v2712
        %v3017 = vadd.f32 %v3016, %v2713
        %v3018 = vadd.f32 %v3017, %v2714
        %v3019 = vadd.f32 %v3018, %v2715
        %3020 = vadd.xlane.f32.xlu0 %v3019
        %v3021 = vpop.xlane.xlu0 %3020
        %v3022 = vadd.f32 %v2716, %v2717
        %v3023 = vadd.f32 %v3022, %v2718
        %v3024 = vadd.f32 %v3023, %v2719
        %v3025 = vadd.f32 %v3024, %v2720
        %v3026 = vadd.f32 %v3025, %v2721
        %v3027 = vadd.f32 %v3026, %v2722
        %v3028 = vadd.f32 %v3027, %v2723
        %v3029 = vadd.f32 %v3028, %v2724
        %v3030 = vadd.f32 %v3029, %v2725
        %v3031 = vadd.f32 %v3030, %v2726
        %v3032 = vadd.f32 %v3031, %v2727
        %v3033 = vadd.f32 %v3032, %v2728
        %v3034 = vadd.f32 %v3033, %v2729
        %v3035 = vadd.f32 %v3034, %v2730
        %v3036 = vadd.f32 %v3035, %v2731
        %3037 = vadd.xlane.f32.xlu0 %v3036
        %v3038 = vpop.xlane.xlu0 %3037
        %v3039 = vadd.f32 %v2732, %v2733
        %v3040 = vadd.f32 %v3039, %v2734
        %v3041 = vadd.f32 %v3040, %v2735
        %v3042 = vadd.f32 %v3041, %v2736
        %v3043 = vadd.f32 %v3042, %v2737
        %v3044 = vadd.f32 %v3043, %v2738
        %v3045 = vadd.f32 %v3044, %v2739
        %v3046 = vadd.f32 %v3045, %v2740
        %v3047 = vadd.f32 %v3046, %v2741
        %v3048 = vadd.f32 %v3047, %v2742
        %v3049 = vadd.f32 %v3048, %v2743
        %v3050 = vadd.f32 %v3049, %v2744
        %v3051 = vadd.f32 %v3050, %v2745
        %v3052 = vadd.f32 %v3051, %v2746
        %v3053 = vadd.f32 %v3052, %v2747
        %3054 = vadd.xlane.f32.xlu0 %v3053
        %v3055 = vpop.xlane.xlu0 %3054
        %v3056 = vadd.f32 %v2748, %v2749
        %v3057 = vadd.f32 %v3056, %v2750
        %v3058 = vadd.f32 %v3057, %v2751
        %v3059 = vadd.f32 %v3058, %v2752
        %v3060 = vadd.f32 %v3059, %v2753
        %v3061 = vadd.f32 %v3060, %v2754
        %v3062 = vadd.f32 %v3061, %v2755
        %v3063 = vadd.f32 %v3062, %v2756
        %v3064 = vadd.f32 %v3063, %v2757
        %v3065 = vadd.f32 %v3064, %v2758
        %v3066 = vadd.f32 %v3065, %v2759
        %v3067 = vadd.f32 %v3066, %v2760
        %v3068 = vadd.f32 %v3067, %v2761
        %v3069 = vadd.f32 %v3068, %v2762
        %v3070 = vadd.f32 %v3069, %v2763
        %3071 = vadd.xlane.f32.xlu0 %v3070
        %v3072 = vpop.xlane.xlu0 %3071
        %v3073 = vadd.f32 %v2764, %v2765
        %v3074 = vadd.f32 %v3073, %v2766
        %v3075 = vadd.f32 %v3074, %v2767
        %v3076 = vadd.f32 %v3075, %v2768
        %v3077 = vadd.f32 %v3076, %v2769
        %v3078 = vadd.f32 %v3077, %v2770
        %v3079 = vadd.f32 %v3078, %v2771
        %v3080 = vadd.f32 %v3079, %v2772
        %v3081 = vadd.f32 %v3080, %v2773
        %v3082 = vadd.f32 %v3081, %v2774
        %v3083 = vadd.f32 %v3082, %v2775
        %v3084 = vadd.f32 %v3083, %v2776
        %v3085 = vadd.f32 %v3084, %v2777
        %v3086 = vadd.f32 %v3085, %v2778
        %v3087 = vadd.f32 %v3086, %v2779
        %3088 = vadd.xlane.f32.xlu0 %v3087
        %v3089 = vpop.xlane.xlu0 %3088
        %v3090 = vadd.f32 %v2780, %v2781
        %v3091 = vadd.f32 %v3090, %v2782
        %v3092 = vadd.f32 %v3091, %v2783
        %v3093 = vadd.f32 %v3092, %v2784
        %v3094 = vadd.f32 %v3093, %v2785
        %v3095 = vadd.f32 %v3094, %v2786
        %v3096 = vadd.f32 %v3095, %v2787
        %v3097 = vadd.f32 %v3096, %v2788
        %v3098 = vadd.f32 %v3097, %v2789
        %v3099 = vadd.f32 %v3098, %v2790
        %v3100 = vadd.f32 %v3099, %v2791
        %v3101 = vadd.f32 %v3100, %v2792
        %v3102 = vadd.f32 %v3101, %v2793
        %v3103 = vadd.f32 %v3102, %v2794
        %v3104 = vadd.f32 %v3103, %v2795
        %3105 = vadd.xlane.f32.xlu0 %v3104
        %v3106 = vpop.xlane.xlu0 %3105
        %v3107 = vadd.f32 %v2796, %v2797
        %v3108 = vadd.f32 %v3107, %v2798
        %v3109 = vadd.f32 %v3108, %v2799
        %v3110 = vadd.f32 %v3109, %v2800
        %v3111 = vadd.f32 %v3110, %v2801
        %v3112 = vadd.f32 %v3111, %v2802
        %v3113 = vadd.f32 %v3112, %v2803
        %v3114 = vadd.f32 %v3113, %v2804
        %v3115 = vadd.f32 %v3114, %v2805
        %v3116 = vadd.f32 %v3115, %v2806
        %v3117 = vadd.f32 %v3116, %v2807
        %v3118 = vadd.f32 %v3117, %v2808
        %v3119 = vadd.f32 %v3118, %v2809
        %v3120 = vadd.f32 %v3119, %v2810
        %v3121 = vadd.f32 %v3120, %v2811
        %3122 = vadd.xlane.f32.xlu0 %v3121
        %v3123 = vpop.xlane.xlu0 %3122
        %v3124 = vadd.f32 %v2812, %v2813
        %v3125 = vadd.f32 %v3124, %v2814
        %v3126 = vadd.f32 %v3125, %v2815
        %v3127 = vadd.f32 %v3126, %v2816
        %v3128 = vadd.f32 %v3127, %v2817
        %v3129 = vadd.f32 %v3128, %v2818
        %v3130 = vadd.f32 %v3129, %v2819
        %v3131 = vadd.f32 %v3130, %v2820
        %v3132 = vadd.f32 %v3131, %v2821
        %v3133 = vadd.f32 %v3132, %v2822
        %v3134 = vadd.f32 %v3133, %v2823
        %v3135 = vadd.f32 %v3134, %v2824
        %v3136 = vadd.f32 %v3135, %v2825
        %v3137 = vadd.f32 %v3136, %v2826
        %v3138 = vadd.f32 %v3137, %v2827
        %3139 = vadd.xlane.f32.xlu0 %v3138
        %v3140 = vpop.xlane.xlu0 %3139
        %v3141 = vadd.f32 %v2828, %v2829
        %v3142 = vadd.f32 %v3141, %v2830
        %v3143 = vadd.f32 %v3142, %v2831
        %v3144 = vadd.f32 %v3143, %v2832
        %v3145 = vadd.f32 %v3144, %v2833
        %v3146 = vadd.f32 %v3145, %v2834
        %v3147 = vadd.f32 %v3146, %v2835
        %v3148 = vadd.f32 %v3147, %v2836
        %v3149 = vadd.f32 %v3148, %v2837
        %v3150 = vadd.f32 %v3149, %v2838
        %v3151 = vadd.f32 %v3150, %v2839
        %v3152 = vadd.f32 %v3151, %v2840
        %v3153 = vadd.f32 %v3152, %v2841
        %v3154 = vadd.f32 %v3153, %v2842
        %v3155 = vadd.f32 %v3154, %v2843
        %3156 = vadd.xlane.f32.xlu0 %v3155
        %v3157 = vpop.xlane.xlu0 %3156
        %v3158 = vadd.f32 %v2844, %v2845
        %v3159 = vadd.f32 %v3158, %v2846
        %v3160 = vadd.f32 %v3159, %v2847
        %v3161 = vadd.f32 %v3160, %v2848
        %v3162 = vadd.f32 %v3161, %v2849
        %v3163 = vadd.f32 %v3162, %v2850
        %v3164 = vadd.f32 %v3163, %v2851
        %v3165 = vadd.f32 %v3164, %v2852
        %v3166 = vadd.f32 %v3165, %v2853
        %v3167 = vadd.f32 %v3166, %v2854
        %v3168 = vadd.f32 %v3167, %v2855
        %v3169 = vadd.f32 %v3168, %v2856
        %v3170 = vadd.f32 %v3169, %v2857
        %v3171 = vadd.f32 %v3170, %v2858
        %v3172 = vadd.f32 %v3171, %v2859
        %3173 = vadd.xlane.f32.xlu0 %v3172
        %v3174 = vpop.xlane.xlu0 %3173
        %v3175 = vadd.f32 %v2860, %v2861
        %v3176 = vadd.f32 %v3175, %v2862
        %v3177 = vadd.f32 %v3176, %v2863
        %v3178 = vadd.f32 %v3177, %v2864
        %v3179 = vadd.f32 %v3178, %v2865
        %v3180 = vadd.f32 %v3179, %v2866
        %v3181 = vadd.f32 %v3180, %v2867
        %v3182 = vadd.f32 %v3181, %v2868
        %v3183 = vadd.f32 %v3182, %v2869
        %v3184 = vadd.f32 %v3183, %v2870
        %v3185 = vadd.f32 %v3184, %v2871
        %v3186 = vadd.f32 %v3185, %v2872
        %v3187 = vadd.f32 %v3186, %v2873
        %v3188 = vadd.f32 %v3187, %v2874
        %v3189 = vadd.f32 %v3188, %v2875
        %3190 = vadd.xlane.f32.xlu0 %v3189
        %v3191 = vpop.xlane.xlu0 %3190
        %v3192 = vadd.f32 %v2876, %v2877
        %v3193 = vadd.f32 %v3192, %v2878
        %v3194 = vadd.f32 %v3193, %v2879
        %v3195 = vadd.f32 %v3194, %v2880
        %v3196 = vadd.f32 %v3195, %v2881
        %v3197 = vadd.f32 %v3196, %v2882
        %v3198 = vadd.f32 %v3197, %v2883
        %v3199 = vadd.f32 %v3198, %v2884
        %v3200 = vadd.f32 %v3199, %v2885
        %v3201 = vadd.f32 %v3200, %v2886
        %v3202 = vadd.f32 %v3201, %v2887
        %v3203 = vadd.f32 %v3202, %v2888
        %v3204 = vadd.f32 %v3203, %v2889
        %v3205 = vadd.f32 %v3204, %v2890
        %v3206 = vadd.f32 %v3205, %v2891
        %3207 = vadd.xlane.f32.xlu0 %v3206
        %v3208 = vpop.xlane.xlu0 %3207
        %v3209 = vadd.f32 %v2892, %v2893
        %v3210 = vadd.f32 %v3209, %v2894
        %v3211 = vadd.f32 %v3210, %v2895
        %v3212 = vadd.f32 %v3211, %v2896
        %v3213 = vadd.f32 %v3212, %v2897
        %v3214 = vadd.f32 %v3213, %v2898
        %v3215 = vadd.f32 %v3214, %v2899
        %v3216 = vadd.f32 %v3215, %v2900
        %v3217 = vadd.f32 %v3216, %v2901
        %v3218 = vadd.f32 %v3217, %v2902
        %v3219 = vadd.f32 %v3218, %v2903
        %v3220 = vadd.f32 %v3219, %v2904
        %v3221 = vadd.f32 %v3220, %v2905
        %v3222 = vadd.f32 %v3221, %v2906
        %v3223 = vadd.f32 %v3222, %v2907
        %3224 = vadd.xlane.f32.xlu0 %v3223
        %v3225 = vpop.xlane.xlu0 %3224
        %v3226 = vadd.f32 %v2908, %v2909
        %v3227 = vadd.f32 %v3226, %v2910
        %v3228 = vadd.f32 %v3227, %v2911
        %v3229 = vadd.f32 %v3228, %v2912
        %v3230 = vadd.f32 %v3229, %v2913
        %v3231 = vadd.f32 %v3230, %v2914
        %v3232 = vadd.f32 %v3231, %v2915
        %v3233 = vadd.f32 %v3232, %v2916
        %v3234 = vadd.f32 %v3233, %v2917
        %v3235 = vadd.f32 %v3234, %v2918
        %v3236 = vadd.f32 %v3235, %v2919
        %v3237 = vadd.f32 %v3236, %v2920
        %v3238 = vadd.f32 %v3237, %v2921
        %v3239 = vadd.f32 %v3238, %v2922
        %v3240 = vadd.f32 %v3239, %v2923
        %3241 = vadd.xlane.f32.xlu0 %v3240
        %v3242 = vpop.xlane.xlu0 %3241
        %v3243 = vadd.f32 %v2924, %v2925
        %v3244 = vadd.f32 %v3243, %v2926
        %v3245 = vadd.f32 %v3244, %v2927
        %v3246 = vadd.f32 %v3245, %v2928
        %v3247 = vadd.f32 %v3246, %v2929
        %v3248 = vadd.f32 %v3247, %v2930
        %v3249 = vadd.f32 %v3248, %v2931
        %v3250 = vadd.f32 %v3249, %v2932
        %v3251 = vadd.f32 %v3250, %v2933
        %v3252 = vadd.f32 %v3251, %v2934
        %v3253 = vadd.f32 %v3252, %v2935
        %v3254 = vadd.f32 %v3253, %v2936
        %v3255 = vadd.f32 %v3254, %v2937
        %v3256 = vadd.f32 %v3255, %v2938
        %v3257 = vadd.f32 %v3256, %v2939
        %3258 = vadd.xlane.f32.xlu0 %v3257
        %v3259 = vpop.xlane.xlu0 %3258
        %v3260 = vadd.f32 %v2940, %v2941
        %v3261 = vadd.f32 %v3260, %v2942
        %v3262 = vadd.f32 %v3261, %v2943
        %v3263 = vadd.f32 %v3262, %v2944
        %v3264 = vadd.f32 %v3263, %v2945
        %v3265 = vadd.f32 %v3264, %v2946
        %v3266 = vadd.f32 %v3265, %v2947
        %v3267 = vadd.f32 %v3266, %v2948
        %v3268 = vadd.f32 %v3267, %v2949
        %v3269 = vadd.f32 %v3268, %v2950
        %v3270 = vadd.f32 %v3269, %v2951
        %v3271 = vadd.f32 %v3270, %v2952
        %v3272 = vadd.f32 %v3271, %v2953
        %v3273 = vadd.f32 %v3272, %v2954
        %v3274 = vadd.f32 %v3273, %v2955
        %3275 = vadd.xlane.f32.xlu0 %v3274
        %v3276 = vpop.xlane.xlu0 %3275
        %v3277 = vadd.f32 %v2956, %v2957
        %v3278 = vadd.f32 %v3277, %v2958
        %v3279 = vadd.f32 %v3278, %v2959
        %v3280 = vadd.f32 %v3279, %v2960
        %v3281 = vadd.f32 %v3280, %v2961
        %v3282 = vadd.f32 %v3281, %v2962
        %v3283 = vadd.f32 %v3282, %v2963
        %v3284 = vadd.f32 %v3283, %v2964
        %v3285 = vadd.f32 %v3284, %v2965
        %v3286 = vadd.f32 %v3285, %v2966
        %v3287 = vadd.f32 %v3286, %v2967
        %v3288 = vadd.f32 %v3287, %v2968
        %v3289 = vadd.f32 %v3288, %v2969
        %v3290 = vadd.f32 %v3289, %v2970
        %v3291 = vadd.f32 %v3290, %v2971
        %3292 = vadd.xlane.f32.xlu0 %v3291
        %v3293 = vpop.xlane.xlu0 %3292
        %v3294 = vadd.f32 %v2972, %v2973
        %v3295 = vadd.f32 %v3294, %v2974
        %v3296 = vadd.f32 %v3295, %v2975
        %v3297 = vadd.f32 %v3296, %v2976
        %v3298 = vadd.f32 %v3297, %v2977
        %v3299 = vadd.f32 %v3298, %v2978
        %v3300 = vadd.f32 %v3299, %v2979
        %v3301 = vadd.f32 %v3300, %v2980
        %v3302 = vadd.f32 %v3301, %v2981
        %v3303 = vadd.f32 %v3302, %v2982
        %v3304 = vadd.f32 %v3303, %v2983
        %v3305 = vadd.f32 %v3304, %v2984
        %v3306 = vadd.f32 %v3305, %v2985
        %v3307 = vadd.f32 %v3306, %v2986
        %v3308 = vadd.f32 %v3307, %v2987
        %3309 = vadd.xlane.f32.xlu0 %v3308
        %v3310 = vpop.xlane.xlu0 %3309
        %v3311 = vadd.f32 %v2665, %v3004
        %v3312 = vadd.f32 %v2666, %v3021
        %v3313 = vadd.f32 %v2667, %v3038
        %v3314 = vadd.f32 %v2668, %v3055
        %v3315 = vadd.f32 %v2669, %v3072
        %v3316 = vadd.f32 %v2670, %v3089
        %v3317 = vadd.f32 %v2671, %v3106
        %v3318 = vadd.f32 %v2672, %v3123
        %v3319 = vadd.f32 %v2673, %v3140
        %v3320 = vadd.f32 %v2674, %v3157
        %v3321 = vadd.f32 %v2675, %v3174
        %v3322 = vadd.f32 %v2676, %v3191
        %v3323 = vadd.f32 %v2677, %v3208
        %v3324 = vadd.f32 %v2678, %v3225
        %v3325 = vadd.f32 %v2679, %v3242
        %v3326 = vadd.f32 %v2680, %v3259
        %v3327 = vadd.f32 %v2681, %v3276
        %v3328 = vadd.f32 %v2682, %v3293
        %v3329 = vadd.f32 %v2683, %v3310
        %3330 = vst.msk [vmem:[%s730] sm:$0xff] %vm2645, %v3311
        %3331 = vst.msk [vmem:[%s730 + $0x8] sm:$0xff] %vm2645, %v3312
        %3332 = vst.msk [vmem:[%s730 + $0x10] sm:$0xff] %vm2645, %v3313
        %3333 = vst.msk [vmem:[%s730 + $0x18] sm:$0xff] %vm2645, %v3314
        %3334 = vst.msk [vmem:[%s730 + $0x20] sm:$0xff] %vm2645, %v3315
        %3335 = vst.msk [vmem:[%s730 + $0x28] sm:$0xff] %vm2645, %v3316
        %3336 = vst.msk [vmem:[%s730 + $0x30] sm:$0xff] %vm2645, %v3317
        %3337 = vst.msk [vmem:[%s730 + $0x38] sm:$0xff] %vm2645, %v3318
        %3338 = vst.msk [vmem:[%s730 + $0x40] sm:$0xff] %vm2645, %v3319
        %3339 = vst.msk [vmem:[%s730 + $0x48] sm:$0xff] %vm2645, %v3320
        %3340 = vst.msk [vmem:[%s730 + $0x50] sm:$0xff] %vm2645, %v3321
        %3341 = vst.msk [vmem:[%s730 + $0x58] sm:$0xff] %vm2645, %v3322
        %3342 = vst.msk [vmem:[%s730 + $0x60] sm:$0xff] %vm2645, %v3323
        %3343 = vst.msk [vmem:[%s730 + $0x68] sm:$0xff] %vm2645, %v3324
        %3344 = vst.msk [vmem:[%s730 + $0x70] sm:$0xff] %vm2645, %v3325
        %3345 = vst.msk [vmem:[%s730 + $0x78] sm:$0xff] %vm2645, %v3326
        %3346 = vst.msk [vmem:[%s730 + $0x80] sm:$0xff] %vm2645, %v3327
        %3347 = vst.msk [vmem:[%s730 + $0x88] sm:$0xff] %vm2645, %v3328
        %3348 = vst.msk [vmem:[%s730 + $0x90] sm:$0xff] %vm2645, %v3329
        %p3349 = scmp.lt.s32.totalorder %s19, 1
        %s3350 = scalar_select %p3349, %s19, 1
        %s3351 = smul.addr %s3350, 19
        %s3352 = smul.addr %s3351, 8
        %s3353 = scalar_lea.vmem %s2, %s3352
        %p3354 = scmp.lt.s32.totalorder %s19, 1
        %s3355 = scalar_select %p3354, %s19, 1
        %s3356 = smul.addr %s3355, 19
        %s3357 = smul.addr %s3356, 8
        %s3358 = scalar_lea.vmem %s3, %s3357
        // Predicated region
        $region56: #{conv_block_final_double_forward.2} parent=46 // pred_check
          %p3359 = pneg %p94
        $region57: #{conv_block_final_double_forward.2} parent=46 // pred_check_branch
          %3361 = sbr.rel (%p3359) target = $region59
        $region58: #{conv_block_final_double_forward.2} parent=46 // pred_region
          _
        $region59: #{conv_block_final_double_forward.2} parent=46 // pred_fallthru
          _
        // Predicated region
        $region60: #{conv_block_final_double_forward.2} parent=46 // pred_check
          %p3362 = pneg %p120
        $region61: #{conv_block_final_double_forward.2} parent=46 // pred_check_branch
          %3364 = sbr.rel (%p3362) target = $region63
        $region62: #{conv_block_final_double_forward.2} parent=46 // pred_region
          _
        $region63: #{conv_block_final_double_forward.2} parent=46 // pred_fallthru
          _
      $region47: #{conv_block_final_double_forward.2} parent=5 // pred_fallthru
        _
      %p3365 = scmp.le.s32.totalorder 2, %s10
      // Predicated region
      $region64: #{conv_block_final_double_forward.2} parent=5 // pred_check
        %p3366 = pneg %p3365
      $region65: #{conv_block_final_double_forward.2} parent=5 // pred_check_branch
        %3368 = sbr.rel (%p3366) target = $region67
      $region66: #{conv_block_final_double_forward.2} parent=5 // pred_region
        %s3369 = ssub.s32 %s10, 2
        // Predicated region
        $region68: #{conv_block_final_double_forward.2} parent=66 // pred_check
          %p3370 = pneg %p100
        $region69: #{conv_block_final_double_forward.2} parent=66 // pred_check_branch
          %3372 = sbr.rel (%p3370) target = $region71
        $region70: #{conv_block_final_double_forward.2} parent=66 // pred_region
          %p3373 = scmp.lt.s32.totalorder %s21, 1
          %s3374 = scalar_select %p3373, %s21, 1
          %s3375 = smul.addr %s3374, 19
          %s3376 = smul.addr %s3375, 8
          %s3377 = scalar_lea.vmem %s2, %s3376
        $region71: #{conv_block_final_double_forward.2} parent=66 // pred_fallthru
          _
        // Predicated region
        $region72: #{conv_block_final_double_forward.2} parent=66 // pred_check
          %p3378 = pneg %p126
        $region73: #{conv_block_final_double_forward.2} parent=66 // pred_check_branch
          %3380 = sbr.rel (%p3378) target = $region75
        $region74: #{conv_block_final_double_forward.2} parent=66 // pred_region
          %p3381 = scmp.lt.s32.totalorder %s21, 1
          %s3382 = scalar_select %p3381, %s21, 1
          %s3383 = smul.addr %s3382, 19
          %s3384 = smul.addr %s3383, 8
          %s3385 = scalar_lea.vmem %s3, %s3384
        $region75: #{conv_block_final_double_forward.2} parent=66 // pred_fallthru
          _
      $region67: #{conv_block_final_double_forward.2} parent=5 // pred_fallthru
        _
    $region6: #{conv_block_final_double_forward.2} parent=1 // loop_footer
      %s14 = sadd.s32 1, %s10
    $region7: #{conv_block_final_double_forward.2} parent=1 // loop_footer_branch
      %9 = sbr.rel target = $region3
    $region8: #{conv_block_final_double_forward.2} parent=1 // loop_exit
      _

</llo_original>
